<compile_context>
chip_gen: v7x
topology: tpu7x:2x2x1
jax: 0.10.0
libtpu: 0.0.40
codegen_flags: <defaults>
</compile_context>

<pallas_src>
import functools

import jax
import jax.numpy as jnp
from jax import lax
from jax.experimental import pallas as pl
from jax.experimental.pallas import tpu as pltpu

# ---------------- problem sizes (from the module) ----------------
H, W = 9, 9                     # obs['map'] spatial size, NCHW (B, 1, 9, 9)
HO, WO = H - 1, W - 1           # 2x2 VALID conv output: 8 x 8
SPATIAL = HO * WO               # 64
C_OUT = 3                       # conv output channels
INV = 16                        # state_space['inventory'].n
INV_IN = INV + 1                # inventory + selected_item
INV_PAD = 32                    # padded K for the inventory linear
N_ACT = 8                       # action_space.n
F_MAP = C_OUT * SPATIAL         # 192 flattened conv features
BN_EPS = 1e-5
LANES = 128                     # all post-conv activations use 128 lanes

# ---------------- packed weight-slab row offsets (all multiples of 16) ----------------
R_WINV = 0                          # (32, 128)  Linear(17->32); extra rows/cols zero
R_W1C = R_WINV + INV_PAD            # 3 x (64, 128)  map part of Linear(224->64), per channel
R_W1INV = R_W1C + C_OUT * SPATIAL   # (128, 128) inventory part of Linear(224->64)
R_W2 = R_W1INV + LANES              # (128, 128) Linear(64->32)
R_W3 = R_W2 + LANES                 # (128, 128) Linear(32->n_actions)
R_TOTAL = R_W3 + LANES              # 608 rows total


def basicnet_kernel(cw_ref, xs_ref, inv_ref, w_ref, b_ref, out_ref):
    """One batch tile of TILE_B observations.

    cw_ref : SMEM (3, 8) f32        per channel [w00, w01, w10, w11, gamma, beta, 0, 0]
    xs_ref : VMEM (4, TILE_B, 64)   bf16, the 4 shifted taps of the 2x2 conv
    inv_ref: VMEM (TILE_B, 32)      matmul dtype, zero-padded [inventory | selected_item]
    w_ref  : VMEM (608, 128)        matmul dtype, packed lane-dense weight slab (resident)
    b_ref  : VMEM (8, 128) f32      bias rows [b1, b2, b3, b_inv, 0...]     (resident)
    out_ref: VMEM (TILE_B, 128) bf16  logits in lanes 0:N_ACT, zeros elsewhere
    """
    mm = w_ref.dtype
    # Upcast the 4 bf16 taps to f32 ONCE (all conv/BN elementwise math stays f32;
    # v5e has no bf16 VPU, and this avoids 3x repeated converts inside the loop).
    x00 = xs_ref[0].astype(jnp.float32)
    x01 = xs_ref[1].astype(jnp.float32)
    x10 = xs_ref[2].astype(jnp.float32)
    x11 = xs_ref[3].astype(jnp.float32)

    # Inventory branch: Linear(17 -> 32).  K padded to 32, N padded to 128 with zeros,
    # so the padded lanes of inv_feat stay exactly zero.
    inv_feat = jnp.dot(inv_ref[...], w_ref[R_WINV:R_WINV + INV_PAD, :],
                       preferred_element_type=jnp.float32) + b_ref[3:4, :]

    # h1 = concat(map_flat, inv_feat) @ W1 + b1, started with the inventory half + bias.
    h1 = jnp.dot(inv_feat.astype(mm), w_ref[R_W1INV:R_W1INV + LANES, :],
                 preferred_element_type=jnp.float32) + b_ref[0:1, :]

    # Conv(1->3, 2x2) + training-mode BatchNorm2d + ReLU, one channel at a time.
    #  - conv bias omitted: it is cancelled exactly by the BN mean subtraction.
    #  - BN stats are per observation (rows) over the 64 spatial lanes, from one
    #    sum / sum-of-squares pair (independent lane reductions), then a single
    #    fused scale/shift FMA + ReLU.
    #  - No flatten: each channel's (TILE_B, 64) activation is contracted directly
    #    with its 64-row slice of W1 (MXU, f32 accumulate).
    for c in range(C_OUT):
        w00 = cw_ref[c, 0]
        w01 = cw_ref[c, 1]
        w10 = cw_ref[c, 2]
        w11 = cw_ref[c, 3]
        gamma = cw_ref[c, 4]
        beta = cw_ref[c, 5]

        oc = w00 * x00 + w01 * x01 + w10 * x10 + w11 * x11          # (TILE_B, 64) f32
        s1 = jnp.sum(oc, axis=1, keepdims=True)
        s2 = jnp.sum(oc * oc, axis=1, keepdims=True)
        mu = s1 * (1.0 / SPATIAL)
        var = s2 * (1.0 / SPATIAL) - mu * mu                        # biased (training mode)
        scale = gamma * lax.rsqrt(var + BN_EPS)                     # gamma / sqrt(var+eps)
        shift = beta - mu * scale                                   # beta - mu*scale
        a = jnp.maximum(oc * scale + shift, 0.0)                    # fused BN + ReLU
        r = R_W1C + c * SPATIAL
        h1 = h1 + jnp.dot(a.astype(mm), w_ref[r:r + SPATIAL, :],
                          preferred_element_type=jnp.float32)

    h1 = jnp.maximum(h1, 0.0)                                       # (TILE_B, 128)
    h2 = jnp.maximum(
        jnp.dot(h1.astype(mm), w_ref[R_W2:R_W2 + LANES, :],
                preferred_element_type=jnp.float32) + b_ref[1:2, :], 0.0)
    logits = jnp.dot(h2.astype(mm), w_ref[R_W3:R_W3 + LANES, :],
                     preferred_element_type=jnp.float32) + b_ref[2:3, :]
    out_ref[...] = logits.astype(out_ref.dtype)                     # bf16 lane-dense store


def pack_params(params, matmul_dtype=jnp.bfloat16):
    """One-time packing of all parameters into 3 lane-dense buffers.

    Call this once at model-load time and reuse the result across forward calls so the
    ~160 KB of packed weights is DMA'd once per pallas_call and stays VMEM-resident
    across the whole batch grid.
    """
    w = jnp.zeros((R_TOTAL, LANES), jnp.float32)
    w = w.at[R_WINV:R_WINV + INV_IN, :32].set(params["w_inv"])
    w1 = params["w1"]                                            # (224, 64), (in, out)
    for c in range(C_OUT):                                       # map part, per conv channel
        w = w.at[R_W1C + c * SPATIAL:R_W1C + (c + 1) * SPATIAL, :64].set(
            w1[c * SPATIAL:(c + 1) * SPATIAL, :])
    w = w.at[R_W1INV:R_W1INV + 32, :64].set(w1[F_MAP:, :])       # inventory part
    w = w.at[R_W2:R_W2 + 64, :32].set(params["w2"])
    w = w.at[R_W3:R_W3 + 32, :N_ACT].set(params["w3"])

    b = jnp.zeros((8, LANES), jnp.float32)
    b = b.at[0, :64].set(params["b1"])
    b = b.at[1, :32].set(params["b2"])
    b = b.at[2, :N_ACT].set(params["b3"])
    b = b.at[3, :32].set(params["b_inv"])

    cw = jnp.zeros((C_OUT, 8), jnp.float32)
    cw = cw.at[:, 0:4].set(params["conv_w"].reshape(C_OUT, 4))
    cw = cw.at[:, 4].set(params["gamma"])
    cw = cw.at[:, 5].set(params["beta"])
    # conv bias intentionally not packed: Conv2d bias is exactly cancelled by the
    # training-mode BatchNorm mean subtraction, so it would be dead work in the kernel.

    return dict(cw=cw, w=w.astype(matmul_dtype), b=b)


def _choose_tiles(batch, max_tile_b):
    """Pick (tile_b, n_tiles): tiles as large as possible (<= max_tile_b rows), with an
    EVEN tile count >= 2 so both of v7x's TensorCores get work, tile_b a multiple of 8."""
    n_tiles = max(2, pl.cdiv(batch, max_tile_b))
    n_tiles += n_tiles % 2
    tile_b = max(8, pl.cdiv(pl.cdiv(batch, n_tiles), 8) * 8)
    return tile_b, n_tiles


def basicnet_forward(packed, map_nchw, inventory, selected_item, *, max_tile_b=1024):
    """Batched BasicNet forward.

    map_nchw: (B, 1, 9, 9), inventory: (B, 16), selected_item: (B, 1).
    Every row is processed exactly like one call of the PyTorch module (batch = 1),
    including per-observation training-mode BatchNorm statistics.
    Returns logits of shape (B, n_actions) in float32.
    """
    B = map_nchw.shape[0]
    mm_dtype = packed["w"].dtype
    tile_b, n_tiles = _choose_tiles(B, max_tile_b)
    bp = tile_b * n_tiles

    # ---- wrapper-side layout plumbing (one small XLA fusion, no compute hoisted) ----
    # Taps are produced directly in bf16: halves the kernel's dominant HBM input stream
    # (the f32 upcast happens once inside the kernel; BN math stays f32).
    x = map_nchw.reshape(B, H, W).astype(jnp.bfloat16)
    taps = jnp.stack(                                             # 4 shifted conv taps
        [x[:, :HO, :WO], x[:, :HO, 1:], x[:, 1:, :WO], x[:, 1:, 1:]],
        axis=0).reshape(4, B, SPATIAL)                            # (4, B, 64) bf16
    inv = jnp.concatenate([inventory.astype(jnp.float32),
                           selected_item.astype(jnp.float32)], axis=1)   # (B, 17)
    inv = jnp.pad(inv, ((0, 0), (0, INV_PAD - INV_IN)))           # (B, 32)

    # pad the batch to tile_b * n_tiles; padded rows are discarded at the end
    if bp != B:
        taps = jnp.pad(taps, ((0, 0), (0, bp - B), (0, 0)))
        inv = jnp.pad(inv, ((0, bp - B), (0, 0)))

    out = pl.pallas_call(
        basicnet_kernel,
        out_shape=jax.ShapeDtypeStruct((bp, LANES), jnp.bfloat16),      # bf16 halves output DMA
        grid=(n_tiles,),
        in_specs=[
            pl.BlockSpec(memory_space=pltpu.MemorySpace.SMEM),          # conv/BN scalars
            pl.BlockSpec((4, tile_b, SPATIAL), lambda i: (0, i, 0)),    # conv taps (bf16)
            pl.BlockSpec((tile_b, INV_PAD), lambda i: (i, 0)),          # inventory rows
            pl.BlockSpec((R_TOTAL, LANES), lambda i: (0, 0)),           # weights (resident)
            pl.BlockSpec((8, LANES), lambda i: (0, 0)),                 # biases  (resident)
        ],
        out_specs=pl.BlockSpec((tile_b, LANES), lambda i: (i, 0)),      # lane-dense output
        compiler_params=pltpu.CompilerParams(
            dimension_semantics=("parallel",)),   # batch tiles shard across v7x's 2 TCs
    )(packed["cw"], taps, inv.astype(mm_dtype), packed["w"], packed["b"])

    return out[:B, :N_ACT].astype(jnp.float32)


def init_params(key):
    """Deterministic PyTorch-style init: uniform(+-1/sqrt(fan_in)); weights stored (in, out)."""
    ks = jax.random.split(key, 10)

    def u(k, shape, fan_in):
        b = 1.0 / (fan_in ** 0.5)
        return jax.random.uniform(k, shape, jnp.float32, -b, b)

    return dict(
        conv_w=u(ks[0], (3, 1, 2, 2), 4),            # Conv2d(1, 3, [2, 2]).weight
        conv_b=u(ks[1], (3,), 4),                    # Conv2d bias (cancelled by BN)
        gamma=jnp.ones((3,), jnp.float32),           # BatchNorm2d weight
        beta=jnp.zeros((3,), jnp.float32),           # BatchNorm2d bias
        w_inv=u(ks[2], (INV_IN, 32), INV_IN),        # Linear(17, 32)
        b_inv=u(ks[3], (32,), INV_IN),
        w1=u(ks[4], (F_MAP + 32, 64), F_MAP + 32),   # LazyLinear(64)
        b1=u(ks[5], (64,), F_MAP + 32),
        w2=u(ks[6], (64, 32), 64),                   # LazyLinear(32)
        b2=u(ks[7], (32,), 64),
        w3=u(ks[8], (32, N_ACT), 32),                # LazyLinear(n_actions)
        b3=u(ks[9], (N_ACT,), 32),
    )


def reference_forward(params, map_nchw, inventory, selected_item,
                      matmul_dtype=jnp.float32):
    """Pure-JAX reference mirroring the PyTorch module, applied per observation (vmap).

    matmul_dtype lets the reference reproduce the kernel's bf16-operand / f32-accumulate
    matmuls for a tight numerical check; f32 gives the exact module semantics.
    """
    def mm(a, w):
        return jnp.dot(a.astype(matmul_dtype), w.astype(matmul_dtype),
                       preferred_element_type=jnp.float32)

    def single(m, inv, sel):
        x = m.astype(jnp.float32)[None]                              # (1, 1, 9, 9)
        y = lax.conv_general_dilated(x, params["conv_w"], (1, 1), "VALID",
                                     dimension_numbers=("NCHW", "OIHW", "NCHW"))
        y = y + params["conv_b"][None, :, None, None]
        mu = y.mean(axis=(0, 2, 3), keepdims=True)
        var = ((y - mu) ** 2).mean(axis=(0, 2, 3), keepdims=True)    # biased, training mode
        y = (y - mu) / jnp.sqrt(var + BN_EPS)
        y = y * params["gamma"][None, :, None, None] + params["beta"][None, :, None, None]
        y = jnp.maximum(y, 0.0)
        map_flat = y.reshape(-1)                                     # (192,), (C, H, W) order
        iv = jnp.concatenate([inv, sel]).astype(jnp.float32)         # (17,)
        inv_feat = mm(iv[None], params["w_inv"])[0] + params["b_inv"]
        z = jnp.concatenate([map_flat, inv_feat])[None]              # (1, 224)
        h1 = jnp.maximum(mm(z, params["w1"])[0] + params["b1"], 0.0)
        h2 = jnp.maximum(mm(h1[None], params["w2"])[0] + params["b2"], 0.0)
        return mm(h2[None], params["w3"])[0] + params["b3"]

    return jax.vmap(single)(map_nchw, inventory, selected_item)


if __name__ == "__main__":
    key = jax.random.PRNGKey(0)
    k_params, k_map, k_inv, k_sel = jax.random.split(key, 4)
    params = init_params(k_params)

    # Batched observations.  B = 1000 -> adaptive tiling picks 2 tiles of 504 rows
    # (even tile count for v7x megacore, 8 padded rows exercised and sliced off).
    B = 1000
    obs_map = jax.random.uniform(k_map, (B, 1, H, W), jnp.float32)        # NCHW
    obs_inventory = jax.random.uniform(k_inv, (B, INV), jnp.float32)
    obs_selected = jax.random.uniform(k_sel, (B, 1), jnp.float32)

    packed = pack_params(params, matmul_dtype=jnp.bfloat16)   # one-time weight packing
    fwd = jax.jit(functools.partial(basicnet_forward, max_tile_b=1024))

    logits = jax.block_until_ready(fwd(packed, obs_map, obs_inventory, obs_selected))
    assert logits.shape == (B, N_ACT)

    # Tight check: reference with the same bf16-rounded map inputs and bf16-operand
    # matmuls (tolerance also covers the bf16 output store).
    ref_mm = reference_forward(params, obs_map.astype(jnp.bfloat16),
                               obs_inventory, obs_selected,
                               matmul_dtype=jnp.bfloat16)
    assert jnp.allclose(logits, ref_mm, rtol=1e-2, atol=1e-2), \
        float(jnp.max(jnp.abs(logits - ref_mm)))

    # Semantic check against the pure-f32 PyTorch-equivalent forward (bf16 drift bound).
    ref_f32 = reference_forward(params, obs_map, obs_inventory, obs_selected)
    assert jnp.allclose(logits, ref_f32, rtol=5e-2, atol=5e-2), \
        float(jnp.max(jnp.abs(logits - ref_f32)))

    print("KERNEL_OK")
</pallas_src>

<mosaic_0001>
module attributes {stable_mosaic.version = 11 : i64} {
  func.func @basicnet_kernel(%arg0: i32, %arg1: memref<3x8xf32, #tpu.memory_space<smem>>, %arg2: memref<4x504x64xbf16, #tpu.memory_space<vmem>>, %arg3: memref<504x32xbf16, #tpu.memory_space<vmem>>, %arg4: memref<608x128xbf16, #tpu.memory_space<vmem>>, %arg5: memref<8x128xf32, #tpu.memory_space<vmem>>, %arg6: memref<504x128xbf16, #tpu.memory_space<vmem>>) attributes {dimension_semantics = [#tpu.dimension_semantics<parallel>], iteration_bounds = array<i64: 2>, scalar_prefetch = 0 : i64, scratch_operands = 0 : i64, tpu.core_type = #tpu.core_type<tc>, window_params = [{transform_indices = @transform_0, window_bounds = array<i64: 3, 8>}, {transform_indices = @transform_1, window_bounds = array<i64: 4, 504, 64>}, {transform_indices = @transform_2, window_bounds = array<i64: 504, 32>}, {pipeline_mode = #tpu.pipeline_mode<synchronous>, transform_indices = @transform_3, window_bounds = array<i64: 608, 128>}, {pipeline_mode = #tpu.pipeline_mode<synchronous>, transform_indices = @transform_4, window_bounds = array<i64: 8, 128>}, {transform_indices = @transform_5, window_bounds = array<i64: 504, 128>}]} {
    %c0 = arith.constant 0 : index
    %c0_0 = arith.constant 0 : index
    %c0_1 = arith.constant 0 : index
    %0 = vector.load %arg2[%c0, %c0_0, %c0_1] : memref<4x504x64xbf16, #tpu.memory_space<vmem>>, vector<1x504x64xbf16>
    %1 = vector.shape_cast %0 : vector<1x504x64xbf16> to vector<504x64xbf16>
    %2 = arith.extf %1 : vector<504x64xbf16> to vector<504x64xf32>
    %c1 = arith.constant 1 : index
    %c0_2 = arith.constant 0 : index
    %c0_3 = arith.constant 0 : index
    %3 = vector.load %arg2[%c1, %c0_2, %c0_3] : memref<4x504x64xbf16, #tpu.memory_space<vmem>>, vector<1x504x64xbf16>
    %4 = vector.shape_cast %3 : vector<1x504x64xbf16> to vector<504x64xbf16>
    %5 = arith.extf %4 : vector<504x64xbf16> to vector<504x64xf32>
    %c2 = arith.constant 2 : index
    %c0_4 = arith.constant 0 : index
    %c0_5 = arith.constant 0 : index
    %6 = vector.load %arg2[%c2, %c0_4, %c0_5] : memref<4x504x64xbf16, #tpu.memory_space<vmem>>, vector<1x504x64xbf16>
    %7 = vector.shape_cast %6 : vector<1x504x64xbf16> to vector<504x64xbf16>
    %8 = arith.extf %7 : vector<504x64xbf16> to vector<504x64xf32>
    %c3 = arith.constant 3 : index
    %c0_6 = arith.constant 0 : index
    %c0_7 = arith.constant 0 : index
    %9 = vector.load %arg2[%c3, %c0_6, %c0_7] : memref<4x504x64xbf16, #tpu.memory_space<vmem>>, vector<1x504x64xbf16>
    %10 = vector.shape_cast %9 : vector<1x504x64xbf16> to vector<504x64xbf16>
    %11 = arith.extf %10 : vector<504x64xbf16> to vector<504x64xf32>
    %c0_8 = arith.constant 0 : index
    %c0_9 = arith.constant 0 : index
    %12 = vector.load %arg3[%c0_8, %c0_9] : memref<504x32xbf16, #tpu.memory_space<vmem>>, vector<504x32xbf16>
    %c0_10 = arith.constant 0 : index
    %c0_11 = arith.constant 0 : index
    %13 = vector.load %arg4[%c0_10, %c0_11] : memref<608x128xbf16, #tpu.memory_space<vmem>>, vector<32x128xbf16>
    %cst = arith.constant dense<0.000000e+00> : vector<504x128xf32>
    %14 = tpu.matmul %12, %13, %cst {dimension_numbers = #tpu.dot_dimension_numbers<[1], [0], [0], [1], [0, 0, 1, 1], [], []>} : vector<504x32xbf16>, vector<32x128xbf16>, vector<504x128xf32> -> vector<504x128xf32>
    %c3_12 = arith.constant 3 : index
    %c0_13 = arith.constant 0 : index
    %15 = vector.load %arg5[%c3_12, %c0_13] : memref<8x128xf32, #tpu.memory_space<vmem>>, vector<1x128xf32>
    %16 = vector.broadcast %15 : vector<1x128xf32> to vector<504x128xf32>
    %17 = arith.addf %14, %16 : vector<504x128xf32>
    %18 = arith.truncf %17 : vector<504x128xf32> to vector<504x128xbf16>
    %c224 = arith.constant 224 : index
    %c0_14 = arith.constant 0 : index
    %19 = vector.load %arg4[%c224, %c0_14] : memref<608x128xbf16, #tpu.memory_space<vmem>>, vector<128x128xbf16>
    %cst_15 = arith.constant dense<0.000000e+00> : vector<504x128xf32>
    %20 = tpu.matmul %18, %19, %cst_15 {dimension_numbers = #tpu.dot_dimension_numbers<[1], [0], [0], [1], [0, 0, 1, 1], [], []>} : vector<504x128xbf16>, vector<128x128xbf16>, vector<504x128xf32> -> vector<504x128xf32>
    %c0_16 = arith.constant 0 : index
    %c0_17 = arith.constant 0 : index
    %21 = vector.load %arg5[%c0_16, %c0_17] : memref<8x128xf32, #tpu.memory_space<vmem>>, vector<1x128xf32>
    %22 = vector.broadcast %21 : vector<1x128xf32> to vector<504x128xf32>
    %23 = arith.addf %20, %22 : vector<504x128xf32>
    %c0_18 = arith.constant 0 : index
    %c0_19 = arith.constant 0 : index
    %24 = memref.load %arg1[%c0_18, %c0_19] : memref<3x8xf32, #tpu.memory_space<smem>>
    %c0_20 = arith.constant 0 : index
    %c1_21 = arith.constant 1 : index
    %25 = memref.load %arg1[%c0_20, %c1_21] : memref<3x8xf32, #tpu.memory_space<smem>>
    %c0_22 = arith.constant 0 : index
    %c2_23 = arith.constant 2 : index
    %26 = memref.load %arg1[%c0_22, %c2_23] : memref<3x8xf32, #tpu.memory_space<smem>>
    %c0_24 = arith.constant 0 : index
    %c3_25 = arith.constant 3 : index
    %27 = memref.load %arg1[%c0_24, %c3_25] : memref<3x8xf32, #tpu.memory_space<smem>>
    %c0_26 = arith.constant 0 : index
    %c4 = arith.constant 4 : index
    %28 = memref.load %arg1[%c0_26, %c4] : memref<3x8xf32, #tpu.memory_space<smem>>
    %c0_27 = arith.constant 0 : index
    %c5 = arith.constant 5 : index
    %29 = memref.load %arg1[%c0_27, %c5] : memref<3x8xf32, #tpu.memory_space<smem>>
    %30 = vector.broadcast %24 : f32 to vector<504x64xf32>
    %31 = arith.mulf %30, %2 : vector<504x64xf32>
    %32 = vector.broadcast %25 : f32 to vector<504x64xf32>
    %33 = arith.mulf %32, %5 : vector<504x64xf32>
    %34 = arith.addf %31, %33 : vector<504x64xf32>
    %35 = vector.broadcast %26 : f32 to vector<504x64xf32>
    %36 = arith.mulf %35, %8 : vector<504x64xf32>
    %37 = arith.addf %34, %36 : vector<504x64xf32>
    %38 = vector.broadcast %27 : f32 to vector<504x64xf32>
    %39 = arith.mulf %38, %11 : vector<504x64xf32>
    %40 = arith.addf %37, %39 : vector<504x64xf32>
    %cst_28 = arith.constant dense<0.000000e+00> : vector<504xf32>
    %41 = vector.multi_reduction <add>, %40, %cst_28 [1] : vector<504x64xf32> to vector<504xf32>
    %42 = vector.shape_cast %41 : vector<504xf32> to vector<504x1xf32>
    %43 = arith.mulf %40, %40 : vector<504x64xf32>
    %cst_29 = arith.constant dense<0.000000e+00> : vector<504xf32>
    %44 = vector.multi_reduction <add>, %43, %cst_29 [1] : vector<504x64xf32> to vector<504xf32>
    %45 = vector.shape_cast %44 : vector<504xf32> to vector<504x1xf32>
    %cst_30 = arith.constant 1.562500e-02 : f32
    %46 = vector.broadcast %cst_30 : f32 to vector<504x1xf32>
    %47 = arith.mulf %42, %46 : vector<504x1xf32>
    %cst_31 = arith.constant 1.562500e-02 : f32
    %48 = vector.broadcast %cst_31 : f32 to vector<504x1xf32>
    %49 = arith.mulf %45, %48 : vector<504x1xf32>
    %50 = arith.mulf %47, %47 : vector<504x1xf32>
    %51 = arith.subf %49, %50 : vector<504x1xf32>
    %cst_32 = arith.constant 9.99999974E-6 : f32
    %52 = vector.broadcast %cst_32 : f32 to vector<504x1xf32>
    %53 = arith.addf %51, %52 : vector<504x1xf32>
    %54 = math.rsqrt %53 : vector<504x1xf32>
    %55 = vector.broadcast %28 : f32 to vector<504x1xf32>
    %56 = arith.mulf %55, %54 : vector<504x1xf32>
    %57 = arith.mulf %47, %56 : vector<504x1xf32>
    %58 = vector.broadcast %29 : f32 to vector<504x1xf32>
    %59 = arith.subf %58, %57 : vector<504x1xf32>
    %60 = vector.broadcast %56 : vector<504x1xf32> to vector<504x64xf32>
    %61 = arith.mulf %40, %60 : vector<504x64xf32>
    %62 = vector.broadcast %59 : vector<504x1xf32> to vector<504x64xf32>
    %63 = arith.addf %61, %62 : vector<504x64xf32>
    %cst_33 = arith.constant 0.000000e+00 : f32
    %64 = vector.broadcast %cst_33 : f32 to vector<504x64xf32>
    %65 = arith.maximumf %63, %64 : vector<504x64xf32>
    %66 = arith.truncf %65 : vector<504x64xf32> to vector<504x64xbf16>
    %c32 = arith.constant 32 : index
    %c0_34 = arith.constant 0 : index
    %67 = vector.load %arg4[%c32, %c0_34] : memref<608x128xbf16, #tpu.memory_space<vmem>>, vector<64x128xbf16>
    %cst_35 = arith.constant dense<0.000000e+00> : vector<504x128xf32>
    %68 = tpu.matmul %66, %67, %cst_35 {dimension_numbers = #tpu.dot_dimension_numbers<[1], [0], [0], [1], [0, 0, 1, 1], [], []>} : vector<504x64xbf16>, vector<64x128xbf16>, vector<504x128xf32> -> vector<504x128xf32>
    %69 = arith.addf %23, %68 : vector<504x128xf32>
    %c1_36 = arith.constant 1 : index
    %c0_37 = arith.constant 0 : index
    %70 = memref.load %arg1[%c1_36, %c0_37] : memref<3x8xf32, #tpu.memory_space<smem>>
    %c1_38 = arith.constant 1 : index
    %c1_39 = arith.constant 1 : index
    %71 = memref.load %arg1[%c1_38, %c1_39] : memref<3x8xf32, #tpu.memory_space<smem>>
    %c1_40 = arith.constant 1 : index
    %c2_41 = arith.constant 2 : index
    %72 = memref.load %arg1[%c1_40, %c2_41] : memref<3x8xf32, #tpu.memory_space<smem>>
    %c1_42 = arith.constant 1 : index
    %c3_43 = arith.constant 3 : index
    %73 = memref.load %arg1[%c1_42, %c3_43] : memref<3x8xf32, #tpu.memory_space<smem>>
    %c1_44 = arith.constant 1 : index
    %c4_45 = arith.constant 4 : index
    %74 = memref.load %arg1[%c1_44, %c4_45] : memref<3x8xf32, #tpu.memory_space<smem>>
    %c1_46 = arith.constant 1 : index
    %c5_47 = arith.constant 5 : index
    %75 = memref.load %arg1[%c1_46, %c5_47] : memref<3x8xf32, #tpu.memory_space<smem>>
    %76 = vector.broadcast %70 : f32 to vector<504x64xf32>
    %77 = arith.mulf %76, %2 : vector<504x64xf32>
    %78 = vector.broadcast %71 : f32 to vector<504x64xf32>
    %79 = arith.mulf %78, %5 : vector<504x64xf32>
    %80 = arith.addf %77, %79 : vector<504x64xf32>
    %81 = vector.broadcast %72 : f32 to vector<504x64xf32>
    %82 = arith.mulf %81, %8 : vector<504x64xf32>
    %83 = arith.addf %80, %82 : vector<504x64xf32>
    %84 = vector.broadcast %73 : f32 to vector<504x64xf32>
    %85 = arith.mulf %84, %11 : vector<504x64xf32>
    %86 = arith.addf %83, %85 : vector<504x64xf32>
    %cst_48 = arith.constant dense<0.000000e+00> : vector<504xf32>
    %87 = vector.multi_reduction <add>, %86, %cst_48 [1] : vector<504x64xf32> to vector<504xf32>
    %88 = vector.shape_cast %87 : vector<504xf32> to vector<504x1xf32>
    %89 = arith.mulf %86, %86 : vector<504x64xf32>
    %cst_49 = arith.constant dense<0.000000e+00> : vector<504xf32>
    %90 = vector.multi_reduction <add>, %89, %cst_49 [1] : vector<504x64xf32> to vector<504xf32>
    %91 = vector.shape_cast %90 : vector<504xf32> to vector<504x1xf32>
    %cst_50 = arith.constant 1.562500e-02 : f32
    %92 = vector.broadcast %cst_50 : f32 to vector<504x1xf32>
    %93 = arith.mulf %88, %92 : vector<504x1xf32>
    %cst_51 = arith.constant 1.562500e-02 : f32
    %94 = vector.broadcast %cst_51 : f32 to vector<504x1xf32>
    %95 = arith.mulf %91, %94 : vector<504x1xf32>
    %96 = arith.mulf %93, %93 : vector<504x1xf32>
    %97 = arith.subf %95, %96 : vector<504x1xf32>
    %cst_52 = arith.constant 9.99999974E-6 : f32
    %98 = vector.broadcast %cst_52 : f32 to vector<504x1xf32>
    %99 = arith.addf %97, %98 : vector<504x1xf32>
    %100 = math.rsqrt %99 : vector<504x1xf32>
    %101 = vector.broadcast %74 : f32 to vector<504x1xf32>
    %102 = arith.mulf %101, %100 : vector<504x1xf32>
    %103 = arith.mulf %93, %102 : vector<504x1xf32>
    %104 = vector.broadcast %75 : f32 to vector<504x1xf32>
    %105 = arith.subf %104, %103 : vector<504x1xf32>
    %106 = vector.broadcast %102 : vector<504x1xf32> to vector<504x64xf32>
    %107 = arith.mulf %86, %106 : vector<504x64xf32>
    %108 = vector.broadcast %105 : vector<504x1xf32> to vector<504x64xf32>
    %109 = arith.addf %107, %108 : vector<504x64xf32>
    %cst_53 = arith.constant 0.000000e+00 : f32
    %110 = vector.broadcast %cst_53 : f32 to vector<504x64xf32>
    %111 = arith.maximumf %109, %110 : vector<504x64xf32>
    %112 = arith.truncf %111 : vector<504x64xf32> to vector<504x64xbf16>
    %c96 = arith.constant 96 : index
    %c0_54 = arith.constant 0 : index
    %113 = vector.load %arg4[%c96, %c0_54] : memref<608x128xbf16, #tpu.memory_space<vmem>>, vector<64x128xbf16>
    %cst_55 = arith.constant dense<0.000000e+00> : vector<504x128xf32>
    %114 = tpu.matmul %112, %113, %cst_55 {dimension_numbers = #tpu.dot_dimension_numbers<[1], [0], [0], [1], [0, 0, 1, 1], [], []>} : vector<504x64xbf16>, vector<64x128xbf16>, vector<504x128xf32> -> vector<504x128xf32>
    %115 = arith.addf %69, %114 : vector<504x128xf32>
    %c2_56 = arith.constant 2 : index
    %c0_57 = arith.constant 0 : index
    %116 = memref.load %arg1[%c2_56, %c0_57] : memref<3x8xf32, #tpu.memory_space<smem>>
    %c2_58 = arith.constant 2 : index
    %c1_59 = arith.constant 1 : index
    %117 = memref.load %arg1[%c2_58, %c1_59] : memref<3x8xf32, #tpu.memory_space<smem>>
    %c2_60 = arith.constant 2 : index
    %c2_61 = arith.constant 2 : index
    %118 = memref.load %arg1[%c2_60, %c2_61] : memref<3x8xf32, #tpu.memory_space<smem>>
    %c2_62 = arith.constant 2 : index
    %c3_63 = arith.constant 3 : index
    %119 = memref.load %arg1[%c2_62, %c3_63] : memref<3x8xf32, #tpu.memory_space<smem>>
    %c2_64 = arith.constant 2 : index
    %c4_65 = arith.constant 4 : index
    %120 = memref.load %arg1[%c2_64, %c4_65] : memref<3x8xf32, #tpu.memory_space<smem>>
    %c2_66 = arith.constant 2 : index
    %c5_67 = arith.constant 5 : index
    %121 = memref.load %arg1[%c2_66, %c5_67] : memref<3x8xf32, #tpu.memory_space<smem>>
    %122 = vector.broadcast %116 : f32 to vector<504x64xf32>
    %123 = arith.mulf %122, %2 : vector<504x64xf32>
    %124 = vector.broadcast %117 : f32 to vector<504x64xf32>
    %125 = arith.mulf %124, %5 : vector<504x64xf32>
    %126 = arith.addf %123, %125 : vector<504x64xf32>
    %127 = vector.broadcast %118 : f32 to vector<504x64xf32>
    %128 = arith.mulf %127, %8 : vector<504x64xf32>
    %129 = arith.addf %126, %128 : vector<504x64xf32>
    %130 = vector.broadcast %119 : f32 to vector<504x64xf32>
    %131 = arith.mulf %130, %11 : vector<504x64xf32>
    %132 = arith.addf %129, %131 : vector<504x64xf32>
    %cst_68 = arith.constant dense<0.000000e+00> : vector<504xf32>
    %133 = vector.multi_reduction <add>, %132, %cst_68 [1] : vector<504x64xf32> to vector<504xf32>
    %134 = vector.shape_cast %133 : vector<504xf32> to vector<504x1xf32>
    %135 = arith.mulf %132, %132 : vector<504x64xf32>
    %cst_69 = arith.constant dense<0.000000e+00> : vector<504xf32>
    %136 = vector.multi_reduction <add>, %135, %cst_69 [1] : vector<504x64xf32> to vector<504xf32>
    %137 = vector.shape_cast %136 : vector<504xf32> to vector<504x1xf32>
    %cst_70 = arith.constant 1.562500e-02 : f32
    %138 = vector.broadcast %cst_70 : f32 to vector<504x1xf32>
    %139 = arith.mulf %134, %138 : vector<504x1xf32>
    %cst_71 = arith.constant 1.562500e-02 : f32
    %140 = vector.broadcast %cst_71 : f32 to vector<504x1xf32>
    %141 = arith.mulf %137, %140 : vector<504x1xf32>
    %142 = arith.mulf %139, %139 : vector<504x1xf32>
    %143 = arith.subf %141, %142 : vector<504x1xf32>
    %cst_72 = arith.constant 9.99999974E-6 : f32
    %144 = vector.broadcast %cst_72 : f32 to vector<504x1xf32>
    %145 = arith.addf %143, %144 : vector<504x1xf32>
    %146 = math.rsqrt %145 : vector<504x1xf32>
    %147 = vector.broadcast %120 : f32 to vector<504x1xf32>
    %148 = arith.mulf %147, %146 : vector<504x1xf32>
    %149 = arith.mulf %139, %148 : vector<504x1xf32>
    %150 = vector.broadcast %121 : f32 to vector<504x1xf32>
    %151 = arith.subf %150, %149 : vector<504x1xf32>
    %152 = vector.broadcast %148 : vector<504x1xf32> to vector<504x64xf32>
    %153 = arith.mulf %132, %152 : vector<504x64xf32>
    %154 = vector.broadcast %151 : vector<504x1xf32> to vector<504x64xf32>
    %155 = arith.addf %153, %154 : vector<504x64xf32>
    %cst_73 = arith.constant 0.000000e+00 : f32
    %156 = vector.broadcast %cst_73 : f32 to vector<504x64xf32>
    %157 = arith.maximumf %155, %156 : vector<504x64xf32>
    %158 = arith.truncf %157 : vector<504x64xf32> to vector<504x64xbf16>
    %c160 = arith.constant 160 : index
    %c0_74 = arith.constant 0 : index
    %159 = vector.load %arg4[%c160, %c0_74] : memref<608x128xbf16, #tpu.memory_space<vmem>>, vector<64x128xbf16>
    %cst_75 = arith.constant dense<0.000000e+00> : vector<504x128xf32>
    %160 = tpu.matmul %158, %159, %cst_75 {dimension_numbers = #tpu.dot_dimension_numbers<[1], [0], [0], [1], [0, 0, 1, 1], [], []>} : vector<504x64xbf16>, vector<64x128xbf16>, vector<504x128xf32> -> vector<504x128xf32>
    %161 = arith.addf %115, %160 : vector<504x128xf32>
    %cst_76 = arith.constant 0.000000e+00 : f32
    %162 = vector.broadcast %cst_76 : f32 to vector<504x128xf32>
    %163 = arith.maximumf %161, %162 : vector<504x128xf32>
    %164 = arith.truncf %163 : vector<504x128xf32> to vector<504x128xbf16>
    %c352 = arith.constant 352 : index
    %c0_77 = arith.constant 0 : index
    %165 = vector.load %arg4[%c352, %c0_77] : memref<608x128xbf16, #tpu.memory_space<vmem>>, vector<128x128xbf16>
    %cst_78 = arith.constant dense<0.000000e+00> : vector<504x128xf32>
    %166 = tpu.matmul %164, %165, %cst_78 {dimension_numbers = #tpu.dot_dimension_numbers<[1], [0], [0], [1], [0, 0, 1, 1], [], []>} : vector<504x128xbf16>, vector<128x128xbf16>, vector<504x128xf32> -> vector<504x128xf32>
    %c1_79 = arith.constant 1 : index
    %c0_80 = arith.constant 0 : index
    %167 = vector.load %arg5[%c1_79, %c0_80] : memref<8x128xf32, #tpu.memory_space<vmem>>, vector<1x128xf32>
    %168 = vector.broadcast %167 : vector<1x128xf32> to vector<504x128xf32>
    %169 = arith.addf %166, %168 : vector<504x128xf32>
    %cst_81 = arith.constant 0.000000e+00 : f32
    %170 = vector.broadcast %cst_81 : f32 to vector<504x128xf32>
    %171 = arith.maximumf %169, %170 : vector<504x128xf32>
    %172 = arith.truncf %171 : vector<504x128xf32> to vector<504x128xbf16>
    %c480 = arith.constant 480 : index
    %c0_82 = arith.constant 0 : index
    %173 = vector.load %arg4[%c480, %c0_82] : memref<608x128xbf16, #tpu.memory_space<vmem>>, vector<128x128xbf16>
    %cst_83 = arith.constant dense<0.000000e+00> : vector<504x128xf32>
    %174 = tpu.matmul %172, %173, %cst_83 {dimension_numbers = #tpu.dot_dimension_numbers<[1], [0], [0], [1], [0, 0, 1, 1], [], []>} : vector<504x128xbf16>, vector<128x128xbf16>, vector<504x128xf32> -> vector<504x128xf32>
    %c2_84 = arith.constant 2 : index
    %c0_85 = arith.constant 0 : index
    %175 = vector.load %arg5[%c2_84, %c0_85] : memref<8x128xf32, #tpu.memory_space<vmem>>, vector<1x128xf32>
    %176 = vector.broadcast %175 : vector<1x128xf32> to vector<504x128xf32>
    %177 = arith.addf %174, %176 : vector<504x128xf32>
    %178 = arith.truncf %177 : vector<504x128xf32> to vector<504x128xbf16>
    %c0_86 = arith.constant 0 : index
    %c0_87 = arith.constant 0 : index
    %179 = vector.load %arg6[%c0_86, %c0_87] : memref<504x128xbf16, #tpu.memory_space<vmem>>, vector<504x128xbf16>
    tpu.vector_store %arg6[%c0_86, %c0_87], %178 {strides = array<i32>} : memref<504x128xbf16, #tpu.memory_space<vmem>>, vector<504x128xbf16>,
    return
  }
  func.func @transform_0(%arg0: i32) -> (i32, i32) {
    %c0_i32 = arith.constant 0 : i32
    %c0_i32_0 = arith.constant 0 : i32
    %c0_i32_1 = arith.constant 0 : i32
    return %c0_i32, %c0_i32_0 : i32, i32
  }
  func.func @transform_1(%arg0: i32) -> (i32, i32, i32) {
    %c0_i32 = arith.constant 0 : i32
    %c0_i32_0 = arith.constant 0 : i32
    %c0_i32_1 = arith.constant 0 : i32
    return %c0_i32, %arg0, %c0_i32_0 : i32, i32, i32
  }
  func.func @transform_2(%arg0: i32) -> (i32, i32) {
    %c0_i32 = arith.constant 0 : i32
    %c0_i32_0 = arith.constant 0 : i32
    return %arg0, %c0_i32 : i32, i32
  }
  func.func @transform_3(%arg0: i32) -> (i32, i32) {
    %c0_i32 = arith.constant 0 : i32
    %c0_i32_0 = arith.constant 0 : i32
    %c0_i32_1 = arith.constant 0 : i32
    return %c0_i32, %c0_i32_0 : i32, i32
  }
  func.func @transform_4(%arg0: i32) -> (i32, i32) {
    %c0_i32 = arith.constant 0 : i32
    %c0_i32_0 = arith.constant 0 : i32
    %c0_i32_1 = arith.constant 0 : i32
    return %c0_i32, %c0_i32_0 : i32, i32
  }
  func.func @transform_5(%arg0: i32) -> (i32, i32) {
    %c0_i32 = arith.constant 0 : i32
    %c0_i32_0 = arith.constant 0 : i32
    return %arg0, %c0_i32 : i32, i32
  }
}

</mosaic_0001>

<llo_original>
// kernel: basicnet_forward.1
$region0: #{basicnet_forward.1}
  #allocation0 [shape = 'u32[]', space=smem, size = 0x4, offset = 0x4, fixed_abs, tag = 'smem constant byte address 0x4 - core index']
  #allocation1 [shape = 'u32[144,128]{1,0:T(1,128)}', space=vmem, size = 0x12000, scoped, tag = 'internal scratch']
  %s0 = inlined_call_operand.vmem [shape: f32[3,8], index: 0, kind: input, shape index: {}]
  %s1 = inlined_call_operand.vmem [shape: bf16[4,1008,64], index: 1, kind: input, shape index: {}]
  %s2 = inlined_call_operand.vmem [shape: bf16[1008,32], index: 2, kind: input, shape index: {}]
  %s3 = inlined_call_operand.vmem [shape: bf16[608,128], index: 3, kind: input, shape index: {}]
  %s4 = inlined_call_operand.vmem [shape: f32[8,128], index: 4, kind: input, shape index: {}]
  %s5 = inlined_call_operand.vmem [shape: bf16[1008,128], index: 5, kind: output, shape index: {}]
  %s6 = sld [smem:[#allocation0]]
  $region98: #{basicnet_forward.1} parent=0
    _
  %s8 = ssub.s32 1, %s6
  %s9 = scalar_select 0, %s8, %s6
  $region1: #{basicnet_forward.1} parent=0
    #allocation2 [shape = 'u8[2048]{0}', space=smem, size = 0x800, scoped, tag = 'input window, operand 0, single buffered']
    #allocation3 [shape = 's32[2]{0}', space=sflag, size = 0x8, scoped, tag = 'scoped memory for basicnet_forward.1']
    #allocation4 [shape = 'u8[1032192]{0}', space=vmem, size = 0xfc000, scoped, tag = 'input window, operand 1']
    %10 = vsyncpa [#allocation3], 0
    loop: start=0, step=1, limit=4
    $region2: #{basicnet_forward.1} parent=1 // loop_pre_header
      _
    $region3: #{basicnet_forward.1} parent=1 // loop_header
      %s12 = sphi 0, %s16
      %p13 = scmp.ge.s32.totalorder %s12, 4
      %s20 = sphi 0, %s20
      %s22 = sphi 0, %s20
      %s23 = sphi 0, %s22
      %s37 = sphi 0, %s23
      %s43 = sphi 0, %s45
      %s46 = sphi 0, %s43
      %s47 = sphi 0, %s46
      %s63 = sphi 0, %s47
      %s69 = sphi 0, %s71
      %s72 = sphi 0, %s69
      %s73 = sphi 0, %s72
      %s89 = sphi 0, %s73
      %s93 = sphi 0, %s93
      %s95 = sphi 0, %s93
      %s96 = sphi 0, %s95
      %s110 = sphi 0, %s96
      %s114 = sphi 0, %s114
      %s116 = sphi 0, %s114
      %s117 = sphi 0, %s116
      %s131 = sphi 0, %s117
      %s137 = sphi 0, %s139
      %s140 = sphi 0, %s137
      %s141 = sphi 0, %s140
      %s157 = sphi 0, %s141
    $region4: #{basicnet_forward.1} parent=1 // loop_header_branch
      %15 = sbr.rel (%p13) target = $region8
    $region5: #{basicnet_forward.1} parent=1 // loop_body
      %s17 = ssub.s32 %s12, 1
      %s18 = ssub.s32 %s12, 2
      %s19 = sadd.s32 %s12, 1
      %s21 = sadd.s32 %s20, 1
      %p24 = scmp.eq.s32.totalorder %s12, 1
      %p25 = scmp.ne.s32.totalorder %s20, %s22
      %p26 = scmp.eq.s32.totalorder %s12, 0
      %p27 = por %p25, %p26
      %p28 = scmp.ne.s32.totalorder %s20, %s22
      %p29 = scmp.eq.s32.totalorder %s17, 1
      %p30 = por %p28, %p29
      %p31 = scmp.ne.s32.totalorder %s22, %s23
      %p32 = scmp.eq.s32.totalorder %s17, 0
      %p33 = por %p31, %p32
      %p34 = scmp.ne.s32.totalorder %s22, %s23
      %p35 = scmp.eq.s32.totalorder %s18, 1
      %p36 = por %p34, %p35
      %p38 = scmp.ne.s32.totalorder %s23, %s37
      %p39 = scmp.eq.s32.totalorder %s18, 0
      %p40 = por %p38, %p39
      %s41 = ssub.s32 %s12, %s19
      %p42 = scmp.eq.s32.totalorder %s41, 0
      %s44 = sadd.s32 %s43, 1
      %s45 = scalar_select %p42, %s43, %s44
      %p48 = pneg %p42
      %p49 = scmp.eq.s32.totalorder %s12, 1
      %p50 = por %p48, %p49
      %p51 = scmp.ne.s32.totalorder %s43, %s46
      %p52 = scmp.eq.s32.totalorder %s12, 0
      %p53 = por %p51, %p52
      %p54 = scmp.ne.s32.totalorder %s43, %s46
      %p55 = scmp.eq.s32.totalorder %s17, 1
      %p56 = por %p54, %p55
      %p57 = scmp.ne.s32.totalorder %s46, %s47
      %p58 = scmp.eq.s32.totalorder %s17, 0
      %p59 = por %p57, %p58
      %p60 = scmp.ne.s32.totalorder %s46, %s47
      %p61 = scmp.eq.s32.totalorder %s18, 1
      %p62 = por %p60, %p61
      %p64 = scmp.ne.s32.totalorder %s47, %s63
      %p65 = scmp.eq.s32.totalorder %s18, 0
      %p66 = por %p64, %p65
      %s67 = ssub.s32 %s12, %s19
      %p68 = scmp.eq.s32.totalorder %s67, 0
      %s70 = sadd.s32 %s69, 1
      %s71 = scalar_select %p68, %s69, %s70
      %p74 = pneg %p68
      %p75 = scmp.eq.s32.totalorder %s12, 1
      %p76 = por %p74, %p75
      %p77 = scmp.ne.s32.totalorder %s69, %s72
      %p78 = scmp.eq.s32.totalorder %s12, 0
      %p79 = por %p77, %p78
      %p80 = scmp.ne.s32.totalorder %s69, %s72
      %p81 = scmp.eq.s32.totalorder %s17, 1
      %p82 = por %p80, %p81
      %p83 = scmp.ne.s32.totalorder %s72, %s73
      %p84 = scmp.eq.s32.totalorder %s17, 0
      %p85 = por %p83, %p84
      %p86 = scmp.ne.s32.totalorder %s72, %s73
      %p87 = scmp.eq.s32.totalorder %s18, 1
      %p88 = por %p86, %p87
      %p90 = scmp.ne.s32.totalorder %s73, %s89
      %p91 = scmp.eq.s32.totalorder %s18, 0
      %p92 = por %p90, %p91
      %s94 = sadd.s32 %s93, 1
      %p97 = scmp.eq.s32.totalorder %s12, 1
      %p98 = scmp.ne.s32.totalorder %s93, %s95
      %p99 = scmp.eq.s32.totalorder %s12, 0
      %p100 = por %p98, %p99
      %p101 = scmp.ne.s32.totalorder %s93, %s95
      %p102 = scmp.eq.s32.totalorder %s17, 1
      %p103 = por %p101, %p102
      %p104 = scmp.ne.s32.totalorder %s95, %s96
      %p105 = scmp.eq.s32.totalorder %s17, 0
      %p106 = por %p104, %p105
      %p107 = scmp.ne.s32.totalorder %s95, %s96
      %p108 = scmp.eq.s32.totalorder %s18, 1
      %p109 = por %p107, %p108
      %p111 = scmp.ne.s32.totalorder %s96, %s110
      %p112 = scmp.eq.s32.totalorder %s18, 0
      %p113 = por %p111, %p112
      %s115 = sadd.s32 %s114, 1
      %p118 = scmp.eq.s32.totalorder %s12, 1
      %p119 = scmp.ne.s32.totalorder %s114, %s116
      %p120 = scmp.eq.s32.totalorder %s12, 0
      %p121 = por %p119, %p120
      %p122 = scmp.ne.s32.totalorder %s114, %s116
      %p123 = scmp.eq.s32.totalorder %s17, 1
      %p124 = por %p122, %p123
      %p125 = scmp.ne.s32.totalorder %s116, %s117
      %p126 = scmp.eq.s32.totalorder %s17, 0
      %p127 = por %p125, %p126
      %p128 = scmp.ne.s32.totalorder %s116, %s117
      %p129 = scmp.eq.s32.totalorder %s18, 1
      %p130 = por %p128, %p129
      %p132 = scmp.ne.s32.totalorder %s117, %s131
      %p133 = scmp.eq.s32.totalorder %s18, 0
      %p134 = por %p132, %p133
      %s135 = ssub.s32 %s12, %s19
      %p136 = scmp.eq.s32.totalorder %s135, 0
      %s138 = sadd.s32 %s137, 1
      %s139 = scalar_select %p136, %s137, %s138
      %p142 = pneg %p136
      %p143 = scmp.eq.s32.totalorder %s12, 1
      %p144 = por %p142, %p143
      %p145 = scmp.ne.s32.totalorder %s137, %s140
      %p146 = scmp.eq.s32.totalorder %s12, 0
      %p147 = por %p145, %p146
      %p148 = scmp.ne.s32.totalorder %s137, %s140
      %p149 = scmp.eq.s32.totalorder %s17, 1
      %p150 = por %p148, %p149
      %p151 = scmp.ne.s32.totalorder %s140, %s141
      %p152 = scmp.eq.s32.totalorder %s17, 0
      %p153 = por %p151, %p152
      %p154 = scmp.ne.s32.totalorder %s140, %s141
      %p155 = scmp.eq.s32.totalorder %s18, 1
      %p156 = por %p154, %p155
      %p158 = scmp.ne.s32.totalorder %s141, %s157
      %p159 = scmp.eq.s32.totalorder %s18, 0
      %p160 = por %p158, %p159
      %p161 = scmp.le.s32.totalorder 1, %s12
      %p162 = scmp.lt.s32.totalorder %s12, 3
      %p163 = pnand %p161, %p162
      %p164 = pneg %p163
      // Predicated region
      $region9: #{basicnet_forward.1} parent=5 // pred_check
        _
      $region10: #{basicnet_forward.1} parent=5 // pred_check_branch
        %166 = sbr.rel (%p163) target = $region12
      $region11: #{basicnet_forward.1} parent=5 // pred_region
        %s167 = ssub.s32 %s12, 1
        // Predicated region
        $region13: #{basicnet_forward.1} parent=11 // pred_check
          %p168 = pneg %p33
        $region14: #{basicnet_forward.1} parent=11 // pred_check_branch
          %170 = sbr.rel (%p168) target = $region16
        $region15: #{basicnet_forward.1} parent=11 // pred_region
          %s172 = ssub.s32 64, 64
          %173 = vsyncadd [#allocation3], %s172
          %s175 = sshll.u32 %s0, 4
          %s176 = int_to_ptr.vmem [resolvable:$true] %s175
          %178 = dma.vmem_to_smem %s176, 64, [#allocation2], [#allocation3]
        $region16: #{basicnet_forward.1} parent=11 // pred_fallthru
          _
        // Predicated region
        $region17: #{basicnet_forward.1} parent=11 // pred_check
          %p179 = pneg %p106
        $region18: #{basicnet_forward.1} parent=11 // pred_check_branch
          %181 = sbr.rel (%p179) target = $region20
        $region19: #{basicnet_forward.1} parent=11 // pred_region
          _
        $region20: #{basicnet_forward.1} parent=11 // pred_fallthru
          _
        // Predicated region
        $region21: #{basicnet_forward.1} parent=11 // pred_check
          %p182 = pneg %p127
        $region22: #{basicnet_forward.1} parent=11 // pred_check_branch
          %184 = sbr.rel (%p182) target = $region24
        $region23: #{basicnet_forward.1} parent=11 // pred_region
          _
        $region24: #{basicnet_forward.1} parent=11 // pred_fallthru
          _
      $region12: #{basicnet_forward.1} parent=5 // pred_fallthru
        _
      %p185 = scmp.lt.s32.totalorder %s12, 2
      // Predicated region
      $region25: #{basicnet_forward.1} parent=5 // pred_check
        %p186 = pneg %p185
      $region26: #{basicnet_forward.1} parent=5 // pred_check_branch
        %188 = sbr.rel (%p186) target = $region28
      $region27: #{basicnet_forward.1} parent=5 // pred_region
        // Predicated region
        $region29: #{basicnet_forward.1} parent=27 // pred_check
          %p189 = pneg %p53
        $region30: #{basicnet_forward.1} parent=27 // pred_check_branch
          %191 = sbr.rel (%p189) target = $region32
        $region31: #{basicnet_forward.1} parent=27 // pred_region
          %s192 = sand.u32 %s43, 1
          %s193 = sand.u32 %s43, 1
          %s194 = smul.addr %s193, 1008
          %s195 = scalar_lea.vmem [#allocation4], %s194
          %s196 = smul.u32 63, %s12
          %s197 = smul.addr %s196, 4
          %s198 = scalar_lea.vmem %s1, %s197
          // Predicated region
          $region33: #{basicnet_forward.1} parent=31 // pred_check
            _
          $region34: #{basicnet_forward.1} parent=31 // pred_check_branch
            %200 = sbr.rel (0) target = $region36
          $region35: #{basicnet_forward.1} parent=31 // pred_region
            // Predicated region
            $region37: #{basicnet_forward.1} parent=35 // pred_check
              _
            $region38: #{basicnet_forward.1} parent=35 // pred_check_branch
              %202 = sbr.rel target = $region40
            $region39: #{basicnet_forward.1} parent=35 // pred_region
              // Predicated region
              $region52: #{basicnet_forward.1} parent=39 // pred_check
                _
              $region53: #{basicnet_forward.1} parent=39 // pred_check_branch
                %719 = sbr.rel (0) target = $region55
              $region54: #{basicnet_forward.1} parent=39 // pred_region
                loop: start=0, step=1, limit=1
                $region56: #{basicnet_forward.1} parent=54 // loop_pre_header
                  _
                $region57: #{basicnet_forward.1} parent=54 // loop_header
                  %s721 = sphi 0, %s725
                  %p722 = scmp.ge.s32.totalorder %s721, 1
                  %s726 = sphi %s198, %s198
                  %s727 = sphi %s195, %s195
                $region58: #{basicnet_forward.1} parent=54 // loop_header_branch
                  %724 = sbr.rel (%p722) target = $region62
                $region59: #{basicnet_forward.1} parent=54 // loop_body
                  _
                $region60: #{basicnet_forward.1} parent=54 // loop_footer
                  %s725 = sadd.s32 1, %s721
                $region61: #{basicnet_forward.1} parent=54 // loop_footer_branch
                  %720 = sbr.rel target = $region57
                $region62: #{basicnet_forward.1} parent=54 // loop_exit
                  _
                loop: start=0, step=1, limit=1
                $region63: #{basicnet_forward.1} parent=54 // loop_pre_header
                  _
                $region64: #{basicnet_forward.1} parent=54 // loop_header
                  %s730 = sphi 0, %s734
                  %p731 = scmp.ge.s32.totalorder %s730, 1
                  %s735 = sphi %s198, %s198
                  %s736 = sphi %s195, %s195
                $region65: #{basicnet_forward.1} parent=54 // loop_header_branch
                  %733 = sbr.rel (%p731) target = $region69
                $region66: #{basicnet_forward.1} parent=54 // loop_body
                  %v737 = vld [vmem:[%s735] sm:$0xf]
                  %738 = vst [vmem:[%s736] sm:$0xf] %v737
                  %v739 = vld [vmem:[%s735 + $0x4] sm:$0xf]
                  %740 = vst [vmem:[%s736 + $0x4] sm:$0xf] %v739
                  %v741 = vld [vmem:[%s735 + $0x8] sm:$0xf]
                  %742 = vst [vmem:[%s736 + $0x8] sm:$0xf] %v741
                  %v743 = vld [vmem:[%s735 + $0xc] sm:$0xf]
                  %744 = vst [vmem:[%s736 + $0xc] sm:$0xf] %v743
                  %v745 = vld [vmem:[%s735 + $0x10] sm:$0xf]
                  %746 = vst [vmem:[%s736 + $0x10] sm:$0xf] %v745
                  %v747 = vld [vmem:[%s735 + $0x14] sm:$0xf]
                  %748 = vst [vmem:[%s736 + $0x14] sm:$0xf] %v747
                  %v749 = vld [vmem:[%s735 + $0x18] sm:$0xf]
                  %750 = vst [vmem:[%s736 + $0x18] sm:$0xf] %v749
                  %v751 = vld [vmem:[%s735 + $0x1c] sm:$0xf]
                  %752 = vst [vmem:[%s736 + $0x1c] sm:$0xf] %v751
                  %v753 = vld [vmem:[%s735 + $0x20] sm:$0xf]
                  %754 = vst [vmem:[%s736 + $0x20] sm:$0xf] %v753
                  %v755 = vld [vmem:[%s735 + $0x24] sm:$0xf]
                  %756 = vst [vmem:[%s736 + $0x24] sm:$0xf] %v755
                  %v757 = vld [vmem:[%s735 + $0x28] sm:$0xf]
                  %758 = vst [vmem:[%s736 + $0x28] sm:$0xf] %v757
                  %v759 = vld [vmem:[%s735 + $0x2c] sm:$0xf]
                  %760 = vst [vmem:[%s736 + $0x2c] sm:$0xf] %v759
                  %v761 = vld [vmem:[%s735 + $0x30] sm:$0xf]
                  %762 = vst [vmem:[%s736 + $0x30] sm:$0xf] %v761
                  %v763 = vld [vmem:[%s735 + $0x34] sm:$0xf]
                  %764 = vst [vmem:[%s736 + $0x34] sm:$0xf] %v763
                  %v765 = vld [vmem:[%s735 + $0x38] sm:$0xf]
                  %766 = vst [vmem:[%s736 + $0x38] sm:$0xf] %v765
                  %v767 = vld [vmem:[%s735 + $0x3c] sm:$0xf]
                  %768 = vst [vmem:[%s736 + $0x3c] sm:$0xf] %v767
                  %v769 = vld [vmem:[%s735 + $0x40] sm:$0xf]
                  %770 = vst [vmem:[%s736 + $0x40] sm:$0xf] %v769
                  %v771 = vld [vmem:[%s735 + $0x44] sm:$0xf]
                  %772 = vst [vmem:[%s736 + $0x44] sm:$0xf] %v771
                  %v773 = vld [vmem:[%s735 + $0x48] sm:$0xf]
                  %774 = vst [vmem:[%s736 + $0x48] sm:$0xf] %v773
                  %v775 = vld [vmem:[%s735 + $0x4c] sm:$0xf]
                  %776 = vst [vmem:[%s736 + $0x4c] sm:$0xf] %v775
                  %v777 = vld [vmem:[%s735 + $0x50] sm:$0xf]
                  %778 = vst [vmem:[%s736 + $0x50] sm:$0xf] %v777
                  %v779 = vld [vmem:[%s735 + $0x54] sm:$0xf]
                  %780 = vst [vmem:[%s736 + $0x54] sm:$0xf] %v779
                  %v781 = vld [vmem:[%s735 + $0x58] sm:$0xf]
                  %782 = vst [vmem:[%s736 + $0x58] sm:$0xf] %v781
                  %v783 = vld [vmem:[%s735 + $0x5c] sm:$0xf]
                  %784 = vst [vmem:[%s736 + $0x5c] sm:$0xf] %v783
                  %v785 = vld [vmem:[%s735 + $0x60] sm:$0xf]
                  %786 = vst [vmem:[%s736 + $0x60] sm:$0xf] %v785
                  %v787 = vld [vmem:[%s735 + $0x64] sm:$0xf]
                  %788 = vst [vmem:[%s736 + $0x64] sm:$0xf] %v787
                  %v789 = vld [vmem:[%s735 + $0x68] sm:$0xf]
                  %790 = vst [vmem:[%s736 + $0x68] sm:$0xf] %v789
                  %v791 = vld [vmem:[%s735 + $0x6c] sm:$0xf]
                  %792 = vst [vmem:[%s736 + $0x6c] sm:$0xf] %v791
                  %v793 = vld [vmem:[%s735 + $0x70] sm:$0xf]
                  %794 = vst [vmem:[%s736 + $0x70] sm:$0xf] %v793
                  %v795 = vld [vmem:[%s735 + $0x74] sm:$0xf]
                  %796 = vst [vmem:[%s736 + $0x74] sm:$0xf] %v795
                  %v797 = vld [vmem:[%s735 + $0x78] sm:$0xf]
                  %798 = vst [vmem:[%s736 + $0x78] sm:$0xf] %v797
                  %v799 = vld [vmem:[%s735 + $0x7c] sm:$0xf]
                  %800 = vst [vmem:[%s736 + $0x7c] sm:$0xf] %v799
                  %v801 = vld [vmem:[%s735 + $0x80] sm:$0xf]
                  %802 = vst [vmem:[%s736 + $0x80] sm:$0xf] %v801
                  %v803 = vld [vmem:[%s735 + $0x84] sm:$0xf]
                  %804 = vst [vmem:[%s736 + $0x84] sm:$0xf] %v803
                  %v805 = vld [vmem:[%s735 + $0x88] sm:$0xf]
                  %806 = vst [vmem:[%s736 + $0x88] sm:$0xf] %v805
                  %v807 = vld [vmem:[%s735 + $0x8c] sm:$0xf]
                  %808 = vst [vmem:[%s736 + $0x8c] sm:$0xf] %v807
                  %v809 = vld [vmem:[%s735 + $0x90] sm:$0xf]
                  %810 = vst [vmem:[%s736 + $0x90] sm:$0xf] %v809
                  %v811 = vld [vmem:[%s735 + $0x94] sm:$0xf]
                  %812 = vst [vmem:[%s736 + $0x94] sm:$0xf] %v811
                  %v813 = vld [vmem:[%s735 + $0x98] sm:$0xf]
                  %814 = vst [vmem:[%s736 + $0x98] sm:$0xf] %v813
                  %v815 = vld [vmem:[%s735 + $0x9c] sm:$0xf]
                  %816 = vst [vmem:[%s736 + $0x9c] sm:$0xf] %v815
                  %v817 = vld [vmem:[%s735 + $0xa0] sm:$0xf]
                  %818 = vst [vmem:[%s736 + $0xa0] sm:$0xf] %v817
                  %v819 = vld [vmem:[%s735 + $0xa4] sm:$0xf]
                  %820 = vst [vmem:[%s736 + $0xa4] sm:$0xf] %v819
                  %v821 = vld [vmem:[%s735 + $0xa8] sm:$0xf]
                  %822 = vst [vmem:[%s736 + $0xa8] sm:$0xf] %v821
                  %v823 = vld [vmem:[%s735 + $0xac] sm:$0xf]
                  %824 = vst [vmem:[%s736 + $0xac] sm:$0xf] %v823
                  %v825 = vld [vmem:[%s735 + $0xb0] sm:$0xf]
                  %826 = vst [vmem:[%s736 + $0xb0] sm:$0xf] %v825
                  %v827 = vld [vmem:[%s735 + $0xb4] sm:$0xf]
                  %828 = vst [vmem:[%s736 + $0xb4] sm:$0xf] %v827
                  %v829 = vld [vmem:[%s735 + $0xb8] sm:$0xf]
                  %830 = vst [vmem:[%s736 + $0xb8] sm:$0xf] %v829
                  %v831 = vld [vmem:[%s735 + $0xbc] sm:$0xf]
                  %832 = vst [vmem:[%s736 + $0xbc] sm:$0xf] %v831
                  %v833 = vld [vmem:[%s735 + $0xc0] sm:$0xf]
                  %834 = vst [vmem:[%s736 + $0xc0] sm:$0xf] %v833
                  %v835 = vld [vmem:[%s735 + $0xc4] sm:$0xf]
                  %836 = vst [vmem:[%s736 + $0xc4] sm:$0xf] %v835
                  %v837 = vld [vmem:[%s735 + $0xc8] sm:$0xf]
                  %838 = vst [vmem:[%s736 + $0xc8] sm:$0xf] %v837
                  %v839 = vld [vmem:[%s735 + $0xcc] sm:$0xf]
                  %840 = vst [vmem:[%s736 + $0xcc] sm:$0xf] %v839
                  %v841 = vld [vmem:[%s735 + $0xd0] sm:$0xf]
                  %842 = vst [vmem:[%s736 + $0xd0] sm:$0xf] %v841
                  %v843 = vld [vmem:[%s735 + $0xd4] sm:$0xf]
                  %844 = vst [vmem:[%s736 + $0xd4] sm:$0xf] %v843
                  %v845 = vld [vmem:[%s735 + $0xd8] sm:$0xf]
                  %846 = vst [vmem:[%s736 + $0xd8] sm:$0xf] %v845
                  %v847 = vld [vmem:[%s735 + $0xdc] sm:$0xf]
                  %848 = vst [vmem:[%s736 + $0xdc] sm:$0xf] %v847
                  %v849 = vld [vmem:[%s735 + $0xe0] sm:$0xf]
                  %850 = vst [vmem:[%s736 + $0xe0] sm:$0xf] %v849
                  %v851 = vld [vmem:[%s735 + $0xe4] sm:$0xf]
                  %852 = vst [vmem:[%s736 + $0xe4] sm:$0xf] %v851
                  %v853 = vld [vmem:[%s735 + $0xe8] sm:$0xf]
                  %854 = vst [vmem:[%s736 + $0xe8] sm:$0xf] %v853
                  %v855 = vld [vmem:[%s735 + $0xec] sm:$0xf]
                  %856 = vst [vmem:[%s736 + $0xec] sm:$0xf] %v855
                  %v857 = vld [vmem:[%s735 + $0xf0] sm:$0xf]
                  %858 = vst [vmem:[%s736 + $0xf0] sm:$0xf] %v857
                  %v859 = vld [vmem:[%s735 + $0xf4] sm:$0xf]
                  %860 = vst [vmem:[%s736 + $0xf4] sm:$0xf] %v859
                  %v861 = vld [vmem:[%s735 + $0xf8] sm:$0xf]
                  %862 = vst [vmem:[%s736 + $0xf8] sm:$0xf] %v861
                  %v863 = vld [vmem:[%s735 + $0x1f8] sm:$0xf]
                  %864 = vst [vmem:[%s736 + $0xfc] sm:$0xf] %v863
                  %v865 = vld [vmem:[%s735 + $0x1fc] sm:$0xf]
                  %866 = vst [vmem:[%s736 + $0x100] sm:$0xf] %v865
                  %v867 = vld [vmem:[%s735 + $0x200] sm:$0xf]
                  %868 = vst [vmem:[%s736 + $0x104] sm:$0xf] %v867
                  %v869 = vld [vmem:[%s735 + $0x204] sm:$0xf]
                  %870 = vst [vmem:[%s736 + $0x108] sm:$0xf] %v869
                  %v871 = vld [vmem:[%s735 + $0x208] sm:$0xf]
                  %872 = vst [vmem:[%s736 + $0x10c] sm:$0xf] %v871
                  %v873 = vld [vmem:[%s735 + $0x20c] sm:$0xf]
                  %874 = vst [vmem:[%s736 + $0x110] sm:$0xf] %v873
                  %v875 = vld [vmem:[%s735 + $0x210] sm:$0xf]
                  %876 = vst [vmem:[%s736 + $0x114] sm:$0xf] %v875
                  %v877 = vld [vmem:[%s735 + $0x214] sm:$0xf]
                  %878 = vst [vmem:[%s736 + $0x118] sm:$0xf] %v877
                  %v879 = vld [vmem:[%s735 + $0x218] sm:$0xf]
                  %880 = vst [vmem:[%s736 + $0x11c] sm:$0xf] %v879
                  %v881 = vld [vmem:[%s735 + $0x21c] sm:$0xf]
                  %882 = vst [vmem:[%s736 + $0x120] sm:$0xf] %v881
                  %v883 = vld [vmem:[%s735 + $0x220] sm:$0xf]
                  %884 = vst [vmem:[%s736 + $0x124] sm:$0xf] %v883
                  %v885 = vld [vmem:[%s735 + $0x224] sm:$0xf]
                  %886 = vst [vmem:[%s736 + $0x128] sm:$0xf] %v885
                  %v887 = vld [vmem:[%s735 + $0x228] sm:$0xf]
                  %888 = vst [vmem:[%s736 + $0x12c] sm:$0xf] %v887
                  %v889 = vld [vmem:[%s735 + $0x22c] sm:$0xf]
                  %890 = vst [vmem:[%s736 + $0x130] sm:$0xf] %v889
                  %v891 = vld [vmem:[%s735 + $0x230] sm:$0xf]
                  %892 = vst [vmem:[%s736 + $0x134] sm:$0xf] %v891
                  %v893 = vld [vmem:[%s735 + $0x234] sm:$0xf]
                  %894 = vst [vmem:[%s736 + $0x138] sm:$0xf] %v893
                  %v895 = vld [vmem:[%s735 + $0x238] sm:$0xf]
                  %896 = vst [vmem:[%s736 + $0x13c] sm:$0xf] %v895
                  %v897 = vld [vmem:[%s735 + $0x23c] sm:$0xf]
                  %898 = vst [vmem:[%s736 + $0x140] sm:$0xf] %v897
                  %v899 = vld [vmem:[%s735 + $0x240] sm:$0xf]
                  %900 = vst [vmem:[%s736 + $0x144] sm:$0xf] %v899
                  %v901 = vld [vmem:[%s735 + $0x244] sm:$0xf]
                  %902 = vst [vmem:[%s736 + $0x148] sm:$0xf] %v901
                  %v903 = vld [vmem:[%s735 + $0x248] sm:$0xf]
                  %904 = vst [vmem:[%s736 + $0x14c] sm:$0xf] %v903
                  %v905 = vld [vmem:[%s735 + $0x24c] sm:$0xf]
                  %906 = vst [vmem:[%s736 + $0x150] sm:$0xf] %v905
                  %v907 = vld [vmem:[%s735 + $0x250] sm:$0xf]
                  %908 = vst [vmem:[%s736 + $0x154] sm:$0xf] %v907
                  %v909 = vld [vmem:[%s735 + $0x254] sm:$0xf]
                  %910 = vst [vmem:[%s736 + $0x158] sm:$0xf] %v909
                  %v911 = vld [vmem:[%s735 + $0x258] sm:$0xf]
                  %912 = vst [vmem:[%s736 + $0x15c] sm:$0xf] %v911
                  %v913 = vld [vmem:[%s735 + $0x25c] sm:$0xf]
                  %914 = vst [vmem:[%s736 + $0x160] sm:$0xf] %v913
                  %v915 = vld [vmem:[%s735 + $0x260] sm:$0xf]
                  %916 = vst [vmem:[%s736 + $0x164] sm:$0xf] %v915
                  %v917 = vld [vmem:[%s735 + $0x264] sm:$0xf]
                  %918 = vst [vmem:[%s736 + $0x168] sm:$0xf] %v917
                  %v919 = vld [vmem:[%s735 + $0x268] sm:$0xf]
                  %920 = vst [vmem:[%s736 + $0x16c] sm:$0xf] %v919
                  %v921 = vld [vmem:[%s735 + $0x26c] sm:$0xf]
                  %922 = vst [vmem:[%s736 + $0x170] sm:$0xf] %v921
                  %v923 = vld [vmem:[%s735 + $0x270] sm:$0xf]
                  %924 = vst [vmem:[%s736 + $0x174] sm:$0xf] %v923
                  %v925 = vld [vmem:[%s735 + $0x274] sm:$0xf]
                  %926 = vst [vmem:[%s736 + $0x178] sm:$0xf] %v925
                  %v927 = vld [vmem:[%s735 + $0x278] sm:$0xf]
                  %928 = vst [vmem:[%s736 + $0x17c] sm:$0xf] %v927
                  %v929 = vld [vmem:[%s735 + $0x27c] sm:$0xf]
                  %930 = vst [vmem:[%s736 + $0x180] sm:$0xf] %v929
                  %v931 = vld [vmem:[%s735 + $0x280] sm:$0xf]
                  %932 = vst [vmem:[%s736 + $0x184] sm:$0xf] %v931
                  %v933 = vld [vmem:[%s735 + $0x284] sm:$0xf]
                  %934 = vst [vmem:[%s736 + $0x188] sm:$0xf] %v933
                  %v935 = vld [vmem:[%s735 + $0x288] sm:$0xf]
                  %936 = vst [vmem:[%s736 + $0x18c] sm:$0xf] %v935
                  %v937 = vld [vmem:[%s735 + $0x28c] sm:$0xf]
                  %938 = vst [vmem:[%s736 + $0x190] sm:$0xf] %v937
                  %v939 = vld [vmem:[%s735 + $0x290] sm:$0xf]
                  %940 = vst [vmem:[%s736 + $0x194] sm:$0xf] %v939
                  %v941 = vld [vmem:[%s735 + $0x294] sm:$0xf]
                  %942 = vst [vmem:[%s736 + $0x198] sm:$0xf] %v941
                  %v943 = vld [vmem:[%s735 + $0x298] sm:$0xf]
                  %944 = vst [vmem:[%s736 + $0x19c] sm:$0xf] %v943
                  %v945 = vld [vmem:[%s735 + $0x29c] sm:$0xf]
                  %946 = vst [vmem:[%s736 + $0x1a0] sm:$0xf] %v945
                  %v947 = vld [vmem:[%s735 + $0x2a0] sm:$0xf]
                  %948 = vst [vmem:[%s736 + $0x1a4] sm:$0xf] %v947
                  %v949 = vld [vmem:[%s735 + $0x2a4] sm:$0xf]
                  %950 = vst [vmem:[%s736 + $0x1a8] sm:$0xf] %v949
                  %v951 = vld [vmem:[%s735 + $0x2a8] sm:$0xf]
                  %952 = vst [vmem:[%s736 + $0x1ac] sm:$0xf] %v951
                  %v953 = vld [vmem:[%s735 + $0x2ac] sm:$0xf]
                  %954 = vst [vmem:[%s736 + $0x1b0] sm:$0xf] %v953
                  %v955 = vld [vmem:[%s735 + $0x2b0] sm:$0xf]
                  %956 = vst [vmem:[%s736 + $0x1b4] sm:$0xf] %v955
                  %v957 = vld [vmem:[%s735 + $0x2b4] sm:$0xf]
                  %958 = vst [vmem:[%s736 + $0x1b8] sm:$0xf] %v957
                  %v959 = vld [vmem:[%s735 + $0x2b8] sm:$0xf]
                  %960 = vst [vmem:[%s736 + $0x1bc] sm:$0xf] %v959
                  %v961 = vld [vmem:[%s735 + $0x2bc] sm:$0xf]
                  %962 = vst [vmem:[%s736 + $0x1c0] sm:$0xf] %v961
                  %v963 = vld [vmem:[%s735 + $0x2c0] sm:$0xf]
                  %964 = vst [vmem:[%s736 + $0x1c4] sm:$0xf] %v963
                  %v965 = vld [vmem:[%s735 + $0x2c4] sm:$0xf]
                  %966 = vst [vmem:[%s736 + $0x1c8] sm:$0xf] %v965
                  %v967 = vld [vmem:[%s735 + $0x2c8] sm:$0xf]
                  %968 = vst [vmem:[%s736 + $0x1cc] sm:$0xf] %v967
                  %v969 = vld [vmem:[%s735 + $0x2cc] sm:$0xf]
                  %970 = vst [vmem:[%s736 + $0x1d0] sm:$0xf] %v969
                  %v971 = vld [vmem:[%s735 + $0x2d0] sm:$0xf]
                  %972 = vst [vmem:[%s736 + $0x1d4] sm:$0xf] %v971
                  %v973 = vld [vmem:[%s735 + $0x2d4] sm:$0xf]
                  %974 = vst [vmem:[%s736 + $0x1d8] sm:$0xf] %v973
                  %v975 = vld [vmem:[%s735 + $0x2d8] sm:$0xf]
                  %976 = vst [vmem:[%s736 + $0x1dc] sm:$0xf] %v975
                  %v977 = vld [vmem:[%s735 + $0x2dc] sm:$0xf]
                  %978 = vst [vmem:[%s736 + $0x1e0] sm:$0xf] %v977
                  %v979 = vld [vmem:[%s735 + $0x2e0] sm:$0xf]
                  %980 = vst [vmem:[%s736 + $0x1e4] sm:$0xf] %v979
                  %v981 = vld [vmem:[%s735 + $0x2e4] sm:$0xf]
                  %982 = vst [vmem:[%s736 + $0x1e8] sm:$0xf] %v981
                  %v983 = vld [vmem:[%s735 + $0x2e8] sm:$0xf]
                  %984 = vst [vmem:[%s736 + $0x1ec] sm:$0xf] %v983
                  %v985 = vld [vmem:[%s735 + $0x2ec] sm:$0xf]
                  %986 = vst [vmem:[%s736 + $0x1f0] sm:$0xf] %v985
                  %v987 = vld [vmem:[%s735 + $0x2f0] sm:$0xf]
                  %988 = vst [vmem:[%s736 + $0x1f4] sm:$0xf] %v987
                  %v989 = vld [vmem:[%s735 + $0x3f0] sm:$0xf]
                  %990 = vst [vmem:[%s736 + $0x1f8] sm:$0xf] %v989
                  %v991 = vld [vmem:[%s735 + $0x3f4] sm:$0xf]
                  %992 = vst [vmem:[%s736 + $0x1fc] sm:$0xf] %v991
                  %v993 = vld [vmem:[%s735 + $0x3f8] sm:$0xf]
                  %994 = vst [vmem:[%s736 + $0x200] sm:$0xf] %v993
                  %v995 = vld [vmem:[%s735 + $0x3fc] sm:$0xf]
                  %996 = vst [vmem:[%s736 + $0x204] sm:$0xf] %v995
                  %v997 = vld [vmem:[%s735 + $0x400] sm:$0xf]
                  %998 = vst [vmem:[%s736 + $0x208] sm:$0xf] %v997
                  %v999 = vld [vmem:[%s735 + $0x404] sm:$0xf]
                  %1000 = vst [vmem:[%s736 + $0x20c] sm:$0xf] %v999
                  %v1001 = vld [vmem:[%s735 + $0x408] sm:$0xf]
                  %1002 = vst [vmem:[%s736 + $0x210] sm:$0xf] %v1001
                  %v1003 = vld [vmem:[%s735 + $0x40c] sm:$0xf]
                  %1004 = vst [vmem:[%s736 + $0x214] sm:$0xf] %v1003
                  %v1005 = vld [vmem:[%s735 + $0x410] sm:$0xf]
                  %1006 = vst [vmem:[%s736 + $0x218] sm:$0xf] %v1005
                  %v1007 = vld [vmem:[%s735 + $0x414] sm:$0xf]
                  %1008 = vst [vmem:[%s736 + $0x21c] sm:$0xf] %v1007
                  %v1009 = vld [vmem:[%s735 + $0x418] sm:$0xf]
                  %1010 = vst [vmem:[%s736 + $0x220] sm:$0xf] %v1009
                  %v1011 = vld [vmem:[%s735 + $0x41c] sm:$0xf]
                  %1012 = vst [vmem:[%s736 + $0x224] sm:$0xf] %v1011
                  %v1013 = vld [vmem:[%s735 + $0x420] sm:$0xf]
                  %1014 = vst [vmem:[%s736 + $0x228] sm:$0xf] %v1013
                  %v1015 = vld [vmem:[%s735 + $0x424] sm:$0xf]
                  %1016 = vst [vmem:[%s736 + $0x22c] sm:$0xf] %v1015
                  %v1017 = vld [vmem:[%s735 + $0x428] sm:$0xf]
                  %1018 = vst [vmem:[%s736 + $0x230] sm:$0xf] %v1017
                  %v1019 = vld [vmem:[%s735 + $0x42c] sm:$0xf]
                  %1020 = vst [vmem:[%s736 + $0x234] sm:$0xf] %v1019
                  %v1021 = vld [vmem:[%s735 + $0x430] sm:$0xf]
                  %1022 = vst [vmem:[%s736 + $0x238] sm:$0xf] %v1021
                  %v1023 = vld [vmem:[%s735 + $0x434] sm:$0xf]
                  %1024 = vst [vmem:[%s736 + $0x23c] sm:$0xf] %v1023
                  %v1025 = vld [vmem:[%s735 + $0x438] sm:$0xf]
                  %1026 = vst [vmem:[%s736 + $0x240] sm:$0xf] %v1025
                  %v1027 = vld [vmem:[%s735 + $0x43c] sm:$0xf]
                  %1028 = vst [vmem:[%s736 + $0x244] sm:$0xf] %v1027
                  %v1029 = vld [vmem:[%s735 + $0x440] sm:$0xf]
                  %1030 = vst [vmem:[%s736 + $0x248] sm:$0xf] %v1029
                  %v1031 = vld [vmem:[%s735 + $0x444] sm:$0xf]
                  %1032 = vst [vmem:[%s736 + $0x24c] sm:$0xf] %v1031
                  %v1033 = vld [vmem:[%s735 + $0x448] sm:$0xf]
                  %1034 = vst [vmem:[%s736 + $0x250] sm:$0xf] %v1033
                  %v1035 = vld [vmem:[%s735 + $0x44c] sm:$0xf]
                  %1036 = vst [vmem:[%s736 + $0x254] sm:$0xf] %v1035
                  %v1037 = vld [vmem:[%s735 + $0x450] sm:$0xf]
                  %1038 = vst [vmem:[%s736 + $0x258] sm:$0xf] %v1037
                  %v1039 = vld [vmem:[%s735 + $0x454] sm:$0xf]
                  %1040 = vst [vmem:[%s736 + $0x25c] sm:$0xf] %v1039
                  %v1041 = vld [vmem:[%s735 + $0x458] sm:$0xf]
                  %1042 = vst [vmem:[%s736 + $0x260] sm:$0xf] %v1041
                  %v1043 = vld [vmem:[%s735 + $0x45c] sm:$0xf]
                  %1044 = vst [vmem:[%s736 + $0x264] sm:$0xf] %v1043
                  %v1045 = vld [vmem:[%s735 + $0x460] sm:$0xf]
                  %1046 = vst [vmem:[%s736 + $0x268] sm:$0xf] %v1045
                  %v1047 = vld [vmem:[%s735 + $0x464] sm:$0xf]
                  %1048 = vst [vmem:[%s736 + $0x26c] sm:$0xf] %v1047
                  %v1049 = vld [vmem:[%s735 + $0x468] sm:$0xf]
                  %1050 = vst [vmem:[%s736 + $0x270] sm:$0xf] %v1049
                  %v1051 = vld [vmem:[%s735 + $0x46c] sm:$0xf]
                  %1052 = vst [vmem:[%s736 + $0x274] sm:$0xf] %v1051
                  %v1053 = vld [vmem:[%s735 + $0x470] sm:$0xf]
                  %1054 = vst [vmem:[%s736 + $0x278] sm:$0xf] %v1053
                  %v1055 = vld [vmem:[%s735 + $0x474] sm:$0xf]
                  %1056 = vst [vmem:[%s736 + $0x27c] sm:$0xf] %v1055
                  %v1057 = vld [vmem:[%s735 + $0x478] sm:$0xf]
                  %1058 = vst [vmem:[%s736 + $0x280] sm:$0xf] %v1057
                  %v1059 = vld [vmem:[%s735 + $0x47c] sm:$0xf]
                  %1060 = vst [vmem:[%s736 + $0x284] sm:$0xf] %v1059
                  %v1061 = vld [vmem:[%s735 + $0x480] sm:$0xf]
                  %1062 = vst [vmem:[%s736 + $0x288] sm:$0xf] %v1061
                  %v1063 = vld [vmem:[%s735 + $0x484] sm:$0xf]
                  %1064 = vst [vmem:[%s736 + $0x28c] sm:$0xf] %v1063
                  %v1065 = vld [vmem:[%s735 + $0x488] sm:$0xf]
                  %1066 = vst [vmem:[%s736 + $0x290] sm:$0xf] %v1065
                  %v1067 = vld [vmem:[%s735 + $0x48c] sm:$0xf]
                  %1068 = vst [vmem:[%s736 + $0x294] sm:$0xf] %v1067
                  %v1069 = vld [vmem:[%s735 + $0x490] sm:$0xf]
                  %1070 = vst [vmem:[%s736 + $0x298] sm:$0xf] %v1069
                  %v1071 = vld [vmem:[%s735 + $0x494] sm:$0xf]
                  %1072 = vst [vmem:[%s736 + $0x29c] sm:$0xf] %v1071
                  %v1073 = vld [vmem:[%s735 + $0x498] sm:$0xf]
                  %1074 = vst [vmem:[%s736 + $0x2a0] sm:$0xf] %v1073
                  %v1075 = vld [vmem:[%s735 + $0x49c] sm:$0xf]
                  %1076 = vst [vmem:[%s736 + $0x2a4] sm:$0xf] %v1075
                  %v1077 = vld [vmem:[%s735 + $0x4a0] sm:$0xf]
                  %1078 = vst [vmem:[%s736 + $0x2a8] sm:$0xf] %v1077
                  %v1079 = vld [vmem:[%s735 + $0x4a4] sm:$0xf]
                  %1080 = vst [vmem:[%s736 + $0x2ac] sm:$0xf] %v1079
                  %v1081 = vld [vmem:[%s735 + $0x4a8] sm:$0xf]
                  %1082 = vst [vmem:[%s736 + $0x2b0] sm:$0xf] %v1081
                  %v1083 = vld [vmem:[%s735 + $0x4ac] sm:$0xf]
                  %1084 = vst [vmem:[%s736 + $0x2b4] sm:$0xf] %v1083
                  %v1085 = vld [vmem:[%s735 + $0x4b0] sm:$0xf]
                  %1086 = vst [vmem:[%s736 + $0x2b8] sm:$0xf] %v1085
                  %v1087 = vld [vmem:[%s735 + $0x4b4] sm:$0xf]
                  %1088 = vst [vmem:[%s736 + $0x2bc] sm:$0xf] %v1087
                  %v1089 = vld [vmem:[%s735 + $0x4b8] sm:$0xf]
                  %1090 = vst [vmem:[%s736 + $0x2c0] sm:$0xf] %v1089
                  %v1091 = vld [vmem:[%s735 + $0x4bc] sm:$0xf]
                  %1092 = vst [vmem:[%s736 + $0x2c4] sm:$0xf] %v1091
                  %v1093 = vld [vmem:[%s735 + $0x4c0] sm:$0xf]
                  %1094 = vst [vmem:[%s736 + $0x2c8] sm:$0xf] %v1093
                  %v1095 = vld [vmem:[%s735 + $0x4c4] sm:$0xf]
                  %1096 = vst [vmem:[%s736 + $0x2cc] sm:$0xf] %v1095
                  %v1097 = vld [vmem:[%s735 + $0x4c8] sm:$0xf]
                  %1098 = vst [vmem:[%s736 + $0x2d0] sm:$0xf] %v1097
                  %v1099 = vld [vmem:[%s735 + $0x4cc] sm:$0xf]
                  %1100 = vst [vmem:[%s736 + $0x2d4] sm:$0xf] %v1099
                  %v1101 = vld [vmem:[%s735 + $0x4d0] sm:$0xf]
                  %1102 = vst [vmem:[%s736 + $0x2d8] sm:$0xf] %v1101
                  %v1103 = vld [vmem:[%s735 + $0x4d4] sm:$0xf]
                  %1104 = vst [vmem:[%s736 + $0x2dc] sm:$0xf] %v1103
                  %v1105 = vld [vmem:[%s735 + $0x4d8] sm:$0xf]
                  %1106 = vst [vmem:[%s736 + $0x2e0] sm:$0xf] %v1105
                  %v1107 = vld [vmem:[%s735 + $0x4dc] sm:$0xf]
                  %1108 = vst [vmem:[%s736 + $0x2e4] sm:$0xf] %v1107
                  %v1109 = vld [vmem:[%s735 + $0x4e0] sm:$0xf]
                  %1110 = vst [vmem:[%s736 + $0x2e8] sm:$0xf] %v1109
                  %v1111 = vld [vmem:[%s735 + $0x4e4] sm:$0xf]
                  %1112 = vst [vmem:[%s736 + $0x2ec] sm:$0xf] %v1111
                  %v1113 = vld [vmem:[%s735 + $0x4e8] sm:$0xf]
                  %1114 = vst [vmem:[%s736 + $0x2f0] sm:$0xf] %v1113
                  %v1115 = vld [vmem:[%s735 + $0x5e8] sm:$0xf]
                  %1116 = vst [vmem:[%s736 + $0x2f4] sm:$0xf] %v1115
                  %v1117 = vld [vmem:[%s735 + $0x5ec] sm:$0xf]
                  %1118 = vst [vmem:[%s736 + $0x2f8] sm:$0xf] %v1117
                  %v1119 = vld [vmem:[%s735 + $0x5f0] sm:$0xf]
                  %1120 = vst [vmem:[%s736 + $0x2fc] sm:$0xf] %v1119
                  %v1121 = vld [vmem:[%s735 + $0x5f4] sm:$0xf]
                  %1122 = vst [vmem:[%s736 + $0x300] sm:$0xf] %v1121
                  %v1123 = vld [vmem:[%s735 + $0x5f8] sm:$0xf]
                  %1124 = vst [vmem:[%s736 + $0x304] sm:$0xf] %v1123
                  %v1125 = vld [vmem:[%s735 + $0x5fc] sm:$0xf]
                  %1126 = vst [vmem:[%s736 + $0x308] sm:$0xf] %v1125
                  %v1127 = vld [vmem:[%s735 + $0x600] sm:$0xf]
                  %1128 = vst [vmem:[%s736 + $0x30c] sm:$0xf] %v1127
                  %v1129 = vld [vmem:[%s735 + $0x604] sm:$0xf]
                  %1130 = vst [vmem:[%s736 + $0x310] sm:$0xf] %v1129
                  %v1131 = vld [vmem:[%s735 + $0x608] sm:$0xf]
                  %1132 = vst [vmem:[%s736 + $0x314] sm:$0xf] %v1131
                  %v1133 = vld [vmem:[%s735 + $0x60c] sm:$0xf]
                  %1134 = vst [vmem:[%s736 + $0x318] sm:$0xf] %v1133
                  %v1135 = vld [vmem:[%s735 + $0x610] sm:$0xf]
                  %1136 = vst [vmem:[%s736 + $0x31c] sm:$0xf] %v1135
                  %v1137 = vld [vmem:[%s735 + $0x614] sm:$0xf]
                  %1138 = vst [vmem:[%s736 + $0x320] sm:$0xf] %v1137
                  %v1139 = vld [vmem:[%s735 + $0x618] sm:$0xf]
                  %1140 = vst [vmem:[%s736 + $0x324] sm:$0xf] %v1139
                  %v1141 = vld [vmem:[%s735 + $0x61c] sm:$0xf]
                  %1142 = vst [vmem:[%s736 + $0x328] sm:$0xf] %v1141
                  %v1143 = vld [vmem:[%s735 + $0x620] sm:$0xf]
                  %1144 = vst [vmem:[%s736 + $0x32c] sm:$0xf] %v1143
                  %v1145 = vld [vmem:[%s735 + $0x624] sm:$0xf]
                  %1146 = vst [vmem:[%s736 + $0x330] sm:$0xf] %v1145
                  %v1147 = vld [vmem:[%s735 + $0x628] sm:$0xf]
                  %1148 = vst [vmem:[%s736 + $0x334] sm:$0xf] %v1147
                  %v1149 = vld [vmem:[%s735 + $0x62c] sm:$0xf]
                  %1150 = vst [vmem:[%s736 + $0x338] sm:$0xf] %v1149
                  %v1151 = vld [vmem:[%s735 + $0x630] sm:$0xf]
                  %1152 = vst [vmem:[%s736 + $0x33c] sm:$0xf] %v1151
                  %v1153 = vld [vmem:[%s735 + $0x634] sm:$0xf]
                  %1154 = vst [vmem:[%s736 + $0x340] sm:$0xf] %v1153
                  %v1155 = vld [vmem:[%s735 + $0x638] sm:$0xf]
                  %1156 = vst [vmem:[%s736 + $0x344] sm:$0xf] %v1155
                  %v1157 = vld [vmem:[%s735 + $0x63c] sm:$0xf]
                  %1158 = vst [vmem:[%s736 + $0x348] sm:$0xf] %v1157
                  %v1159 = vld [vmem:[%s735 + $0x640] sm:$0xf]
                  %1160 = vst [vmem:[%s736 + $0x34c] sm:$0xf] %v1159
                  %v1161 = vld [vmem:[%s735 + $0x644] sm:$0xf]
                  %1162 = vst [vmem:[%s736 + $0x350] sm:$0xf] %v1161
                  %v1163 = vld [vmem:[%s735 + $0x648] sm:$0xf]
                  %1164 = vst [vmem:[%s736 + $0x354] sm:$0xf] %v1163
                  %v1165 = vld [vmem:[%s735 + $0x64c] sm:$0xf]
                  %1166 = vst [vmem:[%s736 + $0x358] sm:$0xf] %v1165
                  %v1167 = vld [vmem:[%s735 + $0x650] sm:$0xf]
                  %1168 = vst [vmem:[%s736 + $0x35c] sm:$0xf] %v1167
                  %v1169 = vld [vmem:[%s735 + $0x654] sm:$0xf]
                  %1170 = vst [vmem:[%s736 + $0x360] sm:$0xf] %v1169
                  %v1171 = vld [vmem:[%s735 + $0x658] sm:$0xf]
                  %1172 = vst [vmem:[%s736 + $0x364] sm:$0xf] %v1171
                  %v1173 = vld [vmem:[%s735 + $0x65c] sm:$0xf]
                  %1174 = vst [vmem:[%s736 + $0x368] sm:$0xf] %v1173
                  %v1175 = vld [vmem:[%s735 + $0x660] sm:$0xf]
                  %1176 = vst [vmem:[%s736 + $0x36c] sm:$0xf] %v1175
                  %v1177 = vld [vmem:[%s735 + $0x664] sm:$0xf]
                  %1178 = vst [vmem:[%s736 + $0x370] sm:$0xf] %v1177
                  %v1179 = vld [vmem:[%s735 + $0x668] sm:$0xf]
                  %1180 = vst [vmem:[%s736 + $0x374] sm:$0xf] %v1179
                  %v1181 = vld [vmem:[%s735 + $0x66c] sm:$0xf]
                  %1182 = vst [vmem:[%s736 + $0x378] sm:$0xf] %v1181
                  %v1183 = vld [vmem:[%s735 + $0x670] sm:$0xf]
                  %1184 = vst [vmem:[%s736 + $0x37c] sm:$0xf] %v1183
                  %v1185 = vld [vmem:[%s735 + $0x674] sm:$0xf]
                  %1186 = vst [vmem:[%s736 + $0x380] sm:$0xf] %v1185
                  %v1187 = vld [vmem:[%s735 + $0x678] sm:$0xf]
                  %1188 = vst [vmem:[%s736 + $0x384] sm:$0xf] %v1187
                  %v1189 = vld [vmem:[%s735 + $0x67c] sm:$0xf]
                  %1190 = vst [vmem:[%s736 + $0x388] sm:$0xf] %v1189
                  %v1191 = vld [vmem:[%s735 + $0x680] sm:$0xf]
                  %1192 = vst [vmem:[%s736 + $0x38c] sm:$0xf] %v1191
                  %v1193 = vld [vmem:[%s735 + $0x684] sm:$0xf]
                  %1194 = vst [vmem:[%s736 + $0x390] sm:$0xf] %v1193
                  %v1195 = vld [vmem:[%s735 + $0x688] sm:$0xf]
                  %1196 = vst [vmem:[%s736 + $0x394] sm:$0xf] %v1195
                  %v1197 = vld [vmem:[%s735 + $0x68c] sm:$0xf]
                  %1198 = vst [vmem:[%s736 + $0x398] sm:$0xf] %v1197
                  %v1199 = vld [vmem:[%s735 + $0x690] sm:$0xf]
                  %1200 = vst [vmem:[%s736 + $0x39c] sm:$0xf] %v1199
                  %v1201 = vld [vmem:[%s735 + $0x694] sm:$0xf]
                  %1202 = vst [vmem:[%s736 + $0x3a0] sm:$0xf] %v1201
                  %v1203 = vld [vmem:[%s735 + $0x698] sm:$0xf]
                  %1204 = vst [vmem:[%s736 + $0x3a4] sm:$0xf] %v1203
                  %v1205 = vld [vmem:[%s735 + $0x69c] sm:$0xf]
                  %1206 = vst [vmem:[%s736 + $0x3a8] sm:$0xf] %v1205
                  %v1207 = vld [vmem:[%s735 + $0x6a0] sm:$0xf]
                  %1208 = vst [vmem:[%s736 + $0x3ac] sm:$0xf] %v1207
                  %v1209 = vld [vmem:[%s735 + $0x6a4] sm:$0xf]
                  %1210 = vst [vmem:[%s736 + $0x3b0] sm:$0xf] %v1209
                  %v1211 = vld [vmem:[%s735 + $0x6a8] sm:$0xf]
                  %1212 = vst [vmem:[%s736 + $0x3b4] sm:$0xf] %v1211
                  %v1213 = vld [vmem:[%s735 + $0x6ac] sm:$0xf]
                  %1214 = vst [vmem:[%s736 + $0x3b8] sm:$0xf] %v1213
                  %v1215 = vld [vmem:[%s735 + $0x6b0] sm:$0xf]
                  %1216 = vst [vmem:[%s736 + $0x3bc] sm:$0xf] %v1215
                  %v1217 = vld [vmem:[%s735 + $0x6b4] sm:$0xf]
                  %1218 = vst [vmem:[%s736 + $0x3c0] sm:$0xf] %v1217
                  %v1219 = vld [vmem:[%s735 + $0x6b8] sm:$0xf]
                  %1220 = vst [vmem:[%s736 + $0x3c4] sm:$0xf] %v1219
                  %v1221 = vld [vmem:[%s735 + $0x6bc] sm:$0xf]
                  %1222 = vst [vmem:[%s736 + $0x3c8] sm:$0xf] %v1221
                  %v1223 = vld [vmem:[%s735 + $0x6c0] sm:$0xf]
                  %1224 = vst [vmem:[%s736 + $0x3cc] sm:$0xf] %v1223
                  %v1225 = vld [vmem:[%s735 + $0x6c4] sm:$0xf]
                  %1226 = vst [vmem:[%s736 + $0x3d0] sm:$0xf] %v1225
                  %v1227 = vld [vmem:[%s735 + $0x6c8] sm:$0xf]
                  %1228 = vst [vmem:[%s736 + $0x3d4] sm:$0xf] %v1227
                  %v1229 = vld [vmem:[%s735 + $0x6cc] sm:$0xf]
                  %1230 = vst [vmem:[%s736 + $0x3d8] sm:$0xf] %v1229
                  %v1231 = vld [vmem:[%s735 + $0x6d0] sm:$0xf]
                  %1232 = vst [vmem:[%s736 + $0x3dc] sm:$0xf] %v1231
                  %v1233 = vld [vmem:[%s735 + $0x6d4] sm:$0xf]
                  %1234 = vst [vmem:[%s736 + $0x3e0] sm:$0xf] %v1233
                  %v1235 = vld [vmem:[%s735 + $0x6d8] sm:$0xf]
                  %1236 = vst [vmem:[%s736 + $0x3e4] sm:$0xf] %v1235
                  %v1237 = vld [vmem:[%s735 + $0x6dc] sm:$0xf]
                  %1238 = vst [vmem:[%s736 + $0x3e8] sm:$0xf] %v1237
                  %v1239 = vld [vmem:[%s735 + $0x6e0] sm:$0xf]
                  %1240 = vst [vmem:[%s736 + $0x3ec] sm:$0xf] %v1239
                $region67: #{basicnet_forward.1} parent=54 // loop_footer
                  %s734 = sadd.s32 1, %s730
                $region68: #{basicnet_forward.1} parent=54 // loop_footer_branch
                  %729 = sbr.rel target = $region64
                $region69: #{basicnet_forward.1} parent=54 // loop_exit
                  _
              $region55: #{basicnet_forward.1} parent=39 // pred_fallthru
                _
            $region40: #{basicnet_forward.1} parent=35 // pred_fallthru
              _
            // Predicated region
            $region41: #{basicnet_forward.1} parent=35 // pred_check
              _
            $region42: #{basicnet_forward.1} parent=35 // pred_check_branch
              %204 = sbr.rel (0) target = $region44
            $region43: #{basicnet_forward.1} parent=35 // pred_region
              loop: start=0, step=1, limit=1
              $region45: #{basicnet_forward.1} parent=43 // loop_pre_header
                _
              $region46: #{basicnet_forward.1} parent=43 // loop_header
                %s207 = sphi 0, %s211
                %p208 = scmp.ge.s32.totalorder %s207, 1
                %s212 = sphi %s198, %s198
                %s213 = sphi %s195, %s195
              $region47: #{basicnet_forward.1} parent=43 // loop_header_branch
                %210 = sbr.rel (%p208) target = $region51
              $region48: #{basicnet_forward.1} parent=43 // loop_body
                %v214 = vld [vmem:[%s212] sm:$0xf]
                %215 = vst [vmem:[%s213] sm:$0xf] %v214
                %v216 = vld [vmem:[%s212 + $0x4] sm:$0xf]
                %217 = vst [vmem:[%s213 + $0x4] sm:$0xf] %v216
                %v218 = vld [vmem:[%s212 + $0x8] sm:$0xf]
                %219 = vst [vmem:[%s213 + $0x8] sm:$0xf] %v218
                %v220 = vld [vmem:[%s212 + $0xc] sm:$0xf]
                %221 = vst [vmem:[%s213 + $0xc] sm:$0xf] %v220
                %v222 = vld [vmem:[%s212 + $0x10] sm:$0xf]
                %223 = vst [vmem:[%s213 + $0x10] sm:$0xf] %v222
                %v224 = vld [vmem:[%s212 + $0x14] sm:$0xf]
                %225 = vst [vmem:[%s213 + $0x14] sm:$0xf] %v224
                %v226 = vld [vmem:[%s212 + $0x18] sm:$0xf]
                %227 = vst [vmem:[%s213 + $0x18] sm:$0xf] %v226
                %v228 = vld [vmem:[%s212 + $0x1c] sm:$0xf]
                %229 = vst [vmem:[%s213 + $0x1c] sm:$0xf] %v228
                %v230 = vld [vmem:[%s212 + $0x20] sm:$0xf]
                %231 = vst [vmem:[%s213 + $0x20] sm:$0xf] %v230
                %v232 = vld [vmem:[%s212 + $0x24] sm:$0xf]
                %233 = vst [vmem:[%s213 + $0x24] sm:$0xf] %v232
                %v234 = vld [vmem:[%s212 + $0x28] sm:$0xf]
                %235 = vst [vmem:[%s213 + $0x28] sm:$0xf] %v234
                %v236 = vld [vmem:[%s212 + $0x2c] sm:$0xf]
                %237 = vst [vmem:[%s213 + $0x2c] sm:$0xf] %v236
                %v238 = vld [vmem:[%s212 + $0x30] sm:$0xf]
                %239 = vst [vmem:[%s213 + $0x30] sm:$0xf] %v238
                %v240 = vld [vmem:[%s212 + $0x34] sm:$0xf]
                %241 = vst [vmem:[%s213 + $0x34] sm:$0xf] %v240
                %v242 = vld [vmem:[%s212 + $0x38] sm:$0xf]
                %243 = vst [vmem:[%s213 + $0x38] sm:$0xf] %v242
                %v244 = vld [vmem:[%s212 + $0x3c] sm:$0xf]
                %245 = vst [vmem:[%s213 + $0x3c] sm:$0xf] %v244
                %v246 = vld [vmem:[%s212 + $0x40] sm:$0xf]
                %247 = vst [vmem:[%s213 + $0x40] sm:$0xf] %v246
                %v248 = vld [vmem:[%s212 + $0x44] sm:$0xf]
                %249 = vst [vmem:[%s213 + $0x44] sm:$0xf] %v248
                %v250 = vld [vmem:[%s212 + $0x48] sm:$0xf]
                %251 = vst [vmem:[%s213 + $0x48] sm:$0xf] %v250
                %v252 = vld [vmem:[%s212 + $0x4c] sm:$0xf]
                %253 = vst [vmem:[%s213 + $0x4c] sm:$0xf] %v252
                %v254 = vld [vmem:[%s212 + $0x50] sm:$0xf]
                %255 = vst [vmem:[%s213 + $0x50] sm:$0xf] %v254
                %v256 = vld [vmem:[%s212 + $0x54] sm:$0xf]
                %257 = vst [vmem:[%s213 + $0x54] sm:$0xf] %v256
                %v258 = vld [vmem:[%s212 + $0x58] sm:$0xf]
                %259 = vst [vmem:[%s213 + $0x58] sm:$0xf] %v258
                %v260 = vld [vmem:[%s212 + $0x5c] sm:$0xf]
                %261 = vst [vmem:[%s213 + $0x5c] sm:$0xf] %v260
                %v262 = vld [vmem:[%s212 + $0x60] sm:$0xf]
                %263 = vst [vmem:[%s213 + $0x60] sm:$0xf] %v262
                %v264 = vld [vmem:[%s212 + $0x64] sm:$0xf]
                %265 = vst [vmem:[%s213 + $0x64] sm:$0xf] %v264
                %v266 = vld [vmem:[%s212 + $0x68] sm:$0xf]
                %267 = vst [vmem:[%s213 + $0x68] sm:$0xf] %v266
                %v268 = vld [vmem:[%s212 + $0x6c] sm:$0xf]
                %269 = vst [vmem:[%s213 + $0x6c] sm:$0xf] %v268
                %v270 = vld [vmem:[%s212 + $0x70] sm:$0xf]
                %271 = vst [vmem:[%s213 + $0x70] sm:$0xf] %v270
                %v272 = vld [vmem:[%s212 + $0x74] sm:$0xf]
                %273 = vst [vmem:[%s213 + $0x74] sm:$0xf] %v272
                %v274 = vld [vmem:[%s212 + $0x78] sm:$0xf]
                %275 = vst [vmem:[%s213 + $0x78] sm:$0xf] %v274
                %v276 = vld [vmem:[%s212 + $0x7c] sm:$0xf]
                %277 = vst [vmem:[%s213 + $0x7c] sm:$0xf] %v276
                %v278 = vld [vmem:[%s212 + $0x80] sm:$0xf]
                %279 = vst [vmem:[%s213 + $0x80] sm:$0xf] %v278
                %v280 = vld [vmem:[%s212 + $0x84] sm:$0xf]
                %281 = vst [vmem:[%s213 + $0x84] sm:$0xf] %v280
                %v282 = vld [vmem:[%s212 + $0x88] sm:$0xf]
                %283 = vst [vmem:[%s213 + $0x88] sm:$0xf] %v282
                %v284 = vld [vmem:[%s212 + $0x8c] sm:$0xf]
                %285 = vst [vmem:[%s213 + $0x8c] sm:$0xf] %v284
                %v286 = vld [vmem:[%s212 + $0x90] sm:$0xf]
                %287 = vst [vmem:[%s213 + $0x90] sm:$0xf] %v286
                %v288 = vld [vmem:[%s212 + $0x94] sm:$0xf]
                %289 = vst [vmem:[%s213 + $0x94] sm:$0xf] %v288
                %v290 = vld [vmem:[%s212 + $0x98] sm:$0xf]
                %291 = vst [vmem:[%s213 + $0x98] sm:$0xf] %v290
                %v292 = vld [vmem:[%s212 + $0x9c] sm:$0xf]
                %293 = vst [vmem:[%s213 + $0x9c] sm:$0xf] %v292
                %v294 = vld [vmem:[%s212 + $0xa0] sm:$0xf]
                %295 = vst [vmem:[%s213 + $0xa0] sm:$0xf] %v294
                %v296 = vld [vmem:[%s212 + $0xa4] sm:$0xf]
                %297 = vst [vmem:[%s213 + $0xa4] sm:$0xf] %v296
                %v298 = vld [vmem:[%s212 + $0xa8] sm:$0xf]
                %299 = vst [vmem:[%s213 + $0xa8] sm:$0xf] %v298
                %v300 = vld [vmem:[%s212 + $0xac] sm:$0xf]
                %301 = vst [vmem:[%s213 + $0xac] sm:$0xf] %v300
                %v302 = vld [vmem:[%s212 + $0xb0] sm:$0xf]
                %303 = vst [vmem:[%s213 + $0xb0] sm:$0xf] %v302
                %v304 = vld [vmem:[%s212 + $0xb4] sm:$0xf]
                %305 = vst [vmem:[%s213 + $0xb4] sm:$0xf] %v304
                %v306 = vld [vmem:[%s212 + $0xb8] sm:$0xf]
                %307 = vst [vmem:[%s213 + $0xb8] sm:$0xf] %v306
                %v308 = vld [vmem:[%s212 + $0xbc] sm:$0xf]
                %309 = vst [vmem:[%s213 + $0xbc] sm:$0xf] %v308
                %v310 = vld [vmem:[%s212 + $0xc0] sm:$0xf]
                %311 = vst [vmem:[%s213 + $0xc0] sm:$0xf] %v310
                %v312 = vld [vmem:[%s212 + $0xc4] sm:$0xf]
                %313 = vst [vmem:[%s213 + $0xc4] sm:$0xf] %v312
                %v314 = vld [vmem:[%s212 + $0xc8] sm:$0xf]
                %315 = vst [vmem:[%s213 + $0xc8] sm:$0xf] %v314
                %v316 = vld [vmem:[%s212 + $0xcc] sm:$0xf]
                %317 = vst [vmem:[%s213 + $0xcc] sm:$0xf] %v316
                %v318 = vld [vmem:[%s212 + $0xd0] sm:$0xf]
                %319 = vst [vmem:[%s213 + $0xd0] sm:$0xf] %v318
                %v320 = vld [vmem:[%s212 + $0xd4] sm:$0xf]
                %321 = vst [vmem:[%s213 + $0xd4] sm:$0xf] %v320
                %v322 = vld [vmem:[%s212 + $0xd8] sm:$0xf]
                %323 = vst [vmem:[%s213 + $0xd8] sm:$0xf] %v322
                %v324 = vld [vmem:[%s212 + $0xdc] sm:$0xf]
                %325 = vst [vmem:[%s213 + $0xdc] sm:$0xf] %v324
                %v326 = vld [vmem:[%s212 + $0xe0] sm:$0xf]
                %327 = vst [vmem:[%s213 + $0xe0] sm:$0xf] %v326
                %v328 = vld [vmem:[%s212 + $0xe4] sm:$0xf]
                %329 = vst [vmem:[%s213 + $0xe4] sm:$0xf] %v328
                %v330 = vld [vmem:[%s212 + $0xe8] sm:$0xf]
                %331 = vst [vmem:[%s213 + $0xe8] sm:$0xf] %v330
                %v332 = vld [vmem:[%s212 + $0xec] sm:$0xf]
                %333 = vst [vmem:[%s213 + $0xec] sm:$0xf] %v332
                %v334 = vld [vmem:[%s212 + $0xf0] sm:$0xf]
                %335 = vst [vmem:[%s213 + $0xf0] sm:$0xf] %v334
                %v336 = vld [vmem:[%s212 + $0xf4] sm:$0xf]
                %337 = vst [vmem:[%s213 + $0xf4] sm:$0xf] %v336
                %v338 = vld [vmem:[%s212 + $0xf8] sm:$0xf]
                %339 = vst [vmem:[%s213 + $0xf8] sm:$0xf] %v338
                %v340 = vld [vmem:[%s212 + $0x1f8] sm:$0xf]
                %341 = vst [vmem:[%s213 + $0xfc] sm:$0xf] %v340
                %v342 = vld [vmem:[%s212 + $0x1fc] sm:$0xf]
                %343 = vst [vmem:[%s213 + $0x100] sm:$0xf] %v342
                %v344 = vld [vmem:[%s212 + $0x200] sm:$0xf]
                %345 = vst [vmem:[%s213 + $0x104] sm:$0xf] %v344
                %v346 = vld [vmem:[%s212 + $0x204] sm:$0xf]
                %347 = vst [vmem:[%s213 + $0x108] sm:$0xf] %v346
                %v348 = vld [vmem:[%s212 + $0x208] sm:$0xf]
                %349 = vst [vmem:[%s213 + $0x10c] sm:$0xf] %v348
                %v350 = vld [vmem:[%s212 + $0x20c] sm:$0xf]
                %351 = vst [vmem:[%s213 + $0x110] sm:$0xf] %v350
                %v352 = vld [vmem:[%s212 + $0x210] sm:$0xf]
                %353 = vst [vmem:[%s213 + $0x114] sm:$0xf] %v352
                %v354 = vld [vmem:[%s212 + $0x214] sm:$0xf]
                %355 = vst [vmem:[%s213 + $0x118] sm:$0xf] %v354
                %v356 = vld [vmem:[%s212 + $0x218] sm:$0xf]
                %357 = vst [vmem:[%s213 + $0x11c] sm:$0xf] %v356
                %v358 = vld [vmem:[%s212 + $0x21c] sm:$0xf]
                %359 = vst [vmem:[%s213 + $0x120] sm:$0xf] %v358
                %v360 = vld [vmem:[%s212 + $0x220] sm:$0xf]
                %361 = vst [vmem:[%s213 + $0x124] sm:$0xf] %v360
                %v362 = vld [vmem:[%s212 + $0x224] sm:$0xf]
                %363 = vst [vmem:[%s213 + $0x128] sm:$0xf] %v362
                %v364 = vld [vmem:[%s212 + $0x228] sm:$0xf]
                %365 = vst [vmem:[%s213 + $0x12c] sm:$0xf] %v364
                %v366 = vld [vmem:[%s212 + $0x22c] sm:$0xf]
                %367 = vst [vmem:[%s213 + $0x130] sm:$0xf] %v366
                %v368 = vld [vmem:[%s212 + $0x230] sm:$0xf]
                %369 = vst [vmem:[%s213 + $0x134] sm:$0xf] %v368
                %v370 = vld [vmem:[%s212 + $0x234] sm:$0xf]
                %371 = vst [vmem:[%s213 + $0x138] sm:$0xf] %v370
                %v372 = vld [vmem:[%s212 + $0x238] sm:$0xf]
                %373 = vst [vmem:[%s213 + $0x13c] sm:$0xf] %v372
                %v374 = vld [vmem:[%s212 + $0x23c] sm:$0xf]
                %375 = vst [vmem:[%s213 + $0x140] sm:$0xf] %v374
                %v376 = vld [vmem:[%s212 + $0x240] sm:$0xf]
                %377 = vst [vmem:[%s213 + $0x144] sm:$0xf] %v376
                %v378 = vld [vmem:[%s212 + $0x244] sm:$0xf]
                %379 = vst [vmem:[%s213 + $0x148] sm:$0xf] %v378
                %v380 = vld [vmem:[%s212 + $0x248] sm:$0xf]
                %381 = vst [vmem:[%s213 + $0x14c] sm:$0xf] %v380
                %v382 = vld [vmem:[%s212 + $0x24c] sm:$0xf]
                %383 = vst [vmem:[%s213 + $0x150] sm:$0xf] %v382
                %v384 = vld [vmem:[%s212 + $0x250] sm:$0xf]
                %385 = vst [vmem:[%s213 + $0x154] sm:$0xf] %v384
                %v386 = vld [vmem:[%s212 + $0x254] sm:$0xf]
                %387 = vst [vmem:[%s213 + $0x158] sm:$0xf] %v386
                %v388 = vld [vmem:[%s212 + $0x258] sm:$0xf]
                %389 = vst [vmem:[%s213 + $0x15c] sm:$0xf] %v388
                %v390 = vld [vmem:[%s212 + $0x25c] sm:$0xf]
                %391 = vst [vmem:[%s213 + $0x160] sm:$0xf] %v390
                %v392 = vld [vmem:[%s212 + $0x260] sm:$0xf]
                %393 = vst [vmem:[%s213 + $0x164] sm:$0xf] %v392
                %v394 = vld [vmem:[%s212 + $0x264] sm:$0xf]
                %395 = vst [vmem:[%s213 + $0x168] sm:$0xf] %v394
                %v396 = vld [vmem:[%s212 + $0x268] sm:$0xf]
                %397 = vst [vmem:[%s213 + $0x16c] sm:$0xf] %v396
                %v398 = vld [vmem:[%s212 + $0x26c] sm:$0xf]
                %399 = vst [vmem:[%s213 + $0x170] sm:$0xf] %v398
                %v400 = vld [vmem:[%s212 + $0x270] sm:$0xf]
                %401 = vst [vmem:[%s213 + $0x174] sm:$0xf] %v400
                %v402 = vld [vmem:[%s212 + $0x274] sm:$0xf]
                %403 = vst [vmem:[%s213 + $0x178] sm:$0xf] %v402
                %v404 = vld [vmem:[%s212 + $0x278] sm:$0xf]
                %405 = vst [vmem:[%s213 + $0x17c] sm:$0xf] %v404
                %v406 = vld [vmem:[%s212 + $0x27c] sm:$0xf]
                %407 = vst [vmem:[%s213 + $0x180] sm:$0xf] %v406
                %v408 = vld [vmem:[%s212 + $0x280] sm:$0xf]
                %409 = vst [vmem:[%s213 + $0x184] sm:$0xf] %v408
                %v410 = vld [vmem:[%s212 + $0x284] sm:$0xf]
                %411 = vst [vmem:[%s213 + $0x188] sm:$0xf] %v410
                %v412 = vld [vmem:[%s212 + $0x288] sm:$0xf]
                %413 = vst [vmem:[%s213 + $0x18c] sm:$0xf] %v412
                %v414 = vld [vmem:[%s212 + $0x28c] sm:$0xf]
                %415 = vst [vmem:[%s213 + $0x190] sm:$0xf] %v414
                %v416 = vld [vmem:[%s212 + $0x290] sm:$0xf]
                %417 = vst [vmem:[%s213 + $0x194] sm:$0xf] %v416
                %v418 = vld [vmem:[%s212 + $0x294] sm:$0xf]
                %419 = vst [vmem:[%s213 + $0x198] sm:$0xf] %v418
                %v420 = vld [vmem:[%s212 + $0x298] sm:$0xf]
                %421 = vst [vmem:[%s213 + $0x19c] sm:$0xf] %v420
                %v422 = vld [vmem:[%s212 + $0x29c] sm:$0xf]
                %423 = vst [vmem:[%s213 + $0x1a0] sm:$0xf] %v422
                %v424 = vld [vmem:[%s212 + $0x2a0] sm:$0xf]
                %425 = vst [vmem:[%s213 + $0x1a4] sm:$0xf] %v424
                %v426 = vld [vmem:[%s212 + $0x2a4] sm:$0xf]
                %427 = vst [vmem:[%s213 + $0x1a8] sm:$0xf] %v426
                %v428 = vld [vmem:[%s212 + $0x2a8] sm:$0xf]
                %429 = vst [vmem:[%s213 + $0x1ac] sm:$0xf] %v428
                %v430 = vld [vmem:[%s212 + $0x2ac] sm:$0xf]
                %431 = vst [vmem:[%s213 + $0x1b0] sm:$0xf] %v430
                %v432 = vld [vmem:[%s212 + $0x2b0] sm:$0xf]
                %433 = vst [vmem:[%s213 + $0x1b4] sm:$0xf] %v432
                %v434 = vld [vmem:[%s212 + $0x2b4] sm:$0xf]
                %435 = vst [vmem:[%s213 + $0x1b8] sm:$0xf] %v434
                %v436 = vld [vmem:[%s212 + $0x2b8] sm:$0xf]
                %437 = vst [vmem:[%s213 + $0x1bc] sm:$0xf] %v436
                %v438 = vld [vmem:[%s212 + $0x2bc] sm:$0xf]
                %439 = vst [vmem:[%s213 + $0x1c0] sm:$0xf] %v438
                %v440 = vld [vmem:[%s212 + $0x2c0] sm:$0xf]
                %441 = vst [vmem:[%s213 + $0x1c4] sm:$0xf] %v440
                %v442 = vld [vmem:[%s212 + $0x2c4] sm:$0xf]
                %443 = vst [vmem:[%s213 + $0x1c8] sm:$0xf] %v442
                %v444 = vld [vmem:[%s212 + $0x2c8] sm:$0xf]
                %445 = vst [vmem:[%s213 + $0x1cc] sm:$0xf] %v444
                %v446 = vld [vmem:[%s212 + $0x2cc] sm:$0xf]
                %447 = vst [vmem:[%s213 + $0x1d0] sm:$0xf] %v446
                %v448 = vld [vmem:[%s212 + $0x2d0] sm:$0xf]
                %449 = vst [vmem:[%s213 + $0x1d4] sm:$0xf] %v448
                %v450 = vld [vmem:[%s212 + $0x2d4] sm:$0xf]
                %451 = vst [vmem:[%s213 + $0x1d8] sm:$0xf] %v450
                %v452 = vld [vmem:[%s212 + $0x2d8] sm:$0xf]
                %453 = vst [vmem:[%s213 + $0x1dc] sm:$0xf] %v452
                %v454 = vld [vmem:[%s212 + $0x2dc] sm:$0xf]
                %455 = vst [vmem:[%s213 + $0x1e0] sm:$0xf] %v454
                %v456 = vld [vmem:[%s212 + $0x2e0] sm:$0xf]
                %457 = vst [vmem:[%s213 + $0x1e4] sm:$0xf] %v456
                %v458 = vld [vmem:[%s212 + $0x2e4] sm:$0xf]
                %459 = vst [vmem:[%s213 + $0x1e8] sm:$0xf] %v458
                %v460 = vld [vmem:[%s212 + $0x2e8] sm:$0xf]
                %461 = vst [vmem:[%s213 + $0x1ec] sm:$0xf] %v460
                %v462 = vld [vmem:[%s212 + $0x2ec] sm:$0xf]
                %463 = vst [vmem:[%s213 + $0x1f0] sm:$0xf] %v462
                %v464 = vld [vmem:[%s212 + $0x2f0] sm:$0xf]
                %465 = vst [vmem:[%s213 + $0x1f4] sm:$0xf] %v464
                %v466 = vld [vmem:[%s212 + $0x3f0] sm:$0xf]
                %467 = vst [vmem:[%s213 + $0x1f8] sm:$0xf] %v466
                %v468 = vld [vmem:[%s212 + $0x3f4] sm:$0xf]
                %469 = vst [vmem:[%s213 + $0x1fc] sm:$0xf] %v468
                %v470 = vld [vmem:[%s212 + $0x3f8] sm:$0xf]
                %471 = vst [vmem:[%s213 + $0x200] sm:$0xf] %v470
                %v472 = vld [vmem:[%s212 + $0x3fc] sm:$0xf]
                %473 = vst [vmem:[%s213 + $0x204] sm:$0xf] %v472
                %v474 = vld [vmem:[%s212 + $0x400] sm:$0xf]
                %475 = vst [vmem:[%s213 + $0x208] sm:$0xf] %v474
                %v476 = vld [vmem:[%s212 + $0x404] sm:$0xf]
                %477 = vst [vmem:[%s213 + $0x20c] sm:$0xf] %v476
                %v478 = vld [vmem:[%s212 + $0x408] sm:$0xf]
                %479 = vst [vmem:[%s213 + $0x210] sm:$0xf] %v478
                %v480 = vld [vmem:[%s212 + $0x40c] sm:$0xf]
                %481 = vst [vmem:[%s213 + $0x214] sm:$0xf] %v480
                %v482 = vld [vmem:[%s212 + $0x410] sm:$0xf]
                %483 = vst [vmem:[%s213 + $0x218] sm:$0xf] %v482
                %v484 = vld [vmem:[%s212 + $0x414] sm:$0xf]
                %485 = vst [vmem:[%s213 + $0x21c] sm:$0xf] %v484
                %v486 = vld [vmem:[%s212 + $0x418] sm:$0xf]
                %487 = vst [vmem:[%s213 + $0x220] sm:$0xf] %v486
                %v488 = vld [vmem:[%s212 + $0x41c] sm:$0xf]
                %489 = vst [vmem:[%s213 + $0x224] sm:$0xf] %v488
                %v490 = vld [vmem:[%s212 + $0x420] sm:$0xf]
                %491 = vst [vmem:[%s213 + $0x228] sm:$0xf] %v490
                %v492 = vld [vmem:[%s212 + $0x424] sm:$0xf]
                %493 = vst [vmem:[%s213 + $0x22c] sm:$0xf] %v492
                %v494 = vld [vmem:[%s212 + $0x428] sm:$0xf]
                %495 = vst [vmem:[%s213 + $0x230] sm:$0xf] %v494
                %v496 = vld [vmem:[%s212 + $0x42c] sm:$0xf]
                %497 = vst [vmem:[%s213 + $0x234] sm:$0xf] %v496
                %v498 = vld [vmem:[%s212 + $0x430] sm:$0xf]
                %499 = vst [vmem:[%s213 + $0x238] sm:$0xf] %v498
                %v500 = vld [vmem:[%s212 + $0x434] sm:$0xf]
                %501 = vst [vmem:[%s213 + $0x23c] sm:$0xf] %v500
                %v502 = vld [vmem:[%s212 + $0x438] sm:$0xf]
                %503 = vst [vmem:[%s213 + $0x240] sm:$0xf] %v502
                %v504 = vld [vmem:[%s212 + $0x43c] sm:$0xf]
                %505 = vst [vmem:[%s213 + $0x244] sm:$0xf] %v504
                %v506 = vld [vmem:[%s212 + $0x440] sm:$0xf]
                %507 = vst [vmem:[%s213 + $0x248] sm:$0xf] %v506
                %v508 = vld [vmem:[%s212 + $0x444] sm:$0xf]
                %509 = vst [vmem:[%s213 + $0x24c] sm:$0xf] %v508
                %v510 = vld [vmem:[%s212 + $0x448] sm:$0xf]
                %511 = vst [vmem:[%s213 + $0x250] sm:$0xf] %v510
                %v512 = vld [vmem:[%s212 + $0x44c] sm:$0xf]
                %513 = vst [vmem:[%s213 + $0x254] sm:$0xf] %v512
                %v514 = vld [vmem:[%s212 + $0x450] sm:$0xf]
                %515 = vst [vmem:[%s213 + $0x258] sm:$0xf] %v514
                %v516 = vld [vmem:[%s212 + $0x454] sm:$0xf]
                %517 = vst [vmem:[%s213 + $0x25c] sm:$0xf] %v516
                %v518 = vld [vmem:[%s212 + $0x458] sm:$0xf]
                %519 = vst [vmem:[%s213 + $0x260] sm:$0xf] %v518
                %v520 = vld [vmem:[%s212 + $0x45c] sm:$0xf]
                %521 = vst [vmem:[%s213 + $0x264] sm:$0xf] %v520
                %v522 = vld [vmem:[%s212 + $0x460] sm:$0xf]
                %523 = vst [vmem:[%s213 + $0x268] sm:$0xf] %v522
                %v524 = vld [vmem:[%s212 + $0x464] sm:$0xf]
                %525 = vst [vmem:[%s213 + $0x26c] sm:$0xf] %v524
                %v526 = vld [vmem:[%s212 + $0x468] sm:$0xf]
                %527 = vst [vmem:[%s213 + $0x270] sm:$0xf] %v526
                %v528 = vld [vmem:[%s212 + $0x46c] sm:$0xf]
                %529 = vst [vmem:[%s213 + $0x274] sm:$0xf] %v528
                %v530 = vld [vmem:[%s212 + $0x470] sm:$0xf]
                %531 = vst [vmem:[%s213 + $0x278] sm:$0xf] %v530
                %v532 = vld [vmem:[%s212 + $0x474] sm:$0xf]
                %533 = vst [vmem:[%s213 + $0x27c] sm:$0xf] %v532
                %v534 = vld [vmem:[%s212 + $0x478] sm:$0xf]
                %535 = vst [vmem:[%s213 + $0x280] sm:$0xf] %v534
                %v536 = vld [vmem:[%s212 + $0x47c] sm:$0xf]
                %537 = vst [vmem:[%s213 + $0x284] sm:$0xf] %v536
                %v538 = vld [vmem:[%s212 + $0x480] sm:$0xf]
                %539 = vst [vmem:[%s213 + $0x288] sm:$0xf] %v538
                %v540 = vld [vmem:[%s212 + $0x484] sm:$0xf]
                %541 = vst [vmem:[%s213 + $0x28c] sm:$0xf] %v540
                %v542 = vld [vmem:[%s212 + $0x488] sm:$0xf]
                %543 = vst [vmem:[%s213 + $0x290] sm:$0xf] %v542
                %v544 = vld [vmem:[%s212 + $0x48c] sm:$0xf]
                %545 = vst [vmem:[%s213 + $0x294] sm:$0xf] %v544
                %v546 = vld [vmem:[%s212 + $0x490] sm:$0xf]
                %547 = vst [vmem:[%s213 + $0x298] sm:$0xf] %v546
                %v548 = vld [vmem:[%s212 + $0x494] sm:$0xf]
                %549 = vst [vmem:[%s213 + $0x29c] sm:$0xf] %v548
                %v550 = vld [vmem:[%s212 + $0x498] sm:$0xf]
                %551 = vst [vmem:[%s213 + $0x2a0] sm:$0xf] %v550
                %v552 = vld [vmem:[%s212 + $0x49c] sm:$0xf]
                %553 = vst [vmem:[%s213 + $0x2a4] sm:$0xf] %v552
                %v554 = vld [vmem:[%s212 + $0x4a0] sm:$0xf]
                %555 = vst [vmem:[%s213 + $0x2a8] sm:$0xf] %v554
                %v556 = vld [vmem:[%s212 + $0x4a4] sm:$0xf]
                %557 = vst [vmem:[%s213 + $0x2ac] sm:$0xf] %v556
                %v558 = vld [vmem:[%s212 + $0x4a8] sm:$0xf]
                %559 = vst [vmem:[%s213 + $0x2b0] sm:$0xf] %v558
                %v560 = vld [vmem:[%s212 + $0x4ac] sm:$0xf]
                %561 = vst [vmem:[%s213 + $0x2b4] sm:$0xf] %v560
                %v562 = vld [vmem:[%s212 + $0x4b0] sm:$0xf]
                %563 = vst [vmem:[%s213 + $0x2b8] sm:$0xf] %v562
                %v564 = vld [vmem:[%s212 + $0x4b4] sm:$0xf]
                %565 = vst [vmem:[%s213 + $0x2bc] sm:$0xf] %v564
                %v566 = vld [vmem:[%s212 + $0x4b8] sm:$0xf]
                %567 = vst [vmem:[%s213 + $0x2c0] sm:$0xf] %v566
                %v568 = vld [vmem:[%s212 + $0x4bc] sm:$0xf]
                %569 = vst [vmem:[%s213 + $0x2c4] sm:$0xf] %v568
                %v570 = vld [vmem:[%s212 + $0x4c0] sm:$0xf]
                %571 = vst [vmem:[%s213 + $0x2c8] sm:$0xf] %v570
                %v572 = vld [vmem:[%s212 + $0x4c4] sm:$0xf]
                %573 = vst [vmem:[%s213 + $0x2cc] sm:$0xf] %v572
                %v574 = vld [vmem:[%s212 + $0x4c8] sm:$0xf]
                %575 = vst [vmem:[%s213 + $0x2d0] sm:$0xf] %v574
                %v576 = vld [vmem:[%s212 + $0x4cc] sm:$0xf]
                %577 = vst [vmem:[%s213 + $0x2d4] sm:$0xf] %v576
                %v578 = vld [vmem:[%s212 + $0x4d0] sm:$0xf]
                %579 = vst [vmem:[%s213 + $0x2d8] sm:$0xf] %v578
                %v580 = vld [vmem:[%s212 + $0x4d4] sm:$0xf]
                %581 = vst [vmem:[%s213 + $0x2dc] sm:$0xf] %v580
                %v582 = vld [vmem:[%s212 + $0x4d8] sm:$0xf]
                %583 = vst [vmem:[%s213 + $0x2e0] sm:$0xf] %v582
                %v584 = vld [vmem:[%s212 + $0x4dc] sm:$0xf]
                %585 = vst [vmem:[%s213 + $0x2e4] sm:$0xf] %v584
                %v586 = vld [vmem:[%s212 + $0x4e0] sm:$0xf]
                %587 = vst [vmem:[%s213 + $0x2e8] sm:$0xf] %v586
                %v588 = vld [vmem:[%s212 + $0x4e4] sm:$0xf]
                %589 = vst [vmem:[%s213 + $0x2ec] sm:$0xf] %v588
                %v590 = vld [vmem:[%s212 + $0x4e8] sm:$0xf]
                %591 = vst [vmem:[%s213 + $0x2f0] sm:$0xf] %v590
                %v592 = vld [vmem:[%s212 + $0x5e8] sm:$0xf]
                %593 = vst [vmem:[%s213 + $0x2f4] sm:$0xf] %v592
                %v594 = vld [vmem:[%s212 + $0x5ec] sm:$0xf]
                %595 = vst [vmem:[%s213 + $0x2f8] sm:$0xf] %v594
                %v596 = vld [vmem:[%s212 + $0x5f0] sm:$0xf]
                %597 = vst [vmem:[%s213 + $0x2fc] sm:$0xf] %v596
                %v598 = vld [vmem:[%s212 + $0x5f4] sm:$0xf]
                %599 = vst [vmem:[%s213 + $0x300] sm:$0xf] %v598
                %v600 = vld [vmem:[%s212 + $0x5f8] sm:$0xf]
                %601 = vst [vmem:[%s213 + $0x304] sm:$0xf] %v600
                %v602 = vld [vmem:[%s212 + $0x5fc] sm:$0xf]
                %603 = vst [vmem:[%s213 + $0x308] sm:$0xf] %v602
                %v604 = vld [vmem:[%s212 + $0x600] sm:$0xf]
                %605 = vst [vmem:[%s213 + $0x30c] sm:$0xf] %v604
                %v606 = vld [vmem:[%s212 + $0x604] sm:$0xf]
                %607 = vst [vmem:[%s213 + $0x310] sm:$0xf] %v606
                %v608 = vld [vmem:[%s212 + $0x608] sm:$0xf]
                %609 = vst [vmem:[%s213 + $0x314] sm:$0xf] %v608
                %v610 = vld [vmem:[%s212 + $0x60c] sm:$0xf]
                %611 = vst [vmem:[%s213 + $0x318] sm:$0xf] %v610
                %v612 = vld [vmem:[%s212 + $0x610] sm:$0xf]
                %613 = vst [vmem:[%s213 + $0x31c] sm:$0xf] %v612
                %v614 = vld [vmem:[%s212 + $0x614] sm:$0xf]
                %615 = vst [vmem:[%s213 + $0x320] sm:$0xf] %v614
                %v616 = vld [vmem:[%s212 + $0x618] sm:$0xf]
                %617 = vst [vmem:[%s213 + $0x324] sm:$0xf] %v616
                %v618 = vld [vmem:[%s212 + $0x61c] sm:$0xf]
                %619 = vst [vmem:[%s213 + $0x328] sm:$0xf] %v618
                %v620 = vld [vmem:[%s212 + $0x620] sm:$0xf]
                %621 = vst [vmem:[%s213 + $0x32c] sm:$0xf] %v620
                %v622 = vld [vmem:[%s212 + $0x624] sm:$0xf]
                %623 = vst [vmem:[%s213 + $0x330] sm:$0xf] %v622
                %v624 = vld [vmem:[%s212 + $0x628] sm:$0xf]
                %625 = vst [vmem:[%s213 + $0x334] sm:$0xf] %v624
                %v626 = vld [vmem:[%s212 + $0x62c] sm:$0xf]
                %627 = vst [vmem:[%s213 + $0x338] sm:$0xf] %v626
                %v628 = vld [vmem:[%s212 + $0x630] sm:$0xf]
                %629 = vst [vmem:[%s213 + $0x33c] sm:$0xf] %v628
                %v630 = vld [vmem:[%s212 + $0x634] sm:$0xf]
                %631 = vst [vmem:[%s213 + $0x340] sm:$0xf] %v630
                %v632 = vld [vmem:[%s212 + $0x638] sm:$0xf]
                %633 = vst [vmem:[%s213 + $0x344] sm:$0xf] %v632
                %v634 = vld [vmem:[%s212 + $0x63c] sm:$0xf]
                %635 = vst [vmem:[%s213 + $0x348] sm:$0xf] %v634
                %v636 = vld [vmem:[%s212 + $0x640] sm:$0xf]
                %637 = vst [vmem:[%s213 + $0x34c] sm:$0xf] %v636
                %v638 = vld [vmem:[%s212 + $0x644] sm:$0xf]
                %639 = vst [vmem:[%s213 + $0x350] sm:$0xf] %v638
                %v640 = vld [vmem:[%s212 + $0x648] sm:$0xf]
                %641 = vst [vmem:[%s213 + $0x354] sm:$0xf] %v640
                %v642 = vld [vmem:[%s212 + $0x64c] sm:$0xf]
                %643 = vst [vmem:[%s213 + $0x358] sm:$0xf] %v642
                %v644 = vld [vmem:[%s212 + $0x650] sm:$0xf]
                %645 = vst [vmem:[%s213 + $0x35c] sm:$0xf] %v644
                %v646 = vld [vmem:[%s212 + $0x654] sm:$0xf]
                %647 = vst [vmem:[%s213 + $0x360] sm:$0xf] %v646
                %v648 = vld [vmem:[%s212 + $0x658] sm:$0xf]
                %649 = vst [vmem:[%s213 + $0x364] sm:$0xf] %v648
                %v650 = vld [vmem:[%s212 + $0x65c] sm:$0xf]
                %651 = vst [vmem:[%s213 + $0x368] sm:$0xf] %v650
                %v652 = vld [vmem:[%s212 + $0x660] sm:$0xf]
                %653 = vst [vmem:[%s213 + $0x36c] sm:$0xf] %v652
                %v654 = vld [vmem:[%s212 + $0x664] sm:$0xf]
                %655 = vst [vmem:[%s213 + $0x370] sm:$0xf] %v654
                %v656 = vld [vmem:[%s212 + $0x668] sm:$0xf]
                %657 = vst [vmem:[%s213 + $0x374] sm:$0xf] %v656
                %v658 = vld [vmem:[%s212 + $0x66c] sm:$0xf]
                %659 = vst [vmem:[%s213 + $0x378] sm:$0xf] %v658
                %v660 = vld [vmem:[%s212 + $0x670] sm:$0xf]
                %661 = vst [vmem:[%s213 + $0x37c] sm:$0xf] %v660
                %v662 = vld [vmem:[%s212 + $0x674] sm:$0xf]
                %663 = vst [vmem:[%s213 + $0x380] sm:$0xf] %v662
                %v664 = vld [vmem:[%s212 + $0x678] sm:$0xf]
                %665 = vst [vmem:[%s213 + $0x384] sm:$0xf] %v664
                %v666 = vld [vmem:[%s212 + $0x67c] sm:$0xf]
                %667 = vst [vmem:[%s213 + $0x388] sm:$0xf] %v666
                %v668 = vld [vmem:[%s212 + $0x680] sm:$0xf]
                %669 = vst [vmem:[%s213 + $0x38c] sm:$0xf] %v668
                %v670 = vld [vmem:[%s212 + $0x684] sm:$0xf]
                %671 = vst [vmem:[%s213 + $0x390] sm:$0xf] %v670
                %v672 = vld [vmem:[%s212 + $0x688] sm:$0xf]
                %673 = vst [vmem:[%s213 + $0x394] sm:$0xf] %v672
                %v674 = vld [vmem:[%s212 + $0x68c] sm:$0xf]
                %675 = vst [vmem:[%s213 + $0x398] sm:$0xf] %v674
                %v676 = vld [vmem:[%s212 + $0x690] sm:$0xf]
                %677 = vst [vmem:[%s213 + $0x39c] sm:$0xf] %v676
                %v678 = vld [vmem:[%s212 + $0x694] sm:$0xf]
                %679 = vst [vmem:[%s213 + $0x3a0] sm:$0xf] %v678
                %v680 = vld [vmem:[%s212 + $0x698] sm:$0xf]
                %681 = vst [vmem:[%s213 + $0x3a4] sm:$0xf] %v680
                %v682 = vld [vmem:[%s212 + $0x69c] sm:$0xf]
                %683 = vst [vmem:[%s213 + $0x3a8] sm:$0xf] %v682
                %v684 = vld [vmem:[%s212 + $0x6a0] sm:$0xf]
                %685 = vst [vmem:[%s213 + $0x3ac] sm:$0xf] %v684
                %v686 = vld [vmem:[%s212 + $0x6a4] sm:$0xf]
                %687 = vst [vmem:[%s213 + $0x3b0] sm:$0xf] %v686
                %v688 = vld [vmem:[%s212 + $0x6a8] sm:$0xf]
                %689 = vst [vmem:[%s213 + $0x3b4] sm:$0xf] %v688
                %v690 = vld [vmem:[%s212 + $0x6ac] sm:$0xf]
                %691 = vst [vmem:[%s213 + $0x3b8] sm:$0xf] %v690
                %v692 = vld [vmem:[%s212 + $0x6b0] sm:$0xf]
                %693 = vst [vmem:[%s213 + $0x3bc] sm:$0xf] %v692
                %v694 = vld [vmem:[%s212 + $0x6b4] sm:$0xf]
                %695 = vst [vmem:[%s213 + $0x3c0] sm:$0xf] %v694
                %v696 = vld [vmem:[%s212 + $0x6b8] sm:$0xf]
                %697 = vst [vmem:[%s213 + $0x3c4] sm:$0xf] %v696
                %v698 = vld [vmem:[%s212 + $0x6bc] sm:$0xf]
                %699 = vst [vmem:[%s213 + $0x3c8] sm:$0xf] %v698
                %v700 = vld [vmem:[%s212 + $0x6c0] sm:$0xf]
                %701 = vst [vmem:[%s213 + $0x3cc] sm:$0xf] %v700
                %v702 = vld [vmem:[%s212 + $0x6c4] sm:$0xf]
                %703 = vst [vmem:[%s213 + $0x3d0] sm:$0xf] %v702
                %v704 = vld [vmem:[%s212 + $0x6c8] sm:$0xf]
                %705 = vst [vmem:[%s213 + $0x3d4] sm:$0xf] %v704
                %v706 = vld [vmem:[%s212 + $0x6cc] sm:$0xf]
                %707 = vst [vmem:[%s213 + $0x3d8] sm:$0xf] %v706
                %v708 = vld [vmem:[%s212 + $0x6d0] sm:$0xf]
                %709 = vst [vmem:[%s213 + $0x3dc] sm:$0xf] %v708
                %v710 = vld [vmem:[%s212 + $0x6d4] sm:$0xf]
                %711 = vst [vmem:[%s213 + $0x3e0] sm:$0xf] %v710
                %v712 = vld [vmem:[%s212 + $0x6d8] sm:$0xf]
                %713 = vst [vmem:[%s213 + $0x3e4] sm:$0xf] %v712
                %v714 = vld [vmem:[%s212 + $0x6dc] sm:$0xf]
                %715 = vst [vmem:[%s213 + $0x3e8] sm:$0xf] %v714
                %v716 = vld [vmem:[%s212 + $0x6e0] sm:$0xf]
                %717 = vst [vmem:[%s213 + $0x3ec] sm:$0xf] %v716
              $region49: #{basicnet_forward.1} parent=43 // loop_footer
                %s211 = sadd.s32 1, %s207
              $region50: #{basicnet_forward.1} parent=43 // loop_footer_branch
                %206 = sbr.rel target = $region46
              $region51: #{basicnet_forward.1} parent=43 // loop_exit
                _
            $region44: #{basicnet_forward.1} parent=35 // pred_fallthru
              _
          $region36: #{basicnet_forward.1} parent=31 // pred_fallthru
            _
          %1241 = vnop
        $region32: #{basicnet_forward.1} parent=27 // pred_fallthru
          _
        // Predicated region
        $region70: #{basicnet_forward.1} parent=27 // pred_check
          %p1242 = pneg %p79
        $region71: #{basicnet_forward.1} parent=27 // pred_check_branch
          %1244 = sbr.rel (%p1242) target = $region73
        $region72: #{basicnet_forward.1} parent=27 // pred_region
          %s1245 = smul.u32 63, %s12
          %p1246 = scmp.lt.s32.totalorder %s1245, 125
          %s1247 = scalar_select %p1246, %s1245, 125
          %s1248 = smul.addr %s1247, 4
          %s1249 = scalar_lea.vmem %s2, %s1248
          %s1250 = smul.u32 63, %s12
        $region73: #{basicnet_forward.1} parent=27 // pred_fallthru
          _
      $region28: #{basicnet_forward.1} parent=5 // pred_fallthru
        _
      %p1251 = scmp.le.s32.totalorder 1, %s12
      %p1252 = scmp.lt.s32.totalorder %s12, 3
      %p1253 = pnand %p1251, %p1252
      %p1254 = pneg %p1253
      // Predicated region
      $region74: #{basicnet_forward.1} parent=5 // pred_check
        _
      $region75: #{basicnet_forward.1} parent=5 // pred_check_branch
        %1256 = sbr.rel (%p1253) target = $region77
      $region76: #{basicnet_forward.1} parent=5 // pred_region
        %s1257 = ssub.s32 %s12, 1
        // Predicated region
        $region78: #{basicnet_forward.1} parent=76 // pred_check
          %p1258 = pneg %p33
        $region79: #{basicnet_forward.1} parent=76 // pred_check_branch
          %1260 = sbr.rel (%p1258) target = $region81
        $region80: #{basicnet_forward.1} parent=76 // pred_region
          %1261 = dma.done [#allocation3], 64
        $region81: #{basicnet_forward.1} parent=76 // pred_fallthru
          _
        %s1262 = sand.u32 %s46, 1
        %s1263 = sand.u32 %s46, 1
        %s1264 = smul.addr %s1263, 1008
        %s1265 = scalar_lea.vmem [#allocation4], %s1264
        // Predicated region
        $region82: #{basicnet_forward.1} parent=76 // pred_check
          %p1266 = pneg %p59
        $region83: #{basicnet_forward.1} parent=76 // pred_check_branch
          %1268 = sbr.rel (%p1266) target = $region85
        $region84: #{basicnet_forward.1} parent=76 // pred_region
          _
        $region85: #{basicnet_forward.1} parent=76 // pred_fallthru
          _
        %1269 = sfence
        %p1270 = pneg %p33
        %p1271 = pneg %p30
        %s1272 = sand.u32 %s46, 1
        %s1273 = sand.u32 %s46, 1
        %s1274 = smul.addr %s1273, 1008
        %s1275 = scalar_lea.vmem [#allocation4], %s1274
        %p1276 = pneg %p59
        %p1277 = pneg %p56
        %s1278 = smul.u32 63, %s17
        %p1279 = scmp.lt.s32.totalorder %s1278, 125
        %s1280 = scalar_select %p1279, %s1278, 125
        %s1281 = smul.addr %s1280, 4
        %s1282 = scalar_lea.vmem %s2, %s1281
        %p1283 = pneg %p85
        %p1284 = pneg %p82
        %p1285 = pneg %p106
        %p1286 = pneg %p103
        %p1287 = pneg %p127
        %p1288 = pneg %p124
        %p1289 = pneg %p153
        %p1290 = pneg %p150
        %s1291 = smul.u32 63, %s17
        %p1292 = scmp.lt.s32.totalorder %s1291, 125
        %s1293 = scalar_select %p1292, %s1291, 125
        %s1294 = smul.addr %s1293, 4
        %s1295 = scalar_lea.vmem %s5, %s1294
        %s1296 = smul.u32 63, %s17
        %s1297 = smul.u32 63, %s17
        %p1298 = scmp.lt.s32.totalorder %s1297, 125
        %s1299 = scalar_select %p1298, %s1297, 125
        %s1300 = smul.addr %s1299, 4
        %s1301 = scalar_lea.vmem %s2, %s1300
        %s1302 = smul.u32 63, %s17
        %s1303 = smul.u32 63, %s17
        %p1304 = scmp.lt.s32.totalorder %s1303, 125
        %s1305 = scalar_select %p1304, %s1303, 125
        %s1306 = smul.addr %s1305, 4
        %s1307 = scalar_lea.vmem %s5, %s1306
        %s1308 = smul.u32 63, %s17
        %v1310 = vld [vmem:[%s1265] sm:$0xf]
        %v1311 = vld [vmem:[%s1265 + $0x4] sm:$0xf]
        %v1312 = vld [vmem:[%s1265 + $0x8] sm:$0xf]
        %v1313 = vld [vmem:[%s1265 + $0xc] sm:$0xf]
        %v1314 = vld [vmem:[%s1265 + $0x10] sm:$0xf]
        %v1315 = vld [vmem:[%s1265 + $0x14] sm:$0xf]
        %v1316 = vld [vmem:[%s1265 + $0x18] sm:$0xf]
        %v1317 = vld [vmem:[%s1265 + $0x1c] sm:$0xf]
        %v1318 = vld [vmem:[%s1265 + $0x20] sm:$0xf]
        %v1319 = vld [vmem:[%s1265 + $0x24] sm:$0xf]
        %v1320 = vld [vmem:[%s1265 + $0x28] sm:$0xf]
        %v1321 = vld [vmem:[%s1265 + $0x2c] sm:$0xf]
        %v1322 = vld [vmem:[%s1265 + $0x30] sm:$0xf]
        %v1323 = vld [vmem:[%s1265 + $0x34] sm:$0xf]
        %v1324 = vld [vmem:[%s1265 + $0x38] sm:$0xf]
        %v1325 = vld [vmem:[%s1265 + $0x3c] sm:$0xf]
        %v1326 = vld [vmem:[%s1265 + $0x40] sm:$0xf]
        %v1327 = vld [vmem:[%s1265 + $0x44] sm:$0xf]
        %v1328 = vld [vmem:[%s1265 + $0x48] sm:$0xf]
        %v1329 = vld [vmem:[%s1265 + $0x4c] sm:$0xf]
        %v1330 = vld [vmem:[%s1265 + $0x50] sm:$0xf]
        %v1331 = vld [vmem:[%s1265 + $0x54] sm:$0xf]
        %v1332 = vld [vmem:[%s1265 + $0x58] sm:$0xf]
        %v1333 = vld [vmem:[%s1265 + $0x5c] sm:$0xf]
        %v1334 = vld [vmem:[%s1265 + $0x60] sm:$0xf]
        %v1335 = vld [vmem:[%s1265 + $0x64] sm:$0xf]
        %v1336 = vld [vmem:[%s1265 + $0x68] sm:$0xf]
        %v1337 = vld [vmem:[%s1265 + $0x6c] sm:$0xf]
        %v1338 = vld [vmem:[%s1265 + $0x70] sm:$0xf]
        %v1339 = vld [vmem:[%s1265 + $0x74] sm:$0xf]
        %v1340 = vld [vmem:[%s1265 + $0x78] sm:$0xf]
        %v1341 = vld [vmem:[%s1265 + $0x7c] sm:$0xf]
        %v1342 = vld [vmem:[%s1265 + $0x80] sm:$0xf]
        %v1343 = vld [vmem:[%s1265 + $0x84] sm:$0xf]
        %v1344 = vld [vmem:[%s1265 + $0x88] sm:$0xf]
        %v1345 = vld [vmem:[%s1265 + $0x8c] sm:$0xf]
        %v1346 = vld [vmem:[%s1265 + $0x90] sm:$0xf]
        %v1347 = vld [vmem:[%s1265 + $0x94] sm:$0xf]
        %v1348 = vld [vmem:[%s1265 + $0x98] sm:$0xf]
        %v1349 = vld [vmem:[%s1265 + $0x9c] sm:$0xf]
        %v1350 = vld [vmem:[%s1265 + $0xa0] sm:$0xf]
        %v1351 = vld [vmem:[%s1265 + $0xa4] sm:$0xf]
        %v1352 = vld [vmem:[%s1265 + $0xa8] sm:$0xf]
        %v1353 = vld [vmem:[%s1265 + $0xac] sm:$0xf]
        %v1354 = vld [vmem:[%s1265 + $0xb0] sm:$0xf]
        %v1355 = vld [vmem:[%s1265 + $0xb4] sm:$0xf]
        %v1356 = vld [vmem:[%s1265 + $0xb8] sm:$0xf]
        %v1357 = vld [vmem:[%s1265 + $0xbc] sm:$0xf]
        %v1358 = vld [vmem:[%s1265 + $0xc0] sm:$0xf]
        %v1359 = vld [vmem:[%s1265 + $0xc4] sm:$0xf]
        %v1360 = vld [vmem:[%s1265 + $0xc8] sm:$0xf]
        %v1361 = vld [vmem:[%s1265 + $0xcc] sm:$0xf]
        %v1362 = vld [vmem:[%s1265 + $0xd0] sm:$0xf]
        %v1363 = vld [vmem:[%s1265 + $0xd4] sm:$0xf]
        %v1364 = vld [vmem:[%s1265 + $0xd8] sm:$0xf]
        %v1365 = vld [vmem:[%s1265 + $0xdc] sm:$0xf]
        %v1366 = vld [vmem:[%s1265 + $0xe0] sm:$0xf]
        %v1367 = vld [vmem:[%s1265 + $0xe4] sm:$0xf]
        %v1368 = vld [vmem:[%s1265 + $0xe8] sm:$0xf]
        %v1369 = vld [vmem:[%s1265 + $0xec] sm:$0xf]
        %v1370 = vld [vmem:[%s1265 + $0xf0] sm:$0xf]
        %v1371 = vld [vmem:[%s1265 + $0xf4] sm:$0xf]
        %v1372 = vld [vmem:[%s1265 + $0xf8] sm:$0xf]
        %v1373 = vunpack.c.l.bf16 %v1310
        %v1374 = vunpack.c.l.bf16 %v1311
        %v1375 = vunpack.c.l.bf16 %v1312
        %v1376 = vunpack.c.l.bf16 %v1313
        %v1377 = vunpack.c.l.bf16 %v1314
        %v1378 = vunpack.c.l.bf16 %v1315
        %v1379 = vunpack.c.l.bf16 %v1316
        %v1380 = vunpack.c.l.bf16 %v1317
        %v1381 = vunpack.c.l.bf16 %v1318
        %v1382 = vunpack.c.l.bf16 %v1319
        %v1383 = vunpack.c.l.bf16 %v1320
        %v1384 = vunpack.c.l.bf16 %v1321
        %v1385 = vunpack.c.l.bf16 %v1322
        %v1386 = vunpack.c.l.bf16 %v1323
        %v1387 = vunpack.c.l.bf16 %v1324
        %v1388 = vunpack.c.l.bf16 %v1325
        %v1389 = vunpack.c.l.bf16 %v1326
        %v1390 = vunpack.c.l.bf16 %v1327
        %v1391 = vunpack.c.l.bf16 %v1328
        %v1392 = vunpack.c.l.bf16 %v1329
        %v1393 = vunpack.c.l.bf16 %v1330
        %v1394 = vunpack.c.l.bf16 %v1331
        %v1395 = vunpack.c.l.bf16 %v1332
        %v1396 = vunpack.c.l.bf16 %v1333
        %v1397 = vunpack.c.l.bf16 %v1334
        %v1398 = vunpack.c.l.bf16 %v1335
        %v1399 = vunpack.c.l.bf16 %v1336
        %v1400 = vunpack.c.l.bf16 %v1337
        %v1401 = vunpack.c.l.bf16 %v1338
        %v1402 = vunpack.c.l.bf16 %v1339
        %v1403 = vunpack.c.l.bf16 %v1340
        %v1404 = vunpack.c.l.bf16 %v1341
        %v1405 = vunpack.c.l.bf16 %v1342
        %v1406 = vunpack.c.l.bf16 %v1343
        %v1407 = vunpack.c.l.bf16 %v1344
        %v1408 = vunpack.c.l.bf16 %v1345
        %v1409 = vunpack.c.l.bf16 %v1346
        %v1410 = vunpack.c.l.bf16 %v1347
        %v1411 = vunpack.c.l.bf16 %v1348
        %v1412 = vunpack.c.l.bf16 %v1349
        %v1413 = vunpack.c.l.bf16 %v1350
        %v1414 = vunpack.c.l.bf16 %v1351
        %v1415 = vunpack.c.l.bf16 %v1352
        %v1416 = vunpack.c.l.bf16 %v1353
        %v1417 = vunpack.c.l.bf16 %v1354
        %v1418 = vunpack.c.l.bf16 %v1355
        %v1419 = vunpack.c.l.bf16 %v1356
        %v1420 = vunpack.c.l.bf16 %v1357
        %v1421 = vunpack.c.l.bf16 %v1358
        %v1422 = vunpack.c.l.bf16 %v1359
        %v1423 = vunpack.c.l.bf16 %v1360
        %v1424 = vunpack.c.l.bf16 %v1361
        %v1425 = vunpack.c.l.bf16 %v1362
        %v1426 = vunpack.c.l.bf16 %v1363
        %v1427 = vunpack.c.l.bf16 %v1364
        %v1428 = vunpack.c.l.bf16 %v1365
        %v1429 = vunpack.c.l.bf16 %v1366
        %v1430 = vunpack.c.l.bf16 %v1367
        %v1431 = vunpack.c.l.bf16 %v1368
        %v1432 = vunpack.c.l.bf16 %v1369
        %v1433 = vunpack.c.l.bf16 %v1370
        %v1434 = vunpack.c.l.bf16 %v1371
        %v1435 = vunpack.c.l.bf16 %v1372
        %s1436 = scalar_lea.vmem %s1265, 252 [#allocation4]
        %v1437 = vld [vmem:[%s1436] sm:$0xf]
        %v1438 = vld [vmem:[%s1436 + $0x4] sm:$0xf]
        %v1439 = vld [vmem:[%s1436 + $0x8] sm:$0xf]
        %v1440 = vld [vmem:[%s1436 + $0xc] sm:$0xf]
        %v1441 = vld [vmem:[%s1436 + $0x10] sm:$0xf]
        %v1442 = vld [vmem:[%s1436 + $0x14] sm:$0xf]
        %v1443 = vld [vmem:[%s1436 + $0x18] sm:$0xf]
        %v1444 = vld [vmem:[%s1436 + $0x1c] sm:$0xf]
        %v1445 = vld [vmem:[%s1436 + $0x20] sm:$0xf]
        %v1446 = vld [vmem:[%s1436 + $0x24] sm:$0xf]
        %v1447 = vld [vmem:[%s1436 + $0x28] sm:$0xf]
        %v1448 = vld [vmem:[%s1436 + $0x2c] sm:$0xf]
        %v1449 = vld [vmem:[%s1436 + $0x30] sm:$0xf]
        %v1450 = vld [vmem:[%s1436 + $0x34] sm:$0xf]
        %v1451 = vld [vmem:[%s1436 + $0x38] sm:$0xf]
        %v1452 = vld [vmem:[%s1436 + $0x3c] sm:$0xf]
        %v1453 = vld [vmem:[%s1436 + $0x40] sm:$0xf]
        %v1454 = vld [vmem:[%s1436 + $0x44] sm:$0xf]
        %v1455 = vld [vmem:[%s1436 + $0x48] sm:$0xf]
        %v1456 = vld [vmem:[%s1436 + $0x4c] sm:$0xf]
        %v1457 = vld [vmem:[%s1436 + $0x50] sm:$0xf]
        %v1458 = vld [vmem:[%s1436 + $0x54] sm:$0xf]
        %v1459 = vld [vmem:[%s1436 + $0x58] sm:$0xf]
        %v1460 = vld [vmem:[%s1436 + $0x5c] sm:$0xf]
        %v1461 = vld [vmem:[%s1436 + $0x60] sm:$0xf]
        %v1462 = vld [vmem:[%s1436 + $0x64] sm:$0xf]
        %v1463 = vld [vmem:[%s1436 + $0x68] sm:$0xf]
        %v1464 = vld [vmem:[%s1436 + $0x6c] sm:$0xf]
        %v1465 = vld [vmem:[%s1436 + $0x70] sm:$0xf]
        %v1466 = vld [vmem:[%s1436 + $0x74] sm:$0xf]
        %v1467 = vld [vmem:[%s1436 + $0x78] sm:$0xf]
        %v1468 = vld [vmem:[%s1436 + $0x7c] sm:$0xf]
        %v1469 = vld [vmem:[%s1436 + $0x80] sm:$0xf]
        %v1470 = vld [vmem:[%s1436 + $0x84] sm:$0xf]
        %v1471 = vld [vmem:[%s1436 + $0x88] sm:$0xf]
        %v1472 = vld [vmem:[%s1436 + $0x8c] sm:$0xf]
        %v1473 = vld [vmem:[%s1436 + $0x90] sm:$0xf]
        %v1474 = vld [vmem:[%s1436 + $0x94] sm:$0xf]
        %v1475 = vld [vmem:[%s1436 + $0x98] sm:$0xf]
        %v1476 = vld [vmem:[%s1436 + $0x9c] sm:$0xf]
        %v1477 = vld [vmem:[%s1436 + $0xa0] sm:$0xf]
        %v1478 = vld [vmem:[%s1436 + $0xa4] sm:$0xf]
        %v1479 = vld [vmem:[%s1436 + $0xa8] sm:$0xf]
        %v1480 = vld [vmem:[%s1436 + $0xac] sm:$0xf]
        %v1481 = vld [vmem:[%s1436 + $0xb0] sm:$0xf]
        %v1482 = vld [vmem:[%s1436 + $0xb4] sm:$0xf]
        %v1483 = vld [vmem:[%s1436 + $0xb8] sm:$0xf]
        %v1484 = vld [vmem:[%s1436 + $0xbc] sm:$0xf]
        %v1485 = vld [vmem:[%s1436 + $0xc0] sm:$0xf]
        %v1486 = vld [vmem:[%s1436 + $0xc4] sm:$0xf]
        %v1487 = vld [vmem:[%s1436 + $0xc8] sm:$0xf]
        %v1488 = vld [vmem:[%s1436 + $0xcc] sm:$0xf]
        %v1489 = vld [vmem:[%s1436 + $0xd0] sm:$0xf]
        %v1490 = vld [vmem:[%s1436 + $0xd4] sm:$0xf]
        %v1491 = vld [vmem:[%s1436 + $0xd8] sm:$0xf]
        %v1492 = vld [vmem:[%s1436 + $0xdc] sm:$0xf]
        %v1493 = vld [vmem:[%s1436 + $0xe0] sm:$0xf]
        %v1494 = vld [vmem:[%s1436 + $0xe4] sm:$0xf]
        %v1495 = vld [vmem:[%s1436 + $0xe8] sm:$0xf]
        %v1496 = vld [vmem:[%s1436 + $0xec] sm:$0xf]
        %v1497 = vld [vmem:[%s1436 + $0xf0] sm:$0xf]
        %v1498 = vld [vmem:[%s1436 + $0xf4] sm:$0xf]
        %v1499 = vld [vmem:[%s1436 + $0xf8] sm:$0xf]
        %v1500 = vunpack.c.l.bf16 %v1437
        %v1501 = vunpack.c.l.bf16 %v1438
        %v1502 = vunpack.c.l.bf16 %v1439
        %v1503 = vunpack.c.l.bf16 %v1440
        %v1504 = vunpack.c.l.bf16 %v1441
        %v1505 = vunpack.c.l.bf16 %v1442
        %v1506 = vunpack.c.l.bf16 %v1443
        %v1507 = vunpack.c.l.bf16 %v1444
        %v1508 = vunpack.c.l.bf16 %v1445
        %v1509 = vunpack.c.l.bf16 %v1446
        %v1510 = vunpack.c.l.bf16 %v1447
        %v1511 = vunpack.c.l.bf16 %v1448
        %v1512 = vunpack.c.l.bf16 %v1449
        %v1513 = vunpack.c.l.bf16 %v1450
        %v1514 = vunpack.c.l.bf16 %v1451
        %v1515 = vunpack.c.l.bf16 %v1452
        %v1516 = vunpack.c.l.bf16 %v1453
        %v1517 = vunpack.c.l.bf16 %v1454
        %v1518 = vunpack.c.l.bf16 %v1455
        %v1519 = vunpack.c.l.bf16 %v1456
        %v1520 = vunpack.c.l.bf16 %v1457
        %v1521 = vunpack.c.l.bf16 %v1458
        %v1522 = vunpack.c.l.bf16 %v1459
        %v1523 = vunpack.c.l.bf16 %v1460
        %v1524 = vunpack.c.l.bf16 %v1461
        %v1525 = vunpack.c.l.bf16 %v1462
        %v1526 = vunpack.c.l.bf16 %v1463
        %v1527 = vunpack.c.l.bf16 %v1464
        %v1528 = vunpack.c.l.bf16 %v1465
        %v1529 = vunpack.c.l.bf16 %v1466
        %v1530 = vunpack.c.l.bf16 %v1467
        %v1531 = vunpack.c.l.bf16 %v1468
        %v1532 = vunpack.c.l.bf16 %v1469
        %v1533 = vunpack.c.l.bf16 %v1470
        %v1534 = vunpack.c.l.bf16 %v1471
        %v1535 = vunpack.c.l.bf16 %v1472
        %v1536 = vunpack.c.l.bf16 %v1473
        %v1537 = vunpack.c.l.bf16 %v1474
        %v1538 = vunpack.c.l.bf16 %v1475
        %v1539 = vunpack.c.l.bf16 %v1476
        %v1540 = vunpack.c.l.bf16 %v1477
        %v1541 = vunpack.c.l.bf16 %v1478
        %v1542 = vunpack.c.l.bf16 %v1479
        %v1543 = vunpack.c.l.bf16 %v1480
        %v1544 = vunpack.c.l.bf16 %v1481
        %v1545 = vunpack.c.l.bf16 %v1482
        %v1546 = vunpack.c.l.bf16 %v1483
        %v1547 = vunpack.c.l.bf16 %v1484
        %v1548 = vunpack.c.l.bf16 %v1485
        %v1549 = vunpack.c.l.bf16 %v1486
        %v1550 = vunpack.c.l.bf16 %v1487
        %v1551 = vunpack.c.l.bf16 %v1488
        %v1552 = vunpack.c.l.bf16 %v1489
        %v1553 = vunpack.c.l.bf16 %v1490
        %v1554 = vunpack.c.l.bf16 %v1491
        %v1555 = vunpack.c.l.bf16 %v1492
        %v1556 = vunpack.c.l.bf16 %v1493
        %v1557 = vunpack.c.l.bf16 %v1494
        %v1558 = vunpack.c.l.bf16 %v1495
        %v1559 = vunpack.c.l.bf16 %v1496
        %v1560 = vunpack.c.l.bf16 %v1497
        %v1561 = vunpack.c.l.bf16 %v1498
        %v1562 = vunpack.c.l.bf16 %v1499
        %s1563 = scalar_lea.vmem %s1265, 504 [#allocation4]
        %v1564 = vld [vmem:[%s1563] sm:$0xf]
        %v1565 = vld [vmem:[%s1563 + $0x4] sm:$0xf]
        %v1566 = vld [vmem:[%s1563 + $0x8] sm:$0xf]
        %v1567 = vld [vmem:[%s1563 + $0xc] sm:$0xf]
        %v1568 = vld [vmem:[%s1563 + $0x10] sm:$0xf]
        %v1569 = vld [vmem:[%s1563 + $0x14] sm:$0xf]
        %v1570 = vld [vmem:[%s1563 + $0x18] sm:$0xf]
        %v1571 = vld [vmem:[%s1563 + $0x1c] sm:$0xf]
        %v1572 = vld [vmem:[%s1563 + $0x20] sm:$0xf]
        %v1573 = vld [vmem:[%s1563 + $0x24] sm:$0xf]
        %v1574 = vld [vmem:[%s1563 + $0x28] sm:$0xf]
        %v1575 = vld [vmem:[%s1563 + $0x2c] sm:$0xf]
        %v1576 = vld [vmem:[%s1563 + $0x30] sm:$0xf]
        %v1577 = vld [vmem:[%s1563 + $0x34] sm:$0xf]
        %v1578 = vld [vmem:[%s1563 + $0x38] sm:$0xf]
        %v1579 = vld [vmem:[%s1563 + $0x3c] sm:$0xf]
        %v1580 = vld [vmem:[%s1563 + $0x40] sm:$0xf]
        %v1581 = vld [vmem:[%s1563 + $0x44] sm:$0xf]
        %v1582 = vld [vmem:[%s1563 + $0x48] sm:$0xf]
        %v1583 = vld [vmem:[%s1563 + $0x4c] sm:$0xf]
        %v1584 = vld [vmem:[%s1563 + $0x50] sm:$0xf]
        %v1585 = vld [vmem:[%s1563 + $0x54] sm:$0xf]
        %v1586 = vld [vmem:[%s1563 + $0x58] sm:$0xf]
        %v1587 = vld [vmem:[%s1563 + $0x5c] sm:$0xf]
        %v1588 = vld [vmem:[%s1563 + $0x60] sm:$0xf]
        %v1589 = vld [vmem:[%s1563 + $0x64] sm:$0xf]
        %v1590 = vld [vmem:[%s1563 + $0x68] sm:$0xf]
        %v1591 = vld [vmem:[%s1563 + $0x6c] sm:$0xf]
        %v1592 = vld [vmem:[%s1563 + $0x70] sm:$0xf]
        %v1593 = vld [vmem:[%s1563 + $0x74] sm:$0xf]
        %v1594 = vld [vmem:[%s1563 + $0x78] sm:$0xf]
        %v1595 = vld [vmem:[%s1563 + $0x7c] sm:$0xf]
        %v1596 = vld [vmem:[%s1563 + $0x80] sm:$0xf]
        %v1597 = vld [vmem:[%s1563 + $0x84] sm:$0xf]
        %v1598 = vld [vmem:[%s1563 + $0x88] sm:$0xf]
        %v1599 = vld [vmem:[%s1563 + $0x8c] sm:$0xf]
        %v1600 = vld [vmem:[%s1563 + $0x90] sm:$0xf]
        %v1601 = vld [vmem:[%s1563 + $0x94] sm:$0xf]
        %v1602 = vld [vmem:[%s1563 + $0x98] sm:$0xf]
        %v1603 = vld [vmem:[%s1563 + $0x9c] sm:$0xf]
        %v1604 = vld [vmem:[%s1563 + $0xa0] sm:$0xf]
        %v1605 = vld [vmem:[%s1563 + $0xa4] sm:$0xf]
        %v1606 = vld [vmem:[%s1563 + $0xa8] sm:$0xf]
        %v1607 = vld [vmem:[%s1563 + $0xac] sm:$0xf]
        %v1608 = vld [vmem:[%s1563 + $0xb0] sm:$0xf]
        %v1609 = vld [vmem:[%s1563 + $0xb4] sm:$0xf]
        %v1610 = vld [vmem:[%s1563 + $0xb8] sm:$0xf]
        %v1611 = vld [vmem:[%s1563 + $0xbc] sm:$0xf]
        %v1612 = vld [vmem:[%s1563 + $0xc0] sm:$0xf]
        %v1613 = vld [vmem:[%s1563 + $0xc4] sm:$0xf]
        %v1614 = vld [vmem:[%s1563 + $0xc8] sm:$0xf]
        %v1615 = vld [vmem:[%s1563 + $0xcc] sm:$0xf]
        %v1616 = vld [vmem:[%s1563 + $0xd0] sm:$0xf]
        %v1617 = vld [vmem:[%s1563 + $0xd4] sm:$0xf]
        %v1618 = vld [vmem:[%s1563 + $0xd8] sm:$0xf]
        %v1619 = vld [vmem:[%s1563 + $0xdc] sm:$0xf]
        %v1620 = vld [vmem:[%s1563 + $0xe0] sm:$0xf]
        %v1621 = vld [vmem:[%s1563 + $0xe4] sm:$0xf]
        %v1622 = vld [vmem:[%s1563 + $0xe8] sm:$0xf]
        %v1623 = vld [vmem:[%s1563 + $0xec] sm:$0xf]
        %v1624 = vld [vmem:[%s1563 + $0xf0] sm:$0xf]
        %v1625 = vld [vmem:[%s1563 + $0xf4] sm:$0xf]
        %v1626 = vld [vmem:[%s1563 + $0xf8] sm:$0xf]
        %v1627 = vunpack.c.l.bf16 %v1564
        %v1628 = vunpack.c.l.bf16 %v1565
        %v1629 = vunpack.c.l.bf16 %v1566
        %v1630 = vunpack.c.l.bf16 %v1567
        %v1631 = vunpack.c.l.bf16 %v1568
        %v1632 = vunpack.c.l.bf16 %v1569
        %v1633 = vunpack.c.l.bf16 %v1570
        %v1634 = vunpack.c.l.bf16 %v1571
        %v1635 = vunpack.c.l.bf16 %v1572
        %v1636 = vunpack.c.l.bf16 %v1573
        %v1637 = vunpack.c.l.bf16 %v1574
        %v1638 = vunpack.c.l.bf16 %v1575
        %v1639 = vunpack.c.l.bf16 %v1576
        %v1640 = vunpack.c.l.bf16 %v1577
        %v1641 = vunpack.c.l.bf16 %v1578
        %v1642 = vunpack.c.l.bf16 %v1579
        %v1643 = vunpack.c.l.bf16 %v1580
        %v1644 = vunpack.c.l.bf16 %v1581
        %v1645 = vunpack.c.l.bf16 %v1582
        %v1646 = vunpack.c.l.bf16 %v1583
        %v1647 = vunpack.c.l.bf16 %v1584
        %v1648 = vunpack.c.l.bf16 %v1585
        %v1649 = vunpack.c.l.bf16 %v1586
        %v1650 = vunpack.c.l.bf16 %v1587
        %v1651 = vunpack.c.l.bf16 %v1588
        %v1652 = vunpack.c.l.bf16 %v1589
        %v1653 = vunpack.c.l.bf16 %v1590
        %v1654 = vunpack.c.l.bf16 %v1591
        %v1655 = vunpack.c.l.bf16 %v1592
        %v1656 = vunpack.c.l.bf16 %v1593
        %v1657 = vunpack.c.l.bf16 %v1594
        %v1658 = vunpack.c.l.bf16 %v1595
        %v1659 = vunpack.c.l.bf16 %v1596
        %v1660 = vunpack.c.l.bf16 %v1597
        %v1661 = vunpack.c.l.bf16 %v1598
        %v1662 = vunpack.c.l.bf16 %v1599
        %v1663 = vunpack.c.l.bf16 %v1600
        %v1664 = vunpack.c.l.bf16 %v1601
        %v1665 = vunpack.c.l.bf16 %v1602
        %v1666 = vunpack.c.l.bf16 %v1603
        %v1667 = vunpack.c.l.bf16 %v1604
        %v1668 = vunpack.c.l.bf16 %v1605
        %v1669 = vunpack.c.l.bf16 %v1606
        %v1670 = vunpack.c.l.bf16 %v1607
        %v1671 = vunpack.c.l.bf16 %v1608
        %v1672 = vunpack.c.l.bf16 %v1609
        %v1673 = vunpack.c.l.bf16 %v1610
        %v1674 = vunpack.c.l.bf16 %v1611
        %v1675 = vunpack.c.l.bf16 %v1612
        %v1676 = vunpack.c.l.bf16 %v1613
        %v1677 = vunpack.c.l.bf16 %v1614
        %v1678 = vunpack.c.l.bf16 %v1615
        %v1679 = vunpack.c.l.bf16 %v1616
        %v1680 = vunpack.c.l.bf16 %v1617
        %v1681 = vunpack.c.l.bf16 %v1618
        %v1682 = vunpack.c.l.bf16 %v1619
        %v1683 = vunpack.c.l.bf16 %v1620
        %v1684 = vunpack.c.l.bf16 %v1621
        %v1685 = vunpack.c.l.bf16 %v1622
        %v1686 = vunpack.c.l.bf16 %v1623
        %v1687 = vunpack.c.l.bf16 %v1624
        %v1688 = vunpack.c.l.bf16 %v1625
        %v1689 = vunpack.c.l.bf16 %v1626
        %s1690 = scalar_lea.vmem %s1265, 756 [#allocation4]
        %v1691 = vld [vmem:[%s1690] sm:$0xf]
        %v1692 = vld [vmem:[%s1690 + $0x4] sm:$0xf]
        %v1693 = vld [vmem:[%s1690 + $0x8] sm:$0xf]
        %v1694 = vld [vmem:[%s1690 + $0xc] sm:$0xf]
        %v1695 = vld [vmem:[%s1690 + $0x10] sm:$0xf]
        %v1696 = vld [vmem:[%s1690 + $0x14] sm:$0xf]
        %v1697 = vld [vmem:[%s1690 + $0x18] sm:$0xf]
        %v1698 = vld [vmem:[%s1690 + $0x1c] sm:$0xf]
        %v1699 = vld [vmem:[%s1690 + $0x20] sm:$0xf]
        %v1700 = vld [vmem:[%s1690 + $0x24] sm:$0xf]
        %v1701 = vld [vmem:[%s1690 + $0x28] sm:$0xf]
        %v1702 = vld [vmem:[%s1690 + $0x2c] sm:$0xf]
        %v1703 = vld [vmem:[%s1690 + $0x30] sm:$0xf]
        %v1704 = vld [vmem:[%s1690 + $0x34] sm:$0xf]
        %v1705 = vld [vmem:[%s1690 + $0x38] sm:$0xf]
        %v1706 = vld [vmem:[%s1690 + $0x3c] sm:$0xf]
        %v1707 = vld [vmem:[%s1690 + $0x40] sm:$0xf]
        %v1708 = vld [vmem:[%s1690 + $0x44] sm:$0xf]
        %v1709 = vld [vmem:[%s1690 + $0x48] sm:$0xf]
        %v1710 = vld [vmem:[%s1690 + $0x4c] sm:$0xf]
        %v1711 = vld [vmem:[%s1690 + $0x50] sm:$0xf]
        %v1712 = vld [vmem:[%s1690 + $0x54] sm:$0xf]
        %v1713 = vld [vmem:[%s1690 + $0x58] sm:$0xf]
        %v1714 = vld [vmem:[%s1690 + $0x5c] sm:$0xf]
        %v1715 = vld [vmem:[%s1690 + $0x60] sm:$0xf]
        %v1716 = vld [vmem:[%s1690 + $0x64] sm:$0xf]
        %v1717 = vld [vmem:[%s1690 + $0x68] sm:$0xf]
        %v1718 = vld [vmem:[%s1690 + $0x6c] sm:$0xf]
        %v1719 = vld [vmem:[%s1690 + $0x70] sm:$0xf]
        %v1720 = vld [vmem:[%s1690 + $0x74] sm:$0xf]
        %v1721 = vld [vmem:[%s1690 + $0x78] sm:$0xf]
        %v1722 = vld [vmem:[%s1690 + $0x7c] sm:$0xf]
        %v1723 = vld [vmem:[%s1690 + $0x80] sm:$0xf]
        %v1724 = vld [vmem:[%s1690 + $0x84] sm:$0xf]
        %v1725 = vld [vmem:[%s1690 + $0x88] sm:$0xf]
        %v1726 = vld [vmem:[%s1690 + $0x8c] sm:$0xf]
        %v1727 = vld [vmem:[%s1690 + $0x90] sm:$0xf]
        %v1728 = vld [vmem:[%s1690 + $0x94] sm:$0xf]
        %v1729 = vld [vmem:[%s1690 + $0x98] sm:$0xf]
        %v1730 = vld [vmem:[%s1690 + $0x9c] sm:$0xf]
        %v1731 = vld [vmem:[%s1690 + $0xa0] sm:$0xf]
        %v1732 = vld [vmem:[%s1690 + $0xa4] sm:$0xf]
        %v1733 = vld [vmem:[%s1690 + $0xa8] sm:$0xf]
        %v1734 = vld [vmem:[%s1690 + $0xac] sm:$0xf]
        %v1735 = vld [vmem:[%s1690 + $0xb0] sm:$0xf]
        %v1736 = vld [vmem:[%s1690 + $0xb4] sm:$0xf]
        %v1737 = vld [vmem:[%s1690 + $0xb8] sm:$0xf]
        %v1738 = vld [vmem:[%s1690 + $0xbc] sm:$0xf]
        %v1739 = vld [vmem:[%s1690 + $0xc0] sm:$0xf]
        %v1740 = vld [vmem:[%s1690 + $0xc4] sm:$0xf]
        %v1741 = vld [vmem:[%s1690 + $0xc8] sm:$0xf]
        %v1742 = vld [vmem:[%s1690 + $0xcc] sm:$0xf]
        %v1743 = vld [vmem:[%s1690 + $0xd0] sm:$0xf]
        %v1744 = vld [vmem:[%s1690 + $0xd4] sm:$0xf]
        %v1745 = vld [vmem:[%s1690 + $0xd8] sm:$0xf]
        %v1746 = vld [vmem:[%s1690 + $0xdc] sm:$0xf]
        %v1747 = vld [vmem:[%s1690 + $0xe0] sm:$0xf]
        %v1748 = vld [vmem:[%s1690 + $0xe4] sm:$0xf]
        %v1749 = vld [vmem:[%s1690 + $0xe8] sm:$0xf]
        %v1750 = vld [vmem:[%s1690 + $0xec] sm:$0xf]
        %v1751 = vld [vmem:[%s1690 + $0xf0] sm:$0xf]
        %v1752 = vld [vmem:[%s1690 + $0xf4] sm:$0xf]
        %v1753 = vld [vmem:[%s1690 + $0xf8] sm:$0xf]
        %v1754 = vunpack.c.l.bf16 %v1691
        %v1755 = vunpack.c.l.bf16 %v1692
        %v1756 = vunpack.c.l.bf16 %v1693
        %v1757 = vunpack.c.l.bf16 %v1694
        %v1758 = vunpack.c.l.bf16 %v1695
        %v1759 = vunpack.c.l.bf16 %v1696
        %v1760 = vunpack.c.l.bf16 %v1697
        %v1761 = vunpack.c.l.bf16 %v1698
        %v1762 = vunpack.c.l.bf16 %v1699
        %v1763 = vunpack.c.l.bf16 %v1700
        %v1764 = vunpack.c.l.bf16 %v1701
        %v1765 = vunpack.c.l.bf16 %v1702
        %v1766 = vunpack.c.l.bf16 %v1703
        %v1767 = vunpack.c.l.bf16 %v1704
        %v1768 = vunpack.c.l.bf16 %v1705
        %v1769 = vunpack.c.l.bf16 %v1706
        %v1770 = vunpack.c.l.bf16 %v1707
        %v1771 = vunpack.c.l.bf16 %v1708
        %v1772 = vunpack.c.l.bf16 %v1709
        %v1773 = vunpack.c.l.bf16 %v1710
        %v1774 = vunpack.c.l.bf16 %v1711
        %v1775 = vunpack.c.l.bf16 %v1712
        %v1776 = vunpack.c.l.bf16 %v1713
        %v1777 = vunpack.c.l.bf16 %v1714
        %v1778 = vunpack.c.l.bf16 %v1715
        %v1779 = vunpack.c.l.bf16 %v1716
        %v1780 = vunpack.c.l.bf16 %v1717
        %v1781 = vunpack.c.l.bf16 %v1718
        %v1782 = vunpack.c.l.bf16 %v1719
        %v1783 = vunpack.c.l.bf16 %v1720
        %v1784 = vunpack.c.l.bf16 %v1721
        %v1785 = vunpack.c.l.bf16 %v1722
        %v1786 = vunpack.c.l.bf16 %v1723
        %v1787 = vunpack.c.l.bf16 %v1724
        %v1788 = vunpack.c.l.bf16 %v1725
        %v1789 = vunpack.c.l.bf16 %v1726
        %v1790 = vunpack.c.l.bf16 %v1727
        %v1791 = vunpack.c.l.bf16 %v1728
        %v1792 = vunpack.c.l.bf16 %v1729
        %v1793 = vunpack.c.l.bf16 %v1730
        %v1794 = vunpack.c.l.bf16 %v1731
        %v1795 = vunpack.c.l.bf16 %v1732
        %v1796 = vunpack.c.l.bf16 %v1733
        %v1797 = vunpack.c.l.bf16 %v1734
        %v1798 = vunpack.c.l.bf16 %v1735
        %v1799 = vunpack.c.l.bf16 %v1736
        %v1800 = vunpack.c.l.bf16 %v1737
        %v1801 = vunpack.c.l.bf16 %v1738
        %v1802 = vunpack.c.l.bf16 %v1739
        %v1803 = vunpack.c.l.bf16 %v1740
        %v1804 = vunpack.c.l.bf16 %v1741
        %v1805 = vunpack.c.l.bf16 %v1742
        %v1806 = vunpack.c.l.bf16 %v1743
        %v1807 = vunpack.c.l.bf16 %v1744
        %v1808 = vunpack.c.l.bf16 %v1745
        %v1809 = vunpack.c.l.bf16 %v1746
        %v1810 = vunpack.c.l.bf16 %v1747
        %v1811 = vunpack.c.l.bf16 %v1748
        %v1812 = vunpack.c.l.bf16 %v1749
        %v1813 = vunpack.c.l.bf16 %v1750
        %v1814 = vunpack.c.l.bf16 %v1751
        %v1815 = vunpack.c.l.bf16 %v1752
        %v1816 = vunpack.c.l.bf16 %v1753
        %v1817 = vld [vmem:[%s1301] sm:$0xf]
        %v1818 = vld [vmem:[%s1301 + $0x4] sm:$0xf]
        %v1819 = vld [vmem:[%s1301 + $0x8] sm:$0xf]
        %v1820 = vld [vmem:[%s1301 + $0xc] sm:$0xf]
        %v1821 = vld [vmem:[%s1301 + $0x10] sm:$0xf]
        %v1822 = vld [vmem:[%s1301 + $0x14] sm:$0xf]
        %v1823 = vld [vmem:[%s1301 + $0x18] sm:$0xf]
        %v1824 = vld [vmem:[%s1301 + $0x1c] sm:$0xf]
        %v1825 = vld [vmem:[%s1301 + $0x20] sm:$0xf]
        %v1826 = vld [vmem:[%s1301 + $0x24] sm:$0xf]
        %v1827 = vld [vmem:[%s1301 + $0x28] sm:$0xf]
        %v1828 = vld [vmem:[%s1301 + $0x2c] sm:$0xf]
        %v1829 = vld [vmem:[%s1301 + $0x30] sm:$0xf]
        %v1830 = vld [vmem:[%s1301 + $0x34] sm:$0xf]
        %v1831 = vld [vmem:[%s1301 + $0x38] sm:$0xf]
        %v1832 = vld [vmem:[%s1301 + $0x3c] sm:$0xf]
        %v1833 = vld [vmem:[%s1301 + $0x40] sm:$0xf]
        %v1834 = vld [vmem:[%s1301 + $0x44] sm:$0xf]
        %v1835 = vld [vmem:[%s1301 + $0x48] sm:$0xf]
        %v1836 = vld [vmem:[%s1301 + $0x4c] sm:$0xf]
        %v1837 = vld [vmem:[%s1301 + $0x50] sm:$0xf]
        %v1838 = vld [vmem:[%s1301 + $0x54] sm:$0xf]
        %v1839 = vld [vmem:[%s1301 + $0x58] sm:$0xf]
        %v1840 = vld [vmem:[%s1301 + $0x5c] sm:$0xf]
        %v1841 = vld [vmem:[%s1301 + $0x60] sm:$0xf]
        %v1842 = vld [vmem:[%s1301 + $0x64] sm:$0xf]
        %v1843 = vld [vmem:[%s1301 + $0x68] sm:$0xf]
        %v1844 = vld [vmem:[%s1301 + $0x6c] sm:$0xf]
        %v1845 = vld [vmem:[%s1301 + $0x70] sm:$0xf]
        %v1846 = vld [vmem:[%s1301 + $0x74] sm:$0xf]
        %v1847 = vld [vmem:[%s1301 + $0x78] sm:$0xf]
        %v1848 = vld [vmem:[%s1301 + $0x7c] sm:$0xf]
        %v1849 = vld [vmem:[%s1301 + $0x80] sm:$0xf]
        %v1850 = vld [vmem:[%s1301 + $0x84] sm:$0xf]
        %v1851 = vld [vmem:[%s1301 + $0x88] sm:$0xf]
        %v1852 = vld [vmem:[%s1301 + $0x8c] sm:$0xf]
        %v1853 = vld [vmem:[%s1301 + $0x90] sm:$0xf]
        %v1854 = vld [vmem:[%s1301 + $0x94] sm:$0xf]
        %v1855 = vld [vmem:[%s1301 + $0x98] sm:$0xf]
        %v1856 = vld [vmem:[%s1301 + $0x9c] sm:$0xf]
        %v1857 = vld [vmem:[%s1301 + $0xa0] sm:$0xf]
        %v1858 = vld [vmem:[%s1301 + $0xa4] sm:$0xf]
        %v1859 = vld [vmem:[%s1301 + $0xa8] sm:$0xf]
        %v1860 = vld [vmem:[%s1301 + $0xac] sm:$0xf]
        %v1861 = vld [vmem:[%s1301 + $0xb0] sm:$0xf]
        %v1862 = vld [vmem:[%s1301 + $0xb4] sm:$0xf]
        %v1863 = vld [vmem:[%s1301 + $0xb8] sm:$0xf]
        %v1864 = vld [vmem:[%s1301 + $0xbc] sm:$0xf]
        %v1865 = vld [vmem:[%s1301 + $0xc0] sm:$0xf]
        %v1866 = vld [vmem:[%s1301 + $0xc4] sm:$0xf]
        %v1867 = vld [vmem:[%s1301 + $0xc8] sm:$0xf]
        %v1868 = vld [vmem:[%s1301 + $0xcc] sm:$0xf]
        %v1869 = vld [vmem:[%s1301 + $0xd0] sm:$0xf]
        %v1870 = vld [vmem:[%s1301 + $0xd4] sm:$0xf]
        %v1871 = vld [vmem:[%s1301 + $0xd8] sm:$0xf]
        %v1872 = vld [vmem:[%s1301 + $0xdc] sm:$0xf]
        %v1873 = vld [vmem:[%s1301 + $0xe0] sm:$0xf]
        %v1874 = vld [vmem:[%s1301 + $0xe4] sm:$0xf]
        %v1875 = vld [vmem:[%s1301 + $0xe8] sm:$0xf]
        %v1876 = vld [vmem:[%s1301 + $0xec] sm:$0xf]
        %v1877 = vld [vmem:[%s1301 + $0xf0] sm:$0xf]
        %v1878 = vld [vmem:[%s1301 + $0xf4] sm:$0xf]
        %v1879 = vld [vmem:[%s1301 + $0xf8] sm:$0xf]
        %v1880 = vld [vmem:[%s3] sm:$0xf]
        %v1881 = vld [vmem:[%s3 + $0x4] sm:$0xf]
        %v1882 = vld [vmem:[%s3 + $0x8] sm:$0xf]
        %v1883 = vld [vmem:[%s3 + $0xc] sm:$0xf]
        %v1884 = vld [vmem:[%s4 + $0x3] sm:$0x1]
        %v1885 = vlaneseq
        %v1886 = vshrl.u32 %v1885, 7
        %v1887 = vsub.s32 0, %v1886
        %v1888 = vrot.slane %v1884, %v1887
        %v1952 = vunpack.c.l.b16 %v1817
        %v1953 = vunpack.c.l.b16 %v1818
        %v1954 = vunpack.c.l.b16 %v1819
        %v1955 = vunpack.c.l.b16 %v1820
        %v1956 = vunpack.c.l.b16 %v1821
        %v1957 = vunpack.c.l.b16 %v1822
        %v1958 = vunpack.c.l.b16 %v1823
        %v1959 = vunpack.c.l.b16 %v1824
        %v1960 = vunpack.c.l.b16 %v1825
        %v1961 = vunpack.c.l.b16 %v1826
        %v1962 = vunpack.c.l.b16 %v1827
        %v1963 = vunpack.c.l.b16 %v1828
        %v1964 = vunpack.c.l.b16 %v1829
        %v1965 = vunpack.c.l.b16 %v1830
        %v1966 = vunpack.c.l.b16 %v1831
        %v1967 = vunpack.c.l.b16 %v1832
        %v1968 = vunpack.c.l.b16 %v1833
        %v1969 = vunpack.c.l.b16 %v1834
        %v1970 = vunpack.c.l.b16 %v1835
        %v1971 = vunpack.c.l.b16 %v1836
        %v1972 = vunpack.c.l.b16 %v1837
        %v1973 = vunpack.c.l.b16 %v1838
        %v1974 = vunpack.c.l.b16 %v1839
        %v1975 = vunpack.c.l.b16 %v1840
        %v1976 = vunpack.c.l.b16 %v1841
        %v1977 = vunpack.c.l.b16 %v1842
        %v1978 = vunpack.c.l.b16 %v1843
        %v1979 = vunpack.c.l.b16 %v1844
        %v1980 = vunpack.c.l.b16 %v1845
        %v1981 = vunpack.c.l.b16 %v1846
        %v1982 = vunpack.c.l.b16 %v1847
        %v1983 = vunpack.c.l.b16 %v1848
        %v1984 = vunpack.c.l.b16 %v1849
        %v1985 = vunpack.c.l.b16 %v1850
        %v1986 = vunpack.c.l.b16 %v1851
        %v1987 = vunpack.c.l.b16 %v1852
        %v1988 = vunpack.c.l.b16 %v1853
        %v1989 = vunpack.c.l.b16 %v1854
        %v1990 = vunpack.c.l.b16 %v1855
        %v1991 = vunpack.c.l.b16 %v1856
        %v1992 = vunpack.c.l.b16 %v1857
        %v1993 = vunpack.c.l.b16 %v1858
        %v1994 = vunpack.c.l.b16 %v1859
        %v1995 = vunpack.c.l.b16 %v1860
        %v1996 = vunpack.c.l.b16 %v1861
        %v1997 = vunpack.c.l.b16 %v1862
        %v1998 = vunpack.c.l.b16 %v1863
        %v1999 = vunpack.c.l.b16 %v1864
        %v2000 = vunpack.c.l.b16 %v1865
        %v2001 = vunpack.c.l.b16 %v1866
        %v2002 = vunpack.c.l.b16 %v1867
        %v2003 = vunpack.c.l.b16 %v1868
        %v2004 = vunpack.c.l.b16 %v1869
        %v2005 = vunpack.c.l.b16 %v1870
        %v2006 = vunpack.c.l.b16 %v1871
        %v2007 = vunpack.c.l.b16 %v1872
        %v2008 = vunpack.c.l.b16 %v1873
        %v2009 = vunpack.c.l.b16 %v1874
        %v2010 = vunpack.c.l.b16 %v1875
        %v2011 = vunpack.c.l.b16 %v1876
        %v2012 = vunpack.c.l.b16 %v1877
        %v2013 = vunpack.c.l.b16 %v1878
        %v2014 = vunpack.c.l.b16 %v1879
        %v2015 = vpack.c.b16 %v1953, %v1952
        %v2016 = vpack.c.b16 %v1955, %v1954
        %v2017 = vpack.c.b16 %v1957, %v1956
        %v2018 = vpack.c.b16 %v1959, %v1958
        %v2019 = vpack.c.b16 %v1961, %v1960
        %v2020 = vpack.c.b16 %v1963, %v1962
        %v2021 = vpack.c.b16 %v1965, %v1964
        %v2022 = vpack.c.b16 %v1967, %v1966
        %v2023 = vpack.c.b16 %v1969, %v1968
        %v2024 = vpack.c.b16 %v1971, %v1970
        %v2025 = vpack.c.b16 %v1973, %v1972
        %v2026 = vpack.c.b16 %v1975, %v1974
        %v2027 = vpack.c.b16 %v1977, %v1976
        %v2028 = vpack.c.b16 %v1979, %v1978
        %v2029 = vpack.c.b16 %v1981, %v1980
        %v2030 = vpack.c.b16 %v1983, %v1982
        %v2031 = vpack.c.b16 %v1985, %v1984
        %v2032 = vpack.c.b16 %v1987, %v1986
        %v2033 = vpack.c.b16 %v1989, %v1988
        %v2034 = vpack.c.b16 %v1991, %v1990
        %v2035 = vpack.c.b16 %v1993, %v1992
        %v2036 = vpack.c.b16 %v1995, %v1994
        %v2037 = vpack.c.b16 %v1997, %v1996
        %v2038 = vpack.c.b16 %v1999, %v1998
        %v2039 = vpack.c.b16 %v2001, %v2000
        %v2040 = vpack.c.b16 %v2003, %v2002
        %v2041 = vpack.c.b16 %v2005, %v2004
        %v2042 = vpack.c.b16 %v2007, %v2006
        %v2043 = vpack.c.b16 %v2009, %v2008
        %v2044 = vpack.c.b16 %v2011, %v2010
        %v2045 = vpack.c.b16 %v2013, %v2012
        %v2046 = vpack.c.b16 %v2014, %v2014
        %v2051 = vunpack.c.l.b16 %v1880
        %v2052 = vunpack.c.l.b16 %v1881
        %v2053 = vunpack.c.l.b16 %v1882
        %v2054 = vunpack.c.l.b16 %v1883
        %v2055 = vpack.c.b16 %v2052, %v2051
        %v2056 = vpack.c.b16 %v2054, %v2053
        %vm2059 = vcmask 261120
        %v2061 = vsel %vm2059, %v2015, 0
        %v2064 = vsel %vm2059, %v2016, 0
        %v2067 = vsel %vm2059, %v2017, 0
        %v2070 = vsel %vm2059, %v2018, 0
        %v2073 = vsel %vm2059, %v2019, 0
        %v2076 = vsel %vm2059, %v2020, 0
        %v2079 = vsel %vm2059, %v2021, 0
        %v2082 = vsel %vm2059, %v2022, 0
        %v2085 = vsel %vm2059, %v2023, 0
        %v2088 = vsel %vm2059, %v2024, 0
        %v2091 = vsel %vm2059, %v2025, 0
        %v2094 = vsel %vm2059, %v2026, 0
        %v2097 = vsel %vm2059, %v2027, 0
        %v2100 = vsel %vm2059, %v2028, 0
        %v2103 = vsel %vm2059, %v2029, 0
        %v2106 = vsel %vm2059, %v2030, 0
        %v2109 = vsel %vm2059, %v2031, 0
        %v2112 = vsel %vm2059, %v2032, 0
        %v2115 = vsel %vm2059, %v2033, 0
        %v2118 = vsel %vm2059, %v2034, 0
        %v2121 = vsel %vm2059, %v2035, 0
        %v2124 = vsel %vm2059, %v2036, 0
        %v2127 = vsel %vm2059, %v2037, 0
        %v2130 = vsel %vm2059, %v2038, 0
        %v2133 = vsel %vm2059, %v2039, 0
        %v2136 = vsel %vm2059, %v2040, 0
        %v2139 = vsel %vm2059, %v2041, 0
        %v2142 = vsel %vm2059, %v2042, 0
        %v2145 = vsel %vm2059, %v2043, 0
        %v2148 = vsel %vm2059, %v2044, 0
        %v2151 = vsel %vm2059, %v2045, 0
        %v2154 = vsel %vm2059, %v2046, 0
        %2156 = vmatprep.subr.bf16.mxu0 0
        %2157 = vmatpush1.bf16.msra.mxu0 %v2055
        %2158 = vmatprep.subr.bf16.mxu0 0
        %2159 = vmatpush1.bf16.msra.mxu0 %v2056
        %2160 = vmatprep.subr.bf16.mxu0 0
        %2161 = vmatpush1.bf16.msra.mxu0 0
        %2162 = vmatprep.subr.bf16.mxu0 0
        %2163 = vmatpush1.bf16.msra.mxu0 0
        %2164 = vmatprep.subr.bf16.mxu0 0
        %2165 = vmatpush1.bf16.msra.mxu0 0
        %2166 = vmatprep.subr.bf16.mxu0 0
        %2167 = vmatpush1.bf16.msra.mxu0 0
        %2168 = vmatprep.subr.bf16.mxu0 0
        %2169 = vmatpush1.bf16.msra.mxu0 0
        %2170 = vmatprep.subr.bf16.mxu0 0
        %2171 = vmatpush1.bf16.msra.mxu0 0
        %2172 = vmatprep.subr.bf16.mxu0 0
        %2173 = vmatpush1.bf16.msra.mxu0 0
        %2174 = vmatprep.subr.bf16.mxu0 0
        %2175 = vmatpush1.bf16.msra.mxu0 0
        %2176 = vmatprep.subr.bf16.mxu0 0
        %2177 = vmatpush1.bf16.msra.mxu0 0
        %2178 = vmatprep.subr.bf16.mxu0 0
        %2179 = vmatpush1.bf16.msra.mxu0 0
        %2180 = vmatprep.subr.bf16.mxu0 0
        %2181 = vmatpush1.bf16.msra.mxu0 0
        %2182 = vmatprep.subr.bf16.mxu0 0
        %2183 = vmatpush1.bf16.msra.mxu0 0
        %2184 = vmatprep.subr.bf16.mxu0 0
        %2185 = vmatpush1.bf16.msra.mxu0 0
        %2186 = vmatprep.subr.bf16.mxu0 0
        %2187 = vmatpush1.bf16.msra.mxu0 0
        %2188 = vmatprep.mubr.bf16.mxu0 0
        %2189 = vmatmul.mubr.bf16.gmra.mrb[0].mxu0 %v2061
        %v2190 = vpop.f32.mrb[0].mxu0
        %v2191 = vadd.f32 %v1888, %v2190
        %v2192 = vpop.f32.mrb[0].mxu0
        %v2193 = vpop.f32.mrb[0].mxu0
        %v2194 = vadd.f32 %v1888, %v2193
        %v2195 = vpop.f32.mrb[0].mxu0
        %2196 = vmatprep.mubr.bf16.mxu0 0
        %2197 = vmatmul.mubr.bf16.gmra.mrb[0].mxu0 %v2064
        %v2198 = vpop.f32.mrb[0].mxu0
        %v2199 = vadd.f32 %v1888, %v2198
        %v2200 = vpop.f32.mrb[0].mxu0
        %v2201 = vpop.f32.mrb[0].mxu0
        %v2202 = vadd.f32 %v1888, %v2201
        %v2203 = vpop.f32.mrb[0].mxu0
        %2204 = vmatprep.mubr.bf16.mxu0 0
        %2205 = vmatmul.mubr.bf16.gmra.mrb[0].mxu0 %v2067
        %v2206 = vpop.f32.mrb[0].mxu0
        %v2207 = vadd.f32 %v1888, %v2206
        %v2208 = vpop.f32.mrb[0].mxu0
        %v2209 = vpop.f32.mrb[0].mxu0
        %v2210 = vadd.f32 %v1888, %v2209
        %v2211 = vpop.f32.mrb[0].mxu0
        %2212 = vmatprep.mubr.bf16.mxu0 0
        %2213 = vmatmul.mubr.bf16.gmra.mrb[0].mxu0 %v2070
        %v2214 = vpop.f32.mrb[0].mxu0
        %v2215 = vadd.f32 %v1888, %v2214
        %v2216 = vpop.f32.mrb[0].mxu0
        %v2217 = vpop.f32.mrb[0].mxu0
        %v2218 = vadd.f32 %v1888, %v2217
        %v2219 = vpop.f32.mrb[0].mxu0
        %2220 = vmatprep.mubr.bf16.mxu0 0
        %2221 = vmatmul.mubr.bf16.gmra.mrb[0].mxu0 %v2073
        %v2222 = vpop.f32.mrb[0].mxu0
        %v2223 = vadd.f32 %v1888, %v2222
        %v2224 = vpop.f32.mrb[0].mxu0
        %v2225 = vpop.f32.mrb[0].mxu0
        %v2226 = vadd.f32 %v1888, %v2225
        %v2227 = vpop.f32.mrb[0].mxu0
        %2228 = vmatprep.mubr.bf16.mxu0 0
        %2229 = vmatmul.mubr.bf16.gmra.mrb[0].mxu0 %v2076
        %v2230 = vpop.f32.mrb[0].mxu0
        %v2231 = vadd.f32 %v1888, %v2230
        %v2232 = vpop.f32.mrb[0].mxu0
        %v2233 = vpop.f32.mrb[0].mxu0
        %v2234 = vadd.f32 %v1888, %v2233
        %v2235 = vpop.f32.mrb[0].mxu0
        %2236 = vmatprep.mubr.bf16.mxu0 0
        %2237 = vmatmul.mubr.bf16.gmra.mrb[0].mxu0 %v2079
        %v2238 = vpop.f32.mrb[0].mxu0
        %v2239 = vadd.f32 %v1888, %v2238
        %v2240 = vpop.f32.mrb[0].mxu0
        %v2241 = vpop.f32.mrb[0].mxu0
        %v2242 = vadd.f32 %v1888, %v2241
        %v2243 = vpop.f32.mrb[0].mxu0
        %2244 = vmatprep.mubr.bf16.mxu0 0
        %2245 = vmatmul.mubr.bf16.gmra.mrb[0].mxu0 %v2082
        %v2246 = vpop.f32.mrb[0].mxu0
        %v2247 = vadd.f32 %v1888, %v2246
        %v2248 = vpop.f32.mrb[0].mxu0
        %v2249 = vpop.f32.mrb[0].mxu0
        %v2250 = vadd.f32 %v1888, %v2249
        %v2251 = vpop.f32.mrb[0].mxu0
        %2252 = vmatprep.mubr.bf16.mxu0 0
        %2253 = vmatmul.mubr.bf16.gmra.mrb[0].mxu0 %v2085
        %v2254 = vpop.f32.mrb[0].mxu0
        %v2255 = vadd.f32 %v1888, %v2254
        %v2256 = vpop.f32.mrb[0].mxu0
        %v2257 = vpop.f32.mrb[0].mxu0
        %v2258 = vadd.f32 %v1888, %v2257
        %v2259 = vpop.f32.mrb[0].mxu0
        %2260 = vmatprep.mubr.bf16.mxu0 0
        %2261 = vmatmul.mubr.bf16.gmra.mrb[0].mxu0 %v2088
        %v2262 = vpop.f32.mrb[0].mxu0
        %v2263 = vadd.f32 %v1888, %v2262
        %v2264 = vpop.f32.mrb[0].mxu0
        %v2265 = vpop.f32.mrb[0].mxu0
        %v2266 = vadd.f32 %v1888, %v2265
        %v2267 = vpop.f32.mrb[0].mxu0
        %2268 = vmatprep.mubr.bf16.mxu0 0
        %2269 = vmatmul.mubr.bf16.gmra.mrb[0].mxu0 %v2091
        %v2270 = vpop.f32.mrb[0].mxu0
        %v2271 = vadd.f32 %v1888, %v2270
        %v2272 = vpop.f32.mrb[0].mxu0
        %v2273 = vpop.f32.mrb[0].mxu0
        %v2274 = vadd.f32 %v1888, %v2273
        %v2275 = vpop.f32.mrb[0].mxu0
        %2276 = vmatprep.mubr.bf16.mxu0 0
        %2277 = vmatmul.mubr.bf16.gmra.mrb[0].mxu0 %v2094
        %v2278 = vpop.f32.mrb[0].mxu0
        %v2279 = vadd.f32 %v1888, %v2278
        %v2280 = vpop.f32.mrb[0].mxu0
        %v2281 = vpop.f32.mrb[0].mxu0
        %v2282 = vadd.f32 %v1888, %v2281
        %v2283 = vpop.f32.mrb[0].mxu0
        %2284 = vmatprep.mubr.bf16.mxu0 0
        %2285 = vmatmul.mubr.bf16.gmra.mrb[0].mxu0 %v2097
        %v2286 = vpop.f32.mrb[0].mxu0
        %v2287 = vadd.f32 %v1888, %v2286
        %v2288 = vpop.f32.mrb[0].mxu0
        %v2289 = vpop.f32.mrb[0].mxu0
        %v2290 = vadd.f32 %v1888, %v2289
        %v2291 = vpop.f32.mrb[0].mxu0
        %2292 = vmatprep.mubr.bf16.mxu0 0
        %2293 = vmatmul.mubr.bf16.gmra.mrb[0].mxu0 %v2100
        %v2294 = vpop.f32.mrb[0].mxu0
        %v2295 = vadd.f32 %v1888, %v2294
        %v2296 = vpop.f32.mrb[0].mxu0
        %v2297 = vpop.f32.mrb[0].mxu0
        %v2298 = vadd.f32 %v1888, %v2297
        %v2299 = vpop.f32.mrb[0].mxu0
        %2300 = vmatprep.mubr.bf16.mxu0 0
        %2301 = vmatmul.mubr.bf16.gmra.mrb[0].mxu0 %v2103
        %v2302 = vpop.f32.mrb[0].mxu0
        %v2303 = vadd.f32 %v1888, %v2302
        %v2304 = vpop.f32.mrb[0].mxu0
        %v2305 = vpop.f32.mrb[0].mxu0
        %v2306 = vadd.f32 %v1888, %v2305
        %v2307 = vpop.f32.mrb[0].mxu0
        %2308 = vmatprep.mubr.bf16.mxu0 0
        %2309 = vmatmul.mubr.bf16.gmra.mrb[0].mxu0 %v2106
        %v2310 = vpop.f32.mrb[0].mxu0
        %v2311 = vadd.f32 %v1888, %v2310
        %v2312 = vpop.f32.mrb[0].mxu0
        %v2313 = vpop.f32.mrb[0].mxu0
        %v2314 = vadd.f32 %v1888, %v2313
        %v2315 = vpop.f32.mrb[0].mxu0
        %2316 = vmatprep.mubr.bf16.mxu0 0
        %2317 = vmatmul.mubr.bf16.gmra.mrb[0].mxu0 %v2109
        %v2318 = vpop.f32.mrb[0].mxu0
        %v2319 = vadd.f32 %v1888, %v2318
        %v2320 = vpop.f32.mrb[0].mxu0
        %v2321 = vpop.f32.mrb[0].mxu0
        %v2322 = vadd.f32 %v1888, %v2321
        %v2323 = vpop.f32.mrb[0].mxu0
        %2324 = vmatprep.mubr.bf16.mxu0 0
        %2325 = vmatmul.mubr.bf16.gmra.mrb[0].mxu0 %v2112
        %v2326 = vpop.f32.mrb[0].mxu0
        %v2327 = vadd.f32 %v1888, %v2326
        %v2328 = vpop.f32.mrb[0].mxu0
        %v2329 = vpop.f32.mrb[0].mxu0
        %v2330 = vadd.f32 %v1888, %v2329
        %v2331 = vpop.f32.mrb[0].mxu0
        %2332 = vmatprep.mubr.bf16.mxu0 0
        %2333 = vmatmul.mubr.bf16.gmra.mrb[0].mxu0 %v2115
        %v2334 = vpop.f32.mrb[0].mxu0
        %v2335 = vadd.f32 %v1888, %v2334
        %v2336 = vpop.f32.mrb[0].mxu0
        %v2337 = vpop.f32.mrb[0].mxu0
        %v2338 = vadd.f32 %v1888, %v2337
        %v2339 = vpop.f32.mrb[0].mxu0
        %2340 = vmatprep.mubr.bf16.mxu0 0
        %2341 = vmatmul.mubr.bf16.gmra.mrb[0].mxu0 %v2118
        %v2342 = vpop.f32.mrb[0].mxu0
        %v2343 = vadd.f32 %v1888, %v2342
        %v2344 = vpop.f32.mrb[0].mxu0
        %v2345 = vpop.f32.mrb[0].mxu0
        %v2346 = vadd.f32 %v1888, %v2345
        %v2347 = vpop.f32.mrb[0].mxu0
        %2348 = vmatprep.mubr.bf16.mxu0 0
        %2349 = vmatmul.mubr.bf16.gmra.mrb[0].mxu0 %v2121
        %v2350 = vpop.f32.mrb[0].mxu0
        %v2351 = vadd.f32 %v1888, %v2350
        %v2352 = vpop.f32.mrb[0].mxu0
        %v2353 = vpop.f32.mrb[0].mxu0
        %v2354 = vadd.f32 %v1888, %v2353
        %v2355 = vpop.f32.mrb[0].mxu0
        %2356 = vmatprep.mubr.bf16.mxu0 0
        %2357 = vmatmul.mubr.bf16.gmra.mrb[0].mxu0 %v2124
        %v2358 = vpop.f32.mrb[0].mxu0
        %v2359 = vadd.f32 %v1888, %v2358
        %v2360 = vpop.f32.mrb[0].mxu0
        %v2361 = vpop.f32.mrb[0].mxu0
        %v2362 = vadd.f32 %v1888, %v2361
        %v2363 = vpop.f32.mrb[0].mxu0
        %2364 = vmatprep.mubr.bf16.mxu0 0
        %2365 = vmatmul.mubr.bf16.gmra.mrb[0].mxu0 %v2127
        %v2366 = vpop.f32.mrb[0].mxu0
        %v2367 = vadd.f32 %v1888, %v2366
        %v2368 = vpop.f32.mrb[0].mxu0
        %v2369 = vpop.f32.mrb[0].mxu0
        %v2370 = vadd.f32 %v1888, %v2369
        %v2371 = vpop.f32.mrb[0].mxu0
        %2372 = vmatprep.mubr.bf16.mxu0 0
        %2373 = vmatmul.mubr.bf16.gmra.mrb[0].mxu0 %v2130
        %v2374 = vpop.f32.mrb[0].mxu0
        %v2375 = vadd.f32 %v1888, %v2374
        %v2376 = vpop.f32.mrb[0].mxu0
        %v2377 = vpop.f32.mrb[0].mxu0
        %v2378 = vadd.f32 %v1888, %v2377
        %v2379 = vpop.f32.mrb[0].mxu0
        %2380 = vmatprep.mubr.bf16.mxu0 0
        %2381 = vmatmul.mubr.bf16.gmra.mrb[0].mxu0 %v2133
        %v2382 = vpop.f32.mrb[0].mxu0
        %v2383 = vadd.f32 %v1888, %v2382
        %v2384 = vpop.f32.mrb[0].mxu0
        %v2385 = vpop.f32.mrb[0].mxu0
        %v2386 = vadd.f32 %v1888, %v2385
        %v2387 = vpop.f32.mrb[0].mxu0
        %2388 = vmatprep.mubr.bf16.mxu0 0
        %2389 = vmatmul.mubr.bf16.gmra.mrb[0].mxu0 %v2136
        %v2390 = vpop.f32.mrb[0].mxu0
        %v2391 = vadd.f32 %v1888, %v2390
        %v2392 = vpop.f32.mrb[0].mxu0
        %v2393 = vpop.f32.mrb[0].mxu0
        %v2394 = vadd.f32 %v1888, %v2393
        %v2395 = vpop.f32.mrb[0].mxu0
        %2396 = vmatprep.mubr.bf16.mxu0 0
        %2397 = vmatmul.mubr.bf16.gmra.mrb[0].mxu0 %v2139
        %v2398 = vpop.f32.mrb[0].mxu0
        %v2399 = vadd.f32 %v1888, %v2398
        %v2400 = vpop.f32.mrb[0].mxu0
        %v2401 = vpop.f32.mrb[0].mxu0
        %v2402 = vadd.f32 %v1888, %v2401
        %v2403 = vpop.f32.mrb[0].mxu0
        %2404 = vmatprep.mubr.bf16.mxu0 0
        %2405 = vmatmul.mubr.bf16.gmra.mrb[0].mxu0 %v2142
        %v2406 = vpop.f32.mrb[0].mxu0
        %v2407 = vadd.f32 %v1888, %v2406
        %v2408 = vpop.f32.mrb[0].mxu0
        %v2409 = vpop.f32.mrb[0].mxu0
        %v2410 = vadd.f32 %v1888, %v2409
        %v2411 = vpop.f32.mrb[0].mxu0
        %2412 = vmatprep.mubr.bf16.mxu0 0
        %2413 = vmatmul.mubr.bf16.gmra.mrb[0].mxu0 %v2145
        %v2414 = vpop.f32.mrb[0].mxu0
        %v2415 = vadd.f32 %v1888, %v2414
        %v2416 = vpop.f32.mrb[0].mxu0
        %v2417 = vpop.f32.mrb[0].mxu0
        %v2418 = vadd.f32 %v1888, %v2417
        %v2419 = vpop.f32.mrb[0].mxu0
        %2420 = vmatprep.mubr.bf16.mxu0 0
        %2421 = vmatmul.mubr.bf16.gmra.mrb[0].mxu0 %v2148
        %v2422 = vpop.f32.mrb[0].mxu0
        %v2423 = vadd.f32 %v1888, %v2422
        %v2424 = vpop.f32.mrb[0].mxu0
        %v2425 = vpop.f32.mrb[0].mxu0
        %v2426 = vadd.f32 %v1888, %v2425
        %v2427 = vpop.f32.mrb[0].mxu0
        %2428 = vmatprep.mubr.bf16.mxu0 0
        %2429 = vmatmul.mubr.bf16.gmra.mrb[0].mxu0 %v2151
        %v2430 = vpop.f32.mrb[0].mxu0
        %v2431 = vadd.f32 %v1888, %v2430
        %v2432 = vpop.f32.mrb[0].mxu0
        %v2433 = vpop.f32.mrb[0].mxu0
        %v2434 = vadd.f32 %v1888, %v2433
        %v2435 = vpop.f32.mrb[0].mxu0
        %2436 = vmatprep.mubr.bf16.mxu0 0
        %2437 = vmatmul.mubr.bf16.gmra.mrb[0].mxu0 %v2154
        %v2438 = vpop.f32.mrb[0].mxu0
        %v2439 = vadd.f32 %v1888, %v2438
        %v2440 = vpop.f32.mrb[0].mxu0
        %v2441 = vpop.f32.mrb[0].mxu0
        %v2442 = vpop.f32.mrb[0].mxu0
        %2443 = vdwg.mxu0
        %v2444 = vpack.c.bf16 %v2194, %v2191
        %v2445 = vpack.c.bf16 %v2202, %v2199
        %v2446 = vpack.c.bf16 %v2210, %v2207
        %v2447 = vpack.c.bf16 %v2218, %v2215
        %v2448 = vpack.c.bf16 %v2226, %v2223
        %v2449 = vpack.c.bf16 %v2234, %v2231
        %v2450 = vpack.c.bf16 %v2242, %v2239
        %v2451 = vpack.c.bf16 %v2250, %v2247
        %v2452 = vpack.c.bf16 %v2258, %v2255
        %v2453 = vpack.c.bf16 %v2266, %v2263
        %v2454 = vpack.c.bf16 %v2274, %v2271
        %v2455 = vpack.c.bf16 %v2282, %v2279
        %v2456 = vpack.c.bf16 %v2290, %v2287
        %v2457 = vpack.c.bf16 %v2298, %v2295
        %v2458 = vpack.c.bf16 %v2306, %v2303
        %v2459 = vpack.c.bf16 %v2314, %v2311
        %v2460 = vpack.c.bf16 %v2322, %v2319
        %v2461 = vpack.c.bf16 %v2330, %v2327
        %v2462 = vpack.c.bf16 %v2338, %v2335
        %v2463 = vpack.c.bf16 %v2346, %v2343
        %v2464 = vpack.c.bf16 %v2354, %v2351
        %v2465 = vpack.c.bf16 %v2362, %v2359
        %v2466 = vpack.c.bf16 %v2370, %v2367
        %v2467 = vpack.c.bf16 %v2378, %v2375
        %v2468 = vpack.c.bf16 %v2386, %v2383
        %v2469 = vpack.c.bf16 %v2394, %v2391
        %v2470 = vpack.c.bf16 %v2402, %v2399
        %v2471 = vpack.c.bf16 %v2410, %v2407
        %v2472 = vpack.c.bf16 %v2418, %v2415
        %v2473 = vpack.c.bf16 %v2426, %v2423
        %v2474 = vpack.c.bf16 %v2434, %v2431
        %v2475 = vpack.c.bf16 %v2439, %v2439
        %v2476 = vld [vmem:[%s3 + $0x70] sm:$0xf]
        %v2477 = vld [vmem:[%s3 + $0x74] sm:$0xf]
        %v2478 = vld [vmem:[%s3 + $0x78] sm:$0xf]
        %v2479 = vld [vmem:[%s3 + $0x7c] sm:$0xf]
        %v2480 = vld [vmem:[%s3 + $0x80] sm:$0xf]
        %v2481 = vld [vmem:[%s3 + $0x84] sm:$0xf]
        %v2482 = vld [vmem:[%s3 + $0x88] sm:$0xf]
        %v2483 = vld [vmem:[%s3 + $0x8c] sm:$0xf]
        %v2484 = vld [vmem:[%s3 + $0x90] sm:$0xf]
        %v2485 = vld [vmem:[%s3 + $0x94] sm:$0xf]
        %v2486 = vld [vmem:[%s3 + $0x98] sm:$0xf]
        %v2487 = vld [vmem:[%s3 + $0x9c] sm:$0xf]
        %v2488 = vld [vmem:[%s3 + $0xa0] sm:$0xf]
        %v2489 = vld [vmem:[%s3 + $0xa4] sm:$0xf]
        %v2490 = vld [vmem:[%s3 + $0xa8] sm:$0xf]
        %v2491 = vld [vmem:[%s3 + $0xac] sm:$0xf]
        %v2492 = vld [vmem:[%s4] sm:$0x1]
        %v2493 = vlaneseq
        %v2494 = vshrl.u32 %v2493, 7
        %v2495 = vsub.s32 0, %v2494
        %v2496 = vrot.slane %v2492, %v2495
        %v2513 = vunpack.c.l.b16 %v2476
        %v2514 = vunpack.c.l.b16 %v2477
        %v2515 = vunpack.c.l.b16 %v2478
        %v2516 = vunpack.c.l.b16 %v2479
        %v2517 = vunpack.c.l.b16 %v2480
        %v2518 = vunpack.c.l.b16 %v2481
        %v2519 = vunpack.c.l.b16 %v2482
        %v2520 = vunpack.c.l.b16 %v2483
        %v2521 = vunpack.c.l.b16 %v2484
        %v2522 = vunpack.c.l.b16 %v2485
        %v2523 = vunpack.c.l.b16 %v2486
        %v2524 = vunpack.c.l.b16 %v2487
        %v2525 = vunpack.c.l.b16 %v2488
        %v2526 = vunpack.c.l.b16 %v2489
        %v2527 = vunpack.c.l.b16 %v2490
        %v2528 = vunpack.c.l.b16 %v2491
        %v2529 = vpack.c.b16 %v2514, %v2513
        %v2530 = vpack.c.b16 %v2516, %v2515
        %v2531 = vpack.c.b16 %v2518, %v2517
        %v2532 = vpack.c.b16 %v2520, %v2519
        %v2533 = vpack.c.b16 %v2522, %v2521
        %v2534 = vpack.c.b16 %v2524, %v2523
        %v2535 = vpack.c.b16 %v2526, %v2525
        %v2536 = vpack.c.b16 %v2528, %v2527
        %2545 = vmatprep.subr.bf16.mxu0 0
        %2546 = vmatpush1.bf16.msra.mxu0 %v2529
        %2547 = vmatprep.subr.bf16.mxu0 0
        %2548 = vmatpush1.bf16.msra.mxu0 %v2530
        %2549 = vmatprep.subr.bf16.mxu0 0
        %2550 = vmatpush1.bf16.msra.mxu0 %v2531
        %2551 = vmatprep.subr.bf16.mxu0 0
        %2552 = vmatpush1.bf16.msra.mxu0 %v2532
        %2553 = vmatprep.subr.bf16.mxu0 0
        %2554 = vmatpush1.bf16.msra.mxu0 %v2533
        %2555 = vmatprep.subr.bf16.mxu0 0
        %2556 = vmatpush1.bf16.msra.mxu0 %v2534
        %2557 = vmatprep.subr.bf16.mxu0 0
        %2558 = vmatpush1.bf16.msra.mxu0 %v2535
        %2559 = vmatprep.subr.bf16.mxu0 0
        %2560 = vmatpush1.bf16.msra.mxu0 %v2536
        %2561 = vmatprep.subr.bf16.mxu0 0
        %2562 = vmatpush1.bf16.msra.mxu0 0
        %2563 = vmatprep.subr.bf16.mxu0 0
        %2564 = vmatpush1.bf16.msra.mxu0 0
        %2565 = vmatprep.subr.bf16.mxu0 0
        %2566 = vmatpush1.bf16.msra.mxu0 0
        %2567 = vmatprep.subr.bf16.mxu0 0
        %2568 = vmatpush1.bf16.msra.mxu0 0
        %2569 = vmatprep.subr.bf16.mxu0 0
        %2570 = vmatpush1.bf16.msra.mxu0 0
        %2571 = vmatprep.subr.bf16.mxu0 0
        %2572 = vmatpush1.bf16.msra.mxu0 0
        %2573 = vmatprep.subr.bf16.mxu0 0
        %2574 = vmatpush1.bf16.msra.mxu0 0
        %2575 = vmatprep.subr.bf16.mxu0 0
        %2576 = vmatpush1.bf16.msra.mxu0 0
        %2577 = vmatprep.mubr.bf16.mxu0 0
        %2578 = vmatmul.mubr.bf16.gmra.mrb[0].mxu0 %v2444
        %v2579 = vpop.f32.mrb[0].mxu0
        %v2580 = vadd.f32 %v2496, %v2579
        %v2581 = vpop.f32.mrb[0].mxu0
        %v2582 = vpop.f32.mrb[0].mxu0
        %v2583 = vadd.f32 %v2496, %v2582
        %v2584 = vpop.f32.mrb[0].mxu0
        %2585 = vmatprep.mubr.bf16.mxu0 0
        %2586 = vmatmul.mubr.bf16.gmra.mrb[0].mxu0 %v2445
        %v2587 = vpop.f32.mrb[0].mxu0
        %v2588 = vadd.f32 %v2496, %v2587
        %v2589 = vpop.f32.mrb[0].mxu0
        %v2590 = vpop.f32.mrb[0].mxu0
        %v2591 = vadd.f32 %v2496, %v2590
        %v2592 = vpop.f32.mrb[0].mxu0
        %2593 = vmatprep.mubr.bf16.mxu0 0
        %2594 = vmatmul.mubr.bf16.gmra.mrb[0].mxu0 %v2446
        %v2595 = vpop.f32.mrb[0].mxu0
        %v2596 = vadd.f32 %v2496, %v2595
        %v2597 = vpop.f32.mrb[0].mxu0
        %v2598 = vpop.f32.mrb[0].mxu0
        %v2599 = vadd.f32 %v2496, %v2598
        %v2600 = vpop.f32.mrb[0].mxu0
        %2601 = vmatprep.mubr.bf16.mxu0 0
        %2602 = vmatmul.mubr.bf16.gmra.mrb[0].mxu0 %v2447
        %v2603 = vpop.f32.mrb[0].mxu0
        %v2604 = vadd.f32 %v2496, %v2603
        %v2605 = vpop.f32.mrb[0].mxu0
        %v2606 = vpop.f32.mrb[0].mxu0
        %v2607 = vadd.f32 %v2496, %v2606
        %v2608 = vpop.f32.mrb[0].mxu0
        %2609 = vmatprep.mubr.bf16.mxu0 0
        %2610 = vmatmul.mubr.bf16.gmra.mrb[0].mxu0 %v2448
        %v2611 = vpop.f32.mrb[0].mxu0
        %v2612 = vadd.f32 %v2496, %v2611
        %v2613 = vpop.f32.mrb[0].mxu0
        %v2614 = vpop.f32.mrb[0].mxu0
        %v2615 = vadd.f32 %v2496, %v2614
        %v2616 = vpop.f32.mrb[0].mxu0
        %2617 = vmatprep.mubr.bf16.mxu0 0
        %2618 = vmatmul.mubr.bf16.gmra.mrb[0].mxu0 %v2449
        %v2619 = vpop.f32.mrb[0].mxu0
        %v2620 = vadd.f32 %v2496, %v2619
        %v2621 = vpop.f32.mrb[0].mxu0
        %v2622 = vpop.f32.mrb[0].mxu0
        %v2623 = vadd.f32 %v2496, %v2622
        %v2624 = vpop.f32.mrb[0].mxu0
        %2625 = vmatprep.mubr.bf16.mxu0 0
        %2626 = vmatmul.mubr.bf16.gmra.mrb[0].mxu0 %v2450
        %v2627 = vpop.f32.mrb[0].mxu0
        %v2628 = vadd.f32 %v2496, %v2627
        %v2629 = vpop.f32.mrb[0].mxu0
        %v2630 = vpop.f32.mrb[0].mxu0
        %v2631 = vadd.f32 %v2496, %v2630
        %v2632 = vpop.f32.mrb[0].mxu0
        %2633 = vmatprep.mubr.bf16.mxu0 0
        %2634 = vmatmul.mubr.bf16.gmra.mrb[0].mxu0 %v2451
        %v2635 = vpop.f32.mrb[0].mxu0
        %v2636 = vadd.f32 %v2496, %v2635
        %v2637 = vpop.f32.mrb[0].mxu0
        %v2638 = vpop.f32.mrb[0].mxu0
        %v2639 = vadd.f32 %v2496, %v2638
        %v2640 = vpop.f32.mrb[0].mxu0
        %2641 = vmatprep.mubr.bf16.mxu0 0
        %2642 = vmatmul.mubr.bf16.gmra.mrb[0].mxu0 %v2452
        %v2643 = vpop.f32.mrb[0].mxu0
        %v2644 = vadd.f32 %v2496, %v2643
        %v2645 = vpop.f32.mrb[0].mxu0
        %v2646 = vpop.f32.mrb[0].mxu0
        %v2647 = vadd.f32 %v2496, %v2646
        %v2648 = vpop.f32.mrb[0].mxu0
        %2649 = vmatprep.mubr.bf16.mxu0 0
        %2650 = vmatmul.mubr.bf16.gmra.mrb[0].mxu0 %v2453
        %v2651 = vpop.f32.mrb[0].mxu0
        %v2652 = vadd.f32 %v2496, %v2651
        %v2653 = vpop.f32.mrb[0].mxu0
        %v2654 = vpop.f32.mrb[0].mxu0
        %v2655 = vadd.f32 %v2496, %v2654
        %v2656 = vpop.f32.mrb[0].mxu0
        %2657 = vmatprep.mubr.bf16.mxu0 0
        %2658 = vmatmul.mubr.bf16.gmra.mrb[0].mxu0 %v2454
        %v2659 = vpop.f32.mrb[0].mxu0
        %v2660 = vadd.f32 %v2496, %v2659
        %v2661 = vpop.f32.mrb[0].mxu0
        %v2662 = vpop.f32.mrb[0].mxu0
        %v2663 = vadd.f32 %v2496, %v2662
        %v2664 = vpop.f32.mrb[0].mxu0
        %2665 = vmatprep.mubr.bf16.mxu0 0
        %2666 = vmatmul.mubr.bf16.gmra.mrb[0].mxu0 %v2455
        %v2667 = vpop.f32.mrb[0].mxu0
        %v2668 = vadd.f32 %v2496, %v2667
        %v2669 = vpop.f32.mrb[0].mxu0
        %v2670 = vpop.f32.mrb[0].mxu0
        %v2671 = vadd.f32 %v2496, %v2670
        %v2672 = vpop.f32.mrb[0].mxu0
        %2673 = vmatprep.mubr.bf16.mxu0 0
        %2674 = vmatmul.mubr.bf16.gmra.mrb[0].mxu0 %v2456
        %v2675 = vpop.f32.mrb[0].mxu0
        %v2676 = vadd.f32 %v2496, %v2675
        %v2677 = vpop.f32.mrb[0].mxu0
        %v2678 = vpop.f32.mrb[0].mxu0
        %v2679 = vadd.f32 %v2496, %v2678
        %v2680 = vpop.f32.mrb[0].mxu0
        %2681 = vmatprep.mubr.bf16.mxu0 0
        %2682 = vmatmul.mubr.bf16.gmra.mrb[0].mxu0 %v2457
        %v2683 = vpop.f32.mrb[0].mxu0
        %v2684 = vadd.f32 %v2496, %v2683
        %v2685 = vpop.f32.mrb[0].mxu0
        %v2686 = vpop.f32.mrb[0].mxu0
        %v2687 = vadd.f32 %v2496, %v2686
        %v2688 = vpop.f32.mrb[0].mxu0
        %2689 = vmatprep.mubr.bf16.mxu0 0
        %2690 = vmatmul.mubr.bf16.gmra.mrb[0].mxu0 %v2458
        %v2691 = vpop.f32.mrb[0].mxu0
        %v2692 = vadd.f32 %v2496, %v2691
        %v2693 = vpop.f32.mrb[0].mxu0
        %v2694 = vpop.f32.mrb[0].mxu0
        %v2695 = vadd.f32 %v2496, %v2694
        %v2696 = vpop.f32.mrb[0].mxu0
        %2697 = vmatprep.mubr.bf16.mxu0 0
        %2698 = vmatmul.mubr.bf16.gmra.mrb[0].mxu0 %v2459
        %v2699 = vpop.f32.mrb[0].mxu0
        %v2700 = vadd.f32 %v2496, %v2699
        %v2701 = vpop.f32.mrb[0].mxu0
        %v2702 = vpop.f32.mrb[0].mxu0
        %v2703 = vadd.f32 %v2496, %v2702
        %v2704 = vpop.f32.mrb[0].mxu0
        %2705 = vmatprep.mubr.bf16.mxu0 0
        %2706 = vmatmul.mubr.bf16.gmra.mrb[0].mxu0 %v2460
        %v2707 = vpop.f32.mrb[0].mxu0
        %v2708 = vadd.f32 %v2496, %v2707
        %v2709 = vpop.f32.mrb[0].mxu0
        %v2710 = vpop.f32.mrb[0].mxu0
        %v2711 = vadd.f32 %v2496, %v2710
        %v2712 = vpop.f32.mrb[0].mxu0
        %2713 = vmatprep.mubr.bf16.mxu0 0
        %2714 = vmatmul.mubr.bf16.gmra.mrb[0].mxu0 %v2461
        %v2715 = vpop.f32.mrb[0].mxu0
        %v2716 = vadd.f32 %v2496, %v2715
        %v2717 = vpop.f32.mrb[0].mxu0
        %v2718 = vpop.f32.mrb[0].mxu0
        %v2719 = vadd.f32 %v2496, %v2718
        %v2720 = vpop.f32.mrb[0].mxu0
        %2721 = vmatprep.mubr.bf16.mxu0 0
        %2722 = vmatmul.mubr.bf16.gmra.mrb[0].mxu0 %v2462
        %v2723 = vpop.f32.mrb[0].mxu0
        %v2724 = vadd.f32 %v2496, %v2723
        %v2725 = vpop.f32.mrb[0].mxu0
        %v2726 = vpop.f32.mrb[0].mxu0
        %v2727 = vadd.f32 %v2496, %v2726
        %v2728 = vpop.f32.mrb[0].mxu0
        %2729 = vmatprep.mubr.bf16.mxu0 0
        %2730 = vmatmul.mubr.bf16.gmra.mrb[0].mxu0 %v2463
        %v2731 = vpop.f32.mrb[0].mxu0
        %v2732 = vadd.f32 %v2496, %v2731
        %v2733 = vpop.f32.mrb[0].mxu0
        %v2734 = vpop.f32.mrb[0].mxu0
        %v2735 = vadd.f32 %v2496, %v2734
        %v2736 = vpop.f32.mrb[0].mxu0
        %2737 = vmatprep.mubr.bf16.mxu0 0
        %2738 = vmatmul.mubr.bf16.gmra.mrb[0].mxu0 %v2464
        %v2739 = vpop.f32.mrb[0].mxu0
        %v2740 = vadd.f32 %v2496, %v2739
        %v2741 = vpop.f32.mrb[0].mxu0
        %v2742 = vpop.f32.mrb[0].mxu0
        %v2743 = vadd.f32 %v2496, %v2742
        %v2744 = vpop.f32.mrb[0].mxu0
        %2745 = vmatprep.mubr.bf16.mxu0 0
        %2746 = vmatmul.mubr.bf16.gmra.mrb[0].mxu0 %v2465
        %v2747 = vpop.f32.mrb[0].mxu0
        %v2748 = vadd.f32 %v2496, %v2747
        %v2749 = vpop.f32.mrb[0].mxu0
        %v2750 = vpop.f32.mrb[0].mxu0
        %v2751 = vadd.f32 %v2496, %v2750
        %v2752 = vpop.f32.mrb[0].mxu0
        %2753 = vmatprep.mubr.bf16.mxu0 0
        %2754 = vmatmul.mubr.bf16.gmra.mrb[0].mxu0 %v2466
        %v2755 = vpop.f32.mrb[0].mxu0
        %v2756 = vadd.f32 %v2496, %v2755
        %v2757 = vpop.f32.mrb[0].mxu0
        %v2758 = vpop.f32.mrb[0].mxu0
        %v2759 = vadd.f32 %v2496, %v2758
        %v2760 = vpop.f32.mrb[0].mxu0
        %2761 = vmatprep.mubr.bf16.mxu0 0
        %2762 = vmatmul.mubr.bf16.gmra.mrb[0].mxu0 %v2467
        %v2763 = vpop.f32.mrb[0].mxu0
        %v2764 = vadd.f32 %v2496, %v2763
        %v2765 = vpop.f32.mrb[0].mxu0
        %v2766 = vpop.f32.mrb[0].mxu0
        %v2767 = vadd.f32 %v2496, %v2766
        %v2768 = vpop.f32.mrb[0].mxu0
        %2769 = vmatprep.mubr.bf16.mxu0 0
        %2770 = vmatmul.mubr.bf16.gmra.mrb[0].mxu0 %v2468
        %v2771 = vpop.f32.mrb[0].mxu0
        %v2772 = vadd.f32 %v2496, %v2771
        %v2773 = vpop.f32.mrb[0].mxu0
        %v2774 = vpop.f32.mrb[0].mxu0
        %v2775 = vadd.f32 %v2496, %v2774
        %v2776 = vpop.f32.mrb[0].mxu0
        %2777 = vmatprep.mubr.bf16.mxu0 0
        %2778 = vmatmul.mubr.bf16.gmra.mrb[0].mxu0 %v2469
        %v2779 = vpop.f32.mrb[0].mxu0
        %v2780 = vadd.f32 %v2496, %v2779
        %v2781 = vpop.f32.mrb[0].mxu0
        %v2782 = vpop.f32.mrb[0].mxu0
        %v2783 = vadd.f32 %v2496, %v2782
        %v2784 = vpop.f32.mrb[0].mxu0
        %2785 = vmatprep.mubr.bf16.mxu0 0
        %2786 = vmatmul.mubr.bf16.gmra.mrb[0].mxu0 %v2470
        %v2787 = vpop.f32.mrb[0].mxu0
        %v2788 = vadd.f32 %v2496, %v2787
        %v2789 = vpop.f32.mrb[0].mxu0
        %v2790 = vpop.f32.mrb[0].mxu0
        %v2791 = vadd.f32 %v2496, %v2790
        %v2792 = vpop.f32.mrb[0].mxu0
        %2793 = vmatprep.mubr.bf16.mxu0 0
        %2794 = vmatmul.mubr.bf16.gmra.mrb[0].mxu0 %v2471
        %v2795 = vpop.f32.mrb[0].mxu0
        %v2796 = vadd.f32 %v2496, %v2795
        %v2797 = vpop.f32.mrb[0].mxu0
        %v2798 = vpop.f32.mrb[0].mxu0
        %v2799 = vadd.f32 %v2496, %v2798
        %v2800 = vpop.f32.mrb[0].mxu0
        %2801 = vmatprep.mubr.bf16.mxu0 0
        %2802 = vmatmul.mubr.bf16.gmra.mrb[0].mxu0 %v2472
        %v2803 = vpop.f32.mrb[0].mxu0
        %v2804 = vadd.f32 %v2496, %v2803
        %v2805 = vpop.f32.mrb[0].mxu0
        %v2806 = vpop.f32.mrb[0].mxu0
        %v2807 = vadd.f32 %v2496, %v2806
        %v2808 = vpop.f32.mrb[0].mxu0
        %2809 = vmatprep.mubr.bf16.mxu0 0
        %2810 = vmatmul.mubr.bf16.gmra.mrb[0].mxu0 %v2473
        %v2811 = vpop.f32.mrb[0].mxu0
        %v2812 = vadd.f32 %v2496, %v2811
        %v2813 = vpop.f32.mrb[0].mxu0
        %v2814 = vpop.f32.mrb[0].mxu0
        %v2815 = vadd.f32 %v2496, %v2814
        %v2816 = vpop.f32.mrb[0].mxu0
        %2817 = vmatprep.mubr.bf16.mxu0 0
        %2818 = vmatmul.mubr.bf16.gmra.mrb[0].mxu0 %v2474
        %v2819 = vpop.f32.mrb[0].mxu0
        %v2820 = vadd.f32 %v2496, %v2819
        %v2821 = vpop.f32.mrb[0].mxu0
        %v2822 = vpop.f32.mrb[0].mxu0
        %v2823 = vadd.f32 %v2496, %v2822
        %v2824 = vpop.f32.mrb[0].mxu0
        %2825 = vmatprep.mubr.bf16.mxu0 0
        %2826 = vmatmul.mubr.bf16.gmra.mrb[0].mxu0 %v2475
        %v2827 = vpop.f32.mrb[0].mxu0
        %v2828 = vadd.f32 %v2496, %v2827
        %v2829 = vpop.f32.mrb[0].mxu0
        %v2830 = vpop.f32.mrb[0].mxu0
        %v2831 = vpop.f32.mrb[0].mxu0
        %2832 = vdwg.mxu0
        %s2833 = sld [smem:[#allocation2]]
        %s2834 = sld [smem:[#allocation2 + $0x1]]
        %s2835 = sld [smem:[#allocation2 + $0x2]]
        %s2836 = sld [smem:[#allocation2 + $0x3]]
        %s2837 = sld [smem:[#allocation2 + $0x4]]
        %s2838 = sld [smem:[#allocation2 + $0x5]]
        %v2839 = vstv %s2833
        %v2840 = vmul.f32 %v2839, %v1373
        %v2841 = vmul.f32 %v2839, %v1374
        %v2842 = vmul.f32 %v2839, %v1375
        %v2843 = vmul.f32 %v2839, %v1376
        %v2844 = vmul.f32 %v2839, %v1377
        %v2845 = vmul.f32 %v2839, %v1378
        %v2846 = vmul.f32 %v2839, %v1379
        %v2847 = vmul.f32 %v2839, %v1380
        %v2848 = vmul.f32 %v2839, %v1381
        %v2849 = vmul.f32 %v2839, %v1382
        %v2850 = vmul.f32 %v2839, %v1383
        %v2851 = vmul.f32 %v2839, %v1384
        %v2852 = vmul.f32 %v2839, %v1385
        %v2853 = vmul.f32 %v2839, %v1386
        %v2854 = vmul.f32 %v2839, %v1387
        %v2855 = vmul.f32 %v2839, %v1388
        %v2856 = vmul.f32 %v2839, %v1389
        %v2857 = vmul.f32 %v2839, %v1390
        %v2858 = vmul.f32 %v2839, %v1391
        %v2859 = vmul.f32 %v2839, %v1392
        %v2860 = vmul.f32 %v2839, %v1393
        %v2861 = vmul.f32 %v2839, %v1394
        %v2862 = vmul.f32 %v2839, %v1395
        %v2863 = vmul.f32 %v2839, %v1396
        %v2864 = vmul.f32 %v2839, %v1397
        %v2865 = vmul.f32 %v2839, %v1398
        %v2866 = vmul.f32 %v2839, %v1399
        %v2867 = vmul.f32 %v2839, %v1400
        %v2868 = vmul.f32 %v2839, %v1401
        %v2869 = vmul.f32 %v2839, %v1402
        %v2870 = vmul.f32 %v2839, %v1403
        %v2871 = vmul.f32 %v2839, %v1404
        %v2872 = vmul.f32 %v2839, %v1405
        %v2873 = vmul.f32 %v2839, %v1406
        %v2874 = vmul.f32 %v2839, %v1407
        %v2875 = vmul.f32 %v2839, %v1408
        %v2876 = vmul.f32 %v2839, %v1409
        %v2877 = vmul.f32 %v2839, %v1410
        %v2878 = vmul.f32 %v2839, %v1411
        %v2879 = vmul.f32 %v2839, %v1412
        %v2880 = vmul.f32 %v2839, %v1413
        %v2881 = vmul.f32 %v2839, %v1414
        %v2882 = vmul.f32 %v2839, %v1415
        %v2883 = vmul.f32 %v2839, %v1416
        %v2884 = vmul.f32 %v2839, %v1417
        %v2885 = vmul.f32 %v2839, %v1418
        %v2886 = vmul.f32 %v2839, %v1419
        %v2887 = vmul.f32 %v2839, %v1420
        %v2888 = vmul.f32 %v2839, %v1421
        %v2889 = vmul.f32 %v2839, %v1422
        %v2890 = vmul.f32 %v2839, %v1423
        %v2891 = vmul.f32 %v2839, %v1424
        %v2892 = vmul.f32 %v2839, %v1425
        %v2893 = vmul.f32 %v2839, %v1426
        %v2894 = vmul.f32 %v2839, %v1427
        %v2895 = vmul.f32 %v2839, %v1428
        %v2896 = vmul.f32 %v2839, %v1429
        %v2897 = vmul.f32 %v2839, %v1430
        %v2898 = vmul.f32 %v2839, %v1431
        %v2899 = vmul.f32 %v2839, %v1432
        %v2900 = vmul.f32 %v2839, %v1433
        %v2901 = vmul.f32 %v2839, %v1434
        %v2902 = vmul.f32 %v2839, %v1435
        %v2903 = vstv %s2834
        %v2904 = vmul.f32 %v2903, %v1500
        %v2905 = vmul.f32 %v2903, %v1501
        %v2906 = vmul.f32 %v2903, %v1502
        %v2907 = vmul.f32 %v2903, %v1503
        %v2908 = vmul.f32 %v2903, %v1504
        %v2909 = vmul.f32 %v2903, %v1505
        %v2910 = vmul.f32 %v2903, %v1506
        %v2911 = vmul.f32 %v2903, %v1507
        %v2912 = vmul.f32 %v2903, %v1508
        %v2913 = vmul.f32 %v2903, %v1509
        %v2914 = vmul.f32 %v2903, %v1510
        %v2915 = vmul.f32 %v2903, %v1511
        %v2916 = vmul.f32 %v2903, %v1512
        %v2917 = vmul.f32 %v2903, %v1513
        %v2918 = vmul.f32 %v2903, %v1514
        %v2919 = vmul.f32 %v2903, %v1515
        %v2920 = vmul.f32 %v2903, %v1516
        %v2921 = vmul.f32 %v2903, %v1517
        %v2922 = vmul.f32 %v2903, %v1518
        %v2923 = vmul.f32 %v2903, %v1519
        %v2924 = vmul.f32 %v2903, %v1520
        %v2925 = vmul.f32 %v2903, %v1521
        %v2926 = vmul.f32 %v2903, %v1522
        %v2927 = vmul.f32 %v2903, %v1523
        %v2928 = vmul.f32 %v2903, %v1524
        %v2929 = vmul.f32 %v2903, %v1525
        %v2930 = vmul.f32 %v2903, %v1526
        %v2931 = vmul.f32 %v2903, %v1527
        %v2932 = vmul.f32 %v2903, %v1528
        %v2933 = vmul.f32 %v2903, %v1529
        %v2934 = vmul.f32 %v2903, %v1530
        %v2935 = vmul.f32 %v2903, %v1531
        %v2936 = vmul.f32 %v2903, %v1532
        %v2937 = vmul.f32 %v2903, %v1533
        %v2938 = vmul.f32 %v2903, %v1534
        %v2939 = vmul.f32 %v2903, %v1535
        %v2940 = vmul.f32 %v2903, %v1536
        %v2941 = vmul.f32 %v2903, %v1537
        %v2942 = vmul.f32 %v2903, %v1538
        %v2943 = vmul.f32 %v2903, %v1539
        %v2944 = vmul.f32 %v2903, %v1540
        %v2945 = vmul.f32 %v2903, %v1541
        %v2946 = vmul.f32 %v2903, %v1542
        %v2947 = vmul.f32 %v2903, %v1543
        %v2948 = vmul.f32 %v2903, %v1544
        %v2949 = vmul.f32 %v2903, %v1545
        %v2950 = vmul.f32 %v2903, %v1546
        %v2951 = vmul.f32 %v2903, %v1547
        %v2952 = vmul.f32 %v2903, %v1548
        %v2953 = vmul.f32 %v2903, %v1549
        %v2954 = vmul.f32 %v2903, %v1550
        %v2955 = vmul.f32 %v2903, %v1551
        %v2956 = vmul.f32 %v2903, %v1552
        %v2957 = vmul.f32 %v2903, %v1553
        %v2958 = vmul.f32 %v2903, %v1554
        %v2959 = vmul.f32 %v2903, %v1555
        %v2960 = vmul.f32 %v2903, %v1556
        %v2961 = vmul.f32 %v2903, %v1557
        %v2962 = vmul.f32 %v2903, %v1558
        %v2963 = vmul.f32 %v2903, %v1559
        %v2964 = vmul.f32 %v2903, %v1560
        %v2965 = vmul.f32 %v2903, %v1561
        %v2966 = vmul.f32 %v2903, %v1562
        %v2967 = vadd.f32 %v2840, %v2904
        %v2968 = vadd.f32 %v2841, %v2905
        %v2969 = vadd.f32 %v2842, %v2906
        %v2970 = vadd.f32 %v2843, %v2907
        %v2971 = vadd.f32 %v2844, %v2908
        %v2972 = vadd.f32 %v2845, %v2909
        %v2973 = vadd.f32 %v2846, %v2910
        %v2974 = vadd.f32 %v2847, %v2911
        %v2975 = vadd.f32 %v2848, %v2912
        %v2976 = vadd.f32 %v2849, %v2913
        %v2977 = vadd.f32 %v2850, %v2914
        %v2978 = vadd.f32 %v2851, %v2915
        %v2979 = vadd.f32 %v2852, %v2916
        %v2980 = vadd.f32 %v2853, %v2917
        %v2981 = vadd.f32 %v2854, %v2918
        %v2982 = vadd.f32 %v2855, %v2919
        %v2983 = vadd.f32 %v2856, %v2920
        %v2984 = vadd.f32 %v2857, %v2921
        %v2985 = vadd.f32 %v2858, %v2922
        %v2986 = vadd.f32 %v2859, %v2923
        %v2987 = vadd.f32 %v2860, %v2924
        %v2988 = vadd.f32 %v2861, %v2925
        %v2989 = vadd.f32 %v2862, %v2926
        %v2990 = vadd.f32 %v2863, %v2927
        %v2991 = vadd.f32 %v2864, %v2928
        %v2992 = vadd.f32 %v2865, %v2929
        %v2993 = vadd.f32 %v2866, %v2930
        %v2994 = vadd.f32 %v2867, %v2931
        %v2995 = vadd.f32 %v2868, %v2932
        %v2996 = vadd.f32 %v2869, %v2933
        %v2997 = vadd.f32 %v2870, %v2934
        %v2998 = vadd.f32 %v2871, %v2935
        %v2999 = vadd.f32 %v2872, %v2936
        %v3000 = vadd.f32 %v2873, %v2937
        %v3001 = vadd.f32 %v2874, %v2938
        %v3002 = vadd.f32 %v2875, %v2939
        %v3003 = vadd.f32 %v2876, %v2940
        %v3004 = vadd.f32 %v2877, %v2941
        %v3005 = vadd.f32 %v2878, %v2942
        %v3006 = vadd.f32 %v2879, %v2943
        %v3007 = vadd.f32 %v2880, %v2944
        %v3008 = vadd.f32 %v2881, %v2945
        %v3009 = vadd.f32 %v2882, %v2946
        %v3010 = vadd.f32 %v2883, %v2947
        %v3011 = vadd.f32 %v2884, %v2948
        %v3012 = vadd.f32 %v2885, %v2949
        %v3013 = vadd.f32 %v2886, %v2950
        %v3014 = vadd.f32 %v2887, %v2951
        %v3015 = vadd.f32 %v2888, %v2952
        %v3016 = vadd.f32 %v2889, %v2953
        %v3017 = vadd.f32 %v2890, %v2954
        %v3018 = vadd.f32 %v2891, %v2955
        %v3019 = vadd.f32 %v2892, %v2956
        %v3020 = vadd.f32 %v2893, %v2957
        %v3021 = vadd.f32 %v2894, %v2958
        %v3022 = vadd.f32 %v2895, %v2959
        %v3023 = vadd.f32 %v2896, %v2960
        %v3024 = vadd.f32 %v2897, %v2961
        %v3025 = vadd.f32 %v2898, %v2962
        %v3026 = vadd.f32 %v2899, %v2963
        %v3027 = vadd.f32 %v2900, %v2964
        %v3028 = vadd.f32 %v2901, %v2965
        %v3029 = vadd.f32 %v2902, %v2966
        %v3030 = vstv %s2835
        %v3031 = vmul.f32 %v3030, %v1627
        %v3032 = vmul.f32 %v3030, %v1628
        %v3033 = vmul.f32 %v3030, %v1629
        %v3034 = vmul.f32 %v3030, %v1630
        %v3035 = vmul.f32 %v3030, %v1631
        %v3036 = vmul.f32 %v3030, %v1632
        %v3037 = vmul.f32 %v3030, %v1633
        %v3038 = vmul.f32 %v3030, %v1634
        %v3039 = vmul.f32 %v3030, %v1635
        %v3040 = vmul.f32 %v3030, %v1636
        %v3041 = vmul.f32 %v3030, %v1637
        %v3042 = vmul.f32 %v3030, %v1638
        %v3043 = vmul.f32 %v3030, %v1639
        %v3044 = vmul.f32 %v3030, %v1640
        %v3045 = vmul.f32 %v3030, %v1641
        %v3046 = vmul.f32 %v3030, %v1642
        %v3047 = vmul.f32 %v3030, %v1643
        %v3048 = vmul.f32 %v3030, %v1644
        %v3049 = vmul.f32 %v3030, %v1645
        %v3050 = vmul.f32 %v3030, %v1646
        %v3051 = vmul.f32 %v3030, %v1647
        %v3052 = vmul.f32 %v3030, %v1648
        %v3053 = vmul.f32 %v3030, %v1649
        %v3054 = vmul.f32 %v3030, %v1650
        %v3055 = vmul.f32 %v3030, %v1651
        %v3056 = vmul.f32 %v3030, %v1652
        %v3057 = vmul.f32 %v3030, %v1653
        %v3058 = vmul.f32 %v3030, %v1654
        %v3059 = vmul.f32 %v3030, %v1655
        %v3060 = vmul.f32 %v3030, %v1656
        %v3061 = vmul.f32 %v3030, %v1657
        %v3062 = vmul.f32 %v3030, %v1658
        %v3063 = vmul.f32 %v3030, %v1659
        %v3064 = vmul.f32 %v3030, %v1660
        %v3065 = vmul.f32 %v3030, %v1661
        %v3066 = vmul.f32 %v3030, %v1662
        %v3067 = vmul.f32 %v3030, %v1663
        %v3068 = vmul.f32 %v3030, %v1664
        %v3069 = vmul.f32 %v3030, %v1665
        %v3070 = vmul.f32 %v3030, %v1666
        %v3071 = vmul.f32 %v3030, %v1667
        %v3072 = vmul.f32 %v3030, %v1668
        %v3073 = vmul.f32 %v3030, %v1669
        %v3074 = vmul.f32 %v3030, %v1670
        %v3075 = vmul.f32 %v3030, %v1671
        %v3076 = vmul.f32 %v3030, %v1672
        %v3077 = vmul.f32 %v3030, %v1673
        %v3078 = vmul.f32 %v3030, %v1674
        %v3079 = vmul.f32 %v3030, %v1675
        %v3080 = vmul.f32 %v3030, %v1676
        %v3081 = vmul.f32 %v3030, %v1677
        %v3082 = vmul.f32 %v3030, %v1678
        %v3083 = vmul.f32 %v3030, %v1679
        %v3084 = vmul.f32 %v3030, %v1680
        %v3085 = vmul.f32 %v3030, %v1681
        %v3086 = vmul.f32 %v3030, %v1682
        %v3087 = vmul.f32 %v3030, %v1683
        %v3088 = vmul.f32 %v3030, %v1684
        %v3089 = vmul.f32 %v3030, %v1685
        %v3090 = vmul.f32 %v3030, %v1686
        %v3091 = vmul.f32 %v3030, %v1687
        %v3092 = vmul.f32 %v3030, %v1688
        %v3093 = vmul.f32 %v3030, %v1689
        %v3094 = vadd.f32 %v2967, %v3031
        %v3095 = vadd.f32 %v2968, %v3032
        %v3096 = vadd.f32 %v2969, %v3033
        %v3097 = vadd.f32 %v2970, %v3034
        %v3098 = vadd.f32 %v2971, %v3035
        %v3099 = vadd.f32 %v2972, %v3036
        %v3100 = vadd.f32 %v2973, %v3037
        %v3101 = vadd.f32 %v2974, %v3038
        %v3102 = vadd.f32 %v2975, %v3039
        %v3103 = vadd.f32 %v2976, %v3040
        %v3104 = vadd.f32 %v2977, %v3041
        %v3105 = vadd.f32 %v2978, %v3042
        %v3106 = vadd.f32 %v2979, %v3043
        %v3107 = vadd.f32 %v2980, %v3044
        %v3108 = vadd.f32 %v2981, %v3045
        %v3109 = vadd.f32 %v2982, %v3046
        %v3110 = vadd.f32 %v2983, %v3047
        %v3111 = vadd.f32 %v2984, %v3048
        %v3112 = vadd.f32 %v2985, %v3049
        %v3113 = vadd.f32 %v2986, %v3050
        %v3114 = vadd.f32 %v2987, %v3051
        %v3115 = vadd.f32 %v2988, %v3052
        %v3116 = vadd.f32 %v2989, %v3053
        %v3117 = vadd.f32 %v2990, %v3054
        %v3118 = vadd.f32 %v2991, %v3055
        %v3119 = vadd.f32 %v2992, %v3056
        %v3120 = vadd.f32 %v2993, %v3057
        %v3121 = vadd.f32 %v2994, %v3058
        %v3122 = vadd.f32 %v2995, %v3059
        %v3123 = vadd.f32 %v2996, %v3060
        %v3124 = vadd.f32 %v2997, %v3061
        %v3125 = vadd.f32 %v2998, %v3062
        %v3126 = vadd.f32 %v2999, %v3063
        %v3127 = vadd.f32 %v3000, %v3064
        %v3128 = vadd.f32 %v3001, %v3065
        %v3129 = vadd.f32 %v3002, %v3066
        %v3130 = vadd.f32 %v3003, %v3067
        %v3131 = vadd.f32 %v3004, %v3068
        %v3132 = vadd.f32 %v3005, %v3069
        %v3133 = vadd.f32 %v3006, %v3070
        %v3134 = vadd.f32 %v3007, %v3071
        %v3135 = vadd.f32 %v3008, %v3072
        %v3136 = vadd.f32 %v3009, %v3073
        %v3137 = vadd.f32 %v3010, %v3074
        %v3138 = vadd.f32 %v3011, %v3075
        %v3139 = vadd.f32 %v3012, %v3076
        %v3140 = vadd.f32 %v3013, %v3077
        %v3141 = vadd.f32 %v3014, %v3078
        %v3142 = vadd.f32 %v3015, %v3079
        %v3143 = vadd.f32 %v3016, %v3080
        %v3144 = vadd.f32 %v3017, %v3081
        %v3145 = vadd.f32 %v3018, %v3082
        %v3146 = vadd.f32 %v3019, %v3083
        %v3147 = vadd.f32 %v3020, %v3084
        %v3148 = vadd.f32 %v3021, %v3085
        %v3149 = vadd.f32 %v3022, %v3086
        %v3150 = vadd.f32 %v3023, %v3087
        %v3151 = vadd.f32 %v3024, %v3088
        %v3152 = vadd.f32 %v3025, %v3089
        %v3153 = vadd.f32 %v3026, %v3090
        %v3154 = vadd.f32 %v3027, %v3091
        %v3155 = vadd.f32 %v3028, %v3092
        %v3156 = vadd.f32 %v3029, %v3093
        %v3157 = vstv %s2836
        %v3158 = vmul.f32 %v3157, %v1754
        %v3159 = vmul.f32 %v3157, %v1755
        %v3160 = vmul.f32 %v3157, %v1756
        %v3161 = vmul.f32 %v3157, %v1757
        %v3162 = vmul.f32 %v3157, %v1758
        %v3163 = vmul.f32 %v3157, %v1759
        %v3164 = vmul.f32 %v3157, %v1760
        %v3165 = vmul.f32 %v3157, %v1761
        %v3166 = vmul.f32 %v3157, %v1762
        %v3167 = vmul.f32 %v3157, %v1763
        %v3168 = vmul.f32 %v3157, %v1764
        %v3169 = vmul.f32 %v3157, %v1765
        %v3170 = vmul.f32 %v3157, %v1766
        %v3171 = vmul.f32 %v3157, %v1767
        %v3172 = vmul.f32 %v3157, %v1768
        %v3173 = vmul.f32 %v3157, %v1769
        %v3174 = vmul.f32 %v3157, %v1770
        %v3175 = vmul.f32 %v3157, %v1771
        %v3176 = vmul.f32 %v3157, %v1772
        %v3177 = vmul.f32 %v3157, %v1773
        %v3178 = vmul.f32 %v3157, %v1774
        %v3179 = vmul.f32 %v3157, %v1775
        %v3180 = vmul.f32 %v3157, %v1776
        %v3181 = vmul.f32 %v3157, %v1777
        %v3182 = vmul.f32 %v3157, %v1778
        %v3183 = vmul.f32 %v3157, %v1779
        %v3184 = vmul.f32 %v3157, %v1780
        %v3185 = vmul.f32 %v3157, %v1781
        %v3186 = vmul.f32 %v3157, %v1782
        %v3187 = vmul.f32 %v3157, %v1783
        %v3188 = vmul.f32 %v3157, %v1784
        %v3189 = vmul.f32 %v3157, %v1785
        %v3190 = vmul.f32 %v3157, %v1786
        %v3191 = vmul.f32 %v3157, %v1787
        %v3192 = vmul.f32 %v3157, %v1788
        %v3193 = vmul.f32 %v3157, %v1789
        %v3194 = vmul.f32 %v3157, %v1790
        %v3195 = vmul.f32 %v3157, %v1791
        %v3196 = vmul.f32 %v3157, %v1792
        %v3197 = vmul.f32 %v3157, %v1793
        %v3198 = vmul.f32 %v3157, %v1794
        %v3199 = vmul.f32 %v3157, %v1795
        %v3200 = vmul.f32 %v3157, %v1796
        %v3201 = vmul.f32 %v3157, %v1797
        %v3202 = vmul.f32 %v3157, %v1798
        %v3203 = vmul.f32 %v3157, %v1799
        %v3204 = vmul.f32 %v3157, %v1800
        %v3205 = vmul.f32 %v3157, %v1801
        %v3206 = vmul.f32 %v3157, %v1802
        %v3207 = vmul.f32 %v3157, %v1803
        %v3208 = vmul.f32 %v3157, %v1804
        %v3209 = vmul.f32 %v3157, %v1805
        %v3210 = vmul.f32 %v3157, %v1806
        %v3211 = vmul.f32 %v3157, %v1807
        %v3212 = vmul.f32 %v3157, %v1808
        %v3213 = vmul.f32 %v3157, %v1809
        %v3214 = vmul.f32 %v3157, %v1810
        %v3215 = vmul.f32 %v3157, %v1811
        %v3216 = vmul.f32 %v3157, %v1812
        %v3217 = vmul.f32 %v3157, %v1813
        %v3218 = vmul.f32 %v3157, %v1814
        %v3219 = vmul.f32 %v3157, %v1815
        %v3220 = vmul.f32 %v3157, %v1816
        %v3221 = vadd.f32 %v3094, %v3158
        %v3222 = vadd.f32 %v3095, %v3159
        %v3223 = vadd.f32 %v3096, %v3160
        %v3224 = vadd.f32 %v3097, %v3161
        %v3225 = vadd.f32 %v3098, %v3162
        %v3226 = vadd.f32 %v3099, %v3163
        %v3227 = vadd.f32 %v3100, %v3164
        %v3228 = vadd.f32 %v3101, %v3165
        %v3229 = vadd.f32 %v3102, %v3166
        %v3230 = vadd.f32 %v3103, %v3167
        %v3231 = vadd.f32 %v3104, %v3168
        %v3232 = vadd.f32 %v3105, %v3169
        %v3233 = vadd.f32 %v3106, %v3170
        %v3234 = vadd.f32 %v3107, %v3171
        %v3235 = vadd.f32 %v3108, %v3172
        %v3236 = vadd.f32 %v3109, %v3173
        %v3237 = vadd.f32 %v3110, %v3174
        %v3238 = vadd.f32 %v3111, %v3175
        %v3239 = vadd.f32 %v3112, %v3176
        %v3240 = vadd.f32 %v3113, %v3177
        %v3241 = vadd.f32 %v3114, %v3178
        %v3242 = vadd.f32 %v3115, %v3179
        %v3243 = vadd.f32 %v3116, %v3180
        %v3244 = vadd.f32 %v3117, %v3181
        %v3245 = vadd.f32 %v3118, %v3182
        %v3246 = vadd.f32 %v3119, %v3183
        %v3247 = vadd.f32 %v3120, %v3184
        %v3248 = vadd.f32 %v3121, %v3185
        %v3249 = vadd.f32 %v3122, %v3186
        %v3250 = vadd.f32 %v3123, %v3187
        %v3251 = vadd.f32 %v3124, %v3188
        %v3252 = vadd.f32 %v3125, %v3189
        %v3253 = vadd.f32 %v3126, %v3190
        %v3254 = vadd.f32 %v3127, %v3191
        %v3255 = vadd.f32 %v3128, %v3192
        %v3256 = vadd.f32 %v3129, %v3193
        %v3257 = vadd.f32 %v3130, %v3194
        %v3258 = vadd.f32 %v3131, %v3195
        %v3259 = vadd.f32 %v3132, %v3196
        %v3260 = vadd.f32 %v3133, %v3197
        %v3261 = vadd.f32 %v3134, %v3198
        %v3262 = vadd.f32 %v3135, %v3199
        %v3263 = vadd.f32 %v3136, %v3200
        %v3264 = vadd.f32 %v3137, %v3201
        %v3265 = vadd.f32 %v3138, %v3202
        %v3266 = vadd.f32 %v3139, %v3203
        %v3267 = vadd.f32 %v3140, %v3204
        %v3268 = vadd.f32 %v3141, %v3205
        %v3269 = vadd.f32 %v3142, %v3206
        %v3270 = vadd.f32 %v3143, %v3207
        %v3271 = vadd.f32 %v3144, %v3208
        %v3272 = vadd.f32 %v3145, %v3209
        %v3273 = vadd.f32 %v3146, %v3210
        %v3274 = vadd.f32 %v3147, %v3211
        %v3275 = vadd.f32 %v3148, %v3212
        %v3276 = vadd.f32 %v3149, %v3213
        %v3277 = vadd.f32 %v3150, %v3214
        %v3278 = vadd.f32 %v3151, %v3215
        %v3279 = vadd.f32 %v3152, %v3216
        %v3280 = vadd.f32 %v3153, %v3217
        %v3281 = vadd.f32 %v3154, %v3218
        %v3282 = vadd.f32 %v3155, %v3219
        %v3283 = vadd.f32 %v3156, %v3220
        %vm3284 = vcmask 523264
        %v3285 = vsel %vm3284, %v3221, 0.0
        %3286 = vadd.xlane.f32.xlu0 %v3285
        %v3287 = vpop.xlane.xlu0 %3286
        %v3288 = vsel %vm3284, %v3222, 0.0
        %3289 = vadd.xlane.f32.xlu0 %v3288
        %v3290 = vpop.xlane.xlu0 %3289
        %v3291 = vsel %vm3284, %v3223, 0.0
        %3292 = vadd.xlane.f32.xlu0 %v3291
        %v3293 = vpop.xlane.xlu0 %3292
        %v3294 = vsel %vm3284, %v3224, 0.0
        %3295 = vadd.xlane.f32.xlu0 %v3294
        %v3296 = vpop.xlane.xlu0 %3295
        %v3297 = vsel %vm3284, %v3225, 0.0
        %3298 = vadd.xlane.f32.xlu0 %v3297
        %v3299 = vpop.xlane.xlu0 %3298
        %v3300 = vsel %vm3284, %v3226, 0.0
        %3301 = vadd.xlane.f32.xlu0 %v3300
        %v3302 = vpop.xlane.xlu0 %3301
        %v3303 = vsel %vm3284, %v3227, 0.0
        %3304 = vadd.xlane.f32.xlu0 %v3303
        %v3305 = vpop.xlane.xlu0 %3304
        %v3306 = vsel %vm3284, %v3228, 0.0
        %3307 = vadd.xlane.f32.xlu0 %v3306
        %v3308 = vpop.xlane.xlu0 %3307
        %v3309 = vsel %vm3284, %v3229, 0.0
        %3310 = vadd.xlane.f32.xlu0 %v3309
        %v3311 = vpop.xlane.xlu0 %3310
        %v3312 = vsel %vm3284, %v3230, 0.0
        %3313 = vadd.xlane.f32.xlu0 %v3312
        %v3314 = vpop.xlane.xlu0 %3313
        %v3315 = vsel %vm3284, %v3231, 0.0
        %3316 = vadd.xlane.f32.xlu0 %v3315
        %v3317 = vpop.xlane.xlu0 %3316
        %v3318 = vsel %vm3284, %v3232, 0.0
        %3319 = vadd.xlane.f32.xlu0 %v3318
        %v3320 = vpop.xlane.xlu0 %3319
        %v3321 = vsel %vm3284, %v3233, 0.0
        %3322 = vadd.xlane.f32.xlu0 %v3321
        %v3323 = vpop.xlane.xlu0 %3322
        %v3324 = vsel %vm3284, %v3234, 0.0
        %3325 = vadd.xlane.f32.xlu0 %v3324
        %v3326 = vpop.xlane.xlu0 %3325
        %v3327 = vsel %vm3284, %v3235, 0.0
        %3328 = vadd.xlane.f32.xlu0 %v3327
        %v3329 = vpop.xlane.xlu0 %3328
        %v3330 = vsel %vm3284, %v3236, 0.0
        %3331 = vadd.xlane.f32.xlu0 %v3330
        %v3332 = vpop.xlane.xlu0 %3331
        %v3333 = vsel %vm3284, %v3237, 0.0
        %3334 = vadd.xlane.f32.xlu0 %v3333
        %v3335 = vpop.xlane.xlu0 %3334
        %v3336 = vsel %vm3284, %v3238, 0.0
        %3337 = vadd.xlane.f32.xlu0 %v3336
        %v3338 = vpop.xlane.xlu0 %3337
        %v3339 = vsel %vm3284, %v3239, 0.0
        %3340 = vadd.xlane.f32.xlu0 %v3339
        %v3341 = vpop.xlane.xlu0 %3340
        %v3342 = vsel %vm3284, %v3240, 0.0
        %3343 = vadd.xlane.f32.xlu0 %v3342
        %v3344 = vpop.xlane.xlu0 %3343
        %v3345 = vsel %vm3284, %v3241, 0.0
        %3346 = vadd.xlane.f32.xlu0 %v3345
        %v3347 = vpop.xlane.xlu0 %3346
        %v3348 = vsel %vm3284, %v3242, 0.0
        %3349 = vadd.xlane.f32.xlu0 %v3348
        %v3350 = vpop.xlane.xlu0 %3349
        %v3351 = vsel %vm3284, %v3243, 0.0
        %3352 = vadd.xlane.f32.xlu0 %v3351
        %v3353 = vpop.xlane.xlu0 %3352
        %v3354 = vsel %vm3284, %v3244, 0.0
        %3355 = vadd.xlane.f32.xlu0 %v3354
        %v3356 = vpop.xlane.xlu0 %3355
        %v3357 = vsel %vm3284, %v3245, 0.0
        %3358 = vadd.xlane.f32.xlu0 %v3357
        %v3359 = vpop.xlane.xlu0 %3358
        %v3360 = vsel %vm3284, %v3246, 0.0
        %3361 = vadd.xlane.f32.xlu0 %v3360
        %v3362 = vpop.xlane.xlu0 %3361
        %v3363 = vsel %vm3284, %v3247, 0.0
        %3364 = vadd.xlane.f32.xlu0 %v3363
        %v3365 = vpop.xlane.xlu0 %3364
        %v3366 = vsel %vm3284, %v3248, 0.0
        %3367 = vadd.xlane.f32.xlu0 %v3366
        %v3368 = vpop.xlane.xlu0 %3367
        %v3369 = vsel %vm3284, %v3249, 0.0
        %3370 = vadd.xlane.f32.xlu0 %v3369
        %v3371 = vpop.xlane.xlu0 %3370
        %v3372 = vsel %vm3284, %v3250, 0.0
        %3373 = vadd.xlane.f32.xlu0 %v3372
        %v3374 = vpop.xlane.xlu0 %3373
        %v3375 = vsel %vm3284, %v3251, 0.0
        %3376 = vadd.xlane.f32.xlu0 %v3375
        %v3377 = vpop.xlane.xlu0 %3376
        %v3378 = vsel %vm3284, %v3252, 0.0
        %3379 = vadd.xlane.f32.xlu0 %v3378
        %v3380 = vpop.xlane.xlu0 %3379
        %v3381 = vsel %vm3284, %v3253, 0.0
        %3382 = vadd.xlane.f32.xlu0 %v3381
        %v3383 = vpop.xlane.xlu0 %3382
        %v3384 = vsel %vm3284, %v3254, 0.0
        %3385 = vadd.xlane.f32.xlu0 %v3384
        %v3386 = vpop.xlane.xlu0 %3385
        %v3387 = vsel %vm3284, %v3255, 0.0
        %3388 = vadd.xlane.f32.xlu0 %v3387
        %v3389 = vpop.xlane.xlu0 %3388
        %v3390 = vsel %vm3284, %v3256, 0.0
        %3391 = vadd.xlane.f32.xlu0 %v3390
        %v3392 = vpop.xlane.xlu0 %3391
        %v3393 = vsel %vm3284, %v3257, 0.0
        %3394 = vadd.xlane.f32.xlu0 %v3393
        %v3395 = vpop.xlane.xlu0 %3394
        %v3396 = vsel %vm3284, %v3258, 0.0
        %3397 = vadd.xlane.f32.xlu0 %v3396
        %v3398 = vpop.xlane.xlu0 %3397
        %v3399 = vsel %vm3284, %v3259, 0.0
        %3400 = vadd.xlane.f32.xlu0 %v3399
        %v3401 = vpop.xlane.xlu0 %3400
        %v3402 = vsel %vm3284, %v3260, 0.0
        %3403 = vadd.xlane.f32.xlu0 %v3402
        %v3404 = vpop.xlane.xlu0 %3403
        %v3405 = vsel %vm3284, %v3261, 0.0
        %3406 = vadd.xlane.f32.xlu0 %v3405
        %v3407 = vpop.xlane.xlu0 %3406
        %v3408 = vsel %vm3284, %v3262, 0.0
        %3409 = vadd.xlane.f32.xlu0 %v3408
        %v3410 = vpop.xlane.xlu0 %3409
        %v3411 = vsel %vm3284, %v3263, 0.0
        %3412 = vadd.xlane.f32.xlu0 %v3411
        %v3413 = vpop.xlane.xlu0 %3412
        %v3414 = vsel %vm3284, %v3264, 0.0
        %3415 = vadd.xlane.f32.xlu0 %v3414
        %v3416 = vpop.xlane.xlu0 %3415
        %v3417 = vsel %vm3284, %v3265, 0.0
        %3418 = vadd.xlane.f32.xlu0 %v3417
        %v3419 = vpop.xlane.xlu0 %3418
        %v3420 = vsel %vm3284, %v3266, 0.0
        %3421 = vadd.xlane.f32.xlu0 %v3420
        %v3422 = vpop.xlane.xlu0 %3421
        %v3423 = vsel %vm3284, %v3267, 0.0
        %3424 = vadd.xlane.f32.xlu0 %v3423
        %v3425 = vpop.xlane.xlu0 %3424
        %v3426 = vsel %vm3284, %v3268, 0.0
        %3427 = vadd.xlane.f32.xlu0 %v3426
        %v3428 = vpop.xlane.xlu0 %3427
        %v3429 = vsel %vm3284, %v3269, 0.0
        %3430 = vadd.xlane.f32.xlu0 %v3429
        %v3431 = vpop.xlane.xlu0 %3430
        %v3432 = vsel %vm3284, %v3270, 0.0
        %3433 = vadd.xlane.f32.xlu0 %v3432
        %v3434 = vpop.xlane.xlu0 %3433
        %v3435 = vsel %vm3284, %v3271, 0.0
        %3436 = vadd.xlane.f32.xlu0 %v3435
        %v3437 = vpop.xlane.xlu0 %3436
        %v3438 = vsel %vm3284, %v3272, 0.0
        %3439 = vadd.xlane.f32.xlu0 %v3438
        %v3440 = vpop.xlane.xlu0 %3439
        %v3441 = vsel %vm3284, %v3273, 0.0
        %3442 = vadd.xlane.f32.xlu0 %v3441
        %v3443 = vpop.xlane.xlu0 %3442
        %v3444 = vsel %vm3284, %v3274, 0.0
        %3445 = vadd.xlane.f32.xlu0 %v3444
        %v3446 = vpop.xlane.xlu0 %3445
        %v3447 = vsel %vm3284, %v3275, 0.0
        %3448 = vadd.xlane.f32.xlu0 %v3447
        %v3449 = vpop.xlane.xlu0 %3448
        %v3450 = vsel %vm3284, %v3276, 0.0
        %3451 = vadd.xlane.f32.xlu0 %v3450
        %v3452 = vpop.xlane.xlu0 %3451
        %v3453 = vsel %vm3284, %v3277, 0.0
        %3454 = vadd.xlane.f32.xlu0 %v3453
        %v3455 = vpop.xlane.xlu0 %3454
        %v3456 = vsel %vm3284, %v3278, 0.0
        %3457 = vadd.xlane.f32.xlu0 %v3456
        %v3458 = vpop.xlane.xlu0 %3457
        %v3459 = vsel %vm3284, %v3279, 0.0
        %3460 = vadd.xlane.f32.xlu0 %v3459
        %v3461 = vpop.xlane.xlu0 %3460
        %v3462 = vsel %vm3284, %v3280, 0.0
        %3463 = vadd.xlane.f32.xlu0 %v3462
        %v3464 = vpop.xlane.xlu0 %3463
        %v3465 = vsel %vm3284, %v3281, 0.0
        %3466 = vadd.xlane.f32.xlu0 %v3465
        %v3467 = vpop.xlane.xlu0 %3466
        %v3468 = vsel %vm3284, %v3282, 0.0
        %3469 = vadd.xlane.f32.xlu0 %v3468
        %v3470 = vpop.xlane.xlu0 %3469
        %v3471 = vsel %vm3284, %v3283, 0.0
        %3472 = vadd.xlane.f32.xlu0 %v3471
        %v3473 = vpop.xlane.xlu0 %3472
        %v3474 = vmul.f32 %v3221, %v3221
        %v3475 = vmul.f32 %v3222, %v3222
        %v3476 = vmul.f32 %v3223, %v3223
        %v3477 = vmul.f32 %v3224, %v3224
        %v3478 = vmul.f32 %v3225, %v3225
        %v3479 = vmul.f32 %v3226, %v3226
        %v3480 = vmul.f32 %v3227, %v3227
        %v3481 = vmul.f32 %v3228, %v3228
        %v3482 = vmul.f32 %v3229, %v3229
        %v3483 = vmul.f32 %v3230, %v3230
        %v3484 = vmul.f32 %v3231, %v3231
        %v3485 = vmul.f32 %v3232, %v3232
        %v3486 = vmul.f32 %v3233, %v3233
        %v3487 = vmul.f32 %v3234, %v3234
        %v3488 = vmul.f32 %v3235, %v3235
        %v3489 = vmul.f32 %v3236, %v3236
        %v3490 = vmul.f32 %v3237, %v3237
        %v3491 = vmul.f32 %v3238, %v3238
        %v3492 = vmul.f32 %v3239, %v3239
        %v3493 = vmul.f32 %v3240, %v3240
        %v3494 = vmul.f32 %v3241, %v3241
        %v3495 = vmul.f32 %v3242, %v3242
        %v3496 = vmul.f32 %v3243, %v3243
        %v3497 = vmul.f32 %v3244, %v3244
        %v3498 = vmul.f32 %v3245, %v3245
        %v3499 = vmul.f32 %v3246, %v3246
        %v3500 = vmul.f32 %v3247, %v3247
        %v3501 = vmul.f32 %v3248, %v3248
        %v3502 = vmul.f32 %v3249, %v3249
        %v3503 = vmul.f32 %v3250, %v3250
        %v3504 = vmul.f32 %v3251, %v3251
        %v3505 = vmul.f32 %v3252, %v3252
        %v3506 = vmul.f32 %v3253, %v3253
        %v3507 = vmul.f32 %v3254, %v3254
        %v3508 = vmul.f32 %v3255, %v3255
        %v3509 = vmul.f32 %v3256, %v3256
        %v3510 = vmul.f32 %v3257, %v3257
        %v3511 = vmul.f32 %v3258, %v3258
        %v3512 = vmul.f32 %v3259, %v3259
        %v3513 = vmul.f32 %v3260, %v3260
        %v3514 = vmul.f32 %v3261, %v3261
        %v3515 = vmul.f32 %v3262, %v3262
        %v3516 = vmul.f32 %v3263, %v3263
        %v3517 = vmul.f32 %v3264, %v3264
        %v3518 = vmul.f32 %v3265, %v3265
        %v3519 = vmul.f32 %v3266, %v3266
        %v3520 = vmul.f32 %v3267, %v3267
        %v3521 = vmul.f32 %v3268, %v3268
        %v3522 = vmul.f32 %v3269, %v3269
        %v3523 = vmul.f32 %v3270, %v3270
        %v3524 = vmul.f32 %v3271, %v3271
        %v3525 = vmul.f32 %v3272, %v3272
        %v3526 = vmul.f32 %v3273, %v3273
        %v3527 = vmul.f32 %v3274, %v3274
        %v3528 = vmul.f32 %v3275, %v3275
        %v3529 = vmul.f32 %v3276, %v3276
        %v3530 = vmul.f32 %v3277, %v3277
        %v3531 = vmul.f32 %v3278, %v3278
        %v3532 = vmul.f32 %v3279, %v3279
        %v3533 = vmul.f32 %v3280, %v3280
        %v3534 = vmul.f32 %v3281, %v3281
        %v3535 = vmul.f32 %v3282, %v3282
        %v3536 = vmul.f32 %v3283, %v3283
        %v3537 = vsel %vm3284, %v3474, 0.0
        %3538 = vadd.xlane.f32.xlu0 %v3537
        %v3539 = vpop.xlane.xlu0 %3538
        %v3540 = vsel %vm3284, %v3475, 0.0
        %3541 = vadd.xlane.f32.xlu0 %v3540
        %v3542 = vpop.xlane.xlu0 %3541
        %v3543 = vsel %vm3284, %v3476, 0.0
        %3544 = vadd.xlane.f32.xlu0 %v3543
        %v3545 = vpop.xlane.xlu0 %3544
        %v3546 = vsel %vm3284, %v3477, 0.0
        %3547 = vadd.xlane.f32.xlu0 %v3546
        %v3548 = vpop.xlane.xlu0 %3547
        %v3549 = vsel %vm3284, %v3478, 0.0
        %3550 = vadd.xlane.f32.xlu0 %v3549
        %v3551 = vpop.xlane.xlu0 %3550
        %v3552 = vsel %vm3284, %v3479, 0.0
        %3553 = vadd.xlane.f32.xlu0 %v3552
        %v3554 = vpop.xlane.xlu0 %3553
        %v3555 = vsel %vm3284, %v3480, 0.0
        %3556 = vadd.xlane.f32.xlu0 %v3555
        %v3557 = vpop.xlane.xlu0 %3556
        %v3558 = vsel %vm3284, %v3481, 0.0
        %3559 = vadd.xlane.f32.xlu0 %v3558
        %v3560 = vpop.xlane.xlu0 %3559
        %v3561 = vsel %vm3284, %v3482, 0.0
        %3562 = vadd.xlane.f32.xlu0 %v3561
        %v3563 = vpop.xlane.xlu0 %3562
        %v3564 = vsel %vm3284, %v3483, 0.0
        %3565 = vadd.xlane.f32.xlu0 %v3564
        %v3566 = vpop.xlane.xlu0 %3565
        %v3567 = vsel %vm3284, %v3484, 0.0
        %3568 = vadd.xlane.f32.xlu0 %v3567
        %v3569 = vpop.xlane.xlu0 %3568
        %v3570 = vsel %vm3284, %v3485, 0.0
        %3571 = vadd.xlane.f32.xlu0 %v3570
        %v3572 = vpop.xlane.xlu0 %3571
        %v3573 = vsel %vm3284, %v3486, 0.0
        %3574 = vadd.xlane.f32.xlu0 %v3573
        %v3575 = vpop.xlane.xlu0 %3574
        %v3576 = vsel %vm3284, %v3487, 0.0
        %3577 = vadd.xlane.f32.xlu0 %v3576
        %v3578 = vpop.xlane.xlu0 %3577
        %v3579 = vsel %vm3284, %v3488, 0.0
        %3580 = vadd.xlane.f32.xlu0 %v3579
        %v3581 = vpop.xlane.xlu0 %3580
        %v3582 = vsel %vm3284, %v3489, 0.0
        %3583 = vadd.xlane.f32.xlu0 %v3582
        %v3584 = vpop.xlane.xlu0 %3583
        %v3585 = vsel %vm3284, %v3490, 0.0
        %3586 = vadd.xlane.f32.xlu0 %v3585
        %v3587 = vpop.xlane.xlu0 %3586
        %v3588 = vsel %vm3284, %v3491, 0.0
        %3589 = vadd.xlane.f32.xlu0 %v3588
        %v3590 = vpop.xlane.xlu0 %3589
        %v3591 = vsel %vm3284, %v3492, 0.0
        %3592 = vadd.xlane.f32.xlu0 %v3591
        %v3593 = vpop.xlane.xlu0 %3592
        %v3594 = vsel %vm3284, %v3493, 0.0
        %3595 = vadd.xlane.f32.xlu0 %v3594
        %v3596 = vpop.xlane.xlu0 %3595
        %v3597 = vsel %vm3284, %v3494, 0.0
        %3598 = vadd.xlane.f32.xlu0 %v3597
        %v3599 = vpop.xlane.xlu0 %3598
        %v3600 = vsel %vm3284, %v3495, 0.0
        %3601 = vadd.xlane.f32.xlu0 %v3600
        %v3602 = vpop.xlane.xlu0 %3601
        %v3603 = vsel %vm3284, %v3496, 0.0
        %3604 = vadd.xlane.f32.xlu0 %v3603
        %v3605 = vpop.xlane.xlu0 %3604
        %v3606 = vsel %vm3284, %v3497, 0.0
        %3607 = vadd.xlane.f32.xlu0 %v3606
        %v3608 = vpop.xlane.xlu0 %3607
        %v3609 = vsel %vm3284, %v3498, 0.0
        %3610 = vadd.xlane.f32.xlu0 %v3609
        %v3611 = vpop.xlane.xlu0 %3610
        %v3612 = vsel %vm3284, %v3499, 0.0
        %3613 = vadd.xlane.f32.xlu0 %v3612
        %v3614 = vpop.xlane.xlu0 %3613
        %v3615 = vsel %vm3284, %v3500, 0.0
        %3616 = vadd.xlane.f32.xlu0 %v3615
        %v3617 = vpop.xlane.xlu0 %3616
        %v3618 = vsel %vm3284, %v3501, 0.0
        %3619 = vadd.xlane.f32.xlu0 %v3618
        %v3620 = vpop.xlane.xlu0 %3619
        %v3621 = vsel %vm3284, %v3502, 0.0
        %3622 = vadd.xlane.f32.xlu0 %v3621
        %v3623 = vpop.xlane.xlu0 %3622
        %v3624 = vsel %vm3284, %v3503, 0.0
        %3625 = vadd.xlane.f32.xlu0 %v3624
        %v3626 = vpop.xlane.xlu0 %3625
        %v3627 = vsel %vm3284, %v3504, 0.0
        %3628 = vadd.xlane.f32.xlu0 %v3627
        %v3629 = vpop.xlane.xlu0 %3628
        %v3630 = vsel %vm3284, %v3505, 0.0
        %3631 = vadd.xlane.f32.xlu0 %v3630
        %v3632 = vpop.xlane.xlu0 %3631
        %v3633 = vsel %vm3284, %v3506, 0.0
        %3634 = vadd.xlane.f32.xlu0 %v3633
        %v3635 = vpop.xlane.xlu0 %3634
        %v3636 = vsel %vm3284, %v3507, 0.0
        %3637 = vadd.xlane.f32.xlu0 %v3636
        %v3638 = vpop.xlane.xlu0 %3637
        %v3639 = vsel %vm3284, %v3508, 0.0
        %3640 = vadd.xlane.f32.xlu0 %v3639
        %v3641 = vpop.xlane.xlu0 %3640
        %v3642 = vsel %vm3284, %v3509, 0.0
        %3643 = vadd.xlane.f32.xlu0 %v3642
        %v3644 = vpop.xlane.xlu0 %3643
        %v3645 = vsel %vm3284, %v3510, 0.0
        %3646 = vadd.xlane.f32.xlu0 %v3645
        %v3647 = vpop.xlane.xlu0 %3646
        %v3648 = vsel %vm3284, %v3511, 0.0
        %3649 = vadd.xlane.f32.xlu0 %v3648
        %v3650 = vpop.xlane.xlu0 %3649
        %v3651 = vsel %vm3284, %v3512, 0.0
        %3652 = vadd.xlane.f32.xlu0 %v3651
        %v3653 = vpop.xlane.xlu0 %3652
        %v3654 = vsel %vm3284, %v3513, 0.0
        %3655 = vadd.xlane.f32.xlu0 %v3654
        %v3656 = vpop.xlane.xlu0 %3655
        %v3657 = vsel %vm3284, %v3514, 0.0
        %3658 = vadd.xlane.f32.xlu0 %v3657
        %v3659 = vpop.xlane.xlu0 %3658
        %v3660 = vsel %vm3284, %v3515, 0.0
        %3661 = vadd.xlane.f32.xlu0 %v3660
        %v3662 = vpop.xlane.xlu0 %3661
        %v3663 = vsel %vm3284, %v3516, 0.0
        %3664 = vadd.xlane.f32.xlu0 %v3663
        %v3665 = vpop.xlane.xlu0 %3664
        %v3666 = vsel %vm3284, %v3517, 0.0
        %3667 = vadd.xlane.f32.xlu0 %v3666
        %v3668 = vpop.xlane.xlu0 %3667
        %v3669 = vsel %vm3284, %v3518, 0.0
        %3670 = vadd.xlane.f32.xlu0 %v3669
        %v3671 = vpop.xlane.xlu0 %3670
        %v3672 = vsel %vm3284, %v3519, 0.0
        %3673 = vadd.xlane.f32.xlu0 %v3672
        %v3674 = vpop.xlane.xlu0 %3673
        %v3675 = vsel %vm3284, %v3520, 0.0
        %3676 = vadd.xlane.f32.xlu0 %v3675
        %v3677 = vpop.xlane.xlu0 %3676
        %v3678 = vsel %vm3284, %v3521, 0.0
        %3679 = vadd.xlane.f32.xlu0 %v3678
        %v3680 = vpop.xlane.xlu0 %3679
        %v3681 = vsel %vm3284, %v3522, 0.0
        %3682 = vadd.xlane.f32.xlu0 %v3681
        %v3683 = vpop.xlane.xlu0 %3682
        %v3684 = vsel %vm3284, %v3523, 0.0
        %3685 = vadd.xlane.f32.xlu0 %v3684
        %v3686 = vpop.xlane.xlu0 %3685
        %v3687 = vsel %vm3284, %v3524, 0.0
        %3688 = vadd.xlane.f32.xlu0 %v3687
        %v3689 = vpop.xlane.xlu0 %3688
        %v3690 = vsel %vm3284, %v3525, 0.0
        %3691 = vadd.xlane.f32.xlu0 %v3690
        %v3692 = vpop.xlane.xlu0 %3691
        %v3693 = vsel %vm3284, %v3526, 0.0
        %3694 = vadd.xlane.f32.xlu0 %v3693
        %v3695 = vpop.xlane.xlu0 %3694
        %v3696 = vsel %vm3284, %v3527, 0.0
        %3697 = vadd.xlane.f32.xlu0 %v3696
        %v3698 = vpop.xlane.xlu0 %3697
        %v3699 = vsel %vm3284, %v3528, 0.0
        %3700 = vadd.xlane.f32.xlu0 %v3699
        %v3701 = vpop.xlane.xlu0 %3700
        %v3702 = vsel %vm3284, %v3529, 0.0
        %3703 = vadd.xlane.f32.xlu0 %v3702
        %v3704 = vpop.xlane.xlu0 %3703
        %v3705 = vsel %vm3284, %v3530, 0.0
        %3706 = vadd.xlane.f32.xlu0 %v3705
        %v3707 = vpop.xlane.xlu0 %3706
        %v3708 = vsel %vm3284, %v3531, 0.0
        %3709 = vadd.xlane.f32.xlu0 %v3708
        %v3710 = vpop.xlane.xlu0 %3709
        %v3711 = vsel %vm3284, %v3532, 0.0
        %3712 = vadd.xlane.f32.xlu0 %v3711
        %v3713 = vpop.xlane.xlu0 %3712
        %v3714 = vsel %vm3284, %v3533, 0.0
        %3715 = vadd.xlane.f32.xlu0 %v3714
        %v3716 = vpop.xlane.xlu0 %3715
        %v3717 = vsel %vm3284, %v3534, 0.0
        %3718 = vadd.xlane.f32.xlu0 %v3717
        %v3719 = vpop.xlane.xlu0 %3718
        %v3720 = vsel %vm3284, %v3535, 0.0
        %3721 = vadd.xlane.f32.xlu0 %v3720
        %v3722 = vpop.xlane.xlu0 %3721
        %v3723 = vsel %vm3284, %v3536, 0.0
        %3724 = vadd.xlane.f32.xlu0 %v3723
        %v3725 = vpop.xlane.xlu0 %3724
        %v3726 = vmul.f32 %v3287, 0.015625
        %v3727 = vmul.f32 %v3290, 0.015625
        %v3728 = vmul.f32 %v3293, 0.015625
        %v3729 = vmul.f32 %v3296, 0.015625
        %v3730 = vmul.f32 %v3299, 0.015625
        %v3731 = vmul.f32 %v3302, 0.015625
        %v3732 = vmul.f32 %v3305, 0.015625
        %v3733 = vmul.f32 %v3308, 0.015625
        %v3734 = vmul.f32 %v3311, 0.015625
        %v3735 = vmul.f32 %v3314, 0.015625
        %v3736 = vmul.f32 %v3317, 0.015625
        %v3737 = vmul.f32 %v3320, 0.015625
        %v3738 = vmul.f32 %v3323, 0.015625
        %v3739 = vmul.f32 %v3326, 0.015625
        %v3740 = vmul.f32 %v3329, 0.015625
        %v3741 = vmul.f32 %v3332, 0.015625
        %v3742 = vmul.f32 %v3335, 0.015625
        %v3743 = vmul.f32 %v3338, 0.015625
        %v3744 = vmul.f32 %v3341, 0.015625
        %v3745 = vmul.f32 %v3344, 0.015625
        %v3746 = vmul.f32 %v3347, 0.015625
        %v3747 = vmul.f32 %v3350, 0.015625
        %v3748 = vmul.f32 %v3353, 0.015625
        %v3749 = vmul.f32 %v3356, 0.015625
        %v3750 = vmul.f32 %v3359, 0.015625
        %v3751 = vmul.f32 %v3362, 0.015625
        %v3752 = vmul.f32 %v3365, 0.015625
        %v3753 = vmul.f32 %v3368, 0.015625
        %v3754 = vmul.f32 %v3371, 0.015625
        %v3755 = vmul.f32 %v3374, 0.015625
        %v3756 = vmul.f32 %v3377, 0.015625
        %v3757 = vmul.f32 %v3380, 0.015625
        %v3758 = vmul.f32 %v3383, 0.015625
        %v3759 = vmul.f32 %v3386, 0.015625
        %v3760 = vmul.f32 %v3389, 0.015625
        %v3761 = vmul.f32 %v3392, 0.015625
        %v3762 = vmul.f32 %v3395, 0.015625
        %v3763 = vmul.f32 %v3398, 0.015625
        %v3764 = vmul.f32 %v3401, 0.015625
        %v3765 = vmul.f32 %v3404, 0.015625
        %v3766 = vmul.f32 %v3407, 0.015625
        %v3767 = vmul.f32 %v3410, 0.015625
        %v3768 = vmul.f32 %v3413, 0.015625
        %v3769 = vmul.f32 %v3416, 0.015625
        %v3770 = vmul.f32 %v3419, 0.015625
        %v3771 = vmul.f32 %v3422, 0.015625
        %v3772 = vmul.f32 %v3425, 0.015625
        %v3773 = vmul.f32 %v3428, 0.015625
        %v3774 = vmul.f32 %v3431, 0.015625
        %v3775 = vmul.f32 %v3434, 0.015625
        %v3776 = vmul.f32 %v3437, 0.015625
        %v3777 = vmul.f32 %v3440, 0.015625
        %v3778 = vmul.f32 %v3443, 0.015625
        %v3779 = vmul.f32 %v3446, 0.015625
        %v3780 = vmul.f32 %v3449, 0.015625
        %v3781 = vmul.f32 %v3452, 0.015625
        %v3782 = vmul.f32 %v3455, 0.015625
        %v3783 = vmul.f32 %v3458, 0.015625
        %v3784 = vmul.f32 %v3461, 0.015625
        %v3785 = vmul.f32 %v3464, 0.015625
        %v3786 = vmul.f32 %v3467, 0.015625
        %v3787 = vmul.f32 %v3470, 0.015625
        %v3788 = vmul.f32 %v3473, 0.015625
        %v3789 = vmul.f32 %v3539, 0.015625
        %v3790 = vmul.f32 %v3542, 0.015625
        %v3791 = vmul.f32 %v3545, 0.015625
        %v3792 = vmul.f32 %v3548, 0.015625
        %v3793 = vmul.f32 %v3551, 0.015625
        %v3794 = vmul.f32 %v3554, 0.015625
        %v3795 = vmul.f32 %v3557, 0.015625
        %v3796 = vmul.f32 %v3560, 0.015625
        %v3797 = vmul.f32 %v3563, 0.015625
        %v3798 = vmul.f32 %v3566, 0.015625
        %v3799 = vmul.f32 %v3569, 0.015625
        %v3800 = vmul.f32 %v3572, 0.015625
        %v3801 = vmul.f32 %v3575, 0.015625
        %v3802 = vmul.f32 %v3578, 0.015625
        %v3803 = vmul.f32 %v3581, 0.015625
        %v3804 = vmul.f32 %v3584, 0.015625
        %v3805 = vmul.f32 %v3587, 0.015625
        %v3806 = vmul.f32 %v3590, 0.015625
        %v3807 = vmul.f32 %v3593, 0.015625
        %v3808 = vmul.f32 %v3596, 0.015625
        %v3809 = vmul.f32 %v3599, 0.015625
        %v3810 = vmul.f32 %v3602, 0.015625
        %v3811 = vmul.f32 %v3605, 0.015625
        %v3812 = vmul.f32 %v3608, 0.015625
        %v3813 = vmul.f32 %v3611, 0.015625
        %v3814 = vmul.f32 %v3614, 0.015625
        %v3815 = vmul.f32 %v3617, 0.015625
        %v3816 = vmul.f32 %v3620, 0.015625
        %v3817 = vmul.f32 %v3623, 0.015625
        %v3818 = vmul.f32 %v3626, 0.015625
        %v3819 = vmul.f32 %v3629, 0.015625
        %v3820 = vmul.f32 %v3632, 0.015625
        %v3821 = vmul.f32 %v3635, 0.015625
        %v3822 = vmul.f32 %v3638, 0.015625
        %v3823 = vmul.f32 %v3641, 0.015625
        %v3824 = vmul.f32 %v3644, 0.015625
        %v3825 = vmul.f32 %v3647, 0.015625
        %v3826 = vmul.f32 %v3650, 0.015625
        %v3827 = vmul.f32 %v3653, 0.015625
        %v3828 = vmul.f32 %v3656, 0.015625
        %v3829 = vmul.f32 %v3659, 0.015625
        %v3830 = vmul.f32 %v3662, 0.015625
        %v3831 = vmul.f32 %v3665, 0.015625
        %v3832 = vmul.f32 %v3668, 0.015625
        %v3833 = vmul.f32 %v3671, 0.015625
        %v3834 = vmul.f32 %v3674, 0.015625
        %v3835 = vmul.f32 %v3677, 0.015625
        %v3836 = vmul.f32 %v3680, 0.015625
        %v3837 = vmul.f32 %v3683, 0.015625
        %v3838 = vmul.f32 %v3686, 0.015625
        %v3839 = vmul.f32 %v3689, 0.015625
        %v3840 = vmul.f32 %v3692, 0.015625
        %v3841 = vmul.f32 %v3695, 0.015625
        %v3842 = vmul.f32 %v3698, 0.015625
        %v3843 = vmul.f32 %v3701, 0.015625
        %v3844 = vmul.f32 %v3704, 0.015625
        %v3845 = vmul.f32 %v3707, 0.015625
        %v3846 = vmul.f32 %v3710, 0.015625
        %v3847 = vmul.f32 %v3713, 0.015625
        %v3848 = vmul.f32 %v3716, 0.015625
        %v3849 = vmul.f32 %v3719, 0.015625
        %v3850 = vmul.f32 %v3722, 0.015625
        %v3851 = vmul.f32 %v3725, 0.015625
        %v3852 = vmul.f32 %v3726, %v3726
        %v3853 = vmul.f32 %v3727, %v3727
        %v3854 = vmul.f32 %v3728, %v3728
        %v3855 = vmul.f32 %v3729, %v3729
        %v3856 = vmul.f32 %v3730, %v3730
        %v3857 = vmul.f32 %v3731, %v3731
        %v3858 = vmul.f32 %v3732, %v3732
        %v3859 = vmul.f32 %v3733, %v3733
        %v3860 = vmul.f32 %v3734, %v3734
        %v3861 = vmul.f32 %v3735, %v3735
        %v3862 = vmul.f32 %v3736, %v3736
        %v3863 = vmul.f32 %v3737, %v3737
        %v3864 = vmul.f32 %v3738, %v3738
        %v3865 = vmul.f32 %v3739, %v3739
        %v3866 = vmul.f32 %v3740, %v3740
        %v3867 = vmul.f32 %v3741, %v3741
        %v3868 = vmul.f32 %v3742, %v3742
        %v3869 = vmul.f32 %v3743, %v3743
        %v3870 = vmul.f32 %v3744, %v3744
        %v3871 = vmul.f32 %v3745, %v3745
        %v3872 = vmul.f32 %v3746, %v3746
        %v3873 = vmul.f32 %v3747, %v3747
        %v3874 = vmul.f32 %v3748, %v3748
        %v3875 = vmul.f32 %v3749, %v3749
        %v3876 = vmul.f32 %v3750, %v3750
        %v3877 = vmul.f32 %v3751, %v3751
        %v3878 = vmul.f32 %v3752, %v3752
        %v3879 = vmul.f32 %v3753, %v3753
        %v3880 = vmul.f32 %v3754, %v3754
        %v3881 = vmul.f32 %v3755, %v3755
        %v3882 = vmul.f32 %v3756, %v3756
        %v3883 = vmul.f32 %v3757, %v3757
        %v3884 = vmul.f32 %v3758, %v3758
        %v3885 = vmul.f32 %v3759, %v3759
        %v3886 = vmul.f32 %v3760, %v3760
        %v3887 = vmul.f32 %v3761, %v3761
        %v3888 = vmul.f32 %v3762, %v3762
        %v3889 = vmul.f32 %v3763, %v3763
        %v3890 = vmul.f32 %v3764, %v3764
        %v3891 = vmul.f32 %v3765, %v3765
        %v3892 = vmul.f32 %v3766, %v3766
        %v3893 = vmul.f32 %v3767, %v3767
        %v3894 = vmul.f32 %v3768, %v3768
        %v3895 = vmul.f32 %v3769, %v3769
        %v3896 = vmul.f32 %v3770, %v3770
        %v3897 = vmul.f32 %v3771, %v3771
        %v3898 = vmul.f32 %v3772, %v3772
        %v3899 = vmul.f32 %v3773, %v3773
        %v3900 = vmul.f32 %v3774, %v3774
        %v3901 = vmul.f32 %v3775, %v3775
        %v3902 = vmul.f32 %v3776, %v3776
        %v3903 = vmul.f32 %v3777, %v3777
        %v3904 = vmul.f32 %v3778, %v3778
        %v3905 = vmul.f32 %v3779, %v3779
        %v3906 = vmul.f32 %v3780, %v3780
        %v3907 = vmul.f32 %v3781, %v3781
        %v3908 = vmul.f32 %v3782, %v3782
        %v3909 = vmul.f32 %v3783, %v3783
        %v3910 = vmul.f32 %v3784, %v3784
        %v3911 = vmul.f32 %v3785, %v3785
        %v3912 = vmul.f32 %v3786, %v3786
        %v3913 = vmul.f32 %v3787, %v3787
        %v3914 = vmul.f32 %v3788, %v3788
        %v3915 = vsub.f32 %v3789, %v3852
        %v3916 = vsub.f32 %v3790, %v3853
        %v3917 = vsub.f32 %v3791, %v3854
        %v3918 = vsub.f32 %v3792, %v3855
        %v3919 = vsub.f32 %v3793, %v3856
        %v3920 = vsub.f32 %v3794, %v3857
        %v3921 = vsub.f32 %v3795, %v3858
        %v3922 = vsub.f32 %v3796, %v3859
        %v3923 = vsub.f32 %v3797, %v3860
        %v3924 = vsub.f32 %v3798, %v3861
        %v3925 = vsub.f32 %v3799, %v3862
        %v3926 = vsub.f32 %v3800, %v3863
        %v3927 = vsub.f32 %v3801, %v3864
        %v3928 = vsub.f32 %v3802, %v3865
        %v3929 = vsub.f32 %v3803, %v3866
        %v3930 = vsub.f32 %v3804, %v3867
        %v3931 = vsub.f32 %v3805, %v3868
        %v3932 = vsub.f32 %v3806, %v3869
        %v3933 = vsub.f32 %v3807, %v3870
        %v3934 = vsub.f32 %v3808, %v3871
        %v3935 = vsub.f32 %v3809, %v3872
        %v3936 = vsub.f32 %v3810, %v3873
        %v3937 = vsub.f32 %v3811, %v3874
        %v3938 = vsub.f32 %v3812, %v3875
        %v3939 = vsub.f32 %v3813, %v3876
        %v3940 = vsub.f32 %v3814, %v3877
        %v3941 = vsub.f32 %v3815, %v3878
        %v3942 = vsub.f32 %v3816, %v3879
        %v3943 = vsub.f32 %v3817, %v3880
        %v3944 = vsub.f32 %v3818, %v3881
        %v3945 = vsub.f32 %v3819, %v3882
        %v3946 = vsub.f32 %v3820, %v3883
        %v3947 = vsub.f32 %v3821, %v3884
        %v3948 = vsub.f32 %v3822, %v3885
        %v3949 = vsub.f32 %v3823, %v3886
        %v3950 = vsub.f32 %v3824, %v3887
        %v3951 = vsub.f32 %v3825, %v3888
        %v3952 = vsub.f32 %v3826, %v3889
        %v3953 = vsub.f32 %v3827, %v3890
        %v3954 = vsub.f32 %v3828, %v3891
        %v3955 = vsub.f32 %v3829, %v3892
        %v3956 = vsub.f32 %v3830, %v3893
        %v3957 = vsub.f32 %v3831, %v3894
        %v3958 = vsub.f32 %v3832, %v3895
        %v3959 = vsub.f32 %v3833, %v3896
        %v3960 = vsub.f32 %v3834, %v3897
        %v3961 = vsub.f32 %v3835, %v3898
        %v3962 = vsub.f32 %v3836, %v3899
        %v3963 = vsub.f32 %v3837, %v3900
        %v3964 = vsub.f32 %v3838, %v3901
        %v3965 = vsub.f32 %v3839, %v3902
        %v3966 = vsub.f32 %v3840, %v3903
        %v3967 = vsub.f32 %v3841, %v3904
        %v3968 = vsub.f32 %v3842, %v3905
        %v3969 = vsub.f32 %v3843, %v3906
        %v3970 = vsub.f32 %v3844, %v3907
        %v3971 = vsub.f32 %v3845, %v3908
        %v3972 = vsub.f32 %v3846, %v3909
        %v3973 = vsub.f32 %v3847, %v3910
        %v3974 = vsub.f32 %v3848, %v3911
        %v3975 = vsub.f32 %v3849, %v3912
        %v3976 = vsub.f32 %v3850, %v3913
        %v3977 = vsub.f32 %v3851, %v3914
        %v3978 = vadd.f32 %v3915, 1e-05
        %v3979 = vadd.f32 %v3916, 1e-05
        %v3980 = vadd.f32 %v3917, 1e-05
        %v3981 = vadd.f32 %v3918, 1e-05
        %v3982 = vadd.f32 %v3919, 1e-05
        %v3983 = vadd.f32 %v3920, 1e-05
        %v3984 = vadd.f32 %v3921, 1e-05
        %v3985 = vadd.f32 %v3922, 1e-05
        %v3986 = vadd.f32 %v3923, 1e-05
        %v3987 = vadd.f32 %v3924, 1e-05
        %v3988 = vadd.f32 %v3925, 1e-05
        %v3989 = vadd.f32 %v3926, 1e-05
        %v3990 = vadd.f32 %v3927, 1e-05
        %v3991 = vadd.f32 %v3928, 1e-05
        %v3992 = vadd.f32 %v3929, 1e-05
        %v3993 = vadd.f32 %v3930, 1e-05
        %v3994 = vadd.f32 %v3931, 1e-05
        %v3995 = vadd.f32 %v3932, 1e-05
        %v3996 = vadd.f32 %v3933, 1e-05
        %v3997 = vadd.f32 %v3934, 1e-05
        %v3998 = vadd.f32 %v3935, 1e-05
        %v3999 = vadd.f32 %v3936, 1e-05
        %v4000 = vadd.f32 %v3937, 1e-05
        %v4001 = vadd.f32 %v3938, 1e-05
        %v4002 = vadd.f32 %v3939, 1e-05
        %v4003 = vadd.f32 %v3940, 1e-05
        %v4004 = vadd.f32 %v3941, 1e-05
        %v4005 = vadd.f32 %v3942, 1e-05
        %v4006 = vadd.f32 %v3943, 1e-05
        %v4007 = vadd.f32 %v3944, 1e-05
        %v4008 = vadd.f32 %v3945, 1e-05
        %v4009 = vadd.f32 %v3946, 1e-05
        %v4010 = vadd.f32 %v3947, 1e-05
        %v4011 = vadd.f32 %v3948, 1e-05
        %v4012 = vadd.f32 %v3949, 1e-05
        %v4013 = vadd.f32 %v3950, 1e-05
        %v4014 = vadd.f32 %v3951, 1e-05
        %v4015 = vadd.f32 %v3952, 1e-05
        %v4016 = vadd.f32 %v3953, 1e-05
        %v4017 = vadd.f32 %v3954, 1e-05
        %v4018 = vadd.f32 %v3955, 1e-05
        %v4019 = vadd.f32 %v3956, 1e-05
        %v4020 = vadd.f32 %v3957, 1e-05
        %v4021 = vadd.f32 %v3958, 1e-05
        %v4022 = vadd.f32 %v3959, 1e-05
        %v4023 = vadd.f32 %v3960, 1e-05
        %v4024 = vadd.f32 %v3961, 1e-05
        %v4025 = vadd.f32 %v3962, 1e-05
        %v4026 = vadd.f32 %v3963, 1e-05
        %v4027 = vadd.f32 %v3964, 1e-05
        %v4028 = vadd.f32 %v3965, 1e-05
        %v4029 = vadd.f32 %v3966, 1e-05
        %v4030 = vadd.f32 %v3967, 1e-05
        %v4031 = vadd.f32 %v3968, 1e-05
        %v4032 = vadd.f32 %v3969, 1e-05
        %v4033 = vadd.f32 %v3970, 1e-05
        %v4034 = vadd.f32 %v3971, 1e-05
        %v4035 = vadd.f32 %v3972, 1e-05
        %v4036 = vadd.f32 %v3973, 1e-05
        %v4037 = vadd.f32 %v3974, 1e-05
        %v4038 = vadd.f32 %v3975, 1e-05
        %v4039 = vadd.f32 %v3976, 1e-05
        %v4040 = vadd.f32 %v3977, 1e-05
        %v4041 = vrsqrt.pop %v3978
        %v4042 = vrsqrt.pop %v3979
        %v4043 = vrsqrt.pop %v3980
        %v4044 = vrsqrt.pop %v3981
        %v4045 = vrsqrt.pop %v3982
        %v4046 = vrsqrt.pop %v3983
        %v4047 = vrsqrt.pop %v3984
        %v4048 = vrsqrt.pop %v3985
        %v4049 = vrsqrt.pop %v3986
        %v4050 = vrsqrt.pop %v3987
        %v4051 = vrsqrt.pop %v3988
        %v4052 = vrsqrt.pop %v3989
        %v4053 = vrsqrt.pop %v3990
        %v4054 = vrsqrt.pop %v3991
        %v4055 = vrsqrt.pop %v3992
        %v4056 = vrsqrt.pop %v3993
        %v4057 = vrsqrt.pop %v3994
        %v4058 = vrsqrt.pop %v3995
        %v4059 = vrsqrt.pop %v3996
        %v4060 = vrsqrt.pop %v3997
        %v4061 = vrsqrt.pop %v3998
        %v4062 = vrsqrt.pop %v3999
        %v4063 = vrsqrt.pop %v4000
        %v4064 = vrsqrt.pop %v4001
        %v4065 = vrsqrt.pop %v4002
        %v4066 = vrsqrt.pop %v4003
        %v4067 = vrsqrt.pop %v4004
        %v4068 = vrsqrt.pop %v4005
        %v4069 = vrsqrt.pop %v4006
        %v4070 = vrsqrt.pop %v4007
        %v4071 = vrsqrt.pop %v4008
        %v4072 = vrsqrt.pop %v4009
        %v4073 = vrsqrt.pop %v4010
        %v4074 = vrsqrt.pop %v4011
        %v4075 = vrsqrt.pop %v4012
        %v4076 = vrsqrt.pop %v4013
        %v4077 = vrsqrt.pop %v4014
        %v4078 = vrsqrt.pop %v4015
        %v4079 = vrsqrt.pop %v4016
        %v4080 = vrsqrt.pop %v4017
        %v4081 = vrsqrt.pop %v4018
        %v4082 = vrsqrt.pop %v4019
        %v4083 = vrsqrt.pop %v4020
        %v4084 = vrsqrt.pop %v4021
        %v4085 = vrsqrt.pop %v4022
        %v4086 = vrsqrt.pop %v4023
        %v4087 = vrsqrt.pop %v4024
        %v4088 = vrsqrt.pop %v4025
        %v4089 = vrsqrt.pop %v4026
        %v4090 = vrsqrt.pop %v4027
        %v4091 = vrsqrt.pop %v4028
        %v4092 = vrsqrt.pop %v4029
        %v4093 = vrsqrt.pop %v4030
        %v4094 = vrsqrt.pop %v4031
        %v4095 = vrsqrt.pop %v4032
        %v4096 = vrsqrt.pop %v4033
        %v4097 = vrsqrt.pop %v4034
        %v4098 = vrsqrt.pop %v4035
        %v4099 = vrsqrt.pop %v4036
        %v4100 = vrsqrt.pop %v4037
        %v4101 = vrsqrt.pop %v4038
        %v4102 = vrsqrt.pop %v4039
        %v4103 = vrsqrt.pop %v4040
        %v4104 = vstv %s2837
        %v4105 = vmul.f32 %v4104, %v4041
        %v4106 = vmul.f32 %v4104, %v4042
        %v4107 = vmul.f32 %v4104, %v4043
        %v4108 = vmul.f32 %v4104, %v4044
        %v4109 = vmul.f32 %v4104, %v4045
        %v4110 = vmul.f32 %v4104, %v4046
        %v4111 = vmul.f32 %v4104, %v4047
        %v4112 = vmul.f32 %v4104, %v4048
        %v4113 = vmul.f32 %v4104, %v4049
        %v4114 = vmul.f32 %v4104, %v4050
        %v4115 = vmul.f32 %v4104, %v4051
        %v4116 = vmul.f32 %v4104, %v4052
        %v4117 = vmul.f32 %v4104, %v4053
        %v4118 = vmul.f32 %v4104, %v4054
        %v4119 = vmul.f32 %v4104, %v4055
        %v4120 = vmul.f32 %v4104, %v4056
        %v4121 = vmul.f32 %v4104, %v4057
        %v4122 = vmul.f32 %v4104, %v4058
        %v4123 = vmul.f32 %v4104, %v4059
        %v4124 = vmul.f32 %v4104, %v4060
        %v4125 = vmul.f32 %v4104, %v4061
        %v4126 = vmul.f32 %v4104, %v4062
        %v4127 = vmul.f32 %v4104, %v4063
        %v4128 = vmul.f32 %v4104, %v4064
        %v4129 = vmul.f32 %v4104, %v4065
        %v4130 = vmul.f32 %v4104, %v4066
        %v4131 = vmul.f32 %v4104, %v4067
        %v4132 = vmul.f32 %v4104, %v4068
        %v4133 = vmul.f32 %v4104, %v4069
        %v4134 = vmul.f32 %v4104, %v4070
        %v4135 = vmul.f32 %v4104, %v4071
        %v4136 = vmul.f32 %v4104, %v4072
        %v4137 = vmul.f32 %v4104, %v4073
        %v4138 = vmul.f32 %v4104, %v4074
        %v4139 = vmul.f32 %v4104, %v4075
        %v4140 = vmul.f32 %v4104, %v4076
        %v4141 = vmul.f32 %v4104, %v4077
        %v4142 = vmul.f32 %v4104, %v4078
        %v4143 = vmul.f32 %v4104, %v4079
        %v4144 = vmul.f32 %v4104, %v4080
        %v4145 = vmul.f32 %v4104, %v4081
        %v4146 = vmul.f32 %v4104, %v4082
        %v4147 = vmul.f32 %v4104, %v4083
        %v4148 = vmul.f32 %v4104, %v4084
        %v4149 = vmul.f32 %v4104, %v4085
        %v4150 = vmul.f32 %v4104, %v4086
        %v4151 = vmul.f32 %v4104, %v4087
        %v4152 = vmul.f32 %v4104, %v4088
        %v4153 = vmul.f32 %v4104, %v4089
        %v4154 = vmul.f32 %v4104, %v4090
        %v4155 = vmul.f32 %v4104, %v4091
        %v4156 = vmul.f32 %v4104, %v4092
        %v4157 = vmul.f32 %v4104, %v4093
        %v4158 = vmul.f32 %v4104, %v4094
        %v4159 = vmul.f32 %v4104, %v4095
        %v4160 = vmul.f32 %v4104, %v4096
        %v4161 = vmul.f32 %v4104, %v4097
        %v4162 = vmul.f32 %v4104, %v4098
        %v4163 = vmul.f32 %v4104, %v4099
        %v4164 = vmul.f32 %v4104, %v4100
        %v4165 = vmul.f32 %v4104, %v4101
        %v4166 = vmul.f32 %v4104, %v4102
        %v4167 = vmul.f32 %v4104, %v4103
        %v4168 = vmul.f32 %v3726, %v4105
        %v4169 = vmul.f32 %v3727, %v4106
        %v4170 = vmul.f32 %v3728, %v4107
        %v4171 = vmul.f32 %v3729, %v4108
        %v4172 = vmul.f32 %v3730, %v4109
        %v4173 = vmul.f32 %v3731, %v4110
        %v4174 = vmul.f32 %v3732, %v4111
        %v4175 = vmul.f32 %v3733, %v4112
        %v4176 = vmul.f32 %v3734, %v4113
        %v4177 = vmul.f32 %v3735, %v4114
        %v4178 = vmul.f32 %v3736, %v4115
        %v4179 = vmul.f32 %v3737, %v4116
        %v4180 = vmul.f32 %v3738, %v4117
        %v4181 = vmul.f32 %v3739, %v4118
        %v4182 = vmul.f32 %v3740, %v4119
        %v4183 = vmul.f32 %v3741, %v4120
        %v4184 = vmul.f32 %v3742, %v4121
        %v4185 = vmul.f32 %v3743, %v4122
        %v4186 = vmul.f32 %v3744, %v4123
        %v4187 = vmul.f32 %v3745, %v4124
        %v4188 = vmul.f32 %v3746, %v4125
        %v4189 = vmul.f32 %v3747, %v4126
        %v4190 = vmul.f32 %v3748, %v4127
        %v4191 = vmul.f32 %v3749, %v4128
        %v4192 = vmul.f32 %v3750, %v4129
        %v4193 = vmul.f32 %v3751, %v4130
        %v4194 = vmul.f32 %v3752, %v4131
        %v4195 = vmul.f32 %v3753, %v4132
        %v4196 = vmul.f32 %v3754, %v4133
        %v4197 = vmul.f32 %v3755, %v4134
        %v4198 = vmul.f32 %v3756, %v4135
        %v4199 = vmul.f32 %v3757, %v4136
        %v4200 = vmul.f32 %v3758, %v4137
        %v4201 = vmul.f32 %v3759, %v4138
        %v4202 = vmul.f32 %v3760, %v4139
        %v4203 = vmul.f32 %v3761, %v4140
        %v4204 = vmul.f32 %v3762, %v4141
        %v4205 = vmul.f32 %v3763, %v4142
        %v4206 = vmul.f32 %v3764, %v4143
        %v4207 = vmul.f32 %v3765, %v4144
        %v4208 = vmul.f32 %v3766, %v4145
        %v4209 = vmul.f32 %v3767, %v4146
        %v4210 = vmul.f32 %v3768, %v4147
        %v4211 = vmul.f32 %v3769, %v4148
        %v4212 = vmul.f32 %v3770, %v4149
        %v4213 = vmul.f32 %v3771, %v4150
        %v4214 = vmul.f32 %v3772, %v4151
        %v4215 = vmul.f32 %v3773, %v4152
        %v4216 = vmul.f32 %v3774, %v4153
        %v4217 = vmul.f32 %v3775, %v4154
        %v4218 = vmul.f32 %v3776, %v4155
        %v4219 = vmul.f32 %v3777, %v4156
        %v4220 = vmul.f32 %v3778, %v4157
        %v4221 = vmul.f32 %v3779, %v4158
        %v4222 = vmul.f32 %v3780, %v4159
        %v4223 = vmul.f32 %v3781, %v4160
        %v4224 = vmul.f32 %v3782, %v4161
        %v4225 = vmul.f32 %v3783, %v4162
        %v4226 = vmul.f32 %v3784, %v4163
        %v4227 = vmul.f32 %v3785, %v4164
        %v4228 = vmul.f32 %v3786, %v4165
        %v4229 = vmul.f32 %v3787, %v4166
        %v4230 = vmul.f32 %v3788, %v4167
        %v4231 = vstv %s2838
        %v4232 = vsub.f32 %v4231, %v4168
        %v4233 = vsub.f32 %v4231, %v4169
        %v4234 = vsub.f32 %v4231, %v4170
        %v4235 = vsub.f32 %v4231, %v4171
        %v4236 = vsub.f32 %v4231, %v4172
        %v4237 = vsub.f32 %v4231, %v4173
        %v4238 = vsub.f32 %v4231, %v4174
        %v4239 = vsub.f32 %v4231, %v4175
        %v4240 = vsub.f32 %v4231, %v4176
        %v4241 = vsub.f32 %v4231, %v4177
        %v4242 = vsub.f32 %v4231, %v4178
        %v4243 = vsub.f32 %v4231, %v4179
        %v4244 = vsub.f32 %v4231, %v4180
        %v4245 = vsub.f32 %v4231, %v4181
        %v4246 = vsub.f32 %v4231, %v4182
        %v4247 = vsub.f32 %v4231, %v4183
        %v4248 = vsub.f32 %v4231, %v4184
        %v4249 = vsub.f32 %v4231, %v4185
        %v4250 = vsub.f32 %v4231, %v4186
        %v4251 = vsub.f32 %v4231, %v4187
        %v4252 = vsub.f32 %v4231, %v4188
        %v4253 = vsub.f32 %v4231, %v4189
        %v4254 = vsub.f32 %v4231, %v4190
        %v4255 = vsub.f32 %v4231, %v4191
        %v4256 = vsub.f32 %v4231, %v4192
        %v4257 = vsub.f32 %v4231, %v4193
        %v4258 = vsub.f32 %v4231, %v4194
        %v4259 = vsub.f32 %v4231, %v4195
        %v4260 = vsub.f32 %v4231, %v4196
        %v4261 = vsub.f32 %v4231, %v4197
        %v4262 = vsub.f32 %v4231, %v4198
        %v4263 = vsub.f32 %v4231, %v4199
        %v4264 = vsub.f32 %v4231, %v4200
        %v4265 = vsub.f32 %v4231, %v4201
        %v4266 = vsub.f32 %v4231, %v4202
        %v4267 = vsub.f32 %v4231, %v4203
        %v4268 = vsub.f32 %v4231, %v4204
        %v4269 = vsub.f32 %v4231, %v4205
        %v4270 = vsub.f32 %v4231, %v4206
        %v4271 = vsub.f32 %v4231, %v4207
        %v4272 = vsub.f32 %v4231, %v4208
        %v4273 = vsub.f32 %v4231, %v4209
        %v4274 = vsub.f32 %v4231, %v4210
        %v4275 = vsub.f32 %v4231, %v4211
        %v4276 = vsub.f32 %v4231, %v4212
        %v4277 = vsub.f32 %v4231, %v4213
        %v4278 = vsub.f32 %v4231, %v4214
        %v4279 = vsub.f32 %v4231, %v4215
        %v4280 = vsub.f32 %v4231, %v4216
        %v4281 = vsub.f32 %v4231, %v4217
        %v4282 = vsub.f32 %v4231, %v4218
        %v4283 = vsub.f32 %v4231, %v4219
        %v4284 = vsub.f32 %v4231, %v4220
        %v4285 = vsub.f32 %v4231, %v4221
        %v4286 = vsub.f32 %v4231, %v4222
        %v4287 = vsub.f32 %v4231, %v4223
        %v4288 = vsub.f32 %v4231, %v4224
        %v4289 = vsub.f32 %v4231, %v4225
        %v4290 = vsub.f32 %v4231, %v4226
        %v4291 = vsub.f32 %v4231, %v4227
        %v4292 = vsub.f32 %v4231, %v4228
        %v4293 = vsub.f32 %v4231, %v4229
        %v4294 = vsub.f32 %v4231, %v4230
        %v4295 = vmul.f32 %v3221, %v4105
        %v4296 = vmul.f32 %v3222, %v4106
        %v4297 = vmul.f32 %v3223, %v4107
        %v4298 = vmul.f32 %v3224, %v4108
        %v4299 = vmul.f32 %v3225, %v4109
        %v4300 = vmul.f32 %v3226, %v4110
        %v4301 = vmul.f32 %v3227, %v4111
        %v4302 = vmul.f32 %v3228, %v4112
        %v4303 = vmul.f32 %v3229, %v4113
        %v4304 = vmul.f32 %v3230, %v4114
        %v4305 = vmul.f32 %v3231, %v4115
        %v4306 = vmul.f32 %v3232, %v4116
        %v4307 = vmul.f32 %v3233, %v4117
        %v4308 = vmul.f32 %v3234, %v4118
        %v4309 = vmul.f32 %v3235, %v4119
        %v4310 = vmul.f32 %v3236, %v4120
        %v4311 = vmul.f32 %v3237, %v4121
        %v4312 = vmul.f32 %v3238, %v4122
        %v4313 = vmul.f32 %v3239, %v4123
        %v4314 = vmul.f32 %v3240, %v4124
        %v4315 = vmul.f32 %v3241, %v4125
        %v4316 = vmul.f32 %v3242, %v4126
        %v4317 = vmul.f32 %v3243, %v4127
        %v4318 = vmul.f32 %v3244, %v4128
        %v4319 = vmul.f32 %v3245, %v4129
        %v4320 = vmul.f32 %v3246, %v4130
        %v4321 = vmul.f32 %v3247, %v4131
        %v4322 = vmul.f32 %v3248, %v4132
        %v4323 = vmul.f32 %v3249, %v4133
        %v4324 = vmul.f32 %v3250, %v4134
        %v4325 = vmul.f32 %v3251, %v4135
        %v4326 = vmul.f32 %v3252, %v4136
        %v4327 = vmul.f32 %v3253, %v4137
        %v4328 = vmul.f32 %v3254, %v4138
        %v4329 = vmul.f32 %v3255, %v4139
        %v4330 = vmul.f32 %v3256, %v4140
        %v4331 = vmul.f32 %v3257, %v4141
        %v4332 = vmul.f32 %v3258, %v4142
        %v4333 = vmul.f32 %v3259, %v4143
        %v4334 = vmul.f32 %v3260, %v4144
        %v4335 = vmul.f32 %v3261, %v4145
        %v4336 = vmul.f32 %v3262, %v4146
        %v4337 = vmul.f32 %v3263, %v4147
        %v4338 = vmul.f32 %v3264, %v4148
        %v4339 = vmul.f32 %v3265, %v4149
        %v4340 = vmul.f32 %v3266, %v4150
        %v4341 = vmul.f32 %v3267, %v4151
        %v4342 = vmul.f32 %v3268, %v4152
        %v4343 = vmul.f32 %v3269, %v4153
        %v4344 = vmul.f32 %v3270, %v4154
        %v4345 = vmul.f32 %v3271, %v4155
        %v4346 = vmul.f32 %v3272, %v4156
        %v4347 = vmul.f32 %v3273, %v4157
        %v4348 = vmul.f32 %v3274, %v4158
        %v4349 = vmul.f32 %v3275, %v4159
        %v4350 = vmul.f32 %v3276, %v4160
        %v4351 = vmul.f32 %v3277, %v4161
        %v4352 = vmul.f32 %v3278, %v4162
        %v4353 = vmul.f32 %v3279, %v4163
        %v4354 = vmul.f32 %v3280, %v4164
        %v4355 = vmul.f32 %v3281, %v4165
        %v4356 = vmul.f32 %v3282, %v4166
        %v4357 = vmul.f32 %v3283, %v4167
        %v4358 = vadd.f32 %v4295, %v4232
        %v4359 = vadd.f32 %v4296, %v4233
        %v4360 = vadd.f32 %v4297, %v4234
        %v4361 = vadd.f32 %v4298, %v4235
        %v4362 = vadd.f32 %v4299, %v4236
        %v4363 = vadd.f32 %v4300, %v4237
        %v4364 = vadd.f32 %v4301, %v4238
        %v4365 = vadd.f32 %v4302, %v4239
        %v4366 = vadd.f32 %v4303, %v4240
        %v4367 = vadd.f32 %v4304, %v4241
        %v4368 = vadd.f32 %v4305, %v4242
        %v4369 = vadd.f32 %v4306, %v4243
        %v4370 = vadd.f32 %v4307, %v4244
        %v4371 = vadd.f32 %v4308, %v4245
        %v4372 = vadd.f32 %v4309, %v4246
        %v4373 = vadd.f32 %v4310, %v4247
        %v4374 = vadd.f32 %v4311, %v4248
        %v4375 = vadd.f32 %v4312, %v4249
        %v4376 = vadd.f32 %v4313, %v4250
        %v4377 = vadd.f32 %v4314, %v4251
        %v4378 = vadd.f32 %v4315, %v4252
        %v4379 = vadd.f32 %v4316, %v4253
        %v4380 = vadd.f32 %v4317, %v4254
        %v4381 = vadd.f32 %v4318, %v4255
        %v4382 = vadd.f32 %v4319, %v4256
        %v4383 = vadd.f32 %v4320, %v4257
        %v4384 = vadd.f32 %v4321, %v4258
        %v4385 = vadd.f32 %v4322, %v4259
        %v4386 = vadd.f32 %v4323, %v4260
        %v4387 = vadd.f32 %v4324, %v4261
        %v4388 = vadd.f32 %v4325, %v4262
        %v4389 = vadd.f32 %v4326, %v4263
        %v4390 = vadd.f32 %v4327, %v4264
        %v4391 = vadd.f32 %v4328, %v4265
        %v4392 = vadd.f32 %v4329, %v4266
        %v4393 = vadd.f32 %v4330, %v4267
        %v4394 = vadd.f32 %v4331, %v4268
        %v4395 = vadd.f32 %v4332, %v4269
        %v4396 = vadd.f32 %v4333, %v4270
        %v4397 = vadd.f32 %v4334, %v4271
        %v4398 = vadd.f32 %v4335, %v4272
        %v4399 = vadd.f32 %v4336, %v4273
        %v4400 = vadd.f32 %v4337, %v4274
        %v4401 = vadd.f32 %v4338, %v4275
        %v4402 = vadd.f32 %v4339, %v4276
        %v4403 = vadd.f32 %v4340, %v4277
        %v4404 = vadd.f32 %v4341, %v4278
        %v4405 = vadd.f32 %v4342, %v4279
        %v4406 = vadd.f32 %v4343, %v4280
        %v4407 = vadd.f32 %v4344, %v4281
        %v4408 = vadd.f32 %v4345, %v4282
        %v4409 = vadd.f32 %v4346, %v4283
        %v4410 = vadd.f32 %v4347, %v4284
        %v4411 = vadd.f32 %v4348, %v4285
        %v4412 = vadd.f32 %v4349, %v4286
        %v4413 = vadd.f32 %v4350, %v4287
        %v4414 = vadd.f32 %v4351, %v4288
        %v4415 = vadd.f32 %v4352, %v4289
        %v4416 = vadd.f32 %v4353, %v4290
        %v4417 = vadd.f32 %v4354, %v4291
        %v4418 = vadd.f32 %v4355, %v4292
        %v4419 = vadd.f32 %v4356, %v4293
        %v4420 = vadd.f32 %v4357, %v4294
        %v4421 = vmax.f32 %v4358, 0.0
        %v4422 = vmax.f32 %v4359, 0.0
        %v4423 = vmax.f32 %v4360, 0.0
        %v4424 = vmax.f32 %v4361, 0.0
        %v4425 = vmax.f32 %v4362, 0.0
        %v4426 = vmax.f32 %v4363, 0.0
        %v4427 = vmax.f32 %v4364, 0.0
        %v4428 = vmax.f32 %v4365, 0.0
        %v4429 = vmax.f32 %v4366, 0.0
        %v4430 = vmax.f32 %v4367, 0.0
        %v4431 = vmax.f32 %v4368, 0.0
        %v4432 = vmax.f32 %v4369, 0.0
        %v4433 = vmax.f32 %v4370, 0.0
        %v4434 = vmax.f32 %v4371, 0.0
        %v4435 = vmax.f32 %v4372, 0.0
        %v4436 = vmax.f32 %v4373, 0.0
        %v4437 = vmax.f32 %v4374, 0.0
        %v4438 = vmax.f32 %v4375, 0.0
        %v4439 = vmax.f32 %v4376, 0.0
        %v4440 = vmax.f32 %v4377, 0.0
        %v4441 = vmax.f32 %v4378, 0.0
        %v4442 = vmax.f32 %v4379, 0.0
        %v4443 = vmax.f32 %v4380, 0.0
        %v4444 = vmax.f32 %v4381, 0.0
        %v4445 = vmax.f32 %v4382, 0.0
        %v4446 = vmax.f32 %v4383, 0.0
        %v4447 = vmax.f32 %v4384, 0.0
        %v4448 = vmax.f32 %v4385, 0.0
        %v4449 = vmax.f32 %v4386, 0.0
        %v4450 = vmax.f32 %v4387, 0.0
        %v4451 = vmax.f32 %v4388, 0.0
        %v4452 = vmax.f32 %v4389, 0.0
        %v4453 = vmax.f32 %v4390, 0.0
        %v4454 = vmax.f32 %v4391, 0.0
        %v4455 = vmax.f32 %v4392, 0.0
        %v4456 = vmax.f32 %v4393, 0.0
        %v4457 = vmax.f32 %v4394, 0.0
        %v4458 = vmax.f32 %v4395, 0.0
        %v4459 = vmax.f32 %v4396, 0.0
        %v4460 = vmax.f32 %v4397, 0.0
        %v4461 = vmax.f32 %v4398, 0.0
        %v4462 = vmax.f32 %v4399, 0.0
        %v4463 = vmax.f32 %v4400, 0.0
        %v4464 = vmax.f32 %v4401, 0.0
        %v4465 = vmax.f32 %v4402, 0.0
        %v4466 = vmax.f32 %v4403, 0.0
        %v4467 = vmax.f32 %v4404, 0.0
        %v4468 = vmax.f32 %v4405, 0.0
        %v4469 = vmax.f32 %v4406, 0.0
        %v4470 = vmax.f32 %v4407, 0.0
        %v4471 = vmax.f32 %v4408, 0.0
        %v4472 = vmax.f32 %v4409, 0.0
        %v4473 = vmax.f32 %v4410, 0.0
        %v4474 = vmax.f32 %v4411, 0.0
        %v4475 = vmax.f32 %v4412, 0.0
        %v4476 = vmax.f32 %v4413, 0.0
        %v4477 = vmax.f32 %v4414, 0.0
        %v4478 = vmax.f32 %v4415, 0.0
        %v4479 = vmax.f32 %v4416, 0.0
        %v4480 = vmax.f32 %v4417, 0.0
        %v4481 = vmax.f32 %v4418, 0.0
        %v4482 = vmax.f32 %v4419, 0.0
        %v4483 = vmax.f32 %v4420, 0.0
        %v4484 = vpack.c.bf16 %v4422, %v4421
        %v4485 = vpack.c.bf16 %v4424, %v4423
        %v4486 = vpack.c.bf16 %v4426, %v4425
        %v4487 = vpack.c.bf16 %v4428, %v4427
        %v4488 = vpack.c.bf16 %v4430, %v4429
        %v4489 = vpack.c.bf16 %v4432, %v4431
        %v4490 = vpack.c.bf16 %v4434, %v4433
        %v4491 = vpack.c.bf16 %v4436, %v4435
        %v4492 = vpack.c.bf16 %v4438, %v4437
        %v4493 = vpack.c.bf16 %v4440, %v4439
        %v4494 = vpack.c.bf16 %v4442, %v4441
        %v4495 = vpack.c.bf16 %v4444, %v4443
        %v4496 = vpack.c.bf16 %v4446, %v4445
        %v4497 = vpack.c.bf16 %v4448, %v4447
        %v4498 = vpack.c.bf16 %v4450, %v4449
        %v4499 = vpack.c.bf16 %v4452, %v4451
        %v4500 = vpack.c.bf16 %v4454, %v4453
        %v4501 = vpack.c.bf16 %v4456, %v4455
        %v4502 = vpack.c.bf16 %v4458, %v4457
        %v4503 = vpack.c.bf16 %v4460, %v4459
        %v4504 = vpack.c.bf16 %v4462, %v4461
        %v4505 = vpack.c.bf16 %v4464, %v4463
        %v4506 = vpack.c.bf16 %v4466, %v4465
        %v4507 = vpack.c.bf16 %v4468, %v4467
        %v4508 = vpack.c.bf16 %v4470, %v4469
        %v4509 = vpack.c.bf16 %v4472, %v4471
        %v4510 = vpack.c.bf16 %v4474, %v4473
        %v4511 = vpack.c.bf16 %v4476, %v4475
        %v4512 = vpack.c.bf16 %v4478, %v4477
        %v4513 = vpack.c.bf16 %v4480, %v4479
        %v4514 = vpack.c.bf16 %v4482, %v4481
        %v4515 = vpack.c.bf16 %v4483, %v4483
        %v4516 = vld [vmem:[%s3 + $0x10] sm:$0xf]
        %v4517 = vld [vmem:[%s3 + $0x14] sm:$0xf]
        %v4518 = vld [vmem:[%s3 + $0x18] sm:$0xf]
        %v4519 = vld [vmem:[%s3 + $0x1c] sm:$0xf]
        %v4520 = vld [vmem:[%s3 + $0x20] sm:$0xf]
        %v4521 = vld [vmem:[%s3 + $0x24] sm:$0xf]
        %v4522 = vld [vmem:[%s3 + $0x28] sm:$0xf]
        %v4523 = vld [vmem:[%s3 + $0x2c] sm:$0xf]
        %v4532 = vunpack.c.l.b16 %v4516
        %v4533 = vunpack.c.l.b16 %v4517
        %v4534 = vunpack.c.l.b16 %v4518
        %v4535 = vunpack.c.l.b16 %v4519
        %v4536 = vunpack.c.l.b16 %v4520
        %v4537 = vunpack.c.l.b16 %v4521
        %v4538 = vunpack.c.l.b16 %v4522
        %v4539 = vunpack.c.l.b16 %v4523
        %v4540 = vpack.c.b16 %v4533, %v4532
        %v4541 = vpack.c.b16 %v4535, %v4534
        %v4542 = vpack.c.b16 %v4537, %v4536
        %v4543 = vpack.c.b16 %v4539, %v4538
        %v4549 = vsel %vm3284, %v4484, 0
        %v4552 = vsel %vm3284, %v4485, 0
        %v4555 = vsel %vm3284, %v4486, 0
        %v4558 = vsel %vm3284, %v4487, 0
        %v4561 = vsel %vm3284, %v4488, 0
        %v4564 = vsel %vm3284, %v4489, 0
        %v4567 = vsel %vm3284, %v4490, 0
        %v4570 = vsel %vm3284, %v4491, 0
        %v4573 = vsel %vm3284, %v4492, 0
        %v4576 = vsel %vm3284, %v4493, 0
        %v4579 = vsel %vm3284, %v4494, 0
        %v4582 = vsel %vm3284, %v4495, 0
        %v4585 = vsel %vm3284, %v4496, 0
        %v4588 = vsel %vm3284, %v4497, 0
        %v4591 = vsel %vm3284, %v4498, 0
        %v4594 = vsel %vm3284, %v4499, 0
        %v4597 = vsel %vm3284, %v4500, 0
        %v4600 = vsel %vm3284, %v4501, 0
        %v4603 = vsel %vm3284, %v4502, 0
        %v4606 = vsel %vm3284, %v4503, 0
        %v4609 = vsel %vm3284, %v4504, 0
        %v4612 = vsel %vm3284, %v4505, 0
        %v4615 = vsel %vm3284, %v4506, 0
        %v4618 = vsel %vm3284, %v4507, 0
        %v4621 = vsel %vm3284, %v4508, 0
        %v4624 = vsel %vm3284, %v4509, 0
        %v4627 = vsel %vm3284, %v4510, 0
        %v4630 = vsel %vm3284, %v4511, 0
        %v4633 = vsel %vm3284, %v4512, 0
        %v4636 = vsel %vm3284, %v4513, 0
        %v4639 = vsel %vm3284, %v4514, 0
        %v4642 = vsel %vm3284, %v4515, 0
        %4644 = vmatprep.subr.bf16.mxu0 0
        %4645 = vmatpush1.bf16.msra.mxu0 %v4540
        %4646 = vmatprep.subr.bf16.mxu0 0
        %4647 = vmatpush1.bf16.msra.mxu0 %v4541
        %4648 = vmatprep.subr.bf16.mxu0 0
        %4649 = vmatpush1.bf16.msra.mxu0 %v4542
        %4650 = vmatprep.subr.bf16.mxu0 0
        %4651 = vmatpush1.bf16.msra.mxu0 %v4543
        %4652 = vmatprep.subr.bf16.mxu0 0
        %4653 = vmatpush1.bf16.msra.mxu0 0
        %4654 = vmatprep.subr.bf16.mxu0 0
        %4655 = vmatpush1.bf16.msra.mxu0 0
        %4656 = vmatprep.subr.bf16.mxu0 0
        %4657 = vmatpush1.bf16.msra.mxu0 0
        %4658 = vmatprep.subr.bf16.mxu0 0
        %4659 = vmatpush1.bf16.msra.mxu0 0
        %4660 = vmatprep.subr.bf16.mxu0 0
        %4661 = vmatpush1.bf16.msra.mxu0 0
        %4662 = vmatprep.subr.bf16.mxu0 0
        %4663 = vmatpush1.bf16.msra.mxu0 0
        %4664 = vmatprep.subr.bf16.mxu0 0
        %4665 = vmatpush1.bf16.msra.mxu0 0
        %4666 = vmatprep.subr.bf16.mxu0 0
        %4667 = vmatpush1.bf16.msra.mxu0 0
        %4668 = vmatprep.subr.bf16.mxu0 0
        %4669 = vmatpush1.bf16.msra.mxu0 0
        %4670 = vmatprep.subr.bf16.mxu0 0
        %4671 = vmatpush1.bf16.msra.mxu0 0
        %4672 = vmatprep.subr.bf16.mxu0 0
        %4673 = vmatpush1.bf16.msra.mxu0 0
        %4674 = vmatprep.subr.bf16.mxu0 0
        %4675 = vmatpush1.bf16.msra.mxu0 0
        %4676 = vmatprep.mubr.bf16.mxu0 0
        %4677 = vmatmul.mubr.bf16.gmra.mrb[0].mxu0 %v4549
        %v4678 = vpop.f32.mrb[0].mxu0
        %v4679 = vadd.f32 0.0, %v4678
        %v4680 = vpop.f32.mrb[0].mxu0
        %v4681 = vpop.f32.mrb[0].mxu0
        %v4682 = vadd.f32 0.0, %v4681
        %v4683 = vpop.f32.mrb[0].mxu0
        %4684 = vmatprep.mubr.bf16.mxu0 0
        %4685 = vmatmul.mubr.bf16.gmra.mrb[0].mxu0 %v4552
        %v4686 = vpop.f32.mrb[0].mxu0
        %v4687 = vadd.f32 0.0, %v4686
        %v4688 = vpop.f32.mrb[0].mxu0
        %v4689 = vpop.f32.mrb[0].mxu0
        %v4690 = vadd.f32 0.0, %v4689
        %v4691 = vpop.f32.mrb[0].mxu0
        %4692 = vmatprep.mubr.bf16.mxu0 0
        %4693 = vmatmul.mubr.bf16.gmra.mrb[0].mxu0 %v4555
        %v4694 = vpop.f32.mrb[0].mxu0
        %v4695 = vadd.f32 0.0, %v4694
        %v4696 = vpop.f32.mrb[0].mxu0
        %v4697 = vpop.f32.mrb[0].mxu0
        %v4698 = vadd.f32 0.0, %v4697
        %v4699 = vpop.f32.mrb[0].mxu0
        %4700 = vmatprep.mubr.bf16.mxu0 0
        %4701 = vmatmul.mubr.bf16.gmra.mrb[0].mxu0 %v4558
        %v4702 = vpop.f32.mrb[0].mxu0
        %v4703 = vadd.f32 0.0, %v4702
        %v4704 = vpop.f32.mrb[0].mxu0
        %v4705 = vpop.f32.mrb[0].mxu0
        %v4706 = vadd.f32 0.0, %v4705
        %v4707 = vpop.f32.mrb[0].mxu0
        %4708 = vmatprep.mubr.bf16.mxu0 0
        %4709 = vmatmul.mubr.bf16.gmra.mrb[0].mxu0 %v4561
        %v4710 = vpop.f32.mrb[0].mxu0
        %v4711 = vadd.f32 0.0, %v4710
        %v4712 = vpop.f32.mrb[0].mxu0
        %v4713 = vpop.f32.mrb[0].mxu0
        %v4714 = vadd.f32 0.0, %v4713
        %v4715 = vpop.f32.mrb[0].mxu0
        %4716 = vmatprep.mubr.bf16.mxu0 0
        %4717 = vmatmul.mubr.bf16.gmra.mrb[0].mxu0 %v4564
        %v4718 = vpop.f32.mrb[0].mxu0
        %v4719 = vadd.f32 0.0, %v4718
        %v4720 = vpop.f32.mrb[0].mxu0
        %v4721 = vpop.f32.mrb[0].mxu0
        %v4722 = vadd.f32 0.0, %v4721
        %v4723 = vpop.f32.mrb[0].mxu0
        %4724 = vmatprep.mubr.bf16.mxu0 0
        %4725 = vmatmul.mubr.bf16.gmra.mrb[0].mxu0 %v4567
        %v4726 = vpop.f32.mrb[0].mxu0
        %v4727 = vadd.f32 0.0, %v4726
        %v4728 = vpop.f32.mrb[0].mxu0
        %v4729 = vpop.f32.mrb[0].mxu0
        %v4730 = vadd.f32 0.0, %v4729
        %v4731 = vpop.f32.mrb[0].mxu0
        %4732 = vmatprep.mubr.bf16.mxu0 0
        %4733 = vmatmul.mubr.bf16.gmra.mrb[0].mxu0 %v4570
        %v4734 = vpop.f32.mrb[0].mxu0
        %v4735 = vadd.f32 0.0, %v4734
        %v4736 = vpop.f32.mrb[0].mxu0
        %v4737 = vpop.f32.mrb[0].mxu0
        %v4738 = vadd.f32 0.0, %v4737
        %v4739 = vpop.f32.mrb[0].mxu0
        %4740 = vmatprep.mubr.bf16.mxu0 0
        %4741 = vmatmul.mubr.bf16.gmra.mrb[0].mxu0 %v4573
        %v4742 = vpop.f32.mrb[0].mxu0
        %v4743 = vadd.f32 0.0, %v4742
        %v4744 = vpop.f32.mrb[0].mxu0
        %v4745 = vpop.f32.mrb[0].mxu0
        %v4746 = vadd.f32 0.0, %v4745
        %v4747 = vpop.f32.mrb[0].mxu0
        %4748 = vmatprep.mubr.bf16.mxu0 0
        %4749 = vmatmul.mubr.bf16.gmra.mrb[0].mxu0 %v4576
        %v4750 = vpop.f32.mrb[0].mxu0
        %v4751 = vadd.f32 0.0, %v4750
        %v4752 = vpop.f32.mrb[0].mxu0
        %v4753 = vpop.f32.mrb[0].mxu0
        %v4754 = vadd.f32 0.0, %v4753
        %v4755 = vpop.f32.mrb[0].mxu0
        %4756 = vmatprep.mubr.bf16.mxu0 0
        %4757 = vmatmul.mubr.bf16.gmra.mrb[0].mxu0 %v4579
        %v4758 = vpop.f32.mrb[0].mxu0
        %v4759 = vadd.f32 0.0, %v4758
        %v4760 = vpop.f32.mrb[0].mxu0
        %v4761 = vpop.f32.mrb[0].mxu0
        %v4762 = vadd.f32 0.0, %v4761
        %v4763 = vpop.f32.mrb[0].mxu0
        %4764 = vmatprep.mubr.bf16.mxu0 0
        %4765 = vmatmul.mubr.bf16.gmra.mrb[0].mxu0 %v4582
        %v4766 = vpop.f32.mrb[0].mxu0
        %v4767 = vadd.f32 0.0, %v4766
        %v4768 = vpop.f32.mrb[0].mxu0
        %v4769 = vpop.f32.mrb[0].mxu0
        %v4770 = vadd.f32 0.0, %v4769
        %v4771 = vpop.f32.mrb[0].mxu0
        %4772 = vmatprep.mubr.bf16.mxu0 0
        %4773 = vmatmul.mubr.bf16.gmra.mrb[0].mxu0 %v4585
        %v4774 = vpop.f32.mrb[0].mxu0
        %v4775 = vadd.f32 0.0, %v4774
        %v4776 = vpop.f32.mrb[0].mxu0
        %v4777 = vpop.f32.mrb[0].mxu0
        %v4778 = vadd.f32 0.0, %v4777
        %v4779 = vpop.f32.mrb[0].mxu0
        %4780 = vmatprep.mubr.bf16.mxu0 0
        %4781 = vmatmul.mubr.bf16.gmra.mrb[0].mxu0 %v4588
        %v4782 = vpop.f32.mrb[0].mxu0
        %v4783 = vadd.f32 0.0, %v4782
        %v4784 = vpop.f32.mrb[0].mxu0
        %v4785 = vpop.f32.mrb[0].mxu0
        %v4786 = vadd.f32 0.0, %v4785
        %v4787 = vpop.f32.mrb[0].mxu0
        %4788 = vmatprep.mubr.bf16.mxu0 0
        %4789 = vmatmul.mubr.bf16.gmra.mrb[0].mxu0 %v4591
        %v4790 = vpop.f32.mrb[0].mxu0
        %v4791 = vadd.f32 0.0, %v4790
        %v4792 = vpop.f32.mrb[0].mxu0
        %v4793 = vpop.f32.mrb[0].mxu0
        %v4794 = vadd.f32 0.0, %v4793
        %v4795 = vpop.f32.mrb[0].mxu0
        %4796 = vmatprep.mubr.bf16.mxu0 0
        %4797 = vmatmul.mubr.bf16.gmra.mrb[0].mxu0 %v4594
        %v4798 = vpop.f32.mrb[0].mxu0
        %v4799 = vadd.f32 0.0, %v4798
        %v4800 = vpop.f32.mrb[0].mxu0
        %v4801 = vpop.f32.mrb[0].mxu0
        %v4802 = vadd.f32 0.0, %v4801
        %v4803 = vpop.f32.mrb[0].mxu0
        %4804 = vmatprep.mubr.bf16.mxu0 0
        %4805 = vmatmul.mubr.bf16.gmra.mrb[0].mxu0 %v4597
        %v4806 = vpop.f32.mrb[0].mxu0
        %v4807 = vadd.f32 0.0, %v4806
        %v4808 = vpop.f32.mrb[0].mxu0
        %v4809 = vpop.f32.mrb[0].mxu0
        %v4810 = vadd.f32 0.0, %v4809
        %v4811 = vpop.f32.mrb[0].mxu0
        %4812 = vmatprep.mubr.bf16.mxu0 0
        %4813 = vmatmul.mubr.bf16.gmra.mrb[0].mxu0 %v4600
        %v4814 = vpop.f32.mrb[0].mxu0
        %v4815 = vadd.f32 0.0, %v4814
        %v4816 = vpop.f32.mrb[0].mxu0
        %v4817 = vpop.f32.mrb[0].mxu0
        %v4818 = vadd.f32 0.0, %v4817
        %v4819 = vpop.f32.mrb[0].mxu0
        %4820 = vmatprep.mubr.bf16.mxu0 0
        %4821 = vmatmul.mubr.bf16.gmra.mrb[0].mxu0 %v4603
        %v4822 = vpop.f32.mrb[0].mxu0
        %v4823 = vadd.f32 0.0, %v4822
        %v4824 = vpop.f32.mrb[0].mxu0
        %v4825 = vpop.f32.mrb[0].mxu0
        %v4826 = vadd.f32 0.0, %v4825
        %v4827 = vpop.f32.mrb[0].mxu0
        %4828 = vmatprep.mubr.bf16.mxu0 0
        %4829 = vmatmul.mubr.bf16.gmra.mrb[0].mxu0 %v4606
        %v4830 = vpop.f32.mrb[0].mxu0
        %v4831 = vadd.f32 0.0, %v4830
        %v4832 = vpop.f32.mrb[0].mxu0
        %v4833 = vpop.f32.mrb[0].mxu0
        %v4834 = vadd.f32 0.0, %v4833
        %v4835 = vpop.f32.mrb[0].mxu0
        %4836 = vmatprep.mubr.bf16.mxu0 0
        %4837 = vmatmul.mubr.bf16.gmra.mrb[0].mxu0 %v4609
        %v4838 = vpop.f32.mrb[0].mxu0
        %v4839 = vadd.f32 0.0, %v4838
        %v4840 = vpop.f32.mrb[0].mxu0
        %v4841 = vpop.f32.mrb[0].mxu0
        %v4842 = vadd.f32 0.0, %v4841
        %v4843 = vpop.f32.mrb[0].mxu0
        %4844 = vmatprep.mubr.bf16.mxu0 0
        %4845 = vmatmul.mubr.bf16.gmra.mrb[0].mxu0 %v4612
        %v4846 = vpop.f32.mrb[0].mxu0
        %v4847 = vadd.f32 0.0, %v4846
        %v4848 = vpop.f32.mrb[0].mxu0
        %v4849 = vpop.f32.mrb[0].mxu0
        %v4850 = vadd.f32 0.0, %v4849
        %v4851 = vpop.f32.mrb[0].mxu0
        %4852 = vmatprep.mubr.bf16.mxu0 0
        %4853 = vmatmul.mubr.bf16.gmra.mrb[0].mxu0 %v4615
        %v4854 = vpop.f32.mrb[0].mxu0
        %v4855 = vadd.f32 0.0, %v4854
        %v4856 = vpop.f32.mrb[0].mxu0
        %v4857 = vpop.f32.mrb[0].mxu0
        %v4858 = vadd.f32 0.0, %v4857
        %v4859 = vpop.f32.mrb[0].mxu0
        %4860 = vmatprep.mubr.bf16.mxu0 0
        %4861 = vmatmul.mubr.bf16.gmra.mrb[0].mxu0 %v4618
        %v4862 = vpop.f32.mrb[0].mxu0
        %v4863 = vadd.f32 0.0, %v4862
        %v4864 = vpop.f32.mrb[0].mxu0
        %v4865 = vpop.f32.mrb[0].mxu0
        %v4866 = vadd.f32 0.0, %v4865
        %v4867 = vpop.f32.mrb[0].mxu0
        %4868 = vmatprep.mubr.bf16.mxu0 0
        %4869 = vmatmul.mubr.bf16.gmra.mrb[0].mxu0 %v4621
        %v4870 = vpop.f32.mrb[0].mxu0
        %v4871 = vadd.f32 0.0, %v4870
        %v4872 = vpop.f32.mrb[0].mxu0
        %v4873 = vpop.f32.mrb[0].mxu0
        %v4874 = vadd.f32 0.0, %v4873
        %v4875 = vpop.f32.mrb[0].mxu0
        %4876 = vmatprep.mubr.bf16.mxu0 0
        %4877 = vmatmul.mubr.bf16.gmra.mrb[0].mxu0 %v4624
        %v4878 = vpop.f32.mrb[0].mxu0
        %v4879 = vadd.f32 0.0, %v4878
        %v4880 = vpop.f32.mrb[0].mxu0
        %v4881 = vpop.f32.mrb[0].mxu0
        %v4882 = vadd.f32 0.0, %v4881
        %v4883 = vpop.f32.mrb[0].mxu0
        %4884 = vmatprep.mubr.bf16.mxu0 0
        %4885 = vmatmul.mubr.bf16.gmra.mrb[0].mxu0 %v4627
        %v4886 = vpop.f32.mrb[0].mxu0
        %v4887 = vadd.f32 0.0, %v4886
        %v4888 = vpop.f32.mrb[0].mxu0
        %v4889 = vpop.f32.mrb[0].mxu0
        %v4890 = vadd.f32 0.0, %v4889
        %v4891 = vpop.f32.mrb[0].mxu0
        %4892 = vmatprep.mubr.bf16.mxu0 0
        %4893 = vmatmul.mubr.bf16.gmra.mrb[0].mxu0 %v4630
        %v4894 = vpop.f32.mrb[0].mxu0
        %v4895 = vadd.f32 0.0, %v4894
        %v4896 = vpop.f32.mrb[0].mxu0
        %v4897 = vpop.f32.mrb[0].mxu0
        %v4898 = vadd.f32 0.0, %v4897
        %v4899 = vpop.f32.mrb[0].mxu0
        %4900 = vmatprep.mubr.bf16.mxu0 0
        %4901 = vmatmul.mubr.bf16.gmra.mrb[0].mxu0 %v4633
        %v4902 = vpop.f32.mrb[0].mxu0
        %v4903 = vadd.f32 0.0, %v4902
        %v4904 = vpop.f32.mrb[0].mxu0
        %v4905 = vpop.f32.mrb[0].mxu0
        %v4906 = vadd.f32 0.0, %v4905
        %v4907 = vpop.f32.mrb[0].mxu0
        %4908 = vmatprep.mubr.bf16.mxu0 0
        %4909 = vmatmul.mubr.bf16.gmra.mrb[0].mxu0 %v4636
        %v4910 = vpop.f32.mrb[0].mxu0
        %v4911 = vadd.f32 0.0, %v4910
        %v4912 = vpop.f32.mrb[0].mxu0
        %v4913 = vpop.f32.mrb[0].mxu0
        %v4914 = vadd.f32 0.0, %v4913
        %v4915 = vpop.f32.mrb[0].mxu0
        %4916 = vmatprep.mubr.bf16.mxu0 0
        %4917 = vmatmul.mubr.bf16.gmra.mrb[0].mxu0 %v4639
        %v4918 = vpop.f32.mrb[0].mxu0
        %v4919 = vadd.f32 0.0, %v4918
        %v4920 = vpop.f32.mrb[0].mxu0
        %v4921 = vpop.f32.mrb[0].mxu0
        %v4922 = vadd.f32 0.0, %v4921
        %v4923 = vpop.f32.mrb[0].mxu0
        %4924 = vmatprep.mubr.bf16.mxu0 0
        %4925 = vmatmul.mubr.bf16.gmra.mrb[0].mxu0 %v4642
        %v4926 = vpop.f32.mrb[0].mxu0
        %v4927 = vadd.f32 0.0, %v4926
        %v4928 = vpop.f32.mrb[0].mxu0
        %v4929 = vpop.f32.mrb[0].mxu0
        %v4930 = vpop.f32.mrb[0].mxu0
        %4931 = vdwg.mxu0
        %v4932 = vadd.f32 %v2580, %v4679
        %v4933 = vadd.f32 %v2583, %v4682
        %v4934 = vadd.f32 %v2588, %v4687
        %v4935 = vadd.f32 %v2591, %v4690
        %v4936 = vadd.f32 %v2596, %v4695
        %v4937 = vadd.f32 %v2599, %v4698
        %v4938 = vadd.f32 %v2604, %v4703
        %v4939 = vadd.f32 %v2607, %v4706
        %v4940 = vadd.f32 %v2612, %v4711
        %v4941 = vadd.f32 %v2615, %v4714
        %v4942 = vadd.f32 %v2620, %v4719
        %v4943 = vadd.f32 %v2623, %v4722
        %v4944 = vadd.f32 %v2628, %v4727
        %v4945 = vadd.f32 %v2631, %v4730
        %v4946 = vadd.f32 %v2636, %v4735
        %v4947 = vadd.f32 %v2639, %v4738
        %v4948 = vadd.f32 %v2644, %v4743
        %v4949 = vadd.f32 %v2647, %v4746
        %v4950 = vadd.f32 %v2652, %v4751
        %v4951 = vadd.f32 %v2655, %v4754
        %v4952 = vadd.f32 %v2660, %v4759
        %v4953 = vadd.f32 %v2663, %v4762
        %v4954 = vadd.f32 %v2668, %v4767
        %v4955 = vadd.f32 %v2671, %v4770
        %v4956 = vadd.f32 %v2676, %v4775
        %v4957 = vadd.f32 %v2679, %v4778
        %v4958 = vadd.f32 %v2684, %v4783
        %v4959 = vadd.f32 %v2687, %v4786
        %v4960 = vadd.f32 %v2692, %v4791
        %v4961 = vadd.f32 %v2695, %v4794
        %v4962 = vadd.f32 %v2700, %v4799
        %v4963 = vadd.f32 %v2703, %v4802
        %v4964 = vadd.f32 %v2708, %v4807
        %v4965 = vadd.f32 %v2711, %v4810
        %v4966 = vadd.f32 %v2716, %v4815
        %v4967 = vadd.f32 %v2719, %v4818
        %v4968 = vadd.f32 %v2724, %v4823
        %v4969 = vadd.f32 %v2727, %v4826
        %v4970 = vadd.f32 %v2732, %v4831
        %v4971 = vadd.f32 %v2735, %v4834
        %v4972 = vadd.f32 %v2740, %v4839
        %v4973 = vadd.f32 %v2743, %v4842
        %v4974 = vadd.f32 %v2748, %v4847
        %v4975 = vadd.f32 %v2751, %v4850
        %v4976 = vadd.f32 %v2756, %v4855
        %v4977 = vadd.f32 %v2759, %v4858
        %v4978 = vadd.f32 %v2764, %v4863
        %v4979 = vadd.f32 %v2767, %v4866
        %v4980 = vadd.f32 %v2772, %v4871
        %v4981 = vadd.f32 %v2775, %v4874
        %v4982 = vadd.f32 %v2780, %v4879
        %v4983 = vadd.f32 %v2783, %v4882
        %v4984 = vadd.f32 %v2788, %v4887
        %v4985 = vadd.f32 %v2791, %v4890
        %v4986 = vadd.f32 %v2796, %v4895
        %v4987 = vadd.f32 %v2799, %v4898
        %v4988 = vadd.f32 %v2804, %v4903
        %v4989 = vadd.f32 %v2807, %v4906
        %v4990 = vadd.f32 %v2812, %v4911
        %v4991 = vadd.f32 %v2815, %v4914
        %v4992 = vadd.f32 %v2820, %v4919
        %v4993 = vadd.f32 %v2823, %v4922
        %v4994 = vadd.f32 %v2828, %v4927
        %s4995 = sld [smem:[#allocation2 + $0x80]]
        %s4996 = sld [smem:[#allocation2 + $0x81]]
        %s4997 = sld [smem:[#allocation2 + $0x82]]
        %s4998 = sld [smem:[#allocation2 + $0x83]]
        %s4999 = sld [smem:[#allocation2 + $0x84]]
        %s5000 = sld [smem:[#allocation2 + $0x85]]
        %v5001 = vstv %s4995
        %v5002 = vmul.f32 %v5001, %v1373
        %v5003 = vmul.f32 %v5001, %v1374
        %v5004 = vmul.f32 %v5001, %v1375
        %v5005 = vmul.f32 %v5001, %v1376
        %v5006 = vmul.f32 %v5001, %v1377
        %v5007 = vmul.f32 %v5001, %v1378
        %v5008 = vmul.f32 %v5001, %v1379
        %v5009 = vmul.f32 %v5001, %v1380
        %v5010 = vmul.f32 %v5001, %v1381
        %v5011 = vmul.f32 %v5001, %v1382
        %v5012 = vmul.f32 %v5001, %v1383
        %v5013 = vmul.f32 %v5001, %v1384
        %v5014 = vmul.f32 %v5001, %v1385
        %v5015 = vmul.f32 %v5001, %v1386
        %v5016 = vmul.f32 %v5001, %v1387
        %v5017 = vmul.f32 %v5001, %v1388
        %v5018 = vmul.f32 %v5001, %v1389
        %v5019 = vmul.f32 %v5001, %v1390
        %v5020 = vmul.f32 %v5001, %v1391
        %v5021 = vmul.f32 %v5001, %v1392
        %v5022 = vmul.f32 %v5001, %v1393
        %v5023 = vmul.f32 %v5001, %v1394
        %v5024 = vmul.f32 %v5001, %v1395
        %v5025 = vmul.f32 %v5001, %v1396
        %v5026 = vmul.f32 %v5001, %v1397
        %v5027 = vmul.f32 %v5001, %v1398
        %v5028 = vmul.f32 %v5001, %v1399
        %v5029 = vmul.f32 %v5001, %v1400
        %v5030 = vmul.f32 %v5001, %v1401
        %v5031 = vmul.f32 %v5001, %v1402
        %v5032 = vmul.f32 %v5001, %v1403
        %v5033 = vmul.f32 %v5001, %v1404
        %v5034 = vmul.f32 %v5001, %v1405
        %v5035 = vmul.f32 %v5001, %v1406
        %v5036 = vmul.f32 %v5001, %v1407
        %v5037 = vmul.f32 %v5001, %v1408
        %v5038 = vmul.f32 %v5001, %v1409
        %v5039 = vmul.f32 %v5001, %v1410
        %v5040 = vmul.f32 %v5001, %v1411
        %v5041 = vmul.f32 %v5001, %v1412
        %v5042 = vmul.f32 %v5001, %v1413
        %v5043 = vmul.f32 %v5001, %v1414
        %v5044 = vmul.f32 %v5001, %v1415
        %v5045 = vmul.f32 %v5001, %v1416
        %v5046 = vmul.f32 %v5001, %v1417
        %v5047 = vmul.f32 %v5001, %v1418
        %v5048 = vmul.f32 %v5001, %v1419
        %v5049 = vmul.f32 %v5001, %v1420
        %v5050 = vmul.f32 %v5001, %v1421
        %v5051 = vmul.f32 %v5001, %v1422
        %v5052 = vmul.f32 %v5001, %v1423
        %v5053 = vmul.f32 %v5001, %v1424
        %v5054 = vmul.f32 %v5001, %v1425
        %v5055 = vmul.f32 %v5001, %v1426
        %v5056 = vmul.f32 %v5001, %v1427
        %v5057 = vmul.f32 %v5001, %v1428
        %v5058 = vmul.f32 %v5001, %v1429
        %v5059 = vmul.f32 %v5001, %v1430
        %v5060 = vmul.f32 %v5001, %v1431
        %v5061 = vmul.f32 %v5001, %v1432
        %v5062 = vmul.f32 %v5001, %v1433
        %v5063 = vmul.f32 %v5001, %v1434
        %v5064 = vmul.f32 %v5001, %v1435
        %v5065 = vstv %s4996
        %v5066 = vmul.f32 %v5065, %v1500
        %v5067 = vmul.f32 %v5065, %v1501
        %v5068 = vmul.f32 %v5065, %v1502
        %v5069 = vmul.f32 %v5065, %v1503
        %v5070 = vmul.f32 %v5065, %v1504
        %v5071 = vmul.f32 %v5065, %v1505
        %v5072 = vmul.f32 %v5065, %v1506
        %v5073 = vmul.f32 %v5065, %v1507
        %v5074 = vmul.f32 %v5065, %v1508
        %v5075 = vmul.f32 %v5065, %v1509
        %v5076 = vmul.f32 %v5065, %v1510
        %v5077 = vmul.f32 %v5065, %v1511
        %v5078 = vmul.f32 %v5065, %v1512
        %v5079 = vmul.f32 %v5065, %v1513
        %v5080 = vmul.f32 %v5065, %v1514
        %v5081 = vmul.f32 %v5065, %v1515
        %v5082 = vmul.f32 %v5065, %v1516
        %v5083 = vmul.f32 %v5065, %v1517
        %v5084 = vmul.f32 %v5065, %v1518
        %v5085 = vmul.f32 %v5065, %v1519
        %v5086 = vmul.f32 %v5065, %v1520
        %v5087 = vmul.f32 %v5065, %v1521
        %v5088 = vmul.f32 %v5065, %v1522
        %v5089 = vmul.f32 %v5065, %v1523
        %v5090 = vmul.f32 %v5065, %v1524
        %v5091 = vmul.f32 %v5065, %v1525
        %v5092 = vmul.f32 %v5065, %v1526
        %v5093 = vmul.f32 %v5065, %v1527
        %v5094 = vmul.f32 %v5065, %v1528
        %v5095 = vmul.f32 %v5065, %v1529
        %v5096 = vmul.f32 %v5065, %v1530
        %v5097 = vmul.f32 %v5065, %v1531
        %v5098 = vmul.f32 %v5065, %v1532
        %v5099 = vmul.f32 %v5065, %v1533
        %v5100 = vmul.f32 %v5065, %v1534
        %v5101 = vmul.f32 %v5065, %v1535
        %v5102 = vmul.f32 %v5065, %v1536
        %v5103 = vmul.f32 %v5065, %v1537
        %v5104 = vmul.f32 %v5065, %v1538
        %v5105 = vmul.f32 %v5065, %v1539
        %v5106 = vmul.f32 %v5065, %v1540
        %v5107 = vmul.f32 %v5065, %v1541
        %v5108 = vmul.f32 %v5065, %v1542
        %v5109 = vmul.f32 %v5065, %v1543
        %v5110 = vmul.f32 %v5065, %v1544
        %v5111 = vmul.f32 %v5065, %v1545
        %v5112 = vmul.f32 %v5065, %v1546
        %v5113 = vmul.f32 %v5065, %v1547
        %v5114 = vmul.f32 %v5065, %v1548
        %v5115 = vmul.f32 %v5065, %v1549
        %v5116 = vmul.f32 %v5065, %v1550
        %v5117 = vmul.f32 %v5065, %v1551
        %v5118 = vmul.f32 %v5065, %v1552
        %v5119 = vmul.f32 %v5065, %v1553
        %v5120 = vmul.f32 %v5065, %v1554
        %v5121 = vmul.f32 %v5065, %v1555
        %v5122 = vmul.f32 %v5065, %v1556
        %v5123 = vmul.f32 %v5065, %v1557
        %v5124 = vmul.f32 %v5065, %v1558
        %v5125 = vmul.f32 %v5065, %v1559
        %v5126 = vmul.f32 %v5065, %v1560
        %v5127 = vmul.f32 %v5065, %v1561
        %v5128 = vmul.f32 %v5065, %v1562
        %v5129 = vadd.f32 %v5002, %v5066
        %v5130 = vadd.f32 %v5003, %v5067
        %v5131 = vadd.f32 %v5004, %v5068
        %v5132 = vadd.f32 %v5005, %v5069
        %v5133 = vadd.f32 %v5006, %v5070
        %v5134 = vadd.f32 %v5007, %v5071
        %v5135 = vadd.f32 %v5008, %v5072
        %v5136 = vadd.f32 %v5009, %v5073
        %v5137 = vadd.f32 %v5010, %v5074
        %v5138 = vadd.f32 %v5011, %v5075
        %v5139 = vadd.f32 %v5012, %v5076
        %v5140 = vadd.f32 %v5013, %v5077
        %v5141 = vadd.f32 %v5014, %v5078
        %v5142 = vadd.f32 %v5015, %v5079
        %v5143 = vadd.f32 %v5016, %v5080
        %v5144 = vadd.f32 %v5017, %v5081
        %v5145 = vadd.f32 %v5018, %v5082
        %v5146 = vadd.f32 %v5019, %v5083
        %v5147 = vadd.f32 %v5020, %v5084
        %v5148 = vadd.f32 %v5021, %v5085
        %v5149 = vadd.f32 %v5022, %v5086
        %v5150 = vadd.f32 %v5023, %v5087
        %v5151 = vadd.f32 %v5024, %v5088
        %v5152 = vadd.f32 %v5025, %v5089
        %v5153 = vadd.f32 %v5026, %v5090
        %v5154 = vadd.f32 %v5027, %v5091
        %v5155 = vadd.f32 %v5028, %v5092
        %v5156 = vadd.f32 %v5029, %v5093
        %v5157 = vadd.f32 %v5030, %v5094
        %v5158 = vadd.f32 %v5031, %v5095
        %v5159 = vadd.f32 %v5032, %v5096
        %v5160 = vadd.f32 %v5033, %v5097
        %v5161 = vadd.f32 %v5034, %v5098
        %v5162 = vadd.f32 %v5035, %v5099
        %v5163 = vadd.f32 %v5036, %v5100
        %v5164 = vadd.f32 %v5037, %v5101
        %v5165 = vadd.f32 %v5038, %v5102
        %v5166 = vadd.f32 %v5039, %v5103
        %v5167 = vadd.f32 %v5040, %v5104
        %v5168 = vadd.f32 %v5041, %v5105
        %v5169 = vadd.f32 %v5042, %v5106
        %v5170 = vadd.f32 %v5043, %v5107
        %v5171 = vadd.f32 %v5044, %v5108
        %v5172 = vadd.f32 %v5045, %v5109
        %v5173 = vadd.f32 %v5046, %v5110
        %v5174 = vadd.f32 %v5047, %v5111
        %v5175 = vadd.f32 %v5048, %v5112
        %v5176 = vadd.f32 %v5049, %v5113
        %v5177 = vadd.f32 %v5050, %v5114
        %v5178 = vadd.f32 %v5051, %v5115
        %v5179 = vadd.f32 %v5052, %v5116
        %v5180 = vadd.f32 %v5053, %v5117
        %v5181 = vadd.f32 %v5054, %v5118
        %v5182 = vadd.f32 %v5055, %v5119
        %v5183 = vadd.f32 %v5056, %v5120
        %v5184 = vadd.f32 %v5057, %v5121
        %v5185 = vadd.f32 %v5058, %v5122
        %v5186 = vadd.f32 %v5059, %v5123
        %v5187 = vadd.f32 %v5060, %v5124
        %v5188 = vadd.f32 %v5061, %v5125
        %v5189 = vadd.f32 %v5062, %v5126
        %v5190 = vadd.f32 %v5063, %v5127
        %v5191 = vadd.f32 %v5064, %v5128
        %v5192 = vstv %s4997
        %v5193 = vmul.f32 %v5192, %v1627
        %v5194 = vmul.f32 %v5192, %v1628
        %v5195 = vmul.f32 %v5192, %v1629
        %v5196 = vmul.f32 %v5192, %v1630
        %v5197 = vmul.f32 %v5192, %v1631
        %v5198 = vmul.f32 %v5192, %v1632
        %v5199 = vmul.f32 %v5192, %v1633
        %v5200 = vmul.f32 %v5192, %v1634
        %v5201 = vmul.f32 %v5192, %v1635
        %v5202 = vmul.f32 %v5192, %v1636
        %v5203 = vmul.f32 %v5192, %v1637
        %v5204 = vmul.f32 %v5192, %v1638
        %v5205 = vmul.f32 %v5192, %v1639
        %v5206 = vmul.f32 %v5192, %v1640
        %v5207 = vmul.f32 %v5192, %v1641
        %v5208 = vmul.f32 %v5192, %v1642
        %v5209 = vmul.f32 %v5192, %v1643
        %v5210 = vmul.f32 %v5192, %v1644
        %v5211 = vmul.f32 %v5192, %v1645
        %v5212 = vmul.f32 %v5192, %v1646
        %v5213 = vmul.f32 %v5192, %v1647
        %v5214 = vmul.f32 %v5192, %v1648
        %v5215 = vmul.f32 %v5192, %v1649
        %v5216 = vmul.f32 %v5192, %v1650
        %v5217 = vmul.f32 %v5192, %v1651
        %v5218 = vmul.f32 %v5192, %v1652
        %v5219 = vmul.f32 %v5192, %v1653
        %v5220 = vmul.f32 %v5192, %v1654
        %v5221 = vmul.f32 %v5192, %v1655
        %v5222 = vmul.f32 %v5192, %v1656
        %v5223 = vmul.f32 %v5192, %v1657
        %v5224 = vmul.f32 %v5192, %v1658
        %v5225 = vmul.f32 %v5192, %v1659
        %v5226 = vmul.f32 %v5192, %v1660
        %v5227 = vmul.f32 %v5192, %v1661
        %v5228 = vmul.f32 %v5192, %v1662
        %v5229 = vmul.f32 %v5192, %v1663
        %v5230 = vmul.f32 %v5192, %v1664
        %v5231 = vmul.f32 %v5192, %v1665
        %v5232 = vmul.f32 %v5192, %v1666
        %v5233 = vmul.f32 %v5192, %v1667
        %v5234 = vmul.f32 %v5192, %v1668
        %v5235 = vmul.f32 %v5192, %v1669
        %v5236 = vmul.f32 %v5192, %v1670
        %v5237 = vmul.f32 %v5192, %v1671
        %v5238 = vmul.f32 %v5192, %v1672
        %v5239 = vmul.f32 %v5192, %v1673
        %v5240 = vmul.f32 %v5192, %v1674
        %v5241 = vmul.f32 %v5192, %v1675
        %v5242 = vmul.f32 %v5192, %v1676
        %v5243 = vmul.f32 %v5192, %v1677
        %v5244 = vmul.f32 %v5192, %v1678
        %v5245 = vmul.f32 %v5192, %v1679
        %v5246 = vmul.f32 %v5192, %v1680
        %v5247 = vmul.f32 %v5192, %v1681
        %v5248 = vmul.f32 %v5192, %v1682
        %v5249 = vmul.f32 %v5192, %v1683
        %v5250 = vmul.f32 %v5192, %v1684
        %v5251 = vmul.f32 %v5192, %v1685
        %v5252 = vmul.f32 %v5192, %v1686
        %v5253 = vmul.f32 %v5192, %v1687
        %v5254 = vmul.f32 %v5192, %v1688
        %v5255 = vmul.f32 %v5192, %v1689
        %v5256 = vadd.f32 %v5129, %v5193
        %v5257 = vadd.f32 %v5130, %v5194
        %v5258 = vadd.f32 %v5131, %v5195
        %v5259 = vadd.f32 %v5132, %v5196
        %v5260 = vadd.f32 %v5133, %v5197
        %v5261 = vadd.f32 %v5134, %v5198
        %v5262 = vadd.f32 %v5135, %v5199
        %v5263 = vadd.f32 %v5136, %v5200
        %v5264 = vadd.f32 %v5137, %v5201
        %v5265 = vadd.f32 %v5138, %v5202
        %v5266 = vadd.f32 %v5139, %v5203
        %v5267 = vadd.f32 %v5140, %v5204
        %v5268 = vadd.f32 %v5141, %v5205
        %v5269 = vadd.f32 %v5142, %v5206
        %v5270 = vadd.f32 %v5143, %v5207
        %v5271 = vadd.f32 %v5144, %v5208
        %v5272 = vadd.f32 %v5145, %v5209
        %v5273 = vadd.f32 %v5146, %v5210
        %v5274 = vadd.f32 %v5147, %v5211
        %v5275 = vadd.f32 %v5148, %v5212
        %v5276 = vadd.f32 %v5149, %v5213
        %v5277 = vadd.f32 %v5150, %v5214
        %v5278 = vadd.f32 %v5151, %v5215
        %v5279 = vadd.f32 %v5152, %v5216
        %v5280 = vadd.f32 %v5153, %v5217
        %v5281 = vadd.f32 %v5154, %v5218
        %v5282 = vadd.f32 %v5155, %v5219
        %v5283 = vadd.f32 %v5156, %v5220
        %v5284 = vadd.f32 %v5157, %v5221
        %v5285 = vadd.f32 %v5158, %v5222
        %v5286 = vadd.f32 %v5159, %v5223
        %v5287 = vadd.f32 %v5160, %v5224
        %v5288 = vadd.f32 %v5161, %v5225
        %v5289 = vadd.f32 %v5162, %v5226
        %v5290 = vadd.f32 %v5163, %v5227
        %v5291 = vadd.f32 %v5164, %v5228
        %v5292 = vadd.f32 %v5165, %v5229
        %v5293 = vadd.f32 %v5166, %v5230
        %v5294 = vadd.f32 %v5167, %v5231
        %v5295 = vadd.f32 %v5168, %v5232
        %v5296 = vadd.f32 %v5169, %v5233
        %v5297 = vadd.f32 %v5170, %v5234
        %v5298 = vadd.f32 %v5171, %v5235
        %v5299 = vadd.f32 %v5172, %v5236
        %v5300 = vadd.f32 %v5173, %v5237
        %v5301 = vadd.f32 %v5174, %v5238
        %v5302 = vadd.f32 %v5175, %v5239
        %v5303 = vadd.f32 %v5176, %v5240
        %v5304 = vadd.f32 %v5177, %v5241
        %v5305 = vadd.f32 %v5178, %v5242
        %v5306 = vadd.f32 %v5179, %v5243
        %v5307 = vadd.f32 %v5180, %v5244
        %v5308 = vadd.f32 %v5181, %v5245
        %v5309 = vadd.f32 %v5182, %v5246
        %v5310 = vadd.f32 %v5183, %v5247
        %v5311 = vadd.f32 %v5184, %v5248
        %v5312 = vadd.f32 %v5185, %v5249
        %v5313 = vadd.f32 %v5186, %v5250
        %v5314 = vadd.f32 %v5187, %v5251
        %v5315 = vadd.f32 %v5188, %v5252
        %v5316 = vadd.f32 %v5189, %v5253
        %v5317 = vadd.f32 %v5190, %v5254
        %v5318 = vadd.f32 %v5191, %v5255
        %v5319 = vstv %s4998
        %v5320 = vmul.f32 %v5319, %v1754
        %v5321 = vmul.f32 %v5319, %v1755
        %v5322 = vmul.f32 %v5319, %v1756
        %v5323 = vmul.f32 %v5319, %v1757
        %v5324 = vmul.f32 %v5319, %v1758
        %v5325 = vmul.f32 %v5319, %v1759
        %v5326 = vmul.f32 %v5319, %v1760
        %v5327 = vmul.f32 %v5319, %v1761
        %v5328 = vmul.f32 %v5319, %v1762
        %v5329 = vmul.f32 %v5319, %v1763
        %v5330 = vmul.f32 %v5319, %v1764
        %v5331 = vmul.f32 %v5319, %v1765
        %v5332 = vmul.f32 %v5319, %v1766
        %v5333 = vmul.f32 %v5319, %v1767
        %v5334 = vmul.f32 %v5319, %v1768
        %v5335 = vmul.f32 %v5319, %v1769
        %v5336 = vmul.f32 %v5319, %v1770
        %v5337 = vmul.f32 %v5319, %v1771
        %v5338 = vmul.f32 %v5319, %v1772
        %v5339 = vmul.f32 %v5319, %v1773
        %v5340 = vmul.f32 %v5319, %v1774
        %v5341 = vmul.f32 %v5319, %v1775
        %v5342 = vmul.f32 %v5319, %v1776
        %v5343 = vmul.f32 %v5319, %v1777
        %v5344 = vmul.f32 %v5319, %v1778
        %v5345 = vmul.f32 %v5319, %v1779
        %v5346 = vmul.f32 %v5319, %v1780
        %v5347 = vmul.f32 %v5319, %v1781
        %v5348 = vmul.f32 %v5319, %v1782
        %v5349 = vmul.f32 %v5319, %v1783
        %v5350 = vmul.f32 %v5319, %v1784
        %v5351 = vmul.f32 %v5319, %v1785
        %v5352 = vmul.f32 %v5319, %v1786
        %v5353 = vmul.f32 %v5319, %v1787
        %v5354 = vmul.f32 %v5319, %v1788
        %v5355 = vmul.f32 %v5319, %v1789
        %v5356 = vmul.f32 %v5319, %v1790
        %v5357 = vmul.f32 %v5319, %v1791
        %v5358 = vmul.f32 %v5319, %v1792
        %v5359 = vmul.f32 %v5319, %v1793
        %v5360 = vmul.f32 %v5319, %v1794
        %v5361 = vmul.f32 %v5319, %v1795
        %v5362 = vmul.f32 %v5319, %v1796
        %v5363 = vmul.f32 %v5319, %v1797
        %v5364 = vmul.f32 %v5319, %v1798
        %v5365 = vmul.f32 %v5319, %v1799
        %v5366 = vmul.f32 %v5319, %v1800
        %v5367 = vmul.f32 %v5319, %v1801
        %v5368 = vmul.f32 %v5319, %v1802
        %v5369 = vmul.f32 %v5319, %v1803
        %v5370 = vmul.f32 %v5319, %v1804
        %v5371 = vmul.f32 %v5319, %v1805
        %v5372 = vmul.f32 %v5319, %v1806
        %v5373 = vmul.f32 %v5319, %v1807
        %v5374 = vmul.f32 %v5319, %v1808
        %v5375 = vmul.f32 %v5319, %v1809
        %v5376 = vmul.f32 %v5319, %v1810
        %v5377 = vmul.f32 %v5319, %v1811
        %v5378 = vmul.f32 %v5319, %v1812
        %v5379 = vmul.f32 %v5319, %v1813
        %v5380 = vmul.f32 %v5319, %v1814
        %v5381 = vmul.f32 %v5319, %v1815
        %v5382 = vmul.f32 %v5319, %v1816
        %v5383 = vadd.f32 %v5256, %v5320
        %v5384 = vadd.f32 %v5257, %v5321
        %v5385 = vadd.f32 %v5258, %v5322
        %v5386 = vadd.f32 %v5259, %v5323
        %v5387 = vadd.f32 %v5260, %v5324
        %v5388 = vadd.f32 %v5261, %v5325
        %v5389 = vadd.f32 %v5262, %v5326
        %v5390 = vadd.f32 %v5263, %v5327
        %v5391 = vadd.f32 %v5264, %v5328
        %v5392 = vadd.f32 %v5265, %v5329
        %v5393 = vadd.f32 %v5266, %v5330
        %v5394 = vadd.f32 %v5267, %v5331
        %v5395 = vadd.f32 %v5268, %v5332
        %v5396 = vadd.f32 %v5269, %v5333
        %v5397 = vadd.f32 %v5270, %v5334
        %v5398 = vadd.f32 %v5271, %v5335
        %v5399 = vadd.f32 %v5272, %v5336
        %v5400 = vadd.f32 %v5273, %v5337
        %v5401 = vadd.f32 %v5274, %v5338
        %v5402 = vadd.f32 %v5275, %v5339
        %v5403 = vadd.f32 %v5276, %v5340
        %v5404 = vadd.f32 %v5277, %v5341
        %v5405 = vadd.f32 %v5278, %v5342
        %v5406 = vadd.f32 %v5279, %v5343
        %v5407 = vadd.f32 %v5280, %v5344
        %v5408 = vadd.f32 %v5281, %v5345
        %v5409 = vadd.f32 %v5282, %v5346
        %v5410 = vadd.f32 %v5283, %v5347
        %v5411 = vadd.f32 %v5284, %v5348
        %v5412 = vadd.f32 %v5285, %v5349
        %v5413 = vadd.f32 %v5286, %v5350
        %v5414 = vadd.f32 %v5287, %v5351
        %v5415 = vadd.f32 %v5288, %v5352
        %v5416 = vadd.f32 %v5289, %v5353
        %v5417 = vadd.f32 %v5290, %v5354
        %v5418 = vadd.f32 %v5291, %v5355
        %v5419 = vadd.f32 %v5292, %v5356
        %v5420 = vadd.f32 %v5293, %v5357
        %v5421 = vadd.f32 %v5294, %v5358
        %v5422 = vadd.f32 %v5295, %v5359
        %v5423 = vadd.f32 %v5296, %v5360
        %v5424 = vadd.f32 %v5297, %v5361
        %v5425 = vadd.f32 %v5298, %v5362
        %v5426 = vadd.f32 %v5299, %v5363
        %v5427 = vadd.f32 %v5300, %v5364
        %v5428 = vadd.f32 %v5301, %v5365
        %v5429 = vadd.f32 %v5302, %v5366
        %v5430 = vadd.f32 %v5303, %v5367
        %v5431 = vadd.f32 %v5304, %v5368
        %v5432 = vadd.f32 %v5305, %v5369
        %v5433 = vadd.f32 %v5306, %v5370
        %v5434 = vadd.f32 %v5307, %v5371
        %v5435 = vadd.f32 %v5308, %v5372
        %v5436 = vadd.f32 %v5309, %v5373
        %v5437 = vadd.f32 %v5310, %v5374
        %v5438 = vadd.f32 %v5311, %v5375
        %v5439 = vadd.f32 %v5312, %v5376
        %v5440 = vadd.f32 %v5313, %v5377
        %v5441 = vadd.f32 %v5314, %v5378
        %v5442 = vadd.f32 %v5315, %v5379
        %v5443 = vadd.f32 %v5316, %v5380
        %v5444 = vadd.f32 %v5317, %v5381
        %v5445 = vadd.f32 %v5318, %v5382
        %v5446 = vsel %vm3284, %v5383, 0.0
        %5447 = vadd.xlane.f32.xlu0 %v5446
        %v5448 = vpop.xlane.xlu0 %5447
        %v5449 = vsel %vm3284, %v5384, 0.0
        %5450 = vadd.xlane.f32.xlu0 %v5449
        %v5451 = vpop.xlane.xlu0 %5450
        %v5452 = vsel %vm3284, %v5385, 0.0
        %5453 = vadd.xlane.f32.xlu0 %v5452
        %v5454 = vpop.xlane.xlu0 %5453
        %v5455 = vsel %vm3284, %v5386, 0.0
        %5456 = vadd.xlane.f32.xlu0 %v5455
        %v5457 = vpop.xlane.xlu0 %5456
        %v5458 = vsel %vm3284, %v5387, 0.0
        %5459 = vadd.xlane.f32.xlu0 %v5458
        %v5460 = vpop.xlane.xlu0 %5459
        %v5461 = vsel %vm3284, %v5388, 0.0
        %5462 = vadd.xlane.f32.xlu0 %v5461
        %v5463 = vpop.xlane.xlu0 %5462
        %v5464 = vsel %vm3284, %v5389, 0.0
        %5465 = vadd.xlane.f32.xlu0 %v5464
        %v5466 = vpop.xlane.xlu0 %5465
        %v5467 = vsel %vm3284, %v5390, 0.0
        %5468 = vadd.xlane.f32.xlu0 %v5467
        %v5469 = vpop.xlane.xlu0 %5468
        %v5470 = vsel %vm3284, %v5391, 0.0
        %5471 = vadd.xlane.f32.xlu0 %v5470
        %v5472 = vpop.xlane.xlu0 %5471
        %v5473 = vsel %vm3284, %v5392, 0.0
        %5474 = vadd.xlane.f32.xlu0 %v5473
        %v5475 = vpop.xlane.xlu0 %5474
        %v5476 = vsel %vm3284, %v5393, 0.0
        %5477 = vadd.xlane.f32.xlu0 %v5476
        %v5478 = vpop.xlane.xlu0 %5477
        %v5479 = vsel %vm3284, %v5394, 0.0
        %5480 = vadd.xlane.f32.xlu0 %v5479
        %v5481 = vpop.xlane.xlu0 %5480
        %v5482 = vsel %vm3284, %v5395, 0.0
        %5483 = vadd.xlane.f32.xlu0 %v5482
        %v5484 = vpop.xlane.xlu0 %5483
        %v5485 = vsel %vm3284, %v5396, 0.0
        %5486 = vadd.xlane.f32.xlu0 %v5485
        %v5487 = vpop.xlane.xlu0 %5486
        %v5488 = vsel %vm3284, %v5397, 0.0
        %5489 = vadd.xlane.f32.xlu0 %v5488
        %v5490 = vpop.xlane.xlu0 %5489
        %v5491 = vsel %vm3284, %v5398, 0.0
        %5492 = vadd.xlane.f32.xlu0 %v5491
        %v5493 = vpop.xlane.xlu0 %5492
        %v5494 = vsel %vm3284, %v5399, 0.0
        %5495 = vadd.xlane.f32.xlu0 %v5494
        %v5496 = vpop.xlane.xlu0 %5495
        %v5497 = vsel %vm3284, %v5400, 0.0
        %5498 = vadd.xlane.f32.xlu0 %v5497
        %v5499 = vpop.xlane.xlu0 %5498
        %v5500 = vsel %vm3284, %v5401, 0.0
        %5501 = vadd.xlane.f32.xlu0 %v5500
        %v5502 = vpop.xlane.xlu0 %5501
        %v5503 = vsel %vm3284, %v5402, 0.0
        %5504 = vadd.xlane.f32.xlu0 %v5503
        %v5505 = vpop.xlane.xlu0 %5504
        %v5506 = vsel %vm3284, %v5403, 0.0
        %5507 = vadd.xlane.f32.xlu0 %v5506
        %v5508 = vpop.xlane.xlu0 %5507
        %v5509 = vsel %vm3284, %v5404, 0.0
        %5510 = vadd.xlane.f32.xlu0 %v5509
        %v5511 = vpop.xlane.xlu0 %5510
        %v5512 = vsel %vm3284, %v5405, 0.0
        %5513 = vadd.xlane.f32.xlu0 %v5512
        %v5514 = vpop.xlane.xlu0 %5513
        %v5515 = vsel %vm3284, %v5406, 0.0
        %5516 = vadd.xlane.f32.xlu0 %v5515
        %v5517 = vpop.xlane.xlu0 %5516
        %v5518 = vsel %vm3284, %v5407, 0.0
        %5519 = vadd.xlane.f32.xlu0 %v5518
        %v5520 = vpop.xlane.xlu0 %5519
        %v5521 = vsel %vm3284, %v5408, 0.0
        %5522 = vadd.xlane.f32.xlu0 %v5521
        %v5523 = vpop.xlane.xlu0 %5522
        %v5524 = vsel %vm3284, %v5409, 0.0
        %5525 = vadd.xlane.f32.xlu0 %v5524
        %v5526 = vpop.xlane.xlu0 %5525
        %v5527 = vsel %vm3284, %v5410, 0.0
        %5528 = vadd.xlane.f32.xlu0 %v5527
        %v5529 = vpop.xlane.xlu0 %5528
        %v5530 = vsel %vm3284, %v5411, 0.0
        %5531 = vadd.xlane.f32.xlu0 %v5530
        %v5532 = vpop.xlane.xlu0 %5531
        %v5533 = vsel %vm3284, %v5412, 0.0
        %5534 = vadd.xlane.f32.xlu0 %v5533
        %v5535 = vpop.xlane.xlu0 %5534
        %v5536 = vsel %vm3284, %v5413, 0.0
        %5537 = vadd.xlane.f32.xlu0 %v5536
        %v5538 = vpop.xlane.xlu0 %5537
        %v5539 = vsel %vm3284, %v5414, 0.0
        %5540 = vadd.xlane.f32.xlu0 %v5539
        %v5541 = vpop.xlane.xlu0 %5540
        %v5542 = vsel %vm3284, %v5415, 0.0
        %5543 = vadd.xlane.f32.xlu0 %v5542
        %v5544 = vpop.xlane.xlu0 %5543
        %v5545 = vsel %vm3284, %v5416, 0.0
        %5546 = vadd.xlane.f32.xlu0 %v5545
        %v5547 = vpop.xlane.xlu0 %5546
        %v5548 = vsel %vm3284, %v5417, 0.0
        %5549 = vadd.xlane.f32.xlu0 %v5548
        %v5550 = vpop.xlane.xlu0 %5549
        %v5551 = vsel %vm3284, %v5418, 0.0
        %5552 = vadd.xlane.f32.xlu0 %v5551
        %v5553 = vpop.xlane.xlu0 %5552
        %v5554 = vsel %vm3284, %v5419, 0.0
        %5555 = vadd.xlane.f32.xlu0 %v5554
        %v5556 = vpop.xlane.xlu0 %5555
        %v5557 = vsel %vm3284, %v5420, 0.0
        %5558 = vadd.xlane.f32.xlu0 %v5557
        %v5559 = vpop.xlane.xlu0 %5558
        %v5560 = vsel %vm3284, %v5421, 0.0
        %5561 = vadd.xlane.f32.xlu0 %v5560
        %v5562 = vpop.xlane.xlu0 %5561
        %v5563 = vsel %vm3284, %v5422, 0.0
        %5564 = vadd.xlane.f32.xlu0 %v5563
        %v5565 = vpop.xlane.xlu0 %5564
        %v5566 = vsel %vm3284, %v5423, 0.0
        %5567 = vadd.xlane.f32.xlu0 %v5566
        %v5568 = vpop.xlane.xlu0 %5567
        %v5569 = vsel %vm3284, %v5424, 0.0
        %5570 = vadd.xlane.f32.xlu0 %v5569
        %v5571 = vpop.xlane.xlu0 %5570
        %v5572 = vsel %vm3284, %v5425, 0.0
        %5573 = vadd.xlane.f32.xlu0 %v5572
        %v5574 = vpop.xlane.xlu0 %5573
        %v5575 = vsel %vm3284, %v5426, 0.0
        %5576 = vadd.xlane.f32.xlu0 %v5575
        %v5577 = vpop.xlane.xlu0 %5576
        %v5578 = vsel %vm3284, %v5427, 0.0
        %5579 = vadd.xlane.f32.xlu0 %v5578
        %v5580 = vpop.xlane.xlu0 %5579
        %v5581 = vsel %vm3284, %v5428, 0.0
        %5582 = vadd.xlane.f32.xlu0 %v5581
        %v5583 = vpop.xlane.xlu0 %5582
        %v5584 = vsel %vm3284, %v5429, 0.0
        %5585 = vadd.xlane.f32.xlu0 %v5584
        %v5586 = vpop.xlane.xlu0 %5585
        %v5587 = vsel %vm3284, %v5430, 0.0
        %5588 = vadd.xlane.f32.xlu0 %v5587
        %v5589 = vpop.xlane.xlu0 %5588
        %v5590 = vsel %vm3284, %v5431, 0.0
        %5591 = vadd.xlane.f32.xlu0 %v5590
        %v5592 = vpop.xlane.xlu0 %5591
        %v5593 = vsel %vm3284, %v5432, 0.0
        %5594 = vadd.xlane.f32.xlu0 %v5593
        %v5595 = vpop.xlane.xlu0 %5594
        %v5596 = vsel %vm3284, %v5433, 0.0
        %5597 = vadd.xlane.f32.xlu0 %v5596
        %v5598 = vpop.xlane.xlu0 %5597
        %v5599 = vsel %vm3284, %v5434, 0.0
        %5600 = vadd.xlane.f32.xlu0 %v5599
        %v5601 = vpop.xlane.xlu0 %5600
        %v5602 = vsel %vm3284, %v5435, 0.0
        %5603 = vadd.xlane.f32.xlu0 %v5602
        %v5604 = vpop.xlane.xlu0 %5603
        %v5605 = vsel %vm3284, %v5436, 0.0
        %5606 = vadd.xlane.f32.xlu0 %v5605
        %v5607 = vpop.xlane.xlu0 %5606
        %v5608 = vsel %vm3284, %v5437, 0.0
        %5609 = vadd.xlane.f32.xlu0 %v5608
        %v5610 = vpop.xlane.xlu0 %5609
        %v5611 = vsel %vm3284, %v5438, 0.0
        %5612 = vadd.xlane.f32.xlu0 %v5611
        %v5613 = vpop.xlane.xlu0 %5612
        %v5614 = vsel %vm3284, %v5439, 0.0
        %5615 = vadd.xlane.f32.xlu0 %v5614
        %v5616 = vpop.xlane.xlu0 %5615
        %v5617 = vsel %vm3284, %v5440, 0.0
        %5618 = vadd.xlane.f32.xlu0 %v5617
        %v5619 = vpop.xlane.xlu0 %5618
        %v5620 = vsel %vm3284, %v5441, 0.0
        %5621 = vadd.xlane.f32.xlu0 %v5620
        %v5622 = vpop.xlane.xlu0 %5621
        %v5623 = vsel %vm3284, %v5442, 0.0
        %5624 = vadd.xlane.f32.xlu0 %v5623
        %v5625 = vpop.xlane.xlu0 %5624
        %v5626 = vsel %vm3284, %v5443, 0.0
        %5627 = vadd.xlane.f32.xlu0 %v5626
        %v5628 = vpop.xlane.xlu0 %5627
        %v5629 = vsel %vm3284, %v5444, 0.0
        %5630 = vadd.xlane.f32.xlu0 %v5629
        %v5631 = vpop.xlane.xlu0 %5630
        %v5632 = vsel %vm3284, %v5445, 0.0
        %5633 = vadd.xlane.f32.xlu0 %v5632
        %v5634 = vpop.xlane.xlu0 %5633
        %v5635 = vmul.f32 %v5383, %v5383
        %v5636 = vmul.f32 %v5384, %v5384
        %v5637 = vmul.f32 %v5385, %v5385
        %v5638 = vmul.f32 %v5386, %v5386
        %v5639 = vmul.f32 %v5387, %v5387
        %v5640 = vmul.f32 %v5388, %v5388
        %v5641 = vmul.f32 %v5389, %v5389
        %v5642 = vmul.f32 %v5390, %v5390
        %v5643 = vmul.f32 %v5391, %v5391
        %v5644 = vmul.f32 %v5392, %v5392
        %v5645 = vmul.f32 %v5393, %v5393
        %v5646 = vmul.f32 %v5394, %v5394
        %v5647 = vmul.f32 %v5395, %v5395
        %v5648 = vmul.f32 %v5396, %v5396
        %v5649 = vmul.f32 %v5397, %v5397
        %v5650 = vmul.f32 %v5398, %v5398
        %v5651 = vmul.f32 %v5399, %v5399
        %v5652 = vmul.f32 %v5400, %v5400
        %v5653 = vmul.f32 %v5401, %v5401
        %v5654 = vmul.f32 %v5402, %v5402
        %v5655 = vmul.f32 %v5403, %v5403
        %v5656 = vmul.f32 %v5404, %v5404
        %v5657 = vmul.f32 %v5405, %v5405
        %v5658 = vmul.f32 %v5406, %v5406
        %v5659 = vmul.f32 %v5407, %v5407
        %v5660 = vmul.f32 %v5408, %v5408
        %v5661 = vmul.f32 %v5409, %v5409
        %v5662 = vmul.f32 %v5410, %v5410
        %v5663 = vmul.f32 %v5411, %v5411
        %v5664 = vmul.f32 %v5412, %v5412
        %v5665 = vmul.f32 %v5413, %v5413
        %v5666 = vmul.f32 %v5414, %v5414
        %v5667 = vmul.f32 %v5415, %v5415
        %v5668 = vmul.f32 %v5416, %v5416
        %v5669 = vmul.f32 %v5417, %v5417
        %v5670 = vmul.f32 %v5418, %v5418
        %v5671 = vmul.f32 %v5419, %v5419
        %v5672 = vmul.f32 %v5420, %v5420
        %v5673 = vmul.f32 %v5421, %v5421
        %v5674 = vmul.f32 %v5422, %v5422
        %v5675 = vmul.f32 %v5423, %v5423
        %v5676 = vmul.f32 %v5424, %v5424
        %v5677 = vmul.f32 %v5425, %v5425
        %v5678 = vmul.f32 %v5426, %v5426
        %v5679 = vmul.f32 %v5427, %v5427
        %v5680 = vmul.f32 %v5428, %v5428
        %v5681 = vmul.f32 %v5429, %v5429
        %v5682 = vmul.f32 %v5430, %v5430
        %v5683 = vmul.f32 %v5431, %v5431
        %v5684 = vmul.f32 %v5432, %v5432
        %v5685 = vmul.f32 %v5433, %v5433
        %v5686 = vmul.f32 %v5434, %v5434
        %v5687 = vmul.f32 %v5435, %v5435
        %v5688 = vmul.f32 %v5436, %v5436
        %v5689 = vmul.f32 %v5437, %v5437
        %v5690 = vmul.f32 %v5438, %v5438
        %v5691 = vmul.f32 %v5439, %v5439
        %v5692 = vmul.f32 %v5440, %v5440
        %v5693 = vmul.f32 %v5441, %v5441
        %v5694 = vmul.f32 %v5442, %v5442
        %v5695 = vmul.f32 %v5443, %v5443
        %v5696 = vmul.f32 %v5444, %v5444
        %v5697 = vmul.f32 %v5445, %v5445
        %v5698 = vsel %vm3284, %v5635, 0.0
        %5699 = vadd.xlane.f32.xlu0 %v5698
        %v5700 = vpop.xlane.xlu0 %5699
        %v5701 = vsel %vm3284, %v5636, 0.0
        %5702 = vadd.xlane.f32.xlu0 %v5701
        %v5703 = vpop.xlane.xlu0 %5702
        %v5704 = vsel %vm3284, %v5637, 0.0
        %5705 = vadd.xlane.f32.xlu0 %v5704
        %v5706 = vpop.xlane.xlu0 %5705
        %v5707 = vsel %vm3284, %v5638, 0.0
        %5708 = vadd.xlane.f32.xlu0 %v5707
        %v5709 = vpop.xlane.xlu0 %5708
        %v5710 = vsel %vm3284, %v5639, 0.0
        %5711 = vadd.xlane.f32.xlu0 %v5710
        %v5712 = vpop.xlane.xlu0 %5711
        %v5713 = vsel %vm3284, %v5640, 0.0
        %5714 = vadd.xlane.f32.xlu0 %v5713
        %v5715 = vpop.xlane.xlu0 %5714
        %v5716 = vsel %vm3284, %v5641, 0.0
        %5717 = vadd.xlane.f32.xlu0 %v5716
        %v5718 = vpop.xlane.xlu0 %5717
        %v5719 = vsel %vm3284, %v5642, 0.0
        %5720 = vadd.xlane.f32.xlu0 %v5719
        %v5721 = vpop.xlane.xlu0 %5720
        %v5722 = vsel %vm3284, %v5643, 0.0
        %5723 = vadd.xlane.f32.xlu0 %v5722
        %v5724 = vpop.xlane.xlu0 %5723
        %v5725 = vsel %vm3284, %v5644, 0.0
        %5726 = vadd.xlane.f32.xlu0 %v5725
        %v5727 = vpop.xlane.xlu0 %5726
        %v5728 = vsel %vm3284, %v5645, 0.0
        %5729 = vadd.xlane.f32.xlu0 %v5728
        %v5730 = vpop.xlane.xlu0 %5729
        %v5731 = vsel %vm3284, %v5646, 0.0
        %5732 = vadd.xlane.f32.xlu0 %v5731
        %v5733 = vpop.xlane.xlu0 %5732
        %v5734 = vsel %vm3284, %v5647, 0.0
        %5735 = vadd.xlane.f32.xlu0 %v5734
        %v5736 = vpop.xlane.xlu0 %5735
        %v5737 = vsel %vm3284, %v5648, 0.0
        %5738 = vadd.xlane.f32.xlu0 %v5737
        %v5739 = vpop.xlane.xlu0 %5738
        %v5740 = vsel %vm3284, %v5649, 0.0
        %5741 = vadd.xlane.f32.xlu0 %v5740
        %v5742 = vpop.xlane.xlu0 %5741
        %v5743 = vsel %vm3284, %v5650, 0.0
        %5744 = vadd.xlane.f32.xlu0 %v5743
        %v5745 = vpop.xlane.xlu0 %5744
        %v5746 = vsel %vm3284, %v5651, 0.0
        %5747 = vadd.xlane.f32.xlu0 %v5746
        %v5748 = vpop.xlane.xlu0 %5747
        %v5749 = vsel %vm3284, %v5652, 0.0
        %5750 = vadd.xlane.f32.xlu0 %v5749
        %v5751 = vpop.xlane.xlu0 %5750
        %v5752 = vsel %vm3284, %v5653, 0.0
        %5753 = vadd.xlane.f32.xlu0 %v5752
        %v5754 = vpop.xlane.xlu0 %5753
        %v5755 = vsel %vm3284, %v5654, 0.0
        %5756 = vadd.xlane.f32.xlu0 %v5755
        %v5757 = vpop.xlane.xlu0 %5756
        %v5758 = vsel %vm3284, %v5655, 0.0
        %5759 = vadd.xlane.f32.xlu0 %v5758
        %v5760 = vpop.xlane.xlu0 %5759
        %v5761 = vsel %vm3284, %v5656, 0.0
        %5762 = vadd.xlane.f32.xlu0 %v5761
        %v5763 = vpop.xlane.xlu0 %5762
        %v5764 = vsel %vm3284, %v5657, 0.0
        %5765 = vadd.xlane.f32.xlu0 %v5764
        %v5766 = vpop.xlane.xlu0 %5765
        %v5767 = vsel %vm3284, %v5658, 0.0
        %5768 = vadd.xlane.f32.xlu0 %v5767
        %v5769 = vpop.xlane.xlu0 %5768
        %v5770 = vsel %vm3284, %v5659, 0.0
        %5771 = vadd.xlane.f32.xlu0 %v5770
        %v5772 = vpop.xlane.xlu0 %5771
        %v5773 = vsel %vm3284, %v5660, 0.0
        %5774 = vadd.xlane.f32.xlu0 %v5773
        %v5775 = vpop.xlane.xlu0 %5774
        %v5776 = vsel %vm3284, %v5661, 0.0
        %5777 = vadd.xlane.f32.xlu0 %v5776
        %v5778 = vpop.xlane.xlu0 %5777
        %v5779 = vsel %vm3284, %v5662, 0.0
        %5780 = vadd.xlane.f32.xlu0 %v5779
        %v5781 = vpop.xlane.xlu0 %5780
        %v5782 = vsel %vm3284, %v5663, 0.0
        %5783 = vadd.xlane.f32.xlu0 %v5782
        %v5784 = vpop.xlane.xlu0 %5783
        %v5785 = vsel %vm3284, %v5664, 0.0
        %5786 = vadd.xlane.f32.xlu0 %v5785
        %v5787 = vpop.xlane.xlu0 %5786
        %v5788 = vsel %vm3284, %v5665, 0.0
        %5789 = vadd.xlane.f32.xlu0 %v5788
        %v5790 = vpop.xlane.xlu0 %5789
        %v5791 = vsel %vm3284, %v5666, 0.0
        %5792 = vadd.xlane.f32.xlu0 %v5791
        %v5793 = vpop.xlane.xlu0 %5792
        %v5794 = vsel %vm3284, %v5667, 0.0
        %5795 = vadd.xlane.f32.xlu0 %v5794
        %v5796 = vpop.xlane.xlu0 %5795
        %v5797 = vsel %vm3284, %v5668, 0.0
        %5798 = vadd.xlane.f32.xlu0 %v5797
        %v5799 = vpop.xlane.xlu0 %5798
        %v5800 = vsel %vm3284, %v5669, 0.0
        %5801 = vadd.xlane.f32.xlu0 %v5800
        %v5802 = vpop.xlane.xlu0 %5801
        %v5803 = vsel %vm3284, %v5670, 0.0
        %5804 = vadd.xlane.f32.xlu0 %v5803
        %v5805 = vpop.xlane.xlu0 %5804
        %v5806 = vsel %vm3284, %v5671, 0.0
        %5807 = vadd.xlane.f32.xlu0 %v5806
        %v5808 = vpop.xlane.xlu0 %5807
        %v5809 = vsel %vm3284, %v5672, 0.0
        %5810 = vadd.xlane.f32.xlu0 %v5809
        %v5811 = vpop.xlane.xlu0 %5810
        %v5812 = vsel %vm3284, %v5673, 0.0
        %5813 = vadd.xlane.f32.xlu0 %v5812
        %v5814 = vpop.xlane.xlu0 %5813
        %v5815 = vsel %vm3284, %v5674, 0.0
        %5816 = vadd.xlane.f32.xlu0 %v5815
        %v5817 = vpop.xlane.xlu0 %5816
        %v5818 = vsel %vm3284, %v5675, 0.0
        %5819 = vadd.xlane.f32.xlu0 %v5818
        %v5820 = vpop.xlane.xlu0 %5819
        %v5821 = vsel %vm3284, %v5676, 0.0
        %5822 = vadd.xlane.f32.xlu0 %v5821
        %v5823 = vpop.xlane.xlu0 %5822
        %v5824 = vsel %vm3284, %v5677, 0.0
        %5825 = vadd.xlane.f32.xlu0 %v5824
        %v5826 = vpop.xlane.xlu0 %5825
        %v5827 = vsel %vm3284, %v5678, 0.0
        %5828 = vadd.xlane.f32.xlu0 %v5827
        %v5829 = vpop.xlane.xlu0 %5828
        %v5830 = vsel %vm3284, %v5679, 0.0
        %5831 = vadd.xlane.f32.xlu0 %v5830
        %v5832 = vpop.xlane.xlu0 %5831
        %v5833 = vsel %vm3284, %v5680, 0.0
        %5834 = vadd.xlane.f32.xlu0 %v5833
        %v5835 = vpop.xlane.xlu0 %5834
        %v5836 = vsel %vm3284, %v5681, 0.0
        %5837 = vadd.xlane.f32.xlu0 %v5836
        %v5838 = vpop.xlane.xlu0 %5837
        %v5839 = vsel %vm3284, %v5682, 0.0
        %5840 = vadd.xlane.f32.xlu0 %v5839
        %v5841 = vpop.xlane.xlu0 %5840
        %v5842 = vsel %vm3284, %v5683, 0.0
        %5843 = vadd.xlane.f32.xlu0 %v5842
        %v5844 = vpop.xlane.xlu0 %5843
        %v5845 = vsel %vm3284, %v5684, 0.0
        %5846 = vadd.xlane.f32.xlu0 %v5845
        %v5847 = vpop.xlane.xlu0 %5846
        %v5848 = vsel %vm3284, %v5685, 0.0
        %5849 = vadd.xlane.f32.xlu0 %v5848
        %v5850 = vpop.xlane.xlu0 %5849
        %v5851 = vsel %vm3284, %v5686, 0.0
        %5852 = vadd.xlane.f32.xlu0 %v5851
        %v5853 = vpop.xlane.xlu0 %5852
        %v5854 = vsel %vm3284, %v5687, 0.0
        %5855 = vadd.xlane.f32.xlu0 %v5854
        %v5856 = vpop.xlane.xlu0 %5855
        %v5857 = vsel %vm3284, %v5688, 0.0
        %5858 = vadd.xlane.f32.xlu0 %v5857
        %v5859 = vpop.xlane.xlu0 %5858
        %v5860 = vsel %vm3284, %v5689, 0.0
        %5861 = vadd.xlane.f32.xlu0 %v5860
        %v5862 = vpop.xlane.xlu0 %5861
        %v5863 = vsel %vm3284, %v5690, 0.0
        %5864 = vadd.xlane.f32.xlu0 %v5863
        %v5865 = vpop.xlane.xlu0 %5864
        %v5866 = vsel %vm3284, %v5691, 0.0
        %5867 = vadd.xlane.f32.xlu0 %v5866
        %v5868 = vpop.xlane.xlu0 %5867
        %v5869 = vsel %vm3284, %v5692, 0.0
        %5870 = vadd.xlane.f32.xlu0 %v5869
        %v5871 = vpop.xlane.xlu0 %5870
        %v5872 = vsel %vm3284, %v5693, 0.0
        %5873 = vadd.xlane.f32.xlu0 %v5872
        %v5874 = vpop.xlane.xlu0 %5873
        %v5875 = vsel %vm3284, %v5694, 0.0
        %5876 = vadd.xlane.f32.xlu0 %v5875
        %v5877 = vpop.xlane.xlu0 %5876
        %v5878 = vsel %vm3284, %v5695, 0.0
        %5879 = vadd.xlane.f32.xlu0 %v5878
        %v5880 = vpop.xlane.xlu0 %5879
        %v5881 = vsel %vm3284, %v5696, 0.0
        %5882 = vadd.xlane.f32.xlu0 %v5881
        %v5883 = vpop.xlane.xlu0 %5882
        %v5884 = vsel %vm3284, %v5697, 0.0
        %5885 = vadd.xlane.f32.xlu0 %v5884
        %v5886 = vpop.xlane.xlu0 %5885
        %v5887 = vmul.f32 %v5448, 0.015625
        %v5888 = vmul.f32 %v5451, 0.015625
        %v5889 = vmul.f32 %v5454, 0.015625
        %v5890 = vmul.f32 %v5457, 0.015625
        %v5891 = vmul.f32 %v5460, 0.015625
        %v5892 = vmul.f32 %v5463, 0.015625
        %v5893 = vmul.f32 %v5466, 0.015625
        %v5894 = vmul.f32 %v5469, 0.015625
        %v5895 = vmul.f32 %v5472, 0.015625
        %v5896 = vmul.f32 %v5475, 0.015625
        %v5897 = vmul.f32 %v5478, 0.015625
        %v5898 = vmul.f32 %v5481, 0.015625
        %v5899 = vmul.f32 %v5484, 0.015625
        %v5900 = vmul.f32 %v5487, 0.015625
        %v5901 = vmul.f32 %v5490, 0.015625
        %v5902 = vmul.f32 %v5493, 0.015625
        %v5903 = vmul.f32 %v5496, 0.015625
        %v5904 = vmul.f32 %v5499, 0.015625
        %v5905 = vmul.f32 %v5502, 0.015625
        %v5906 = vmul.f32 %v5505, 0.015625
        %v5907 = vmul.f32 %v5508, 0.015625
        %v5908 = vmul.f32 %v5511, 0.015625
        %v5909 = vmul.f32 %v5514, 0.015625
        %v5910 = vmul.f32 %v5517, 0.015625
        %v5911 = vmul.f32 %v5520, 0.015625
        %v5912 = vmul.f32 %v5523, 0.015625
        %v5913 = vmul.f32 %v5526, 0.015625
        %v5914 = vmul.f32 %v5529, 0.015625
        %v5915 = vmul.f32 %v5532, 0.015625
        %v5916 = vmul.f32 %v5535, 0.015625
        %v5917 = vmul.f32 %v5538, 0.015625
        %v5918 = vmul.f32 %v5541, 0.015625
        %v5919 = vmul.f32 %v5544, 0.015625
        %v5920 = vmul.f32 %v5547, 0.015625
        %v5921 = vmul.f32 %v5550, 0.015625
        %v5922 = vmul.f32 %v5553, 0.015625
        %v5923 = vmul.f32 %v5556, 0.015625
        %v5924 = vmul.f32 %v5559, 0.015625
        %v5925 = vmul.f32 %v5562, 0.015625
        %v5926 = vmul.f32 %v5565, 0.015625
        %v5927 = vmul.f32 %v5568, 0.015625
        %v5928 = vmul.f32 %v5571, 0.015625
        %v5929 = vmul.f32 %v5574, 0.015625
        %v5930 = vmul.f32 %v5577, 0.015625
        %v5931 = vmul.f32 %v5580, 0.015625
        %v5932 = vmul.f32 %v5583, 0.015625
        %v5933 = vmul.f32 %v5586, 0.015625
        %v5934 = vmul.f32 %v5589, 0.015625
        %v5935 = vmul.f32 %v5592, 0.015625
        %v5936 = vmul.f32 %v5595, 0.015625
        %v5937 = vmul.f32 %v5598, 0.015625
        %v5938 = vmul.f32 %v5601, 0.015625
        %v5939 = vmul.f32 %v5604, 0.015625
        %v5940 = vmul.f32 %v5607, 0.015625
        %v5941 = vmul.f32 %v5610, 0.015625
        %v5942 = vmul.f32 %v5613, 0.015625
        %v5943 = vmul.f32 %v5616, 0.015625
        %v5944 = vmul.f32 %v5619, 0.015625
        %v5945 = vmul.f32 %v5622, 0.015625
        %v5946 = vmul.f32 %v5625, 0.015625
        %v5947 = vmul.f32 %v5628, 0.015625
        %v5948 = vmul.f32 %v5631, 0.015625
        %v5949 = vmul.f32 %v5634, 0.015625
        %v5950 = vmul.f32 %v5700, 0.015625
        %v5951 = vmul.f32 %v5703, 0.015625
        %v5952 = vmul.f32 %v5706, 0.015625
        %v5953 = vmul.f32 %v5709, 0.015625
        %v5954 = vmul.f32 %v5712, 0.015625
        %v5955 = vmul.f32 %v5715, 0.015625
        %v5956 = vmul.f32 %v5718, 0.015625
        %v5957 = vmul.f32 %v5721, 0.015625
        %v5958 = vmul.f32 %v5724, 0.015625
        %v5959 = vmul.f32 %v5727, 0.015625
        %v5960 = vmul.f32 %v5730, 0.015625
        %v5961 = vmul.f32 %v5733, 0.015625
        %v5962 = vmul.f32 %v5736, 0.015625
        %v5963 = vmul.f32 %v5739, 0.015625
        %v5964 = vmul.f32 %v5742, 0.015625
        %v5965 = vmul.f32 %v5745, 0.015625
        %v5966 = vmul.f32 %v5748, 0.015625
        %v5967 = vmul.f32 %v5751, 0.015625
        %v5968 = vmul.f32 %v5754, 0.015625
        %v5969 = vmul.f32 %v5757, 0.015625
        %v5970 = vmul.f32 %v5760, 0.015625
        %v5971 = vmul.f32 %v5763, 0.015625
        %v5972 = vmul.f32 %v5766, 0.015625
        %v5973 = vmul.f32 %v5769, 0.015625
        %v5974 = vmul.f32 %v5772, 0.015625
        %v5975 = vmul.f32 %v5775, 0.015625
        %v5976 = vmul.f32 %v5778, 0.015625
        %v5977 = vmul.f32 %v5781, 0.015625
        %v5978 = vmul.f32 %v5784, 0.015625
        %v5979 = vmul.f32 %v5787, 0.015625
        %v5980 = vmul.f32 %v5790, 0.015625
        %v5981 = vmul.f32 %v5793, 0.015625
        %v5982 = vmul.f32 %v5796, 0.015625
        %v5983 = vmul.f32 %v5799, 0.015625
        %v5984 = vmul.f32 %v5802, 0.015625
        %v5985 = vmul.f32 %v5805, 0.015625
        %v5986 = vmul.f32 %v5808, 0.015625
        %v5987 = vmul.f32 %v5811, 0.015625
        %v5988 = vmul.f32 %v5814, 0.015625
        %v5989 = vmul.f32 %v5817, 0.015625
        %v5990 = vmul.f32 %v5820, 0.015625
        %v5991 = vmul.f32 %v5823, 0.015625
        %v5992 = vmul.f32 %v5826, 0.015625
        %v5993 = vmul.f32 %v5829, 0.015625
        %v5994 = vmul.f32 %v5832, 0.015625
        %v5995 = vmul.f32 %v5835, 0.015625
        %v5996 = vmul.f32 %v5838, 0.015625
        %v5997 = vmul.f32 %v5841, 0.015625
        %v5998 = vmul.f32 %v5844, 0.015625
        %v5999 = vmul.f32 %v5847, 0.015625
        %v6000 = vmul.f32 %v5850, 0.015625
        %v6001 = vmul.f32 %v5853, 0.015625
        %v6002 = vmul.f32 %v5856, 0.015625
        %v6003 = vmul.f32 %v5859, 0.015625
        %v6004 = vmul.f32 %v5862, 0.015625
        %v6005 = vmul.f32 %v5865, 0.015625
        %v6006 = vmul.f32 %v5868, 0.015625
        %v6007 = vmul.f32 %v5871, 0.015625
        %v6008 = vmul.f32 %v5874, 0.015625
        %v6009 = vmul.f32 %v5877, 0.015625
        %v6010 = vmul.f32 %v5880, 0.015625
        %v6011 = vmul.f32 %v5883, 0.015625
        %v6012 = vmul.f32 %v5886, 0.015625
        %v6013 = vmul.f32 %v5887, %v5887
        %v6014 = vmul.f32 %v5888, %v5888
        %v6015 = vmul.f32 %v5889, %v5889
        %v6016 = vmul.f32 %v5890, %v5890
        %v6017 = vmul.f32 %v5891, %v5891
        %v6018 = vmul.f32 %v5892, %v5892
        %v6019 = vmul.f32 %v5893, %v5893
        %v6020 = vmul.f32 %v5894, %v5894
        %v6021 = vmul.f32 %v5895, %v5895
        %v6022 = vmul.f32 %v5896, %v5896
        %v6023 = vmul.f32 %v5897, %v5897
        %v6024 = vmul.f32 %v5898, %v5898
        %v6025 = vmul.f32 %v5899, %v5899
        %v6026 = vmul.f32 %v5900, %v5900
        %v6027 = vmul.f32 %v5901, %v5901
        %v6028 = vmul.f32 %v5902, %v5902
        %v6029 = vmul.f32 %v5903, %v5903
        %v6030 = vmul.f32 %v5904, %v5904
        %v6031 = vmul.f32 %v5905, %v5905
        %v6032 = vmul.f32 %v5906, %v5906
        %v6033 = vmul.f32 %v5907, %v5907
        %v6034 = vmul.f32 %v5908, %v5908
        %v6035 = vmul.f32 %v5909, %v5909
        %v6036 = vmul.f32 %v5910, %v5910
        %v6037 = vmul.f32 %v5911, %v5911
        %v6038 = vmul.f32 %v5912, %v5912
        %v6039 = vmul.f32 %v5913, %v5913
        %v6040 = vmul.f32 %v5914, %v5914
        %v6041 = vmul.f32 %v5915, %v5915
        %v6042 = vmul.f32 %v5916, %v5916
        %v6043 = vmul.f32 %v5917, %v5917
        %v6044 = vmul.f32 %v5918, %v5918
        %v6045 = vmul.f32 %v5919, %v5919
        %v6046 = vmul.f32 %v5920, %v5920
        %v6047 = vmul.f32 %v5921, %v5921
        %v6048 = vmul.f32 %v5922, %v5922
        %v6049 = vmul.f32 %v5923, %v5923
        %v6050 = vmul.f32 %v5924, %v5924
        %v6051 = vmul.f32 %v5925, %v5925
        %v6052 = vmul.f32 %v5926, %v5926
        %v6053 = vmul.f32 %v5927, %v5927
        %v6054 = vmul.f32 %v5928, %v5928
        %v6055 = vmul.f32 %v5929, %v5929
        %v6056 = vmul.f32 %v5930, %v5930
        %v6057 = vmul.f32 %v5931, %v5931
        %v6058 = vmul.f32 %v5932, %v5932
        %v6059 = vmul.f32 %v5933, %v5933
        %v6060 = vmul.f32 %v5934, %v5934
        %v6061 = vmul.f32 %v5935, %v5935
        %v6062 = vmul.f32 %v5936, %v5936
        %v6063 = vmul.f32 %v5937, %v5937
        %v6064 = vmul.f32 %v5938, %v5938
        %v6065 = vmul.f32 %v5939, %v5939
        %v6066 = vmul.f32 %v5940, %v5940
        %v6067 = vmul.f32 %v5941, %v5941
        %v6068 = vmul.f32 %v5942, %v5942
        %v6069 = vmul.f32 %v5943, %v5943
        %v6070 = vmul.f32 %v5944, %v5944
        %v6071 = vmul.f32 %v5945, %v5945
        %v6072 = vmul.f32 %v5946, %v5946
        %v6073 = vmul.f32 %v5947, %v5947
        %v6074 = vmul.f32 %v5948, %v5948
        %v6075 = vmul.f32 %v5949, %v5949
        %v6076 = vsub.f32 %v5950, %v6013
        %v6077 = vsub.f32 %v5951, %v6014
        %v6078 = vsub.f32 %v5952, %v6015
        %v6079 = vsub.f32 %v5953, %v6016
        %v6080 = vsub.f32 %v5954, %v6017
        %v6081 = vsub.f32 %v5955, %v6018
        %v6082 = vsub.f32 %v5956, %v6019
        %v6083 = vsub.f32 %v5957, %v6020
        %v6084 = vsub.f32 %v5958, %v6021
        %v6085 = vsub.f32 %v5959, %v6022
        %v6086 = vsub.f32 %v5960, %v6023
        %v6087 = vsub.f32 %v5961, %v6024
        %v6088 = vsub.f32 %v5962, %v6025
        %v6089 = vsub.f32 %v5963, %v6026
        %v6090 = vsub.f32 %v5964, %v6027
        %v6091 = vsub.f32 %v5965, %v6028
        %v6092 = vsub.f32 %v5966, %v6029
        %v6093 = vsub.f32 %v5967, %v6030
        %v6094 = vsub.f32 %v5968, %v6031
        %v6095 = vsub.f32 %v5969, %v6032
        %v6096 = vsub.f32 %v5970, %v6033
        %v6097 = vsub.f32 %v5971, %v6034
        %v6098 = vsub.f32 %v5972, %v6035
        %v6099 = vsub.f32 %v5973, %v6036
        %v6100 = vsub.f32 %v5974, %v6037
        %v6101 = vsub.f32 %v5975, %v6038
        %v6102 = vsub.f32 %v5976, %v6039
        %v6103 = vsub.f32 %v5977, %v6040
        %v6104 = vsub.f32 %v5978, %v6041
        %v6105 = vsub.f32 %v5979, %v6042
        %v6106 = vsub.f32 %v5980, %v6043
        %v6107 = vsub.f32 %v5981, %v6044
        %v6108 = vsub.f32 %v5982, %v6045
        %v6109 = vsub.f32 %v5983, %v6046
        %v6110 = vsub.f32 %v5984, %v6047
        %v6111 = vsub.f32 %v5985, %v6048
        %v6112 = vsub.f32 %v5986, %v6049
        %v6113 = vsub.f32 %v5987, %v6050
        %v6114 = vsub.f32 %v5988, %v6051
        %v6115 = vsub.f32 %v5989, %v6052
        %v6116 = vsub.f32 %v5990, %v6053
        %v6117 = vsub.f32 %v5991, %v6054
        %v6118 = vsub.f32 %v5992, %v6055
        %v6119 = vsub.f32 %v5993, %v6056
        %v6120 = vsub.f32 %v5994, %v6057
        %v6121 = vsub.f32 %v5995, %v6058
        %v6122 = vsub.f32 %v5996, %v6059
        %v6123 = vsub.f32 %v5997, %v6060
        %v6124 = vsub.f32 %v5998, %v6061
        %v6125 = vsub.f32 %v5999, %v6062
        %v6126 = vsub.f32 %v6000, %v6063
        %v6127 = vsub.f32 %v6001, %v6064
        %v6128 = vsub.f32 %v6002, %v6065
        %v6129 = vsub.f32 %v6003, %v6066
        %v6130 = vsub.f32 %v6004, %v6067
        %v6131 = vsub.f32 %v6005, %v6068
        %v6132 = vsub.f32 %v6006, %v6069
        %v6133 = vsub.f32 %v6007, %v6070
        %v6134 = vsub.f32 %v6008, %v6071
        %v6135 = vsub.f32 %v6009, %v6072
        %v6136 = vsub.f32 %v6010, %v6073
        %v6137 = vsub.f32 %v6011, %v6074
        %v6138 = vsub.f32 %v6012, %v6075
        %v6139 = vadd.f32 %v6076, 1e-05
        %v6140 = vadd.f32 %v6077, 1e-05
        %v6141 = vadd.f32 %v6078, 1e-05
        %v6142 = vadd.f32 %v6079, 1e-05
        %v6143 = vadd.f32 %v6080, 1e-05
        %v6144 = vadd.f32 %v6081, 1e-05
        %v6145 = vadd.f32 %v6082, 1e-05
        %v6146 = vadd.f32 %v6083, 1e-05
        %v6147 = vadd.f32 %v6084, 1e-05
        %v6148 = vadd.f32 %v6085, 1e-05
        %v6149 = vadd.f32 %v6086, 1e-05
        %v6150 = vadd.f32 %v6087, 1e-05
        %v6151 = vadd.f32 %v6088, 1e-05
        %v6152 = vadd.f32 %v6089, 1e-05
        %v6153 = vadd.f32 %v6090, 1e-05
        %v6154 = vadd.f32 %v6091, 1e-05
        %v6155 = vadd.f32 %v6092, 1e-05
        %v6156 = vadd.f32 %v6093, 1e-05
        %v6157 = vadd.f32 %v6094, 1e-05
        %v6158 = vadd.f32 %v6095, 1e-05
        %v6159 = vadd.f32 %v6096, 1e-05
        %v6160 = vadd.f32 %v6097, 1e-05
        %v6161 = vadd.f32 %v6098, 1e-05
        %v6162 = vadd.f32 %v6099, 1e-05
        %v6163 = vadd.f32 %v6100, 1e-05
        %v6164 = vadd.f32 %v6101, 1e-05
        %v6165 = vadd.f32 %v6102, 1e-05
        %v6166 = vadd.f32 %v6103, 1e-05
        %v6167 = vadd.f32 %v6104, 1e-05
        %v6168 = vadd.f32 %v6105, 1e-05
        %v6169 = vadd.f32 %v6106, 1e-05
        %v6170 = vadd.f32 %v6107, 1e-05
        %v6171 = vadd.f32 %v6108, 1e-05
        %v6172 = vadd.f32 %v6109, 1e-05
        %v6173 = vadd.f32 %v6110, 1e-05
        %v6174 = vadd.f32 %v6111, 1e-05
        %v6175 = vadd.f32 %v6112, 1e-05
        %v6176 = vadd.f32 %v6113, 1e-05
        %v6177 = vadd.f32 %v6114, 1e-05
        %v6178 = vadd.f32 %v6115, 1e-05
        %v6179 = vadd.f32 %v6116, 1e-05
        %v6180 = vadd.f32 %v6117, 1e-05
        %v6181 = vadd.f32 %v6118, 1e-05
        %v6182 = vadd.f32 %v6119, 1e-05
        %v6183 = vadd.f32 %v6120, 1e-05
        %v6184 = vadd.f32 %v6121, 1e-05
        %v6185 = vadd.f32 %v6122, 1e-05
        %v6186 = vadd.f32 %v6123, 1e-05
        %v6187 = vadd.f32 %v6124, 1e-05
        %v6188 = vadd.f32 %v6125, 1e-05
        %v6189 = vadd.f32 %v6126, 1e-05
        %v6190 = vadd.f32 %v6127, 1e-05
        %v6191 = vadd.f32 %v6128, 1e-05
        %v6192 = vadd.f32 %v6129, 1e-05
        %v6193 = vadd.f32 %v6130, 1e-05
        %v6194 = vadd.f32 %v6131, 1e-05
        %v6195 = vadd.f32 %v6132, 1e-05
        %v6196 = vadd.f32 %v6133, 1e-05
        %v6197 = vadd.f32 %v6134, 1e-05
        %v6198 = vadd.f32 %v6135, 1e-05
        %v6199 = vadd.f32 %v6136, 1e-05
        %v6200 = vadd.f32 %v6137, 1e-05
        %v6201 = vadd.f32 %v6138, 1e-05
        %v6202 = vrsqrt.pop %v6139
        %v6203 = vrsqrt.pop %v6140
        %v6204 = vrsqrt.pop %v6141
        %v6205 = vrsqrt.pop %v6142
        %v6206 = vrsqrt.pop %v6143
        %v6207 = vrsqrt.pop %v6144
        %v6208 = vrsqrt.pop %v6145
        %v6209 = vrsqrt.pop %v6146
        %v6210 = vrsqrt.pop %v6147
        %v6211 = vrsqrt.pop %v6148
        %v6212 = vrsqrt.pop %v6149
        %v6213 = vrsqrt.pop %v6150
        %v6214 = vrsqrt.pop %v6151
        %v6215 = vrsqrt.pop %v6152
        %v6216 = vrsqrt.pop %v6153
        %v6217 = vrsqrt.pop %v6154
        %v6218 = vrsqrt.pop %v6155
        %v6219 = vrsqrt.pop %v6156
        %v6220 = vrsqrt.pop %v6157
        %v6221 = vrsqrt.pop %v6158
        %v6222 = vrsqrt.pop %v6159
        %v6223 = vrsqrt.pop %v6160
        %v6224 = vrsqrt.pop %v6161
        %v6225 = vrsqrt.pop %v6162
        %v6226 = vrsqrt.pop %v6163
        %v6227 = vrsqrt.pop %v6164
        %v6228 = vrsqrt.pop %v6165
        %v6229 = vrsqrt.pop %v6166
        %v6230 = vrsqrt.pop %v6167
        %v6231 = vrsqrt.pop %v6168
        %v6232 = vrsqrt.pop %v6169
        %v6233 = vrsqrt.pop %v6170
        %v6234 = vrsqrt.pop %v6171
        %v6235 = vrsqrt.pop %v6172
        %v6236 = vrsqrt.pop %v6173
        %v6237 = vrsqrt.pop %v6174
        %v6238 = vrsqrt.pop %v6175
        %v6239 = vrsqrt.pop %v6176
        %v6240 = vrsqrt.pop %v6177
        %v6241 = vrsqrt.pop %v6178
        %v6242 = vrsqrt.pop %v6179
        %v6243 = vrsqrt.pop %v6180
        %v6244 = vrsqrt.pop %v6181
        %v6245 = vrsqrt.pop %v6182
        %v6246 = vrsqrt.pop %v6183
        %v6247 = vrsqrt.pop %v6184
        %v6248 = vrsqrt.pop %v6185
        %v6249 = vrsqrt.pop %v6186
        %v6250 = vrsqrt.pop %v6187
        %v6251 = vrsqrt.pop %v6188
        %v6252 = vrsqrt.pop %v6189
        %v6253 = vrsqrt.pop %v6190
        %v6254 = vrsqrt.pop %v6191
        %v6255 = vrsqrt.pop %v6192
        %v6256 = vrsqrt.pop %v6193
        %v6257 = vrsqrt.pop %v6194
        %v6258 = vrsqrt.pop %v6195
        %v6259 = vrsqrt.pop %v6196
        %v6260 = vrsqrt.pop %v6197
        %v6261 = vrsqrt.pop %v6198
        %v6262 = vrsqrt.pop %v6199
        %v6263 = vrsqrt.pop %v6200
        %v6264 = vrsqrt.pop %v6201
        %v6265 = vstv %s4999
        %v6266 = vmul.f32 %v6265, %v6202
        %v6267 = vmul.f32 %v6265, %v6203
        %v6268 = vmul.f32 %v6265, %v6204
        %v6269 = vmul.f32 %v6265, %v6205
        %v6270 = vmul.f32 %v6265, %v6206
        %v6271 = vmul.f32 %v6265, %v6207
        %v6272 = vmul.f32 %v6265, %v6208
        %v6273 = vmul.f32 %v6265, %v6209
        %v6274 = vmul.f32 %v6265, %v6210
        %v6275 = vmul.f32 %v6265, %v6211
        %v6276 = vmul.f32 %v6265, %v6212
        %v6277 = vmul.f32 %v6265, %v6213
        %v6278 = vmul.f32 %v6265, %v6214
        %v6279 = vmul.f32 %v6265, %v6215
        %v6280 = vmul.f32 %v6265, %v6216
        %v6281 = vmul.f32 %v6265, %v6217
        %v6282 = vmul.f32 %v6265, %v6218
        %v6283 = vmul.f32 %v6265, %v6219
        %v6284 = vmul.f32 %v6265, %v6220
        %v6285 = vmul.f32 %v6265, %v6221
        %v6286 = vmul.f32 %v6265, %v6222
        %v6287 = vmul.f32 %v6265, %v6223
        %v6288 = vmul.f32 %v6265, %v6224
        %v6289 = vmul.f32 %v6265, %v6225
        %v6290 = vmul.f32 %v6265, %v6226
        %v6291 = vmul.f32 %v6265, %v6227
        %v6292 = vmul.f32 %v6265, %v6228
        %v6293 = vmul.f32 %v6265, %v6229
        %v6294 = vmul.f32 %v6265, %v6230
        %v6295 = vmul.f32 %v6265, %v6231
        %v6296 = vmul.f32 %v6265, %v6232
        %v6297 = vmul.f32 %v6265, %v6233
        %v6298 = vmul.f32 %v6265, %v6234
        %v6299 = vmul.f32 %v6265, %v6235
        %v6300 = vmul.f32 %v6265, %v6236
        %v6301 = vmul.f32 %v6265, %v6237
        %v6302 = vmul.f32 %v6265, %v6238
        %v6303 = vmul.f32 %v6265, %v6239
        %v6304 = vmul.f32 %v6265, %v6240
        %v6305 = vmul.f32 %v6265, %v6241
        %v6306 = vmul.f32 %v6265, %v6242
        %v6307 = vmul.f32 %v6265, %v6243
        %v6308 = vmul.f32 %v6265, %v6244
        %v6309 = vmul.f32 %v6265, %v6245
        %v6310 = vmul.f32 %v6265, %v6246
        %v6311 = vmul.f32 %v6265, %v6247
        %v6312 = vmul.f32 %v6265, %v6248
        %v6313 = vmul.f32 %v6265, %v6249
        %v6314 = vmul.f32 %v6265, %v6250
        %v6315 = vmul.f32 %v6265, %v6251
        %v6316 = vmul.f32 %v6265, %v6252
        %v6317 = vmul.f32 %v6265, %v6253
        %v6318 = vmul.f32 %v6265, %v6254
        %v6319 = vmul.f32 %v6265, %v6255
        %v6320 = vmul.f32 %v6265, %v6256
        %v6321 = vmul.f32 %v6265, %v6257
        %v6322 = vmul.f32 %v6265, %v6258
        %v6323 = vmul.f32 %v6265, %v6259
        %v6324 = vmul.f32 %v6265, %v6260
        %v6325 = vmul.f32 %v6265, %v6261
        %v6326 = vmul.f32 %v6265, %v6262
        %v6327 = vmul.f32 %v6265, %v6263
        %v6328 = vmul.f32 %v6265, %v6264
        %v6329 = vmul.f32 %v5887, %v6266
        %v6330 = vmul.f32 %v5888, %v6267
        %v6331 = vmul.f32 %v5889, %v6268
        %v6332 = vmul.f32 %v5890, %v6269
        %v6333 = vmul.f32 %v5891, %v6270
        %v6334 = vmul.f32 %v5892, %v6271
        %v6335 = vmul.f32 %v5893, %v6272
        %v6336 = vmul.f32 %v5894, %v6273
        %v6337 = vmul.f32 %v5895, %v6274
        %v6338 = vmul.f32 %v5896, %v6275
        %v6339 = vmul.f32 %v5897, %v6276
        %v6340 = vmul.f32 %v5898, %v6277
        %v6341 = vmul.f32 %v5899, %v6278
        %v6342 = vmul.f32 %v5900, %v6279
        %v6343 = vmul.f32 %v5901, %v6280
        %v6344 = vmul.f32 %v5902, %v6281
        %v6345 = vmul.f32 %v5903, %v6282
        %v6346 = vmul.f32 %v5904, %v6283
        %v6347 = vmul.f32 %v5905, %v6284
        %v6348 = vmul.f32 %v5906, %v6285
        %v6349 = vmul.f32 %v5907, %v6286
        %v6350 = vmul.f32 %v5908, %v6287
        %v6351 = vmul.f32 %v5909, %v6288
        %v6352 = vmul.f32 %v5910, %v6289
        %v6353 = vmul.f32 %v5911, %v6290
        %v6354 = vmul.f32 %v5912, %v6291
        %v6355 = vmul.f32 %v5913, %v6292
        %v6356 = vmul.f32 %v5914, %v6293
        %v6357 = vmul.f32 %v5915, %v6294
        %v6358 = vmul.f32 %v5916, %v6295
        %v6359 = vmul.f32 %v5917, %v6296
        %v6360 = vmul.f32 %v5918, %v6297
        %v6361 = vmul.f32 %v5919, %v6298
        %v6362 = vmul.f32 %v5920, %v6299
        %v6363 = vmul.f32 %v5921, %v6300
        %v6364 = vmul.f32 %v5922, %v6301
        %v6365 = vmul.f32 %v5923, %v6302
        %v6366 = vmul.f32 %v5924, %v6303
        %v6367 = vmul.f32 %v5925, %v6304
        %v6368 = vmul.f32 %v5926, %v6305
        %v6369 = vmul.f32 %v5927, %v6306
        %v6370 = vmul.f32 %v5928, %v6307
        %v6371 = vmul.f32 %v5929, %v6308
        %v6372 = vmul.f32 %v5930, %v6309
        %v6373 = vmul.f32 %v5931, %v6310
        %v6374 = vmul.f32 %v5932, %v6311
        %v6375 = vmul.f32 %v5933, %v6312
        %v6376 = vmul.f32 %v5934, %v6313
        %v6377 = vmul.f32 %v5935, %v6314
        %v6378 = vmul.f32 %v5936, %v6315
        %v6379 = vmul.f32 %v5937, %v6316
        %v6380 = vmul.f32 %v5938, %v6317
        %v6381 = vmul.f32 %v5939, %v6318
        %v6382 = vmul.f32 %v5940, %v6319
        %v6383 = vmul.f32 %v5941, %v6320
        %v6384 = vmul.f32 %v5942, %v6321
        %v6385 = vmul.f32 %v5943, %v6322
        %v6386 = vmul.f32 %v5944, %v6323
        %v6387 = vmul.f32 %v5945, %v6324
        %v6388 = vmul.f32 %v5946, %v6325
        %v6389 = vmul.f32 %v5947, %v6326
        %v6390 = vmul.f32 %v5948, %v6327
        %v6391 = vmul.f32 %v5949, %v6328
        %v6392 = vstv %s5000
        %v6393 = vsub.f32 %v6392, %v6329
        %v6394 = vsub.f32 %v6392, %v6330
        %v6395 = vsub.f32 %v6392, %v6331
        %v6396 = vsub.f32 %v6392, %v6332
        %v6397 = vsub.f32 %v6392, %v6333
        %v6398 = vsub.f32 %v6392, %v6334
        %v6399 = vsub.f32 %v6392, %v6335
        %v6400 = vsub.f32 %v6392, %v6336
        %v6401 = vsub.f32 %v6392, %v6337
        %v6402 = vsub.f32 %v6392, %v6338
        %v6403 = vsub.f32 %v6392, %v6339
        %v6404 = vsub.f32 %v6392, %v6340
        %v6405 = vsub.f32 %v6392, %v6341
        %v6406 = vsub.f32 %v6392, %v6342
        %v6407 = vsub.f32 %v6392, %v6343
        %v6408 = vsub.f32 %v6392, %v6344
        %v6409 = vsub.f32 %v6392, %v6345
        %v6410 = vsub.f32 %v6392, %v6346
        %v6411 = vsub.f32 %v6392, %v6347
        %v6412 = vsub.f32 %v6392, %v6348
        %v6413 = vsub.f32 %v6392, %v6349
        %v6414 = vsub.f32 %v6392, %v6350
        %v6415 = vsub.f32 %v6392, %v6351
        %v6416 = vsub.f32 %v6392, %v6352
        %v6417 = vsub.f32 %v6392, %v6353
        %v6418 = vsub.f32 %v6392, %v6354
        %v6419 = vsub.f32 %v6392, %v6355
        %v6420 = vsub.f32 %v6392, %v6356
        %v6421 = vsub.f32 %v6392, %v6357
        %v6422 = vsub.f32 %v6392, %v6358
        %v6423 = vsub.f32 %v6392, %v6359
        %v6424 = vsub.f32 %v6392, %v6360
        %v6425 = vsub.f32 %v6392, %v6361
        %v6426 = vsub.f32 %v6392, %v6362
        %v6427 = vsub.f32 %v6392, %v6363
        %v6428 = vsub.f32 %v6392, %v6364
        %v6429 = vsub.f32 %v6392, %v6365
        %v6430 = vsub.f32 %v6392, %v6366
        %v6431 = vsub.f32 %v6392, %v6367
        %v6432 = vsub.f32 %v6392, %v6368
        %v6433 = vsub.f32 %v6392, %v6369
        %v6434 = vsub.f32 %v6392, %v6370
        %v6435 = vsub.f32 %v6392, %v6371
        %v6436 = vsub.f32 %v6392, %v6372
        %v6437 = vsub.f32 %v6392, %v6373
        %v6438 = vsub.f32 %v6392, %v6374
        %v6439 = vsub.f32 %v6392, %v6375
        %v6440 = vsub.f32 %v6392, %v6376
        %v6441 = vsub.f32 %v6392, %v6377
        %v6442 = vsub.f32 %v6392, %v6378
        %v6443 = vsub.f32 %v6392, %v6379
        %v6444 = vsub.f32 %v6392, %v6380
        %v6445 = vsub.f32 %v6392, %v6381
        %v6446 = vsub.f32 %v6392, %v6382
        %v6447 = vsub.f32 %v6392, %v6383
        %v6448 = vsub.f32 %v6392, %v6384
        %v6449 = vsub.f32 %v6392, %v6385
        %v6450 = vsub.f32 %v6392, %v6386
        %v6451 = vsub.f32 %v6392, %v6387
        %v6452 = vsub.f32 %v6392, %v6388
        %v6453 = vsub.f32 %v6392, %v6389
        %v6454 = vsub.f32 %v6392, %v6390
        %v6455 = vsub.f32 %v6392, %v6391
        %v6456 = vmul.f32 %v5383, %v6266
        %v6457 = vmul.f32 %v5384, %v6267
        %v6458 = vmul.f32 %v5385, %v6268
        %v6459 = vmul.f32 %v5386, %v6269
        %v6460 = vmul.f32 %v5387, %v6270
        %v6461 = vmul.f32 %v5388, %v6271
        %v6462 = vmul.f32 %v5389, %v6272
        %v6463 = vmul.f32 %v5390, %v6273
        %v6464 = vmul.f32 %v5391, %v6274
        %v6465 = vmul.f32 %v5392, %v6275
        %v6466 = vmul.f32 %v5393, %v6276
        %v6467 = vmul.f32 %v5394, %v6277
        %v6468 = vmul.f32 %v5395, %v6278
        %v6469 = vmul.f32 %v5396, %v6279
        %v6470 = vmul.f32 %v5397, %v6280
        %v6471 = vmul.f32 %v5398, %v6281
        %v6472 = vmul.f32 %v5399, %v6282
        %v6473 = vmul.f32 %v5400, %v6283
        %v6474 = vmul.f32 %v5401, %v6284
        %v6475 = vmul.f32 %v5402, %v6285
        %v6476 = vmul.f32 %v5403, %v6286
        %v6477 = vmul.f32 %v5404, %v6287
        %v6478 = vmul.f32 %v5405, %v6288
        %v6479 = vmul.f32 %v5406, %v6289
        %v6480 = vmul.f32 %v5407, %v6290
        %v6481 = vmul.f32 %v5408, %v6291
        %v6482 = vmul.f32 %v5409, %v6292
        %v6483 = vmul.f32 %v5410, %v6293
        %v6484 = vmul.f32 %v5411, %v6294
        %v6485 = vmul.f32 %v5412, %v6295
        %v6486 = vmul.f32 %v5413, %v6296
        %v6487 = vmul.f32 %v5414, %v6297
        %v6488 = vmul.f32 %v5415, %v6298
        %v6489 = vmul.f32 %v5416, %v6299
        %v6490 = vmul.f32 %v5417, %v6300
        %v6491 = vmul.f32 %v5418, %v6301
        %v6492 = vmul.f32 %v5419, %v6302
        %v6493 = vmul.f32 %v5420, %v6303
        %v6494 = vmul.f32 %v5421, %v6304
        %v6495 = vmul.f32 %v5422, %v6305
        %v6496 = vmul.f32 %v5423, %v6306
        %v6497 = vmul.f32 %v5424, %v6307
        %v6498 = vmul.f32 %v5425, %v6308
        %v6499 = vmul.f32 %v5426, %v6309
        %v6500 = vmul.f32 %v5427, %v6310
        %v6501 = vmul.f32 %v5428, %v6311
        %v6502 = vmul.f32 %v5429, %v6312
        %v6503 = vmul.f32 %v5430, %v6313
        %v6504 = vmul.f32 %v5431, %v6314
        %v6505 = vmul.f32 %v5432, %v6315
        %v6506 = vmul.f32 %v5433, %v6316
        %v6507 = vmul.f32 %v5434, %v6317
        %v6508 = vmul.f32 %v5435, %v6318
        %v6509 = vmul.f32 %v5436, %v6319
        %v6510 = vmul.f32 %v5437, %v6320
        %v6511 = vmul.f32 %v5438, %v6321
        %v6512 = vmul.f32 %v5439, %v6322
        %v6513 = vmul.f32 %v5440, %v6323
        %v6514 = vmul.f32 %v5441, %v6324
        %v6515 = vmul.f32 %v5442, %v6325
        %v6516 = vmul.f32 %v5443, %v6326
        %v6517 = vmul.f32 %v5444, %v6327
        %v6518 = vmul.f32 %v5445, %v6328
        %v6519 = vadd.f32 %v6456, %v6393
        %v6520 = vadd.f32 %v6457, %v6394
        %v6521 = vadd.f32 %v6458, %v6395
        %v6522 = vadd.f32 %v6459, %v6396
        %v6523 = vadd.f32 %v6460, %v6397
        %v6524 = vadd.f32 %v6461, %v6398
        %v6525 = vadd.f32 %v6462, %v6399
        %v6526 = vadd.f32 %v6463, %v6400
        %v6527 = vadd.f32 %v6464, %v6401
        %v6528 = vadd.f32 %v6465, %v6402
        %v6529 = vadd.f32 %v6466, %v6403
        %v6530 = vadd.f32 %v6467, %v6404
        %v6531 = vadd.f32 %v6468, %v6405
        %v6532 = vadd.f32 %v6469, %v6406
        %v6533 = vadd.f32 %v6470, %v6407
        %v6534 = vadd.f32 %v6471, %v6408
        %v6535 = vadd.f32 %v6472, %v6409
        %v6536 = vadd.f32 %v6473, %v6410
        %v6537 = vadd.f32 %v6474, %v6411
        %v6538 = vadd.f32 %v6475, %v6412
        %v6539 = vadd.f32 %v6476, %v6413
        %v6540 = vadd.f32 %v6477, %v6414
        %v6541 = vadd.f32 %v6478, %v6415
        %v6542 = vadd.f32 %v6479, %v6416
        %v6543 = vadd.f32 %v6480, %v6417
        %v6544 = vadd.f32 %v6481, %v6418
        %v6545 = vadd.f32 %v6482, %v6419
        %v6546 = vadd.f32 %v6483, %v6420
        %v6547 = vadd.f32 %v6484, %v6421
        %v6548 = vadd.f32 %v6485, %v6422
        %v6549 = vadd.f32 %v6486, %v6423
        %v6550 = vadd.f32 %v6487, %v6424
        %v6551 = vadd.f32 %v6488, %v6425
        %v6552 = vadd.f32 %v6489, %v6426
        %v6553 = vadd.f32 %v6490, %v6427
        %v6554 = vadd.f32 %v6491, %v6428
        %v6555 = vadd.f32 %v6492, %v6429
        %v6556 = vadd.f32 %v6493, %v6430
        %v6557 = vadd.f32 %v6494, %v6431
        %v6558 = vadd.f32 %v6495, %v6432
        %v6559 = vadd.f32 %v6496, %v6433
        %v6560 = vadd.f32 %v6497, %v6434
        %v6561 = vadd.f32 %v6498, %v6435
        %v6562 = vadd.f32 %v6499, %v6436
        %v6563 = vadd.f32 %v6500, %v6437
        %v6564 = vadd.f32 %v6501, %v6438
        %v6565 = vadd.f32 %v6502, %v6439
        %v6566 = vadd.f32 %v6503, %v6440
        %v6567 = vadd.f32 %v6504, %v6441
        %v6568 = vadd.f32 %v6505, %v6442
        %v6569 = vadd.f32 %v6506, %v6443
        %v6570 = vadd.f32 %v6507, %v6444
        %v6571 = vadd.f32 %v6508, %v6445
        %v6572 = vadd.f32 %v6509, %v6446
        %v6573 = vadd.f32 %v6510, %v6447
        %v6574 = vadd.f32 %v6511, %v6448
        %v6575 = vadd.f32 %v6512, %v6449
        %v6576 = vadd.f32 %v6513, %v6450
        %v6577 = vadd.f32 %v6514, %v6451
        %v6578 = vadd.f32 %v6515, %v6452
        %v6579 = vadd.f32 %v6516, %v6453
        %v6580 = vadd.f32 %v6517, %v6454
        %v6581 = vadd.f32 %v6518, %v6455
        %v6582 = vmax.f32 %v6519, 0.0
        %v6583 = vmax.f32 %v6520, 0.0
        %v6584 = vmax.f32 %v6521, 0.0
        %v6585 = vmax.f32 %v6522, 0.0
        %v6586 = vmax.f32 %v6523, 0.0
        %v6587 = vmax.f32 %v6524, 0.0
        %v6588 = vmax.f32 %v6525, 0.0
        %v6589 = vmax.f32 %v6526, 0.0
        %v6590 = vmax.f32 %v6527, 0.0
        %v6591 = vmax.f32 %v6528, 0.0
        %v6592 = vmax.f32 %v6529, 0.0
        %v6593 = vmax.f32 %v6530, 0.0
        %v6594 = vmax.f32 %v6531, 0.0
        %v6595 = vmax.f32 %v6532, 0.0
        %v6596 = vmax.f32 %v6533, 0.0
        %v6597 = vmax.f32 %v6534, 0.0
        %v6598 = vmax.f32 %v6535, 0.0
        %v6599 = vmax.f32 %v6536, 0.0
        %v6600 = vmax.f32 %v6537, 0.0
        %v6601 = vmax.f32 %v6538, 0.0
        %v6602 = vmax.f32 %v6539, 0.0
        %v6603 = vmax.f32 %v6540, 0.0
        %v6604 = vmax.f32 %v6541, 0.0
        %v6605 = vmax.f32 %v6542, 0.0
        %v6606 = vmax.f32 %v6543, 0.0
        %v6607 = vmax.f32 %v6544, 0.0
        %v6608 = vmax.f32 %v6545, 0.0
        %v6609 = vmax.f32 %v6546, 0.0
        %v6610 = vmax.f32 %v6547, 0.0
        %v6611 = vmax.f32 %v6548, 0.0
        %v6612 = vmax.f32 %v6549, 0.0
        %v6613 = vmax.f32 %v6550, 0.0
        %v6614 = vmax.f32 %v6551, 0.0
        %v6615 = vmax.f32 %v6552, 0.0
        %v6616 = vmax.f32 %v6553, 0.0
        %v6617 = vmax.f32 %v6554, 0.0
        %v6618 = vmax.f32 %v6555, 0.0
        %v6619 = vmax.f32 %v6556, 0.0
        %v6620 = vmax.f32 %v6557, 0.0
        %v6621 = vmax.f32 %v6558, 0.0
        %v6622 = vmax.f32 %v6559, 0.0
        %v6623 = vmax.f32 %v6560, 0.0
        %v6624 = vmax.f32 %v6561, 0.0
        %v6625 = vmax.f32 %v6562, 0.0
        %v6626 = vmax.f32 %v6563, 0.0
        %v6627 = vmax.f32 %v6564, 0.0
        %v6628 = vmax.f32 %v6565, 0.0
        %v6629 = vmax.f32 %v6566, 0.0
        %v6630 = vmax.f32 %v6567, 0.0
        %v6631 = vmax.f32 %v6568, 0.0
        %v6632 = vmax.f32 %v6569, 0.0
        %v6633 = vmax.f32 %v6570, 0.0
        %v6634 = vmax.f32 %v6571, 0.0
        %v6635 = vmax.f32 %v6572, 0.0
        %v6636 = vmax.f32 %v6573, 0.0
        %v6637 = vmax.f32 %v6574, 0.0
        %v6638 = vmax.f32 %v6575, 0.0
        %v6639 = vmax.f32 %v6576, 0.0
        %v6640 = vmax.f32 %v6577, 0.0
        %v6641 = vmax.f32 %v6578, 0.0
        %v6642 = vmax.f32 %v6579, 0.0
        %v6643 = vmax.f32 %v6580, 0.0
        %v6644 = vmax.f32 %v6581, 0.0
        %v6645 = vpack.c.bf16 %v6583, %v6582
        %v6646 = vpack.c.bf16 %v6585, %v6584
        %v6647 = vpack.c.bf16 %v6587, %v6586
        %v6648 = vpack.c.bf16 %v6589, %v6588
        %v6649 = vpack.c.bf16 %v6591, %v6590
        %v6650 = vpack.c.bf16 %v6593, %v6592
        %v6651 = vpack.c.bf16 %v6595, %v6594
        %v6652 = vpack.c.bf16 %v6597, %v6596
        %v6653 = vpack.c.bf16 %v6599, %v6598
        %v6654 = vpack.c.bf16 %v6601, %v6600
        %v6655 = vpack.c.bf16 %v6603, %v6602
        %v6656 = vpack.c.bf16 %v6605, %v6604
        %v6657 = vpack.c.bf16 %v6607, %v6606
        %v6658 = vpack.c.bf16 %v6609, %v6608
        %v6659 = vpack.c.bf16 %v6611, %v6610
        %v6660 = vpack.c.bf16 %v6613, %v6612
        %v6661 = vpack.c.bf16 %v6615, %v6614
        %v6662 = vpack.c.bf16 %v6617, %v6616
        %v6663 = vpack.c.bf16 %v6619, %v6618
        %v6664 = vpack.c.bf16 %v6621, %v6620
        %v6665 = vpack.c.bf16 %v6623, %v6622
        %v6666 = vpack.c.bf16 %v6625, %v6624
        %v6667 = vpack.c.bf16 %v6627, %v6626
        %v6668 = vpack.c.bf16 %v6629, %v6628
        %v6669 = vpack.c.bf16 %v6631, %v6630
        %v6670 = vpack.c.bf16 %v6633, %v6632
        %v6671 = vpack.c.bf16 %v6635, %v6634
        %v6672 = vpack.c.bf16 %v6637, %v6636
        %v6673 = vpack.c.bf16 %v6639, %v6638
        %v6674 = vpack.c.bf16 %v6641, %v6640
        %v6675 = vpack.c.bf16 %v6643, %v6642
        %v6676 = vpack.c.bf16 %v6644, %v6644
        %v6677 = vld [vmem:[%s3 + $0x30] sm:$0xf]
        %v6678 = vld [vmem:[%s3 + $0x34] sm:$0xf]
        %v6679 = vld [vmem:[%s3 + $0x38] sm:$0xf]
        %v6680 = vld [vmem:[%s3 + $0x3c] sm:$0xf]
        %v6681 = vld [vmem:[%s3 + $0x40] sm:$0xf]
        %v6682 = vld [vmem:[%s3 + $0x44] sm:$0xf]
        %v6683 = vld [vmem:[%s3 + $0x48] sm:$0xf]
        %v6684 = vld [vmem:[%s3 + $0x4c] sm:$0xf]
        %v6693 = vunpack.c.l.b16 %v6677
        %v6694 = vunpack.c.l.b16 %v6678
        %v6695 = vunpack.c.l.b16 %v6679
        %v6696 = vunpack.c.l.b16 %v6680
        %v6697 = vunpack.c.l.b16 %v6681
        %v6698 = vunpack.c.l.b16 %v6682
        %v6699 = vunpack.c.l.b16 %v6683
        %v6700 = vunpack.c.l.b16 %v6684
        %v6701 = vpack.c.b16 %v6694, %v6693
        %v6702 = vpack.c.b16 %v6696, %v6695
        %v6703 = vpack.c.b16 %v6698, %v6697
        %v6704 = vpack.c.b16 %v6700, %v6699
        %v6710 = vsel %vm3284, %v6645, 0
        %v6713 = vsel %vm3284, %v6646, 0
        %v6716 = vsel %vm3284, %v6647, 0
        %v6719 = vsel %vm3284, %v6648, 0
        %v6722 = vsel %vm3284, %v6649, 0
        %v6725 = vsel %vm3284, %v6650, 0
        %v6728 = vsel %vm3284, %v6651, 0
        %v6731 = vsel %vm3284, %v6652, 0
        %v6734 = vsel %vm3284, %v6653, 0
        %v6737 = vsel %vm3284, %v6654, 0
        %v6740 = vsel %vm3284, %v6655, 0
        %v6743 = vsel %vm3284, %v6656, 0
        %v6746 = vsel %vm3284, %v6657, 0
        %v6749 = vsel %vm3284, %v6658, 0
        %v6752 = vsel %vm3284, %v6659, 0
        %v6755 = vsel %vm3284, %v6660, 0
        %v6758 = vsel %vm3284, %v6661, 0
        %v6761 = vsel %vm3284, %v6662, 0
        %v6764 = vsel %vm3284, %v6663, 0
        %v6767 = vsel %vm3284, %v6664, 0
        %v6770 = vsel %vm3284, %v6665, 0
        %v6773 = vsel %vm3284, %v6666, 0
        %v6776 = vsel %vm3284, %v6667, 0
        %v6779 = vsel %vm3284, %v6668, 0
        %v6782 = vsel %vm3284, %v6669, 0
        %v6785 = vsel %vm3284, %v6670, 0
        %v6788 = vsel %vm3284, %v6671, 0
        %v6791 = vsel %vm3284, %v6672, 0
        %v6794 = vsel %vm3284, %v6673, 0
        %v6797 = vsel %vm3284, %v6674, 0
        %v6800 = vsel %vm3284, %v6675, 0
        %v6803 = vsel %vm3284, %v6676, 0
        %6805 = vmatprep.subr.bf16.mxu0 0
        %6806 = vmatpush1.bf16.msra.mxu0 %v6701
        %6807 = vmatprep.subr.bf16.mxu0 0
        %6808 = vmatpush1.bf16.msra.mxu0 %v6702
        %6809 = vmatprep.subr.bf16.mxu0 0
        %6810 = vmatpush1.bf16.msra.mxu0 %v6703
        %6811 = vmatprep.subr.bf16.mxu0 0
        %6812 = vmatpush1.bf16.msra.mxu0 %v6704
        %6813 = vmatprep.subr.bf16.mxu0 0
        %6814 = vmatpush1.bf16.msra.mxu0 0
        %6815 = vmatprep.subr.bf16.mxu0 0
        %6816 = vmatpush1.bf16.msra.mxu0 0
        %6817 = vmatprep.subr.bf16.mxu0 0
        %6818 = vmatpush1.bf16.msra.mxu0 0
        %6819 = vmatprep.subr.bf16.mxu0 0
        %6820 = vmatpush1.bf16.msra.mxu0 0
        %6821 = vmatprep.subr.bf16.mxu0 0
        %6822 = vmatpush1.bf16.msra.mxu0 0
        %6823 = vmatprep.subr.bf16.mxu0 0
        %6824 = vmatpush1.bf16.msra.mxu0 0
        %6825 = vmatprep.subr.bf16.mxu0 0
        %6826 = vmatpush1.bf16.msra.mxu0 0
        %6827 = vmatprep.subr.bf16.mxu0 0
        %6828 = vmatpush1.bf16.msra.mxu0 0
        %6829 = vmatprep.subr.bf16.mxu0 0
        %6830 = vmatpush1.bf16.msra.mxu0 0
        %6831 = vmatprep.subr.bf16.mxu0 0
        %6832 = vmatpush1.bf16.msra.mxu0 0
        %6833 = vmatprep.subr.bf16.mxu0 0
        %6834 = vmatpush1.bf16.msra.mxu0 0
        %6835 = vmatprep.subr.bf16.mxu0 0
        %6836 = vmatpush1.bf16.msra.mxu0 0
        %6837 = vmatprep.mubr.bf16.mxu0 0
        %6838 = vmatmul.mubr.bf16.gmra.mrb[0].mxu0 %v6710
        %v6839 = vpop.f32.mrb[0].mxu0
        %v6840 = vadd.f32 0.0, %v6839
        %v6841 = vpop.f32.mrb[0].mxu0
        %v6842 = vpop.f32.mrb[0].mxu0
        %v6843 = vadd.f32 0.0, %v6842
        %v6844 = vpop.f32.mrb[0].mxu0
        %6845 = vmatprep.mubr.bf16.mxu0 0
        %6846 = vmatmul.mubr.bf16.gmra.mrb[0].mxu0 %v6713
        %v6847 = vpop.f32.mrb[0].mxu0
        %v6848 = vadd.f32 0.0, %v6847
        %v6849 = vpop.f32.mrb[0].mxu0
        %v6850 = vpop.f32.mrb[0].mxu0
        %v6851 = vadd.f32 0.0, %v6850
        %v6852 = vpop.f32.mrb[0].mxu0
        %6853 = vmatprep.mubr.bf16.mxu0 0
        %6854 = vmatmul.mubr.bf16.gmra.mrb[0].mxu0 %v6716
        %v6855 = vpop.f32.mrb[0].mxu0
        %v6856 = vadd.f32 0.0, %v6855
        %v6857 = vpop.f32.mrb[0].mxu0
        %v6858 = vpop.f32.mrb[0].mxu0
        %v6859 = vadd.f32 0.0, %v6858
        %v6860 = vpop.f32.mrb[0].mxu0
        %6861 = vmatprep.mubr.bf16.mxu0 0
        %6862 = vmatmul.mubr.bf16.gmra.mrb[0].mxu0 %v6719
        %v6863 = vpop.f32.mrb[0].mxu0
        %v6864 = vadd.f32 0.0, %v6863
        %v6865 = vpop.f32.mrb[0].mxu0
        %v6866 = vpop.f32.mrb[0].mxu0
        %v6867 = vadd.f32 0.0, %v6866
        %v6868 = vpop.f32.mrb[0].mxu0
        %6869 = vmatprep.mubr.bf16.mxu0 0
        %6870 = vmatmul.mubr.bf16.gmra.mrb[0].mxu0 %v6722
        %v6871 = vpop.f32.mrb[0].mxu0
        %v6872 = vadd.f32 0.0, %v6871
        %v6873 = vpop.f32.mrb[0].mxu0
        %v6874 = vpop.f32.mrb[0].mxu0
        %v6875 = vadd.f32 0.0, %v6874
        %v6876 = vpop.f32.mrb[0].mxu0
        %6877 = vmatprep.mubr.bf16.mxu0 0
        %6878 = vmatmul.mubr.bf16.gmra.mrb[0].mxu0 %v6725
        %v6879 = vpop.f32.mrb[0].mxu0
        %v6880 = vadd.f32 0.0, %v6879
        %v6881 = vpop.f32.mrb[0].mxu0
        %v6882 = vpop.f32.mrb[0].mxu0
        %v6883 = vadd.f32 0.0, %v6882
        %v6884 = vpop.f32.mrb[0].mxu0
        %6885 = vmatprep.mubr.bf16.mxu0 0
        %6886 = vmatmul.mubr.bf16.gmra.mrb[0].mxu0 %v6728
        %v6887 = vpop.f32.mrb[0].mxu0
        %v6888 = vadd.f32 0.0, %v6887
        %v6889 = vpop.f32.mrb[0].mxu0
        %v6890 = vpop.f32.mrb[0].mxu0
        %v6891 = vadd.f32 0.0, %v6890
        %v6892 = vpop.f32.mrb[0].mxu0
        %6893 = vmatprep.mubr.bf16.mxu0 0
        %6894 = vmatmul.mubr.bf16.gmra.mrb[0].mxu0 %v6731
        %v6895 = vpop.f32.mrb[0].mxu0
        %v6896 = vadd.f32 0.0, %v6895
        %v6897 = vpop.f32.mrb[0].mxu0
        %v6898 = vpop.f32.mrb[0].mxu0
        %v6899 = vadd.f32 0.0, %v6898
        %v6900 = vpop.f32.mrb[0].mxu0
        %6901 = vmatprep.mubr.bf16.mxu0 0
        %6902 = vmatmul.mubr.bf16.gmra.mrb[0].mxu0 %v6734
        %v6903 = vpop.f32.mrb[0].mxu0
        %v6904 = vadd.f32 0.0, %v6903
        %v6905 = vpop.f32.mrb[0].mxu0
        %v6906 = vpop.f32.mrb[0].mxu0
        %v6907 = vadd.f32 0.0, %v6906
        %v6908 = vpop.f32.mrb[0].mxu0
        %6909 = vmatprep.mubr.bf16.mxu0 0
        %6910 = vmatmul.mubr.bf16.gmra.mrb[0].mxu0 %v6737
        %v6911 = vpop.f32.mrb[0].mxu0
        %v6912 = vadd.f32 0.0, %v6911
        %v6913 = vpop.f32.mrb[0].mxu0
        %v6914 = vpop.f32.mrb[0].mxu0
        %v6915 = vadd.f32 0.0, %v6914
        %v6916 = vpop.f32.mrb[0].mxu0
        %6917 = vmatprep.mubr.bf16.mxu0 0
        %6918 = vmatmul.mubr.bf16.gmra.mrb[0].mxu0 %v6740
        %v6919 = vpop.f32.mrb[0].mxu0
        %v6920 = vadd.f32 0.0, %v6919
        %v6921 = vpop.f32.mrb[0].mxu0
        %v6922 = vpop.f32.mrb[0].mxu0
        %v6923 = vadd.f32 0.0, %v6922
        %v6924 = vpop.f32.mrb[0].mxu0
        %6925 = vmatprep.mubr.bf16.mxu0 0
        %6926 = vmatmul.mubr.bf16.gmra.mrb[0].mxu0 %v6743
        %v6927 = vpop.f32.mrb[0].mxu0
        %v6928 = vadd.f32 0.0, %v6927
        %v6929 = vpop.f32.mrb[0].mxu0
        %v6930 = vpop.f32.mrb[0].mxu0
        %v6931 = vadd.f32 0.0, %v6930
        %v6932 = vpop.f32.mrb[0].mxu0
        %6933 = vmatprep.mubr.bf16.mxu0 0
        %6934 = vmatmul.mubr.bf16.gmra.mrb[0].mxu0 %v6746
        %v6935 = vpop.f32.mrb[0].mxu0
        %v6936 = vadd.f32 0.0, %v6935
        %v6937 = vpop.f32.mrb[0].mxu0
        %v6938 = vpop.f32.mrb[0].mxu0
        %v6939 = vadd.f32 0.0, %v6938
        %v6940 = vpop.f32.mrb[0].mxu0
        %6941 = vmatprep.mubr.bf16.mxu0 0
        %6942 = vmatmul.mubr.bf16.gmra.mrb[0].mxu0 %v6749
        %v6943 = vpop.f32.mrb[0].mxu0
        %v6944 = vadd.f32 0.0, %v6943
        %v6945 = vpop.f32.mrb[0].mxu0
        %v6946 = vpop.f32.mrb[0].mxu0
        %v6947 = vadd.f32 0.0, %v6946
        %v6948 = vpop.f32.mrb[0].mxu0
        %6949 = vmatprep.mubr.bf16.mxu0 0
        %6950 = vmatmul.mubr.bf16.gmra.mrb[0].mxu0 %v6752
        %v6951 = vpop.f32.mrb[0].mxu0
        %v6952 = vadd.f32 0.0, %v6951
        %v6953 = vpop.f32.mrb[0].mxu0
        %v6954 = vpop.f32.mrb[0].mxu0
        %v6955 = vadd.f32 0.0, %v6954
        %v6956 = vpop.f32.mrb[0].mxu0
        %6957 = vmatprep.mubr.bf16.mxu0 0
        %6958 = vmatmul.mubr.bf16.gmra.mrb[0].mxu0 %v6755
        %v6959 = vpop.f32.mrb[0].mxu0
        %v6960 = vadd.f32 0.0, %v6959
        %v6961 = vpop.f32.mrb[0].mxu0
        %v6962 = vpop.f32.mrb[0].mxu0
        %v6963 = vadd.f32 0.0, %v6962
        %v6964 = vpop.f32.mrb[0].mxu0
        %6965 = vmatprep.mubr.bf16.mxu0 0
        %6966 = vmatmul.mubr.bf16.gmra.mrb[0].mxu0 %v6758
        %v6967 = vpop.f32.mrb[0].mxu0
        %v6968 = vadd.f32 0.0, %v6967
        %v6969 = vpop.f32.mrb[0].mxu0
        %v6970 = vpop.f32.mrb[0].mxu0
        %v6971 = vadd.f32 0.0, %v6970
        %v6972 = vpop.f32.mrb[0].mxu0
        %6973 = vmatprep.mubr.bf16.mxu0 0
        %6974 = vmatmul.mubr.bf16.gmra.mrb[0].mxu0 %v6761
        %v6975 = vpop.f32.mrb[0].mxu0
        %v6976 = vadd.f32 0.0, %v6975
        %v6977 = vpop.f32.mrb[0].mxu0
        %v6978 = vpop.f32.mrb[0].mxu0
        %v6979 = vadd.f32 0.0, %v6978
        %v6980 = vpop.f32.mrb[0].mxu0
        %6981 = vmatprep.mubr.bf16.mxu0 0
        %6982 = vmatmul.mubr.bf16.gmra.mrb[0].mxu0 %v6764
        %v6983 = vpop.f32.mrb[0].mxu0
        %v6984 = vadd.f32 0.0, %v6983
        %v6985 = vpop.f32.mrb[0].mxu0
        %v6986 = vpop.f32.mrb[0].mxu0
        %v6987 = vadd.f32 0.0, %v6986
        %v6988 = vpop.f32.mrb[0].mxu0
        %6989 = vmatprep.mubr.bf16.mxu0 0
        %6990 = vmatmul.mubr.bf16.gmra.mrb[0].mxu0 %v6767
        %v6991 = vpop.f32.mrb[0].mxu0
        %v6992 = vadd.f32 0.0, %v6991
        %v6993 = vpop.f32.mrb[0].mxu0
        %v6994 = vpop.f32.mrb[0].mxu0
        %v6995 = vadd.f32 0.0, %v6994
        %v6996 = vpop.f32.mrb[0].mxu0
        %6997 = vmatprep.mubr.bf16.mxu0 0
        %6998 = vmatmul.mubr.bf16.gmra.mrb[0].mxu0 %v6770
        %v6999 = vpop.f32.mrb[0].mxu0
        %v7000 = vadd.f32 0.0, %v6999
        %v7001 = vpop.f32.mrb[0].mxu0
        %v7002 = vpop.f32.mrb[0].mxu0
        %v7003 = vadd.f32 0.0, %v7002
        %v7004 = vpop.f32.mrb[0].mxu0
        %7005 = vmatprep.mubr.bf16.mxu0 0
        %7006 = vmatmul.mubr.bf16.gmra.mrb[0].mxu0 %v6773
        %v7007 = vpop.f32.mrb[0].mxu0
        %v7008 = vadd.f32 0.0, %v7007
        %v7009 = vpop.f32.mrb[0].mxu0
        %v7010 = vpop.f32.mrb[0].mxu0
        %v7011 = vadd.f32 0.0, %v7010
        %v7012 = vpop.f32.mrb[0].mxu0
        %7013 = vmatprep.mubr.bf16.mxu0 0
        %7014 = vmatmul.mubr.bf16.gmra.mrb[0].mxu0 %v6776
        %v7015 = vpop.f32.mrb[0].mxu0
        %v7016 = vadd.f32 0.0, %v7015
        %v7017 = vpop.f32.mrb[0].mxu0
        %v7018 = vpop.f32.mrb[0].mxu0
        %v7019 = vadd.f32 0.0, %v7018
        %v7020 = vpop.f32.mrb[0].mxu0
        %7021 = vmatprep.mubr.bf16.mxu0 0
        %7022 = vmatmul.mubr.bf16.gmra.mrb[0].mxu0 %v6779
        %v7023 = vpop.f32.mrb[0].mxu0
        %v7024 = vadd.f32 0.0, %v7023
        %v7025 = vpop.f32.mrb[0].mxu0
        %v7026 = vpop.f32.mrb[0].mxu0
        %v7027 = vadd.f32 0.0, %v7026
        %v7028 = vpop.f32.mrb[0].mxu0
        %7029 = vmatprep.mubr.bf16.mxu0 0
        %7030 = vmatmul.mubr.bf16.gmra.mrb[0].mxu0 %v6782
        %v7031 = vpop.f32.mrb[0].mxu0
        %v7032 = vadd.f32 0.0, %v7031
        %v7033 = vpop.f32.mrb[0].mxu0
        %v7034 = vpop.f32.mrb[0].mxu0
        %v7035 = vadd.f32 0.0, %v7034
        %v7036 = vpop.f32.mrb[0].mxu0
        %7037 = vmatprep.mubr.bf16.mxu0 0
        %7038 = vmatmul.mubr.bf16.gmra.mrb[0].mxu0 %v6785
        %v7039 = vpop.f32.mrb[0].mxu0
        %v7040 = vadd.f32 0.0, %v7039
        %v7041 = vpop.f32.mrb[0].mxu0
        %v7042 = vpop.f32.mrb[0].mxu0
        %v7043 = vadd.f32 0.0, %v7042
        %v7044 = vpop.f32.mrb[0].mxu0
        %7045 = vmatprep.mubr.bf16.mxu0 0
        %7046 = vmatmul.mubr.bf16.gmra.mrb[0].mxu0 %v6788
        %v7047 = vpop.f32.mrb[0].mxu0
        %v7048 = vadd.f32 0.0, %v7047
        %v7049 = vpop.f32.mrb[0].mxu0
        %v7050 = vpop.f32.mrb[0].mxu0
        %v7051 = vadd.f32 0.0, %v7050
        %v7052 = vpop.f32.mrb[0].mxu0
        %7053 = vmatprep.mubr.bf16.mxu0 0
        %7054 = vmatmul.mubr.bf16.gmra.mrb[0].mxu0 %v6791
        %v7055 = vpop.f32.mrb[0].mxu0
        %v7056 = vadd.f32 0.0, %v7055
        %v7057 = vpop.f32.mrb[0].mxu0
        %v7058 = vpop.f32.mrb[0].mxu0
        %v7059 = vadd.f32 0.0, %v7058
        %v7060 = vpop.f32.mrb[0].mxu0
        %7061 = vmatprep.mubr.bf16.mxu0 0
        %7062 = vmatmul.mubr.bf16.gmra.mrb[0].mxu0 %v6794
        %v7063 = vpop.f32.mrb[0].mxu0
        %v7064 = vadd.f32 0.0, %v7063
        %v7065 = vpop.f32.mrb[0].mxu0
        %v7066 = vpop.f32.mrb[0].mxu0
        %v7067 = vadd.f32 0.0, %v7066
        %v7068 = vpop.f32.mrb[0].mxu0
        %7069 = vmatprep.mubr.bf16.mxu0 0
        %7070 = vmatmul.mubr.bf16.gmra.mrb[0].mxu0 %v6797
        %v7071 = vpop.f32.mrb[0].mxu0
        %v7072 = vadd.f32 0.0, %v7071
        %v7073 = vpop.f32.mrb[0].mxu0
        %v7074 = vpop.f32.mrb[0].mxu0
        %v7075 = vadd.f32 0.0, %v7074
        %v7076 = vpop.f32.mrb[0].mxu0
        %7077 = vmatprep.mubr.bf16.mxu0 0
        %7078 = vmatmul.mubr.bf16.gmra.mrb[0].mxu0 %v6800
        %v7079 = vpop.f32.mrb[0].mxu0
        %v7080 = vadd.f32 0.0, %v7079
        %v7081 = vpop.f32.mrb[0].mxu0
        %v7082 = vpop.f32.mrb[0].mxu0
        %v7083 = vadd.f32 0.0, %v7082
        %v7084 = vpop.f32.mrb[0].mxu0
        %7085 = vmatprep.mubr.bf16.mxu0 0
        %7086 = vmatmul.mubr.bf16.gmra.mrb[0].mxu0 %v6803
        %v7087 = vpop.f32.mrb[0].mxu0
        %v7088 = vadd.f32 0.0, %v7087
        %v7089 = vpop.f32.mrb[0].mxu0
        %v7090 = vpop.f32.mrb[0].mxu0
        %v7091 = vpop.f32.mrb[0].mxu0
        %7092 = vdwg.mxu0
        %v7093 = vadd.f32 %v4932, %v6840
        %v7094 = vadd.f32 %v4933, %v6843
        %v7095 = vadd.f32 %v4934, %v6848
        %v7096 = vadd.f32 %v4935, %v6851
        %v7097 = vadd.f32 %v4936, %v6856
        %v7098 = vadd.f32 %v4937, %v6859
        %v7099 = vadd.f32 %v4938, %v6864
        %v7100 = vadd.f32 %v4939, %v6867
        %v7101 = vadd.f32 %v4940, %v6872
        %v7102 = vadd.f32 %v4941, %v6875
        %v7103 = vadd.f32 %v4942, %v6880
        %v7104 = vadd.f32 %v4943, %v6883
        %v7105 = vadd.f32 %v4944, %v6888
        %v7106 = vadd.f32 %v4945, %v6891
        %v7107 = vadd.f32 %v4946, %v6896
        %v7108 = vadd.f32 %v4947, %v6899
        %v7109 = vadd.f32 %v4948, %v6904
        %v7110 = vadd.f32 %v4949, %v6907
        %v7111 = vadd.f32 %v4950, %v6912
        %v7112 = vadd.f32 %v4951, %v6915
        %v7113 = vadd.f32 %v4952, %v6920
        %v7114 = vadd.f32 %v4953, %v6923
        %v7115 = vadd.f32 %v4954, %v6928
        %v7116 = vadd.f32 %v4955, %v6931
        %v7117 = vadd.f32 %v4956, %v6936
        %v7118 = vadd.f32 %v4957, %v6939
        %v7119 = vadd.f32 %v4958, %v6944
        %v7120 = vadd.f32 %v4959, %v6947
        %v7121 = vadd.f32 %v4960, %v6952
        %v7122 = vadd.f32 %v4961, %v6955
        %v7123 = vadd.f32 %v4962, %v6960
        %v7124 = vadd.f32 %v4963, %v6963
        %v7125 = vadd.f32 %v4964, %v6968
        %v7126 = vadd.f32 %v4965, %v6971
        %v7127 = vadd.f32 %v4966, %v6976
        %v7128 = vadd.f32 %v4967, %v6979
        %v7129 = vadd.f32 %v4968, %v6984
        %v7130 = vadd.f32 %v4969, %v6987
        %v7131 = vadd.f32 %v4970, %v6992
        %v7132 = vadd.f32 %v4971, %v6995
        %v7133 = vadd.f32 %v4972, %v7000
        %v7134 = vadd.f32 %v4973, %v7003
        %v7135 = vadd.f32 %v4974, %v7008
        %v7136 = vadd.f32 %v4975, %v7011
        %v7137 = vadd.f32 %v4976, %v7016
        %v7138 = vadd.f32 %v4977, %v7019
        %v7139 = vadd.f32 %v4978, %v7024
        %v7140 = vadd.f32 %v4979, %v7027
        %v7141 = vadd.f32 %v4980, %v7032
        %v7142 = vadd.f32 %v4981, %v7035
        %v7143 = vadd.f32 %v4982, %v7040
        %v7144 = vadd.f32 %v4983, %v7043
        %v7145 = vadd.f32 %v4984, %v7048
        %v7146 = vadd.f32 %v4985, %v7051
        %v7147 = vadd.f32 %v4986, %v7056
        %v7148 = vadd.f32 %v4987, %v7059
        %v7149 = vadd.f32 %v4988, %v7064
        %v7150 = vadd.f32 %v4989, %v7067
        %v7151 = vadd.f32 %v4990, %v7072
        %v7152 = vadd.f32 %v4991, %v7075
        %v7153 = vadd.f32 %v4992, %v7080
        %v7154 = vadd.f32 %v4993, %v7083
        %v7155 = vadd.f32 %v4994, %v7088
        %s7156 = sld [smem:[#allocation2 + $0x100]]
        %s7157 = sld [smem:[#allocation2 + $0x101]]
        %s7158 = sld [smem:[#allocation2 + $0x102]]
        %s7159 = sld [smem:[#allocation2 + $0x103]]
        %s7160 = sld [smem:[#allocation2 + $0x104]]
        %s7161 = sld [smem:[#allocation2 + $0x105]]
        %v7162 = vstv %s7156
        %v7163 = vmul.f32 %v7162, %v1373
        %v7164 = vmul.f32 %v7162, %v1374
        %v7165 = vmul.f32 %v7162, %v1375
        %v7166 = vmul.f32 %v7162, %v1376
        %v7167 = vmul.f32 %v7162, %v1377
        %v7168 = vmul.f32 %v7162, %v1378
        %v7169 = vmul.f32 %v7162, %v1379
        %v7170 = vmul.f32 %v7162, %v1380
        %v7171 = vmul.f32 %v7162, %v1381
        %v7172 = vmul.f32 %v7162, %v1382
        %v7173 = vmul.f32 %v7162, %v1383
        %v7174 = vmul.f32 %v7162, %v1384
        %v7175 = vmul.f32 %v7162, %v1385
        %v7176 = vmul.f32 %v7162, %v1386
        %v7177 = vmul.f32 %v7162, %v1387
        %v7178 = vmul.f32 %v7162, %v1388
        %v7179 = vmul.f32 %v7162, %v1389
        %v7180 = vmul.f32 %v7162, %v1390
        %v7181 = vmul.f32 %v7162, %v1391
        %v7182 = vmul.f32 %v7162, %v1392
        %v7183 = vmul.f32 %v7162, %v1393
        %v7184 = vmul.f32 %v7162, %v1394
        %v7185 = vmul.f32 %v7162, %v1395
        %v7186 = vmul.f32 %v7162, %v1396
        %v7187 = vmul.f32 %v7162, %v1397
        %v7188 = vmul.f32 %v7162, %v1398
        %v7189 = vmul.f32 %v7162, %v1399
        %v7190 = vmul.f32 %v7162, %v1400
        %v7191 = vmul.f32 %v7162, %v1401
        %v7192 = vmul.f32 %v7162, %v1402
        %v7193 = vmul.f32 %v7162, %v1403
        %v7194 = vmul.f32 %v7162, %v1404
        %v7195 = vmul.f32 %v7162, %v1405
        %v7196 = vmul.f32 %v7162, %v1406
        %v7197 = vmul.f32 %v7162, %v1407
        %v7198 = vmul.f32 %v7162, %v1408
        %v7199 = vmul.f32 %v7162, %v1409
        %v7200 = vmul.f32 %v7162, %v1410
        %v7201 = vmul.f32 %v7162, %v1411
        %v7202 = vmul.f32 %v7162, %v1412
        %v7203 = vmul.f32 %v7162, %v1413
        %v7204 = vmul.f32 %v7162, %v1414
        %v7205 = vmul.f32 %v7162, %v1415
        %v7206 = vmul.f32 %v7162, %v1416
        %v7207 = vmul.f32 %v7162, %v1417
        %v7208 = vmul.f32 %v7162, %v1418
        %v7209 = vmul.f32 %v7162, %v1419
        %v7210 = vmul.f32 %v7162, %v1420
        %v7211 = vmul.f32 %v7162, %v1421
        %v7212 = vmul.f32 %v7162, %v1422
        %v7213 = vmul.f32 %v7162, %v1423
        %v7214 = vmul.f32 %v7162, %v1424
        %v7215 = vmul.f32 %v7162, %v1425
        %v7216 = vmul.f32 %v7162, %v1426
        %v7217 = vmul.f32 %v7162, %v1427
        %v7218 = vmul.f32 %v7162, %v1428
        %v7219 = vmul.f32 %v7162, %v1429
        %v7220 = vmul.f32 %v7162, %v1430
        %v7221 = vmul.f32 %v7162, %v1431
        %v7222 = vmul.f32 %v7162, %v1432
        %v7223 = vmul.f32 %v7162, %v1433
        %v7224 = vmul.f32 %v7162, %v1434
        %v7225 = vmul.f32 %v7162, %v1435
        %v7226 = vstv %s7157
        %v7227 = vmul.f32 %v7226, %v1500
        %v7228 = vmul.f32 %v7226, %v1501
        %v7229 = vmul.f32 %v7226, %v1502
        %v7230 = vmul.f32 %v7226, %v1503
        %v7231 = vmul.f32 %v7226, %v1504
        %v7232 = vmul.f32 %v7226, %v1505
        %v7233 = vmul.f32 %v7226, %v1506
        %v7234 = vmul.f32 %v7226, %v1507
        %v7235 = vmul.f32 %v7226, %v1508
        %v7236 = vmul.f32 %v7226, %v1509
        %v7237 = vmul.f32 %v7226, %v1510
        %v7238 = vmul.f32 %v7226, %v1511
        %v7239 = vmul.f32 %v7226, %v1512
        %v7240 = vmul.f32 %v7226, %v1513
        %v7241 = vmul.f32 %v7226, %v1514
        %v7242 = vmul.f32 %v7226, %v1515
        %v7243 = vmul.f32 %v7226, %v1516
        %v7244 = vmul.f32 %v7226, %v1517
        %v7245 = vmul.f32 %v7226, %v1518
        %v7246 = vmul.f32 %v7226, %v1519
        %v7247 = vmul.f32 %v7226, %v1520
        %v7248 = vmul.f32 %v7226, %v1521
        %v7249 = vmul.f32 %v7226, %v1522
        %v7250 = vmul.f32 %v7226, %v1523
        %v7251 = vmul.f32 %v7226, %v1524
        %v7252 = vmul.f32 %v7226, %v1525
        %v7253 = vmul.f32 %v7226, %v1526
        %v7254 = vmul.f32 %v7226, %v1527
        %v7255 = vmul.f32 %v7226, %v1528
        %v7256 = vmul.f32 %v7226, %v1529
        %v7257 = vmul.f32 %v7226, %v1530
        %v7258 = vmul.f32 %v7226, %v1531
        %v7259 = vmul.f32 %v7226, %v1532
        %v7260 = vmul.f32 %v7226, %v1533
        %v7261 = vmul.f32 %v7226, %v1534
        %v7262 = vmul.f32 %v7226, %v1535
        %v7263 = vmul.f32 %v7226, %v1536
        %v7264 = vmul.f32 %v7226, %v1537
        %v7265 = vmul.f32 %v7226, %v1538
        %v7266 = vmul.f32 %v7226, %v1539
        %v7267 = vmul.f32 %v7226, %v1540
        %v7268 = vmul.f32 %v7226, %v1541
        %v7269 = vmul.f32 %v7226, %v1542
        %v7270 = vmul.f32 %v7226, %v1543
        %v7271 = vmul.f32 %v7226, %v1544
        %v7272 = vmul.f32 %v7226, %v1545
        %v7273 = vmul.f32 %v7226, %v1546
        %v7274 = vmul.f32 %v7226, %v1547
        %v7275 = vmul.f32 %v7226, %v1548
        %v7276 = vmul.f32 %v7226, %v1549
        %v7277 = vmul.f32 %v7226, %v1550
        %v7278 = vmul.f32 %v7226, %v1551
        %v7279 = vmul.f32 %v7226, %v1552
        %v7280 = vmul.f32 %v7226, %v1553
        %v7281 = vmul.f32 %v7226, %v1554
        %v7282 = vmul.f32 %v7226, %v1555
        %v7283 = vmul.f32 %v7226, %v1556
        %v7284 = vmul.f32 %v7226, %v1557
        %v7285 = vmul.f32 %v7226, %v1558
        %v7286 = vmul.f32 %v7226, %v1559
        %v7287 = vmul.f32 %v7226, %v1560
        %v7288 = vmul.f32 %v7226, %v1561
        %v7289 = vmul.f32 %v7226, %v1562
        %v7290 = vadd.f32 %v7163, %v7227
        %v7291 = vadd.f32 %v7164, %v7228
        %v7292 = vadd.f32 %v7165, %v7229
        %v7293 = vadd.f32 %v7166, %v7230
        %v7294 = vadd.f32 %v7167, %v7231
        %v7295 = vadd.f32 %v7168, %v7232
        %v7296 = vadd.f32 %v7169, %v7233
        %v7297 = vadd.f32 %v7170, %v7234
        %v7298 = vadd.f32 %v7171, %v7235
        %v7299 = vadd.f32 %v7172, %v7236
        %v7300 = vadd.f32 %v7173, %v7237
        %v7301 = vadd.f32 %v7174, %v7238
        %v7302 = vadd.f32 %v7175, %v7239
        %v7303 = vadd.f32 %v7176, %v7240
        %v7304 = vadd.f32 %v7177, %v7241
        %v7305 = vadd.f32 %v7178, %v7242
        %v7306 = vadd.f32 %v7179, %v7243
        %v7307 = vadd.f32 %v7180, %v7244
        %v7308 = vadd.f32 %v7181, %v7245
        %v7309 = vadd.f32 %v7182, %v7246
        %v7310 = vadd.f32 %v7183, %v7247
        %v7311 = vadd.f32 %v7184, %v7248
        %v7312 = vadd.f32 %v7185, %v7249
        %v7313 = vadd.f32 %v7186, %v7250
        %v7314 = vadd.f32 %v7187, %v7251
        %v7315 = vadd.f32 %v7188, %v7252
        %v7316 = vadd.f32 %v7189, %v7253
        %v7317 = vadd.f32 %v7190, %v7254
        %v7318 = vadd.f32 %v7191, %v7255
        %v7319 = vadd.f32 %v7192, %v7256
        %v7320 = vadd.f32 %v7193, %v7257
        %v7321 = vadd.f32 %v7194, %v7258
        %v7322 = vadd.f32 %v7195, %v7259
        %v7323 = vadd.f32 %v7196, %v7260
        %v7324 = vadd.f32 %v7197, %v7261
        %v7325 = vadd.f32 %v7198, %v7262
        %v7326 = vadd.f32 %v7199, %v7263
        %v7327 = vadd.f32 %v7200, %v7264
        %v7328 = vadd.f32 %v7201, %v7265
        %v7329 = vadd.f32 %v7202, %v7266
        %v7330 = vadd.f32 %v7203, %v7267
        %v7331 = vadd.f32 %v7204, %v7268
        %v7332 = vadd.f32 %v7205, %v7269
        %v7333 = vadd.f32 %v7206, %v7270
        %v7334 = vadd.f32 %v7207, %v7271
        %v7335 = vadd.f32 %v7208, %v7272
        %v7336 = vadd.f32 %v7209, %v7273
        %v7337 = vadd.f32 %v7210, %v7274
        %v7338 = vadd.f32 %v7211, %v7275
        %v7339 = vadd.f32 %v7212, %v7276
        %v7340 = vadd.f32 %v7213, %v7277
        %v7341 = vadd.f32 %v7214, %v7278
        %v7342 = vadd.f32 %v7215, %v7279
        %v7343 = vadd.f32 %v7216, %v7280
        %v7344 = vadd.f32 %v7217, %v7281
        %v7345 = vadd.f32 %v7218, %v7282
        %v7346 = vadd.f32 %v7219, %v7283
        %v7347 = vadd.f32 %v7220, %v7284
        %v7348 = vadd.f32 %v7221, %v7285
        %v7349 = vadd.f32 %v7222, %v7286
        %v7350 = vadd.f32 %v7223, %v7287
        %v7351 = vadd.f32 %v7224, %v7288
        %v7352 = vadd.f32 %v7225, %v7289
        %v7353 = vstv %s7158
        %v7354 = vmul.f32 %v7353, %v1627
        %v7355 = vmul.f32 %v7353, %v1628
        %v7356 = vmul.f32 %v7353, %v1629
        %v7357 = vmul.f32 %v7353, %v1630
        %v7358 = vmul.f32 %v7353, %v1631
        %v7359 = vmul.f32 %v7353, %v1632
        %v7360 = vmul.f32 %v7353, %v1633
        %v7361 = vmul.f32 %v7353, %v1634
        %v7362 = vmul.f32 %v7353, %v1635
        %v7363 = vmul.f32 %v7353, %v1636
        %v7364 = vmul.f32 %v7353, %v1637
        %v7365 = vmul.f32 %v7353, %v1638
        %v7366 = vmul.f32 %v7353, %v1639
        %v7367 = vmul.f32 %v7353, %v1640
        %v7368 = vmul.f32 %v7353, %v1641
        %v7369 = vmul.f32 %v7353, %v1642
        %v7370 = vmul.f32 %v7353, %v1643
        %v7371 = vmul.f32 %v7353, %v1644
        %v7372 = vmul.f32 %v7353, %v1645
        %v7373 = vmul.f32 %v7353, %v1646
        %v7374 = vmul.f32 %v7353, %v1647
        %v7375 = vmul.f32 %v7353, %v1648
        %v7376 = vmul.f32 %v7353, %v1649
        %v7377 = vmul.f32 %v7353, %v1650
        %v7378 = vmul.f32 %v7353, %v1651
        %v7379 = vmul.f32 %v7353, %v1652
        %v7380 = vmul.f32 %v7353, %v1653
        %v7381 = vmul.f32 %v7353, %v1654
        %v7382 = vmul.f32 %v7353, %v1655
        %v7383 = vmul.f32 %v7353, %v1656
        %v7384 = vmul.f32 %v7353, %v1657
        %v7385 = vmul.f32 %v7353, %v1658
        %v7386 = vmul.f32 %v7353, %v1659
        %v7387 = vmul.f32 %v7353, %v1660
        %v7388 = vmul.f32 %v7353, %v1661
        %v7389 = vmul.f32 %v7353, %v1662
        %v7390 = vmul.f32 %v7353, %v1663
        %v7391 = vmul.f32 %v7353, %v1664
        %v7392 = vmul.f32 %v7353, %v1665
        %v7393 = vmul.f32 %v7353, %v1666
        %v7394 = vmul.f32 %v7353, %v1667
        %v7395 = vmul.f32 %v7353, %v1668
        %v7396 = vmul.f32 %v7353, %v1669
        %v7397 = vmul.f32 %v7353, %v1670
        %v7398 = vmul.f32 %v7353, %v1671
        %v7399 = vmul.f32 %v7353, %v1672
        %v7400 = vmul.f32 %v7353, %v1673
        %v7401 = vmul.f32 %v7353, %v1674
        %v7402 = vmul.f32 %v7353, %v1675
        %v7403 = vmul.f32 %v7353, %v1676
        %v7404 = vmul.f32 %v7353, %v1677
        %v7405 = vmul.f32 %v7353, %v1678
        %v7406 = vmul.f32 %v7353, %v1679
        %v7407 = vmul.f32 %v7353, %v1680
        %v7408 = vmul.f32 %v7353, %v1681
        %v7409 = vmul.f32 %v7353, %v1682
        %v7410 = vmul.f32 %v7353, %v1683
        %v7411 = vmul.f32 %v7353, %v1684
        %v7412 = vmul.f32 %v7353, %v1685
        %v7413 = vmul.f32 %v7353, %v1686
        %v7414 = vmul.f32 %v7353, %v1687
        %v7415 = vmul.f32 %v7353, %v1688
        %v7416 = vmul.f32 %v7353, %v1689
        %v7417 = vadd.f32 %v7290, %v7354
        %v7418 = vadd.f32 %v7291, %v7355
        %v7419 = vadd.f32 %v7292, %v7356
        %v7420 = vadd.f32 %v7293, %v7357
        %v7421 = vadd.f32 %v7294, %v7358
        %v7422 = vadd.f32 %v7295, %v7359
        %v7423 = vadd.f32 %v7296, %v7360
        %v7424 = vadd.f32 %v7297, %v7361
        %v7425 = vadd.f32 %v7298, %v7362
        %v7426 = vadd.f32 %v7299, %v7363
        %v7427 = vadd.f32 %v7300, %v7364
        %v7428 = vadd.f32 %v7301, %v7365
        %v7429 = vadd.f32 %v7302, %v7366
        %v7430 = vadd.f32 %v7303, %v7367
        %v7431 = vadd.f32 %v7304, %v7368
        %v7432 = vadd.f32 %v7305, %v7369
        %v7433 = vadd.f32 %v7306, %v7370
        %v7434 = vadd.f32 %v7307, %v7371
        %v7435 = vadd.f32 %v7308, %v7372
        %v7436 = vadd.f32 %v7309, %v7373
        %v7437 = vadd.f32 %v7310, %v7374
        %v7438 = vadd.f32 %v7311, %v7375
        %v7439 = vadd.f32 %v7312, %v7376
        %v7440 = vadd.f32 %v7313, %v7377
        %v7441 = vadd.f32 %v7314, %v7378
        %v7442 = vadd.f32 %v7315, %v7379
        %v7443 = vadd.f32 %v7316, %v7380
        %v7444 = vadd.f32 %v7317, %v7381
        %v7445 = vadd.f32 %v7318, %v7382
        %v7446 = vadd.f32 %v7319, %v7383
        %v7447 = vadd.f32 %v7320, %v7384
        %v7448 = vadd.f32 %v7321, %v7385
        %v7449 = vadd.f32 %v7322, %v7386
        %v7450 = vadd.f32 %v7323, %v7387
        %v7451 = vadd.f32 %v7324, %v7388
        %v7452 = vadd.f32 %v7325, %v7389
        %v7453 = vadd.f32 %v7326, %v7390
        %v7454 = vadd.f32 %v7327, %v7391
        %v7455 = vadd.f32 %v7328, %v7392
        %v7456 = vadd.f32 %v7329, %v7393
        %v7457 = vadd.f32 %v7330, %v7394
        %v7458 = vadd.f32 %v7331, %v7395
        %v7459 = vadd.f32 %v7332, %v7396
        %v7460 = vadd.f32 %v7333, %v7397
        %v7461 = vadd.f32 %v7334, %v7398
        %v7462 = vadd.f32 %v7335, %v7399
        %v7463 = vadd.f32 %v7336, %v7400
        %v7464 = vadd.f32 %v7337, %v7401
        %v7465 = vadd.f32 %v7338, %v7402
        %v7466 = vadd.f32 %v7339, %v7403
        %v7467 = vadd.f32 %v7340, %v7404
        %v7468 = vadd.f32 %v7341, %v7405
        %v7469 = vadd.f32 %v7342, %v7406
        %v7470 = vadd.f32 %v7343, %v7407
        %v7471 = vadd.f32 %v7344, %v7408
        %v7472 = vadd.f32 %v7345, %v7409
        %v7473 = vadd.f32 %v7346, %v7410
        %v7474 = vadd.f32 %v7347, %v7411
        %v7475 = vadd.f32 %v7348, %v7412
        %v7476 = vadd.f32 %v7349, %v7413
        %v7477 = vadd.f32 %v7350, %v7414
        %v7478 = vadd.f32 %v7351, %v7415
        %v7479 = vadd.f32 %v7352, %v7416
        %v7480 = vstv %s7159
        %v7481 = vmul.f32 %v7480, %v1754
        %v7482 = vmul.f32 %v7480, %v1755
        %v7483 = vmul.f32 %v7480, %v1756
        %v7484 = vmul.f32 %v7480, %v1757
        %v7485 = vmul.f32 %v7480, %v1758
        %v7486 = vmul.f32 %v7480, %v1759
        %v7487 = vmul.f32 %v7480, %v1760
        %v7488 = vmul.f32 %v7480, %v1761
        %v7489 = vmul.f32 %v7480, %v1762
        %v7490 = vmul.f32 %v7480, %v1763
        %v7491 = vmul.f32 %v7480, %v1764
        %v7492 = vmul.f32 %v7480, %v1765
        %v7493 = vmul.f32 %v7480, %v1766
        %v7494 = vmul.f32 %v7480, %v1767
        %v7495 = vmul.f32 %v7480, %v1768
        %v7496 = vmul.f32 %v7480, %v1769
        %v7497 = vmul.f32 %v7480, %v1770
        %v7498 = vmul.f32 %v7480, %v1771
        %v7499 = vmul.f32 %v7480, %v1772
        %v7500 = vmul.f32 %v7480, %v1773
        %v7501 = vmul.f32 %v7480, %v1774
        %v7502 = vmul.f32 %v7480, %v1775
        %v7503 = vmul.f32 %v7480, %v1776
        %v7504 = vmul.f32 %v7480, %v1777
        %v7505 = vmul.f32 %v7480, %v1778
        %v7506 = vmul.f32 %v7480, %v1779
        %v7507 = vmul.f32 %v7480, %v1780
        %v7508 = vmul.f32 %v7480, %v1781
        %v7509 = vmul.f32 %v7480, %v1782
        %v7510 = vmul.f32 %v7480, %v1783
        %v7511 = vmul.f32 %v7480, %v1784
        %v7512 = vmul.f32 %v7480, %v1785
        %v7513 = vmul.f32 %v7480, %v1786
        %v7514 = vmul.f32 %v7480, %v1787
        %v7515 = vmul.f32 %v7480, %v1788
        %v7516 = vmul.f32 %v7480, %v1789
        %v7517 = vmul.f32 %v7480, %v1790
        %v7518 = vmul.f32 %v7480, %v1791
        %v7519 = vmul.f32 %v7480, %v1792
        %v7520 = vmul.f32 %v7480, %v1793
        %v7521 = vmul.f32 %v7480, %v1794
        %v7522 = vmul.f32 %v7480, %v1795
        %v7523 = vmul.f32 %v7480, %v1796
        %v7524 = vmul.f32 %v7480, %v1797
        %v7525 = vmul.f32 %v7480, %v1798
        %v7526 = vmul.f32 %v7480, %v1799
        %v7527 = vmul.f32 %v7480, %v1800
        %v7528 = vmul.f32 %v7480, %v1801
        %v7529 = vmul.f32 %v7480, %v1802
        %v7530 = vmul.f32 %v7480, %v1803
        %v7531 = vmul.f32 %v7480, %v1804
        %v7532 = vmul.f32 %v7480, %v1805
        %v7533 = vmul.f32 %v7480, %v1806
        %v7534 = vmul.f32 %v7480, %v1807
        %v7535 = vmul.f32 %v7480, %v1808
        %v7536 = vmul.f32 %v7480, %v1809
        %v7537 = vmul.f32 %v7480, %v1810
        %v7538 = vmul.f32 %v7480, %v1811
        %v7539 = vmul.f32 %v7480, %v1812
        %v7540 = vmul.f32 %v7480, %v1813
        %v7541 = vmul.f32 %v7480, %v1814
        %v7542 = vmul.f32 %v7480, %v1815
        %v7543 = vmul.f32 %v7480, %v1816
        %v7544 = vadd.f32 %v7417, %v7481
        %v7545 = vadd.f32 %v7418, %v7482
        %v7546 = vadd.f32 %v7419, %v7483
        %v7547 = vadd.f32 %v7420, %v7484
        %v7548 = vadd.f32 %v7421, %v7485
        %v7549 = vadd.f32 %v7422, %v7486
        %v7550 = vadd.f32 %v7423, %v7487
        %v7551 = vadd.f32 %v7424, %v7488
        %v7552 = vadd.f32 %v7425, %v7489
        %v7553 = vadd.f32 %v7426, %v7490
        %v7554 = vadd.f32 %v7427, %v7491
        %v7555 = vadd.f32 %v7428, %v7492
        %v7556 = vadd.f32 %v7429, %v7493
        %v7557 = vadd.f32 %v7430, %v7494
        %v7558 = vadd.f32 %v7431, %v7495
        %v7559 = vadd.f32 %v7432, %v7496
        %v7560 = vadd.f32 %v7433, %v7497
        %v7561 = vadd.f32 %v7434, %v7498
        %v7562 = vadd.f32 %v7435, %v7499
        %v7563 = vadd.f32 %v7436, %v7500
        %v7564 = vadd.f32 %v7437, %v7501
        %v7565 = vadd.f32 %v7438, %v7502
        %v7566 = vadd.f32 %v7439, %v7503
        %v7567 = vadd.f32 %v7440, %v7504
        %v7568 = vadd.f32 %v7441, %v7505
        %v7569 = vadd.f32 %v7442, %v7506
        %v7570 = vadd.f32 %v7443, %v7507
        %v7571 = vadd.f32 %v7444, %v7508
        %v7572 = vadd.f32 %v7445, %v7509
        %v7573 = vadd.f32 %v7446, %v7510
        %v7574 = vadd.f32 %v7447, %v7511
        %v7575 = vadd.f32 %v7448, %v7512
        %v7576 = vadd.f32 %v7449, %v7513
        %v7577 = vadd.f32 %v7450, %v7514
        %v7578 = vadd.f32 %v7451, %v7515
        %v7579 = vadd.f32 %v7452, %v7516
        %v7580 = vadd.f32 %v7453, %v7517
        %v7581 = vadd.f32 %v7454, %v7518
        %v7582 = vadd.f32 %v7455, %v7519
        %v7583 = vadd.f32 %v7456, %v7520
        %v7584 = vadd.f32 %v7457, %v7521
        %v7585 = vadd.f32 %v7458, %v7522
        %v7586 = vadd.f32 %v7459, %v7523
        %v7587 = vadd.f32 %v7460, %v7524
        %v7588 = vadd.f32 %v7461, %v7525
        %v7589 = vadd.f32 %v7462, %v7526
        %v7590 = vadd.f32 %v7463, %v7527
        %v7591 = vadd.f32 %v7464, %v7528
        %v7592 = vadd.f32 %v7465, %v7529
        %v7593 = vadd.f32 %v7466, %v7530
        %v7594 = vadd.f32 %v7467, %v7531
        %v7595 = vadd.f32 %v7468, %v7532
        %v7596 = vadd.f32 %v7469, %v7533
        %v7597 = vadd.f32 %v7470, %v7534
        %v7598 = vadd.f32 %v7471, %v7535
        %v7599 = vadd.f32 %v7472, %v7536
        %v7600 = vadd.f32 %v7473, %v7537
        %v7601 = vadd.f32 %v7474, %v7538
        %v7602 = vadd.f32 %v7475, %v7539
        %v7603 = vadd.f32 %v7476, %v7540
        %v7604 = vadd.f32 %v7477, %v7541
        %v7605 = vadd.f32 %v7478, %v7542
        %v7606 = vadd.f32 %v7479, %v7543
        %v7607 = vsel %vm3284, %v7544, 0.0
        %7608 = vadd.xlane.f32.xlu0 %v7607
        %v7609 = vpop.xlane.xlu0 %7608
        %v7610 = vsel %vm3284, %v7545, 0.0
        %7611 = vadd.xlane.f32.xlu0 %v7610
        %v7612 = vpop.xlane.xlu0 %7611
        %v7613 = vsel %vm3284, %v7546, 0.0
        %7614 = vadd.xlane.f32.xlu0 %v7613
        %v7615 = vpop.xlane.xlu0 %7614
        %v7616 = vsel %vm3284, %v7547, 0.0
        %7617 = vadd.xlane.f32.xlu0 %v7616
        %v7618 = vpop.xlane.xlu0 %7617
        %v7619 = vsel %vm3284, %v7548, 0.0
        %7620 = vadd.xlane.f32.xlu0 %v7619
        %v7621 = vpop.xlane.xlu0 %7620
        %v7622 = vsel %vm3284, %v7549, 0.0
        %7623 = vadd.xlane.f32.xlu0 %v7622
        %v7624 = vpop.xlane.xlu0 %7623
        %v7625 = vsel %vm3284, %v7550, 0.0
        %7626 = vadd.xlane.f32.xlu0 %v7625
        %v7627 = vpop.xlane.xlu0 %7626
        %v7628 = vsel %vm3284, %v7551, 0.0
        %7629 = vadd.xlane.f32.xlu0 %v7628
        %v7630 = vpop.xlane.xlu0 %7629
        %v7631 = vsel %vm3284, %v7552, 0.0
        %7632 = vadd.xlane.f32.xlu0 %v7631
        %v7633 = vpop.xlane.xlu0 %7632
        %v7634 = vsel %vm3284, %v7553, 0.0
        %7635 = vadd.xlane.f32.xlu0 %v7634
        %v7636 = vpop.xlane.xlu0 %7635
        %v7637 = vsel %vm3284, %v7554, 0.0
        %7638 = vadd.xlane.f32.xlu0 %v7637
        %v7639 = vpop.xlane.xlu0 %7638
        %v7640 = vsel %vm3284, %v7555, 0.0
        %7641 = vadd.xlane.f32.xlu0 %v7640
        %v7642 = vpop.xlane.xlu0 %7641
        %v7643 = vsel %vm3284, %v7556, 0.0
        %7644 = vadd.xlane.f32.xlu0 %v7643
        %v7645 = vpop.xlane.xlu0 %7644
        %v7646 = vsel %vm3284, %v7557, 0.0
        %7647 = vadd.xlane.f32.xlu0 %v7646
        %v7648 = vpop.xlane.xlu0 %7647
        %v7649 = vsel %vm3284, %v7558, 0.0
        %7650 = vadd.xlane.f32.xlu0 %v7649
        %v7651 = vpop.xlane.xlu0 %7650
        %v7652 = vsel %vm3284, %v7559, 0.0
        %7653 = vadd.xlane.f32.xlu0 %v7652
        %v7654 = vpop.xlane.xlu0 %7653
        %v7655 = vsel %vm3284, %v7560, 0.0
        %7656 = vadd.xlane.f32.xlu0 %v7655
        %v7657 = vpop.xlane.xlu0 %7656
        %v7658 = vsel %vm3284, %v7561, 0.0
        %7659 = vadd.xlane.f32.xlu0 %v7658
        %v7660 = vpop.xlane.xlu0 %7659
        %v7661 = vsel %vm3284, %v7562, 0.0
        %7662 = vadd.xlane.f32.xlu0 %v7661
        %v7663 = vpop.xlane.xlu0 %7662
        %v7664 = vsel %vm3284, %v7563, 0.0
        %7665 = vadd.xlane.f32.xlu0 %v7664
        %v7666 = vpop.xlane.xlu0 %7665
        %v7667 = vsel %vm3284, %v7564, 0.0
        %7668 = vadd.xlane.f32.xlu0 %v7667
        %v7669 = vpop.xlane.xlu0 %7668
        %v7670 = vsel %vm3284, %v7565, 0.0
        %7671 = vadd.xlane.f32.xlu0 %v7670
        %v7672 = vpop.xlane.xlu0 %7671
        %v7673 = vsel %vm3284, %v7566, 0.0
        %7674 = vadd.xlane.f32.xlu0 %v7673
        %v7675 = vpop.xlane.xlu0 %7674
        %v7676 = vsel %vm3284, %v7567, 0.0
        %7677 = vadd.xlane.f32.xlu0 %v7676
        %v7678 = vpop.xlane.xlu0 %7677
        %v7679 = vsel %vm3284, %v7568, 0.0
        %7680 = vadd.xlane.f32.xlu0 %v7679
        %v7681 = vpop.xlane.xlu0 %7680
        %v7682 = vsel %vm3284, %v7569, 0.0
        %7683 = vadd.xlane.f32.xlu0 %v7682
        %v7684 = vpop.xlane.xlu0 %7683
        %v7685 = vsel %vm3284, %v7570, 0.0
        %7686 = vadd.xlane.f32.xlu0 %v7685
        %v7687 = vpop.xlane.xlu0 %7686
        %v7688 = vsel %vm3284, %v7571, 0.0
        %7689 = vadd.xlane.f32.xlu0 %v7688
        %v7690 = vpop.xlane.xlu0 %7689
        %v7691 = vsel %vm3284, %v7572, 0.0
        %7692 = vadd.xlane.f32.xlu0 %v7691
        %v7693 = vpop.xlane.xlu0 %7692
        %v7694 = vsel %vm3284, %v7573, 0.0
        %7695 = vadd.xlane.f32.xlu0 %v7694
        %v7696 = vpop.xlane.xlu0 %7695
        %v7697 = vsel %vm3284, %v7574, 0.0
        %7698 = vadd.xlane.f32.xlu0 %v7697
        %v7699 = vpop.xlane.xlu0 %7698
        %v7700 = vsel %vm3284, %v7575, 0.0
        %7701 = vadd.xlane.f32.xlu0 %v7700
        %v7702 = vpop.xlane.xlu0 %7701
        %v7703 = vsel %vm3284, %v7576, 0.0
        %7704 = vadd.xlane.f32.xlu0 %v7703
        %v7705 = vpop.xlane.xlu0 %7704
        %v7706 = vsel %vm3284, %v7577, 0.0
        %7707 = vadd.xlane.f32.xlu0 %v7706
        %v7708 = vpop.xlane.xlu0 %7707
        %v7709 = vsel %vm3284, %v7578, 0.0
        %7710 = vadd.xlane.f32.xlu0 %v7709
        %v7711 = vpop.xlane.xlu0 %7710
        %v7712 = vsel %vm3284, %v7579, 0.0
        %7713 = vadd.xlane.f32.xlu0 %v7712
        %v7714 = vpop.xlane.xlu0 %7713
        %v7715 = vsel %vm3284, %v7580, 0.0
        %7716 = vadd.xlane.f32.xlu0 %v7715
        %v7717 = vpop.xlane.xlu0 %7716
        %v7718 = vsel %vm3284, %v7581, 0.0
        %7719 = vadd.xlane.f32.xlu0 %v7718
        %v7720 = vpop.xlane.xlu0 %7719
        %v7721 = vsel %vm3284, %v7582, 0.0
        %7722 = vadd.xlane.f32.xlu0 %v7721
        %v7723 = vpop.xlane.xlu0 %7722
        %v7724 = vsel %vm3284, %v7583, 0.0
        %7725 = vadd.xlane.f32.xlu0 %v7724
        %v7726 = vpop.xlane.xlu0 %7725
        %v7727 = vsel %vm3284, %v7584, 0.0
        %7728 = vadd.xlane.f32.xlu0 %v7727
        %v7729 = vpop.xlane.xlu0 %7728
        %v7730 = vsel %vm3284, %v7585, 0.0
        %7731 = vadd.xlane.f32.xlu0 %v7730
        %v7732 = vpop.xlane.xlu0 %7731
        %v7733 = vsel %vm3284, %v7586, 0.0
        %7734 = vadd.xlane.f32.xlu0 %v7733
        %v7735 = vpop.xlane.xlu0 %7734
        %v7736 = vsel %vm3284, %v7587, 0.0
        %7737 = vadd.xlane.f32.xlu0 %v7736
        %v7738 = vpop.xlane.xlu0 %7737
        %v7739 = vsel %vm3284, %v7588, 0.0
        %7740 = vadd.xlane.f32.xlu0 %v7739
        %v7741 = vpop.xlane.xlu0 %7740
        %v7742 = vsel %vm3284, %v7589, 0.0
        %7743 = vadd.xlane.f32.xlu0 %v7742
        %v7744 = vpop.xlane.xlu0 %7743
        %v7745 = vsel %vm3284, %v7590, 0.0
        %7746 = vadd.xlane.f32.xlu0 %v7745
        %v7747 = vpop.xlane.xlu0 %7746
        %v7748 = vsel %vm3284, %v7591, 0.0
        %7749 = vadd.xlane.f32.xlu0 %v7748
        %v7750 = vpop.xlane.xlu0 %7749
        %v7751 = vsel %vm3284, %v7592, 0.0
        %7752 = vadd.xlane.f32.xlu0 %v7751
        %v7753 = vpop.xlane.xlu0 %7752
        %v7754 = vsel %vm3284, %v7593, 0.0
        %7755 = vadd.xlane.f32.xlu0 %v7754
        %v7756 = vpop.xlane.xlu0 %7755
        %v7757 = vsel %vm3284, %v7594, 0.0
        %7758 = vadd.xlane.f32.xlu0 %v7757
        %v7759 = vpop.xlane.xlu0 %7758
        %v7760 = vsel %vm3284, %v7595, 0.0
        %7761 = vadd.xlane.f32.xlu0 %v7760
        %v7762 = vpop.xlane.xlu0 %7761
        %v7763 = vsel %vm3284, %v7596, 0.0
        %7764 = vadd.xlane.f32.xlu0 %v7763
        %v7765 = vpop.xlane.xlu0 %7764
        %v7766 = vsel %vm3284, %v7597, 0.0
        %7767 = vadd.xlane.f32.xlu0 %v7766
        %v7768 = vpop.xlane.xlu0 %7767
        %v7769 = vsel %vm3284, %v7598, 0.0
        %7770 = vadd.xlane.f32.xlu0 %v7769
        %v7771 = vpop.xlane.xlu0 %7770
        %v7772 = vsel %vm3284, %v7599, 0.0
        %7773 = vadd.xlane.f32.xlu0 %v7772
        %v7774 = vpop.xlane.xlu0 %7773
        %v7775 = vsel %vm3284, %v7600, 0.0
        %7776 = vadd.xlane.f32.xlu0 %v7775
        %v7777 = vpop.xlane.xlu0 %7776
        %v7778 = vsel %vm3284, %v7601, 0.0
        %7779 = vadd.xlane.f32.xlu0 %v7778
        %v7780 = vpop.xlane.xlu0 %7779
        %v7781 = vsel %vm3284, %v7602, 0.0
        %7782 = vadd.xlane.f32.xlu0 %v7781
        %v7783 = vpop.xlane.xlu0 %7782
        %v7784 = vsel %vm3284, %v7603, 0.0
        %7785 = vadd.xlane.f32.xlu0 %v7784
        %v7786 = vpop.xlane.xlu0 %7785
        %v7787 = vsel %vm3284, %v7604, 0.0
        %7788 = vadd.xlane.f32.xlu0 %v7787
        %v7789 = vpop.xlane.xlu0 %7788
        %v7790 = vsel %vm3284, %v7605, 0.0
        %7791 = vadd.xlane.f32.xlu0 %v7790
        %v7792 = vpop.xlane.xlu0 %7791
        %v7793 = vsel %vm3284, %v7606, 0.0
        %7794 = vadd.xlane.f32.xlu0 %v7793
        %v7795 = vpop.xlane.xlu0 %7794
        %v7796 = vmul.f32 %v7544, %v7544
        %v7797 = vmul.f32 %v7545, %v7545
        %v7798 = vmul.f32 %v7546, %v7546
        %v7799 = vmul.f32 %v7547, %v7547
        %v7800 = vmul.f32 %v7548, %v7548
        %v7801 = vmul.f32 %v7549, %v7549
        %v7802 = vmul.f32 %v7550, %v7550
        %v7803 = vmul.f32 %v7551, %v7551
        %v7804 = vmul.f32 %v7552, %v7552
        %v7805 = vmul.f32 %v7553, %v7553
        %v7806 = vmul.f32 %v7554, %v7554
        %v7807 = vmul.f32 %v7555, %v7555
        %v7808 = vmul.f32 %v7556, %v7556
        %v7809 = vmul.f32 %v7557, %v7557
        %v7810 = vmul.f32 %v7558, %v7558
        %v7811 = vmul.f32 %v7559, %v7559
        %v7812 = vmul.f32 %v7560, %v7560
        %v7813 = vmul.f32 %v7561, %v7561
        %v7814 = vmul.f32 %v7562, %v7562
        %v7815 = vmul.f32 %v7563, %v7563
        %v7816 = vmul.f32 %v7564, %v7564
        %v7817 = vmul.f32 %v7565, %v7565
        %v7818 = vmul.f32 %v7566, %v7566
        %v7819 = vmul.f32 %v7567, %v7567
        %v7820 = vmul.f32 %v7568, %v7568
        %v7821 = vmul.f32 %v7569, %v7569
        %v7822 = vmul.f32 %v7570, %v7570
        %v7823 = vmul.f32 %v7571, %v7571
        %v7824 = vmul.f32 %v7572, %v7572
        %v7825 = vmul.f32 %v7573, %v7573
        %v7826 = vmul.f32 %v7574, %v7574
        %v7827 = vmul.f32 %v7575, %v7575
        %v7828 = vmul.f32 %v7576, %v7576
        %v7829 = vmul.f32 %v7577, %v7577
        %v7830 = vmul.f32 %v7578, %v7578
        %v7831 = vmul.f32 %v7579, %v7579
        %v7832 = vmul.f32 %v7580, %v7580
        %v7833 = vmul.f32 %v7581, %v7581
        %v7834 = vmul.f32 %v7582, %v7582
        %v7835 = vmul.f32 %v7583, %v7583
        %v7836 = vmul.f32 %v7584, %v7584
        %v7837 = vmul.f32 %v7585, %v7585
        %v7838 = vmul.f32 %v7586, %v7586
        %v7839 = vmul.f32 %v7587, %v7587
        %v7840 = vmul.f32 %v7588, %v7588
        %v7841 = vmul.f32 %v7589, %v7589
        %v7842 = vmul.f32 %v7590, %v7590
        %v7843 = vmul.f32 %v7591, %v7591
        %v7844 = vmul.f32 %v7592, %v7592
        %v7845 = vmul.f32 %v7593, %v7593
        %v7846 = vmul.f32 %v7594, %v7594
        %v7847 = vmul.f32 %v7595, %v7595
        %v7848 = vmul.f32 %v7596, %v7596
        %v7849 = vmul.f32 %v7597, %v7597
        %v7850 = vmul.f32 %v7598, %v7598
        %v7851 = vmul.f32 %v7599, %v7599
        %v7852 = vmul.f32 %v7600, %v7600
        %v7853 = vmul.f32 %v7601, %v7601
        %v7854 = vmul.f32 %v7602, %v7602
        %v7855 = vmul.f32 %v7603, %v7603
        %v7856 = vmul.f32 %v7604, %v7604
        %v7857 = vmul.f32 %v7605, %v7605
        %v7858 = vmul.f32 %v7606, %v7606
        %v7859 = vsel %vm3284, %v7796, 0.0
        %7860 = vadd.xlane.f32.xlu0 %v7859
        %v7861 = vpop.xlane.xlu0 %7860
        %v7862 = vsel %vm3284, %v7797, 0.0
        %7863 = vadd.xlane.f32.xlu0 %v7862
        %v7864 = vpop.xlane.xlu0 %7863
        %v7865 = vsel %vm3284, %v7798, 0.0
        %7866 = vadd.xlane.f32.xlu0 %v7865
        %v7867 = vpop.xlane.xlu0 %7866
        %v7868 = vsel %vm3284, %v7799, 0.0
        %7869 = vadd.xlane.f32.xlu0 %v7868
        %v7870 = vpop.xlane.xlu0 %7869
        %v7871 = vsel %vm3284, %v7800, 0.0
        %7872 = vadd.xlane.f32.xlu0 %v7871
        %v7873 = vpop.xlane.xlu0 %7872
        %v7874 = vsel %vm3284, %v7801, 0.0
        %7875 = vadd.xlane.f32.xlu0 %v7874
        %v7876 = vpop.xlane.xlu0 %7875
        %v7877 = vsel %vm3284, %v7802, 0.0
        %7878 = vadd.xlane.f32.xlu0 %v7877
        %v7879 = vpop.xlane.xlu0 %7878
        %v7880 = vsel %vm3284, %v7803, 0.0
        %7881 = vadd.xlane.f32.xlu0 %v7880
        %v7882 = vpop.xlane.xlu0 %7881
        %v7883 = vsel %vm3284, %v7804, 0.0
        %7884 = vadd.xlane.f32.xlu0 %v7883
        %v7885 = vpop.xlane.xlu0 %7884
        %v7886 = vsel %vm3284, %v7805, 0.0
        %7887 = vadd.xlane.f32.xlu0 %v7886
        %v7888 = vpop.xlane.xlu0 %7887
        %v7889 = vsel %vm3284, %v7806, 0.0
        %7890 = vadd.xlane.f32.xlu0 %v7889
        %v7891 = vpop.xlane.xlu0 %7890
        %v7892 = vsel %vm3284, %v7807, 0.0
        %7893 = vadd.xlane.f32.xlu0 %v7892
        %v7894 = vpop.xlane.xlu0 %7893
        %v7895 = vsel %vm3284, %v7808, 0.0
        %7896 = vadd.xlane.f32.xlu0 %v7895
        %v7897 = vpop.xlane.xlu0 %7896
        %v7898 = vsel %vm3284, %v7809, 0.0
        %7899 = vadd.xlane.f32.xlu0 %v7898
        %v7900 = vpop.xlane.xlu0 %7899
        %v7901 = vsel %vm3284, %v7810, 0.0
        %7902 = vadd.xlane.f32.xlu0 %v7901
        %v7903 = vpop.xlane.xlu0 %7902
        %v7904 = vsel %vm3284, %v7811, 0.0
        %7905 = vadd.xlane.f32.xlu0 %v7904
        %v7906 = vpop.xlane.xlu0 %7905
        %v7907 = vsel %vm3284, %v7812, 0.0
        %7908 = vadd.xlane.f32.xlu0 %v7907
        %v7909 = vpop.xlane.xlu0 %7908
        %v7910 = vsel %vm3284, %v7813, 0.0
        %7911 = vadd.xlane.f32.xlu0 %v7910
        %v7912 = vpop.xlane.xlu0 %7911
        %v7913 = vsel %vm3284, %v7814, 0.0
        %7914 = vadd.xlane.f32.xlu0 %v7913
        %v7915 = vpop.xlane.xlu0 %7914
        %v7916 = vsel %vm3284, %v7815, 0.0
        %7917 = vadd.xlane.f32.xlu0 %v7916
        %v7918 = vpop.xlane.xlu0 %7917
        %v7919 = vsel %vm3284, %v7816, 0.0
        %7920 = vadd.xlane.f32.xlu0 %v7919
        %v7921 = vpop.xlane.xlu0 %7920
        %v7922 = vsel %vm3284, %v7817, 0.0
        %7923 = vadd.xlane.f32.xlu0 %v7922
        %v7924 = vpop.xlane.xlu0 %7923
        %v7925 = vsel %vm3284, %v7818, 0.0
        %7926 = vadd.xlane.f32.xlu0 %v7925
        %v7927 = vpop.xlane.xlu0 %7926
        %v7928 = vsel %vm3284, %v7819, 0.0
        %7929 = vadd.xlane.f32.xlu0 %v7928
        %v7930 = vpop.xlane.xlu0 %7929
        %v7931 = vsel %vm3284, %v7820, 0.0
        %7932 = vadd.xlane.f32.xlu0 %v7931
        %v7933 = vpop.xlane.xlu0 %7932
        %v7934 = vsel %vm3284, %v7821, 0.0
        %7935 = vadd.xlane.f32.xlu0 %v7934
        %v7936 = vpop.xlane.xlu0 %7935
        %v7937 = vsel %vm3284, %v7822, 0.0
        %7938 = vadd.xlane.f32.xlu0 %v7937
        %v7939 = vpop.xlane.xlu0 %7938
        %v7940 = vsel %vm3284, %v7823, 0.0
        %7941 = vadd.xlane.f32.xlu0 %v7940
        %v7942 = vpop.xlane.xlu0 %7941
        %v7943 = vsel %vm3284, %v7824, 0.0
        %7944 = vadd.xlane.f32.xlu0 %v7943
        %v7945 = vpop.xlane.xlu0 %7944
        %v7946 = vsel %vm3284, %v7825, 0.0
        %7947 = vadd.xlane.f32.xlu0 %v7946
        %v7948 = vpop.xlane.xlu0 %7947
        %v7949 = vsel %vm3284, %v7826, 0.0
        %7950 = vadd.xlane.f32.xlu0 %v7949
        %v7951 = vpop.xlane.xlu0 %7950
        %v7952 = vsel %vm3284, %v7827, 0.0
        %7953 = vadd.xlane.f32.xlu0 %v7952
        %v7954 = vpop.xlane.xlu0 %7953
        %v7955 = vsel %vm3284, %v7828, 0.0
        %7956 = vadd.xlane.f32.xlu0 %v7955
        %v7957 = vpop.xlane.xlu0 %7956
        %v7958 = vsel %vm3284, %v7829, 0.0
        %7959 = vadd.xlane.f32.xlu0 %v7958
        %v7960 = vpop.xlane.xlu0 %7959
        %v7961 = vsel %vm3284, %v7830, 0.0
        %7962 = vadd.xlane.f32.xlu0 %v7961
        %v7963 = vpop.xlane.xlu0 %7962
        %v7964 = vsel %vm3284, %v7831, 0.0
        %7965 = vadd.xlane.f32.xlu0 %v7964
        %v7966 = vpop.xlane.xlu0 %7965
        %v7967 = vsel %vm3284, %v7832, 0.0
        %7968 = vadd.xlane.f32.xlu0 %v7967
        %v7969 = vpop.xlane.xlu0 %7968
        %v7970 = vsel %vm3284, %v7833, 0.0
        %7971 = vadd.xlane.f32.xlu0 %v7970
        %v7972 = vpop.xlane.xlu0 %7971
        %v7973 = vsel %vm3284, %v7834, 0.0
        %7974 = vadd.xlane.f32.xlu0 %v7973
        %v7975 = vpop.xlane.xlu0 %7974
        %v7976 = vsel %vm3284, %v7835, 0.0
        %7977 = vadd.xlane.f32.xlu0 %v7976
        %v7978 = vpop.xlane.xlu0 %7977
        %v7979 = vsel %vm3284, %v7836, 0.0
        %7980 = vadd.xlane.f32.xlu0 %v7979
        %v7981 = vpop.xlane.xlu0 %7980
        %v7982 = vsel %vm3284, %v7837, 0.0
        %7983 = vadd.xlane.f32.xlu0 %v7982
        %v7984 = vpop.xlane.xlu0 %7983
        %v7985 = vsel %vm3284, %v7838, 0.0
        %7986 = vadd.xlane.f32.xlu0 %v7985
        %v7987 = vpop.xlane.xlu0 %7986
        %v7988 = vsel %vm3284, %v7839, 0.0
        %7989 = vadd.xlane.f32.xlu0 %v7988
        %v7990 = vpop.xlane.xlu0 %7989
        %v7991 = vsel %vm3284, %v7840, 0.0
        %7992 = vadd.xlane.f32.xlu0 %v7991
        %v7993 = vpop.xlane.xlu0 %7992
        %v7994 = vsel %vm3284, %v7841, 0.0
        %7995 = vadd.xlane.f32.xlu0 %v7994
        %v7996 = vpop.xlane.xlu0 %7995
        %v7997 = vsel %vm3284, %v7842, 0.0
        %7998 = vadd.xlane.f32.xlu0 %v7997
        %v7999 = vpop.xlane.xlu0 %7998
        %v8000 = vsel %vm3284, %v7843, 0.0
        %8001 = vadd.xlane.f32.xlu0 %v8000
        %v8002 = vpop.xlane.xlu0 %8001
        %v8003 = vsel %vm3284, %v7844, 0.0
        %8004 = vadd.xlane.f32.xlu0 %v8003
        %v8005 = vpop.xlane.xlu0 %8004
        %v8006 = vsel %vm3284, %v7845, 0.0
        %8007 = vadd.xlane.f32.xlu0 %v8006
        %v8008 = vpop.xlane.xlu0 %8007
        %v8009 = vsel %vm3284, %v7846, 0.0
        %8010 = vadd.xlane.f32.xlu0 %v8009
        %v8011 = vpop.xlane.xlu0 %8010
        %v8012 = vsel %vm3284, %v7847, 0.0
        %8013 = vadd.xlane.f32.xlu0 %v8012
        %v8014 = vpop.xlane.xlu0 %8013
        %v8015 = vsel %vm3284, %v7848, 0.0
        %8016 = vadd.xlane.f32.xlu0 %v8015
        %v8017 = vpop.xlane.xlu0 %8016
        %v8018 = vsel %vm3284, %v7849, 0.0
        %8019 = vadd.xlane.f32.xlu0 %v8018
        %v8020 = vpop.xlane.xlu0 %8019
        %v8021 = vsel %vm3284, %v7850, 0.0
        %8022 = vadd.xlane.f32.xlu0 %v8021
        %v8023 = vpop.xlane.xlu0 %8022
        %v8024 = vsel %vm3284, %v7851, 0.0
        %8025 = vadd.xlane.f32.xlu0 %v8024
        %v8026 = vpop.xlane.xlu0 %8025
        %v8027 = vsel %vm3284, %v7852, 0.0
        %8028 = vadd.xlane.f32.xlu0 %v8027
        %v8029 = vpop.xlane.xlu0 %8028
        %v8030 = vsel %vm3284, %v7853, 0.0
        %8031 = vadd.xlane.f32.xlu0 %v8030
        %v8032 = vpop.xlane.xlu0 %8031
        %v8033 = vsel %vm3284, %v7854, 0.0
        %8034 = vadd.xlane.f32.xlu0 %v8033
        %v8035 = vpop.xlane.xlu0 %8034
        %v8036 = vsel %vm3284, %v7855, 0.0
        %8037 = vadd.xlane.f32.xlu0 %v8036
        %v8038 = vpop.xlane.xlu0 %8037
        %v8039 = vsel %vm3284, %v7856, 0.0
        %8040 = vadd.xlane.f32.xlu0 %v8039
        %v8041 = vpop.xlane.xlu0 %8040
        %v8042 = vsel %vm3284, %v7857, 0.0
        %8043 = vadd.xlane.f32.xlu0 %v8042
        %v8044 = vpop.xlane.xlu0 %8043
        %v8045 = vsel %vm3284, %v7858, 0.0
        %8046 = vadd.xlane.f32.xlu0 %v8045
        %v8047 = vpop.xlane.xlu0 %8046
        %v8048 = vmul.f32 %v7609, 0.015625
        %v8049 = vmul.f32 %v7612, 0.015625
        %v8050 = vmul.f32 %v7615, 0.015625
        %v8051 = vmul.f32 %v7618, 0.015625
        %v8052 = vmul.f32 %v7621, 0.015625
        %v8053 = vmul.f32 %v7624, 0.015625
        %v8054 = vmul.f32 %v7627, 0.015625
        %v8055 = vmul.f32 %v7630, 0.015625
        %v8056 = vmul.f32 %v7633, 0.015625
        %v8057 = vmul.f32 %v7636, 0.015625
        %v8058 = vmul.f32 %v7639, 0.015625
        %v8059 = vmul.f32 %v7642, 0.015625
        %v8060 = vmul.f32 %v7645, 0.015625
        %v8061 = vmul.f32 %v7648, 0.015625
        %v8062 = vmul.f32 %v7651, 0.015625
        %v8063 = vmul.f32 %v7654, 0.015625
        %v8064 = vmul.f32 %v7657, 0.015625
        %v8065 = vmul.f32 %v7660, 0.015625
        %v8066 = vmul.f32 %v7663, 0.015625
        %v8067 = vmul.f32 %v7666, 0.015625
        %v8068 = vmul.f32 %v7669, 0.015625
        %v8069 = vmul.f32 %v7672, 0.015625
        %v8070 = vmul.f32 %v7675, 0.015625
        %v8071 = vmul.f32 %v7678, 0.015625
        %v8072 = vmul.f32 %v7681, 0.015625
        %v8073 = vmul.f32 %v7684, 0.015625
        %v8074 = vmul.f32 %v7687, 0.015625
        %v8075 = vmul.f32 %v7690, 0.015625
        %v8076 = vmul.f32 %v7693, 0.015625
        %v8077 = vmul.f32 %v7696, 0.015625
        %v8078 = vmul.f32 %v7699, 0.015625
        %v8079 = vmul.f32 %v7702, 0.015625
        %v8080 = vmul.f32 %v7705, 0.015625
        %v8081 = vmul.f32 %v7708, 0.015625
        %v8082 = vmul.f32 %v7711, 0.015625
        %v8083 = vmul.f32 %v7714, 0.015625
        %v8084 = vmul.f32 %v7717, 0.015625
        %v8085 = vmul.f32 %v7720, 0.015625
        %v8086 = vmul.f32 %v7723, 0.015625
        %v8087 = vmul.f32 %v7726, 0.015625
        %v8088 = vmul.f32 %v7729, 0.015625
        %v8089 = vmul.f32 %v7732, 0.015625
        %v8090 = vmul.f32 %v7735, 0.015625
        %v8091 = vmul.f32 %v7738, 0.015625
        %v8092 = vmul.f32 %v7741, 0.015625
        %v8093 = vmul.f32 %v7744, 0.015625
        %v8094 = vmul.f32 %v7747, 0.015625
        %v8095 = vmul.f32 %v7750, 0.015625
        %v8096 = vmul.f32 %v7753, 0.015625
        %v8097 = vmul.f32 %v7756, 0.015625
        %v8098 = vmul.f32 %v7759, 0.015625
        %v8099 = vmul.f32 %v7762, 0.015625
        %v8100 = vmul.f32 %v7765, 0.015625
        %v8101 = vmul.f32 %v7768, 0.015625
        %v8102 = vmul.f32 %v7771, 0.015625
        %v8103 = vmul.f32 %v7774, 0.015625
        %v8104 = vmul.f32 %v7777, 0.015625
        %v8105 = vmul.f32 %v7780, 0.015625
        %v8106 = vmul.f32 %v7783, 0.015625
        %v8107 = vmul.f32 %v7786, 0.015625
        %v8108 = vmul.f32 %v7789, 0.015625
        %v8109 = vmul.f32 %v7792, 0.015625
        %v8110 = vmul.f32 %v7795, 0.015625
        %v8111 = vmul.f32 %v7861, 0.015625
        %v8112 = vmul.f32 %v7864, 0.015625
        %v8113 = vmul.f32 %v7867, 0.015625
        %v8114 = vmul.f32 %v7870, 0.015625
        %v8115 = vmul.f32 %v7873, 0.015625
        %v8116 = vmul.f32 %v7876, 0.015625
        %v8117 = vmul.f32 %v7879, 0.015625
        %v8118 = vmul.f32 %v7882, 0.015625
        %v8119 = vmul.f32 %v7885, 0.015625
        %v8120 = vmul.f32 %v7888, 0.015625
        %v8121 = vmul.f32 %v7891, 0.015625
        %v8122 = vmul.f32 %v7894, 0.015625
        %v8123 = vmul.f32 %v7897, 0.015625
        %v8124 = vmul.f32 %v7900, 0.015625
        %v8125 = vmul.f32 %v7903, 0.015625
        %v8126 = vmul.f32 %v7906, 0.015625
        %v8127 = vmul.f32 %v7909, 0.015625
        %v8128 = vmul.f32 %v7912, 0.015625
        %v8129 = vmul.f32 %v7915, 0.015625
        %v8130 = vmul.f32 %v7918, 0.015625
        %v8131 = vmul.f32 %v7921, 0.015625
        %v8132 = vmul.f32 %v7924, 0.015625
        %v8133 = vmul.f32 %v7927, 0.015625
        %v8134 = vmul.f32 %v7930, 0.015625
        %v8135 = vmul.f32 %v7933, 0.015625
        %v8136 = vmul.f32 %v7936, 0.015625
        %v8137 = vmul.f32 %v7939, 0.015625
        %v8138 = vmul.f32 %v7942, 0.015625
        %v8139 = vmul.f32 %v7945, 0.015625
        %v8140 = vmul.f32 %v7948, 0.015625
        %v8141 = vmul.f32 %v7951, 0.015625
        %v8142 = vmul.f32 %v7954, 0.015625
        %v8143 = vmul.f32 %v7957, 0.015625
        %v8144 = vmul.f32 %v7960, 0.015625
        %v8145 = vmul.f32 %v7963, 0.015625
        %v8146 = vmul.f32 %v7966, 0.015625
        %v8147 = vmul.f32 %v7969, 0.015625
        %v8148 = vmul.f32 %v7972, 0.015625
        %v8149 = vmul.f32 %v7975, 0.015625
        %v8150 = vmul.f32 %v7978, 0.015625
        %v8151 = vmul.f32 %v7981, 0.015625
        %v8152 = vmul.f32 %v7984, 0.015625
        %v8153 = vmul.f32 %v7987, 0.015625
        %v8154 = vmul.f32 %v7990, 0.015625
        %v8155 = vmul.f32 %v7993, 0.015625
        %v8156 = vmul.f32 %v7996, 0.015625
        %v8157 = vmul.f32 %v7999, 0.015625
        %v8158 = vmul.f32 %v8002, 0.015625
        %v8159 = vmul.f32 %v8005, 0.015625
        %v8160 = vmul.f32 %v8008, 0.015625
        %v8161 = vmul.f32 %v8011, 0.015625
        %v8162 = vmul.f32 %v8014, 0.015625
        %v8163 = vmul.f32 %v8017, 0.015625
        %v8164 = vmul.f32 %v8020, 0.015625
        %v8165 = vmul.f32 %v8023, 0.015625
        %v8166 = vmul.f32 %v8026, 0.015625
        %v8167 = vmul.f32 %v8029, 0.015625
        %v8168 = vmul.f32 %v8032, 0.015625
        %v8169 = vmul.f32 %v8035, 0.015625
        %v8170 = vmul.f32 %v8038, 0.015625
        %v8171 = vmul.f32 %v8041, 0.015625
        %v8172 = vmul.f32 %v8044, 0.015625
        %v8173 = vmul.f32 %v8047, 0.015625
        %v8174 = vmul.f32 %v8048, %v8048
        %v8175 = vmul.f32 %v8049, %v8049
        %v8176 = vmul.f32 %v8050, %v8050
        %v8177 = vmul.f32 %v8051, %v8051
        %v8178 = vmul.f32 %v8052, %v8052
        %v8179 = vmul.f32 %v8053, %v8053
        %v8180 = vmul.f32 %v8054, %v8054
        %v8181 = vmul.f32 %v8055, %v8055
        %v8182 = vmul.f32 %v8056, %v8056
        %v8183 = vmul.f32 %v8057, %v8057
        %v8184 = vmul.f32 %v8058, %v8058
        %v8185 = vmul.f32 %v8059, %v8059
        %v8186 = vmul.f32 %v8060, %v8060
        %v8187 = vmul.f32 %v8061, %v8061
        %v8188 = vmul.f32 %v8062, %v8062
        %v8189 = vmul.f32 %v8063, %v8063
        %v8190 = vmul.f32 %v8064, %v8064
        %v8191 = vmul.f32 %v8065, %v8065
        %v8192 = vmul.f32 %v8066, %v8066
        %v8193 = vmul.f32 %v8067, %v8067
        %v8194 = vmul.f32 %v8068, %v8068
        %v8195 = vmul.f32 %v8069, %v8069
        %v8196 = vmul.f32 %v8070, %v8070
        %v8197 = vmul.f32 %v8071, %v8071
        %v8198 = vmul.f32 %v8072, %v8072
        %v8199 = vmul.f32 %v8073, %v8073
        %v8200 = vmul.f32 %v8074, %v8074
        %v8201 = vmul.f32 %v8075, %v8075
        %v8202 = vmul.f32 %v8076, %v8076
        %v8203 = vmul.f32 %v8077, %v8077
        %v8204 = vmul.f32 %v8078, %v8078
        %v8205 = vmul.f32 %v8079, %v8079
        %v8206 = vmul.f32 %v8080, %v8080
        %v8207 = vmul.f32 %v8081, %v8081
        %v8208 = vmul.f32 %v8082, %v8082
        %v8209 = vmul.f32 %v8083, %v8083
        %v8210 = vmul.f32 %v8084, %v8084
        %v8211 = vmul.f32 %v8085, %v8085
        %v8212 = vmul.f32 %v8086, %v8086
        %v8213 = vmul.f32 %v8087, %v8087
        %v8214 = vmul.f32 %v8088, %v8088
        %v8215 = vmul.f32 %v8089, %v8089
        %v8216 = vmul.f32 %v8090, %v8090
        %v8217 = vmul.f32 %v8091, %v8091
        %v8218 = vmul.f32 %v8092, %v8092
        %v8219 = vmul.f32 %v8093, %v8093
        %v8220 = vmul.f32 %v8094, %v8094
        %v8221 = vmul.f32 %v8095, %v8095
        %v8222 = vmul.f32 %v8096, %v8096
        %v8223 = vmul.f32 %v8097, %v8097
        %v8224 = vmul.f32 %v8098, %v8098
        %v8225 = vmul.f32 %v8099, %v8099
        %v8226 = vmul.f32 %v8100, %v8100
        %v8227 = vmul.f32 %v8101, %v8101
        %v8228 = vmul.f32 %v8102, %v8102
        %v8229 = vmul.f32 %v8103, %v8103
        %v8230 = vmul.f32 %v8104, %v8104
        %v8231 = vmul.f32 %v8105, %v8105
        %v8232 = vmul.f32 %v8106, %v8106
        %v8233 = vmul.f32 %v8107, %v8107
        %v8234 = vmul.f32 %v8108, %v8108
        %v8235 = vmul.f32 %v8109, %v8109
        %v8236 = vmul.f32 %v8110, %v8110
        %v8237 = vsub.f32 %v8111, %v8174
        %v8238 = vsub.f32 %v8112, %v8175
        %v8239 = vsub.f32 %v8113, %v8176
        %v8240 = vsub.f32 %v8114, %v8177
        %v8241 = vsub.f32 %v8115, %v8178
        %v8242 = vsub.f32 %v8116, %v8179
        %v8243 = vsub.f32 %v8117, %v8180
        %v8244 = vsub.f32 %v8118, %v8181
        %v8245 = vsub.f32 %v8119, %v8182
        %v8246 = vsub.f32 %v8120, %v8183
        %v8247 = vsub.f32 %v8121, %v8184
        %v8248 = vsub.f32 %v8122, %v8185
        %v8249 = vsub.f32 %v8123, %v8186
        %v8250 = vsub.f32 %v8124, %v8187
        %v8251 = vsub.f32 %v8125, %v8188
        %v8252 = vsub.f32 %v8126, %v8189
        %v8253 = vsub.f32 %v8127, %v8190
        %v8254 = vsub.f32 %v8128, %v8191
        %v8255 = vsub.f32 %v8129, %v8192
        %v8256 = vsub.f32 %v8130, %v8193
        %v8257 = vsub.f32 %v8131, %v8194
        %v8258 = vsub.f32 %v8132, %v8195
        %v8259 = vsub.f32 %v8133, %v8196
        %v8260 = vsub.f32 %v8134, %v8197
        %v8261 = vsub.f32 %v8135, %v8198
        %v8262 = vsub.f32 %v8136, %v8199
        %v8263 = vsub.f32 %v8137, %v8200
        %v8264 = vsub.f32 %v8138, %v8201
        %v8265 = vsub.f32 %v8139, %v8202
        %v8266 = vsub.f32 %v8140, %v8203
        %v8267 = vsub.f32 %v8141, %v8204
        %v8268 = vsub.f32 %v8142, %v8205
        %v8269 = vsub.f32 %v8143, %v8206
        %v8270 = vsub.f32 %v8144, %v8207
        %v8271 = vsub.f32 %v8145, %v8208
        %v8272 = vsub.f32 %v8146, %v8209
        %v8273 = vsub.f32 %v8147, %v8210
        %v8274 = vsub.f32 %v8148, %v8211
        %v8275 = vsub.f32 %v8149, %v8212
        %v8276 = vsub.f32 %v8150, %v8213
        %v8277 = vsub.f32 %v8151, %v8214
        %v8278 = vsub.f32 %v8152, %v8215
        %v8279 = vsub.f32 %v8153, %v8216
        %v8280 = vsub.f32 %v8154, %v8217
        %v8281 = vsub.f32 %v8155, %v8218
        %v8282 = vsub.f32 %v8156, %v8219
        %v8283 = vsub.f32 %v8157, %v8220
        %v8284 = vsub.f32 %v8158, %v8221
        %v8285 = vsub.f32 %v8159, %v8222
        %v8286 = vsub.f32 %v8160, %v8223
        %v8287 = vsub.f32 %v8161, %v8224
        %v8288 = vsub.f32 %v8162, %v8225
        %v8289 = vsub.f32 %v8163, %v8226
        %v8290 = vsub.f32 %v8164, %v8227
        %v8291 = vsub.f32 %v8165, %v8228
        %v8292 = vsub.f32 %v8166, %v8229
        %v8293 = vsub.f32 %v8167, %v8230
        %v8294 = vsub.f32 %v8168, %v8231
        %v8295 = vsub.f32 %v8169, %v8232
        %v8296 = vsub.f32 %v8170, %v8233
        %v8297 = vsub.f32 %v8171, %v8234
        %v8298 = vsub.f32 %v8172, %v8235
        %v8299 = vsub.f32 %v8173, %v8236
        %v8300 = vadd.f32 %v8237, 1e-05
        %v8301 = vadd.f32 %v8238, 1e-05
        %v8302 = vadd.f32 %v8239, 1e-05
        %v8303 = vadd.f32 %v8240, 1e-05
        %v8304 = vadd.f32 %v8241, 1e-05
        %v8305 = vadd.f32 %v8242, 1e-05
        %v8306 = vadd.f32 %v8243, 1e-05
        %v8307 = vadd.f32 %v8244, 1e-05
        %v8308 = vadd.f32 %v8245, 1e-05
        %v8309 = vadd.f32 %v8246, 1e-05
        %v8310 = vadd.f32 %v8247, 1e-05
        %v8311 = vadd.f32 %v8248, 1e-05
        %v8312 = vadd.f32 %v8249, 1e-05
        %v8313 = vadd.f32 %v8250, 1e-05
        %v8314 = vadd.f32 %v8251, 1e-05
        %v8315 = vadd.f32 %v8252, 1e-05
        %v8316 = vadd.f32 %v8253, 1e-05
        %v8317 = vadd.f32 %v8254, 1e-05
        %v8318 = vadd.f32 %v8255, 1e-05
        %v8319 = vadd.f32 %v8256, 1e-05
        %v8320 = vadd.f32 %v8257, 1e-05
        %v8321 = vadd.f32 %v8258, 1e-05
        %v8322 = vadd.f32 %v8259, 1e-05
        %v8323 = vadd.f32 %v8260, 1e-05
        %v8324 = vadd.f32 %v8261, 1e-05
        %v8325 = vadd.f32 %v8262, 1e-05
        %v8326 = vadd.f32 %v8263, 1e-05
        %v8327 = vadd.f32 %v8264, 1e-05
        %v8328 = vadd.f32 %v8265, 1e-05
        %v8329 = vadd.f32 %v8266, 1e-05
        %v8330 = vadd.f32 %v8267, 1e-05
        %v8331 = vadd.f32 %v8268, 1e-05
        %v8332 = vadd.f32 %v8269, 1e-05
        %v8333 = vadd.f32 %v8270, 1e-05
        %v8334 = vadd.f32 %v8271, 1e-05
        %v8335 = vadd.f32 %v8272, 1e-05
        %v8336 = vadd.f32 %v8273, 1e-05
        %v8337 = vadd.f32 %v8274, 1e-05
        %v8338 = vadd.f32 %v8275, 1e-05
        %v8339 = vadd.f32 %v8276, 1e-05
        %v8340 = vadd.f32 %v8277, 1e-05
        %v8341 = vadd.f32 %v8278, 1e-05
        %v8342 = vadd.f32 %v8279, 1e-05
        %v8343 = vadd.f32 %v8280, 1e-05
        %v8344 = vadd.f32 %v8281, 1e-05
        %v8345 = vadd.f32 %v8282, 1e-05
        %v8346 = vadd.f32 %v8283, 1e-05
        %v8347 = vadd.f32 %v8284, 1e-05
        %v8348 = vadd.f32 %v8285, 1e-05
        %v8349 = vadd.f32 %v8286, 1e-05
        %v8350 = vadd.f32 %v8287, 1e-05
        %v8351 = vadd.f32 %v8288, 1e-05
        %v8352 = vadd.f32 %v8289, 1e-05
        %v8353 = vadd.f32 %v8290, 1e-05
        %v8354 = vadd.f32 %v8291, 1e-05
        %v8355 = vadd.f32 %v8292, 1e-05
        %v8356 = vadd.f32 %v8293, 1e-05
        %v8357 = vadd.f32 %v8294, 1e-05
        %v8358 = vadd.f32 %v8295, 1e-05
        %v8359 = vadd.f32 %v8296, 1e-05
        %v8360 = vadd.f32 %v8297, 1e-05
        %v8361 = vadd.f32 %v8298, 1e-05
        %v8362 = vadd.f32 %v8299, 1e-05
        %v8363 = vrsqrt.pop %v8300
        %v8364 = vrsqrt.pop %v8301
        %v8365 = vrsqrt.pop %v8302
        %v8366 = vrsqrt.pop %v8303
        %v8367 = vrsqrt.pop %v8304
        %v8368 = vrsqrt.pop %v8305
        %v8369 = vrsqrt.pop %v8306
        %v8370 = vrsqrt.pop %v8307
        %v8371 = vrsqrt.pop %v8308
        %v8372 = vrsqrt.pop %v8309
        %v8373 = vrsqrt.pop %v8310
        %v8374 = vrsqrt.pop %v8311
        %v8375 = vrsqrt.pop %v8312
        %v8376 = vrsqrt.pop %v8313
        %v8377 = vrsqrt.pop %v8314
        %v8378 = vrsqrt.pop %v8315
        %v8379 = vrsqrt.pop %v8316
        %v8380 = vrsqrt.pop %v8317
        %v8381 = vrsqrt.pop %v8318
        %v8382 = vrsqrt.pop %v8319
        %v8383 = vrsqrt.pop %v8320
        %v8384 = vrsqrt.pop %v8321
        %v8385 = vrsqrt.pop %v8322
        %v8386 = vrsqrt.pop %v8323
        %v8387 = vrsqrt.pop %v8324
        %v8388 = vrsqrt.pop %v8325
        %v8389 = vrsqrt.pop %v8326
        %v8390 = vrsqrt.pop %v8327
        %v8391 = vrsqrt.pop %v8328
        %v8392 = vrsqrt.pop %v8329
        %v8393 = vrsqrt.pop %v8330
        %v8394 = vrsqrt.pop %v8331
        %v8395 = vrsqrt.pop %v8332
        %v8396 = vrsqrt.pop %v8333
        %v8397 = vrsqrt.pop %v8334
        %v8398 = vrsqrt.pop %v8335
        %v8399 = vrsqrt.pop %v8336
        %v8400 = vrsqrt.pop %v8337
        %v8401 = vrsqrt.pop %v8338
        %v8402 = vrsqrt.pop %v8339
        %v8403 = vrsqrt.pop %v8340
        %v8404 = vrsqrt.pop %v8341
        %v8405 = vrsqrt.pop %v8342
        %v8406 = vrsqrt.pop %v8343
        %v8407 = vrsqrt.pop %v8344
        %v8408 = vrsqrt.pop %v8345
        %v8409 = vrsqrt.pop %v8346
        %v8410 = vrsqrt.pop %v8347
        %v8411 = vrsqrt.pop %v8348
        %v8412 = vrsqrt.pop %v8349
        %v8413 = vrsqrt.pop %v8350
        %v8414 = vrsqrt.pop %v8351
        %v8415 = vrsqrt.pop %v8352
        %v8416 = vrsqrt.pop %v8353
        %v8417 = vrsqrt.pop %v8354
        %v8418 = vrsqrt.pop %v8355
        %v8419 = vrsqrt.pop %v8356
        %v8420 = vrsqrt.pop %v8357
        %v8421 = vrsqrt.pop %v8358
        %v8422 = vrsqrt.pop %v8359
        %v8423 = vrsqrt.pop %v8360
        %v8424 = vrsqrt.pop %v8361
        %v8425 = vrsqrt.pop %v8362
        %v8426 = vstv %s7160
        %v8427 = vmul.f32 %v8426, %v8363
        %v8428 = vmul.f32 %v8426, %v8364
        %v8429 = vmul.f32 %v8426, %v8365
        %v8430 = vmul.f32 %v8426, %v8366
        %v8431 = vmul.f32 %v8426, %v8367
        %v8432 = vmul.f32 %v8426, %v8368
        %v8433 = vmul.f32 %v8426, %v8369
        %v8434 = vmul.f32 %v8426, %v8370
        %v8435 = vmul.f32 %v8426, %v8371
        %v8436 = vmul.f32 %v8426, %v8372
        %v8437 = vmul.f32 %v8426, %v8373
        %v8438 = vmul.f32 %v8426, %v8374
        %v8439 = vmul.f32 %v8426, %v8375
        %v8440 = vmul.f32 %v8426, %v8376
        %v8441 = vmul.f32 %v8426, %v8377
        %v8442 = vmul.f32 %v8426, %v8378
        %v8443 = vmul.f32 %v8426, %v8379
        %v8444 = vmul.f32 %v8426, %v8380
        %v8445 = vmul.f32 %v8426, %v8381
        %v8446 = vmul.f32 %v8426, %v8382
        %v8447 = vmul.f32 %v8426, %v8383
        %v8448 = vmul.f32 %v8426, %v8384
        %v8449 = vmul.f32 %v8426, %v8385
        %v8450 = vmul.f32 %v8426, %v8386
        %v8451 = vmul.f32 %v8426, %v8387
        %v8452 = vmul.f32 %v8426, %v8388
        %v8453 = vmul.f32 %v8426, %v8389
        %v8454 = vmul.f32 %v8426, %v8390
        %v8455 = vmul.f32 %v8426, %v8391
        %v8456 = vmul.f32 %v8426, %v8392
        %v8457 = vmul.f32 %v8426, %v8393
        %v8458 = vmul.f32 %v8426, %v8394
        %v8459 = vmul.f32 %v8426, %v8395
        %v8460 = vmul.f32 %v8426, %v8396
        %v8461 = vmul.f32 %v8426, %v8397
        %v8462 = vmul.f32 %v8426, %v8398
        %v8463 = vmul.f32 %v8426, %v8399
        %v8464 = vmul.f32 %v8426, %v8400
        %v8465 = vmul.f32 %v8426, %v8401
        %v8466 = vmul.f32 %v8426, %v8402
        %v8467 = vmul.f32 %v8426, %v8403
        %v8468 = vmul.f32 %v8426, %v8404
        %v8469 = vmul.f32 %v8426, %v8405
        %v8470 = vmul.f32 %v8426, %v8406
        %v8471 = vmul.f32 %v8426, %v8407
        %v8472 = vmul.f32 %v8426, %v8408
        %v8473 = vmul.f32 %v8426, %v8409
        %v8474 = vmul.f32 %v8426, %v8410
        %v8475 = vmul.f32 %v8426, %v8411
        %v8476 = vmul.f32 %v8426, %v8412
        %v8477 = vmul.f32 %v8426, %v8413
        %v8478 = vmul.f32 %v8426, %v8414
        %v8479 = vmul.f32 %v8426, %v8415
        %v8480 = vmul.f32 %v8426, %v8416
        %v8481 = vmul.f32 %v8426, %v8417
        %v8482 = vmul.f32 %v8426, %v8418
        %v8483 = vmul.f32 %v8426, %v8419
        %v8484 = vmul.f32 %v8426, %v8420
        %v8485 = vmul.f32 %v8426, %v8421
        %v8486 = vmul.f32 %v8426, %v8422
        %v8487 = vmul.f32 %v8426, %v8423
        %v8488 = vmul.f32 %v8426, %v8424
        %v8489 = vmul.f32 %v8426, %v8425
        %v8490 = vmul.f32 %v8048, %v8427
        %v8491 = vmul.f32 %v8049, %v8428
        %v8492 = vmul.f32 %v8050, %v8429
        %v8493 = vmul.f32 %v8051, %v8430
        %v8494 = vmul.f32 %v8052, %v8431
        %v8495 = vmul.f32 %v8053, %v8432
        %v8496 = vmul.f32 %v8054, %v8433
        %v8497 = vmul.f32 %v8055, %v8434
        %v8498 = vmul.f32 %v8056, %v8435
        %v8499 = vmul.f32 %v8057, %v8436
        %v8500 = vmul.f32 %v8058, %v8437
        %v8501 = vmul.f32 %v8059, %v8438
        %v8502 = vmul.f32 %v8060, %v8439
        %v8503 = vmul.f32 %v8061, %v8440
        %v8504 = vmul.f32 %v8062, %v8441
        %v8505 = vmul.f32 %v8063, %v8442
        %v8506 = vmul.f32 %v8064, %v8443
        %v8507 = vmul.f32 %v8065, %v8444
        %v8508 = vmul.f32 %v8066, %v8445
        %v8509 = vmul.f32 %v8067, %v8446
        %v8510 = vmul.f32 %v8068, %v8447
        %v8511 = vmul.f32 %v8069, %v8448
        %v8512 = vmul.f32 %v8070, %v8449
        %v8513 = vmul.f32 %v8071, %v8450
        %v8514 = vmul.f32 %v8072, %v8451
        %v8515 = vmul.f32 %v8073, %v8452
        %v8516 = vmul.f32 %v8074, %v8453
        %v8517 = vmul.f32 %v8075, %v8454
        %v8518 = vmul.f32 %v8076, %v8455
        %v8519 = vmul.f32 %v8077, %v8456
        %v8520 = vmul.f32 %v8078, %v8457
        %v8521 = vmul.f32 %v8079, %v8458
        %v8522 = vmul.f32 %v8080, %v8459
        %v8523 = vmul.f32 %v8081, %v8460
        %v8524 = vmul.f32 %v8082, %v8461
        %v8525 = vmul.f32 %v8083, %v8462
        %v8526 = vmul.f32 %v8084, %v8463
        %v8527 = vmul.f32 %v8085, %v8464
        %v8528 = vmul.f32 %v8086, %v8465
        %v8529 = vmul.f32 %v8087, %v8466
        %v8530 = vmul.f32 %v8088, %v8467
        %v8531 = vmul.f32 %v8089, %v8468
        %v8532 = vmul.f32 %v8090, %v8469
        %v8533 = vmul.f32 %v8091, %v8470
        %v8534 = vmul.f32 %v8092, %v8471
        %v8535 = vmul.f32 %v8093, %v8472
        %v8536 = vmul.f32 %v8094, %v8473
        %v8537 = vmul.f32 %v8095, %v8474
        %v8538 = vmul.f32 %v8096, %v8475
        %v8539 = vmul.f32 %v8097, %v8476
        %v8540 = vmul.f32 %v8098, %v8477
        %v8541 = vmul.f32 %v8099, %v8478
        %v8542 = vmul.f32 %v8100, %v8479
        %v8543 = vmul.f32 %v8101, %v8480
        %v8544 = vmul.f32 %v8102, %v8481
        %v8545 = vmul.f32 %v8103, %v8482
        %v8546 = vmul.f32 %v8104, %v8483
        %v8547 = vmul.f32 %v8105, %v8484
        %v8548 = vmul.f32 %v8106, %v8485
        %v8549 = vmul.f32 %v8107, %v8486
        %v8550 = vmul.f32 %v8108, %v8487
        %v8551 = vmul.f32 %v8109, %v8488
        %v8552 = vmul.f32 %v8110, %v8489
        %v8553 = vstv %s7161
        %v8554 = vsub.f32 %v8553, %v8490
        %v8555 = vsub.f32 %v8553, %v8491
        %v8556 = vsub.f32 %v8553, %v8492
        %v8557 = vsub.f32 %v8553, %v8493
        %v8558 = vsub.f32 %v8553, %v8494
        %v8559 = vsub.f32 %v8553, %v8495
        %v8560 = vsub.f32 %v8553, %v8496
        %v8561 = vsub.f32 %v8553, %v8497
        %v8562 = vsub.f32 %v8553, %v8498
        %v8563 = vsub.f32 %v8553, %v8499
        %v8564 = vsub.f32 %v8553, %v8500
        %v8565 = vsub.f32 %v8553, %v8501
        %v8566 = vsub.f32 %v8553, %v8502
        %v8567 = vsub.f32 %v8553, %v8503
        %v8568 = vsub.f32 %v8553, %v8504
        %v8569 = vsub.f32 %v8553, %v8505
        %v8570 = vsub.f32 %v8553, %v8506
        %v8571 = vsub.f32 %v8553, %v8507
        %v8572 = vsub.f32 %v8553, %v8508
        %v8573 = vsub.f32 %v8553, %v8509
        %v8574 = vsub.f32 %v8553, %v8510
        %v8575 = vsub.f32 %v8553, %v8511
        %v8576 = vsub.f32 %v8553, %v8512
        %v8577 = vsub.f32 %v8553, %v8513
        %v8578 = vsub.f32 %v8553, %v8514
        %v8579 = vsub.f32 %v8553, %v8515
        %v8580 = vsub.f32 %v8553, %v8516
        %v8581 = vsub.f32 %v8553, %v8517
        %v8582 = vsub.f32 %v8553, %v8518
        %v8583 = vsub.f32 %v8553, %v8519
        %v8584 = vsub.f32 %v8553, %v8520
        %v8585 = vsub.f32 %v8553, %v8521
        %v8586 = vsub.f32 %v8553, %v8522
        %v8587 = vsub.f32 %v8553, %v8523
        %v8588 = vsub.f32 %v8553, %v8524
        %v8589 = vsub.f32 %v8553, %v8525
        %v8590 = vsub.f32 %v8553, %v8526
        %v8591 = vsub.f32 %v8553, %v8527
        %v8592 = vsub.f32 %v8553, %v8528
        %v8593 = vsub.f32 %v8553, %v8529
        %v8594 = vsub.f32 %v8553, %v8530
        %v8595 = vsub.f32 %v8553, %v8531
        %v8596 = vsub.f32 %v8553, %v8532
        %v8597 = vsub.f32 %v8553, %v8533
        %v8598 = vsub.f32 %v8553, %v8534
        %v8599 = vsub.f32 %v8553, %v8535
        %v8600 = vsub.f32 %v8553, %v8536
        %v8601 = vsub.f32 %v8553, %v8537
        %v8602 = vsub.f32 %v8553, %v8538
        %v8603 = vsub.f32 %v8553, %v8539
        %v8604 = vsub.f32 %v8553, %v8540
        %v8605 = vsub.f32 %v8553, %v8541
        %v8606 = vsub.f32 %v8553, %v8542
        %v8607 = vsub.f32 %v8553, %v8543
        %v8608 = vsub.f32 %v8553, %v8544
        %v8609 = vsub.f32 %v8553, %v8545
        %v8610 = vsub.f32 %v8553, %v8546
        %v8611 = vsub.f32 %v8553, %v8547
        %v8612 = vsub.f32 %v8553, %v8548
        %v8613 = vsub.f32 %v8553, %v8549
        %v8614 = vsub.f32 %v8553, %v8550
        %v8615 = vsub.f32 %v8553, %v8551
        %v8616 = vsub.f32 %v8553, %v8552
        %v8617 = vmul.f32 %v7544, %v8427
        %v8618 = vmul.f32 %v7545, %v8428
        %v8619 = vmul.f32 %v7546, %v8429
        %v8620 = vmul.f32 %v7547, %v8430
        %v8621 = vmul.f32 %v7548, %v8431
        %v8622 = vmul.f32 %v7549, %v8432
        %v8623 = vmul.f32 %v7550, %v8433
        %v8624 = vmul.f32 %v7551, %v8434
        %v8625 = vmul.f32 %v7552, %v8435
        %v8626 = vmul.f32 %v7553, %v8436
        %v8627 = vmul.f32 %v7554, %v8437
        %v8628 = vmul.f32 %v7555, %v8438
        %v8629 = vmul.f32 %v7556, %v8439
        %v8630 = vmul.f32 %v7557, %v8440
        %v8631 = vmul.f32 %v7558, %v8441
        %v8632 = vmul.f32 %v7559, %v8442
        %v8633 = vmul.f32 %v7560, %v8443
        %v8634 = vmul.f32 %v7561, %v8444
        %v8635 = vmul.f32 %v7562, %v8445
        %v8636 = vmul.f32 %v7563, %v8446
        %v8637 = vmul.f32 %v7564, %v8447
        %v8638 = vmul.f32 %v7565, %v8448
        %v8639 = vmul.f32 %v7566, %v8449
        %v8640 = vmul.f32 %v7567, %v8450
        %v8641 = vmul.f32 %v7568, %v8451
        %v8642 = vmul.f32 %v7569, %v8452
        %v8643 = vmul.f32 %v7570, %v8453
        %v8644 = vmul.f32 %v7571, %v8454
        %v8645 = vmul.f32 %v7572, %v8455
        %v8646 = vmul.f32 %v7573, %v8456
        %v8647 = vmul.f32 %v7574, %v8457
        %v8648 = vmul.f32 %v7575, %v8458
        %v8649 = vmul.f32 %v7576, %v8459
        %v8650 = vmul.f32 %v7577, %v8460
        %v8651 = vmul.f32 %v7578, %v8461
        %v8652 = vmul.f32 %v7579, %v8462
        %v8653 = vmul.f32 %v7580, %v8463
        %v8654 = vmul.f32 %v7581, %v8464
        %v8655 = vmul.f32 %v7582, %v8465
        %v8656 = vmul.f32 %v7583, %v8466
        %v8657 = vmul.f32 %v7584, %v8467
        %v8658 = vmul.f32 %v7585, %v8468
        %v8659 = vmul.f32 %v7586, %v8469
        %v8660 = vmul.f32 %v7587, %v8470
        %v8661 = vmul.f32 %v7588, %v8471
        %v8662 = vmul.f32 %v7589, %v8472
        %v8663 = vmul.f32 %v7590, %v8473
        %v8664 = vmul.f32 %v7591, %v8474
        %v8665 = vmul.f32 %v7592, %v8475
        %v8666 = vmul.f32 %v7593, %v8476
        %v8667 = vmul.f32 %v7594, %v8477
        %v8668 = vmul.f32 %v7595, %v8478
        %v8669 = vmul.f32 %v7596, %v8479
        %v8670 = vmul.f32 %v7597, %v8480
        %v8671 = vmul.f32 %v7598, %v8481
        %v8672 = vmul.f32 %v7599, %v8482
        %v8673 = vmul.f32 %v7600, %v8483
        %v8674 = vmul.f32 %v7601, %v8484
        %v8675 = vmul.f32 %v7602, %v8485
        %v8676 = vmul.f32 %v7603, %v8486
        %v8677 = vmul.f32 %v7604, %v8487
        %v8678 = vmul.f32 %v7605, %v8488
        %v8679 = vmul.f32 %v7606, %v8489
        %v8680 = vadd.f32 %v8617, %v8554
        %v8681 = vadd.f32 %v8618, %v8555
        %v8682 = vadd.f32 %v8619, %v8556
        %v8683 = vadd.f32 %v8620, %v8557
        %v8684 = vadd.f32 %v8621, %v8558
        %v8685 = vadd.f32 %v8622, %v8559
        %v8686 = vadd.f32 %v8623, %v8560
        %v8687 = vadd.f32 %v8624, %v8561
        %v8688 = vadd.f32 %v8625, %v8562
        %v8689 = vadd.f32 %v8626, %v8563
        %v8690 = vadd.f32 %v8627, %v8564
        %v8691 = vadd.f32 %v8628, %v8565
        %v8692 = vadd.f32 %v8629, %v8566
        %v8693 = vadd.f32 %v8630, %v8567
        %v8694 = vadd.f32 %v8631, %v8568
        %v8695 = vadd.f32 %v8632, %v8569
        %v8696 = vadd.f32 %v8633, %v8570
        %v8697 = vadd.f32 %v8634, %v8571
        %v8698 = vadd.f32 %v8635, %v8572
        %v8699 = vadd.f32 %v8636, %v8573
        %v8700 = vadd.f32 %v8637, %v8574
        %v8701 = vadd.f32 %v8638, %v8575
        %v8702 = vadd.f32 %v8639, %v8576
        %v8703 = vadd.f32 %v8640, %v8577
        %v8704 = vadd.f32 %v8641, %v8578
        %v8705 = vadd.f32 %v8642, %v8579
        %v8706 = vadd.f32 %v8643, %v8580
        %v8707 = vadd.f32 %v8644, %v8581
        %v8708 = vadd.f32 %v8645, %v8582
        %v8709 = vadd.f32 %v8646, %v8583
        %v8710 = vadd.f32 %v8647, %v8584
        %v8711 = vadd.f32 %v8648, %v8585
        %v8712 = vadd.f32 %v8649, %v8586
        %v8713 = vadd.f32 %v8650, %v8587
        %v8714 = vadd.f32 %v8651, %v8588
        %v8715 = vadd.f32 %v8652, %v8589
        %v8716 = vadd.f32 %v8653, %v8590
        %v8717 = vadd.f32 %v8654, %v8591
        %v8718 = vadd.f32 %v8655, %v8592
        %v8719 = vadd.f32 %v8656, %v8593
        %v8720 = vadd.f32 %v8657, %v8594
        %v8721 = vadd.f32 %v8658, %v8595
        %v8722 = vadd.f32 %v8659, %v8596
        %v8723 = vadd.f32 %v8660, %v8597
        %v8724 = vadd.f32 %v8661, %v8598
        %v8725 = vadd.f32 %v8662, %v8599
        %v8726 = vadd.f32 %v8663, %v8600
        %v8727 = vadd.f32 %v8664, %v8601
        %v8728 = vadd.f32 %v8665, %v8602
        %v8729 = vadd.f32 %v8666, %v8603
        %v8730 = vadd.f32 %v8667, %v8604
        %v8731 = vadd.f32 %v8668, %v8605
        %v8732 = vadd.f32 %v8669, %v8606
        %v8733 = vadd.f32 %v8670, %v8607
        %v8734 = vadd.f32 %v8671, %v8608
        %v8735 = vadd.f32 %v8672, %v8609
        %v8736 = vadd.f32 %v8673, %v8610
        %v8737 = vadd.f32 %v8674, %v8611
        %v8738 = vadd.f32 %v8675, %v8612
        %v8739 = vadd.f32 %v8676, %v8613
        %v8740 = vadd.f32 %v8677, %v8614
        %v8741 = vadd.f32 %v8678, %v8615
        %v8742 = vadd.f32 %v8679, %v8616
        %v8743 = vmax.f32 %v8680, 0.0
        %v8744 = vmax.f32 %v8681, 0.0
        %v8745 = vmax.f32 %v8682, 0.0
        %v8746 = vmax.f32 %v8683, 0.0
        %v8747 = vmax.f32 %v8684, 0.0
        %v8748 = vmax.f32 %v8685, 0.0
        %v8749 = vmax.f32 %v8686, 0.0
        %v8750 = vmax.f32 %v8687, 0.0
        %v8751 = vmax.f32 %v8688, 0.0
        %v8752 = vmax.f32 %v8689, 0.0
        %v8753 = vmax.f32 %v8690, 0.0
        %v8754 = vmax.f32 %v8691, 0.0
        %v8755 = vmax.f32 %v8692, 0.0
        %v8756 = vmax.f32 %v8693, 0.0
        %v8757 = vmax.f32 %v8694, 0.0
        %v8758 = vmax.f32 %v8695, 0.0
        %v8759 = vmax.f32 %v8696, 0.0
        %v8760 = vmax.f32 %v8697, 0.0
        %v8761 = vmax.f32 %v8698, 0.0
        %v8762 = vmax.f32 %v8699, 0.0
        %v8763 = vmax.f32 %v8700, 0.0
        %v8764 = vmax.f32 %v8701, 0.0
        %v8765 = vmax.f32 %v8702, 0.0
        %v8766 = vmax.f32 %v8703, 0.0
        %v8767 = vmax.f32 %v8704, 0.0
        %v8768 = vmax.f32 %v8705, 0.0
        %v8769 = vmax.f32 %v8706, 0.0
        %v8770 = vmax.f32 %v8707, 0.0
        %v8771 = vmax.f32 %v8708, 0.0
        %v8772 = vmax.f32 %v8709, 0.0
        %v8773 = vmax.f32 %v8710, 0.0
        %v8774 = vmax.f32 %v8711, 0.0
        %v8775 = vmax.f32 %v8712, 0.0
        %v8776 = vmax.f32 %v8713, 0.0
        %v8777 = vmax.f32 %v8714, 0.0
        %v8778 = vmax.f32 %v8715, 0.0
        %v8779 = vmax.f32 %v8716, 0.0
        %v8780 = vmax.f32 %v8717, 0.0
        %v8781 = vmax.f32 %v8718, 0.0
        %v8782 = vmax.f32 %v8719, 0.0
        %v8783 = vmax.f32 %v8720, 0.0
        %v8784 = vmax.f32 %v8721, 0.0
        %v8785 = vmax.f32 %v8722, 0.0
        %v8786 = vmax.f32 %v8723, 0.0
        %v8787 = vmax.f32 %v8724, 0.0
        %v8788 = vmax.f32 %v8725, 0.0
        %v8789 = vmax.f32 %v8726, 0.0
        %v8790 = vmax.f32 %v8727, 0.0
        %v8791 = vmax.f32 %v8728, 0.0
        %v8792 = vmax.f32 %v8729, 0.0
        %v8793 = vmax.f32 %v8730, 0.0
        %v8794 = vmax.f32 %v8731, 0.0
        %v8795 = vmax.f32 %v8732, 0.0
        %v8796 = vmax.f32 %v8733, 0.0
        %v8797 = vmax.f32 %v8734, 0.0
        %v8798 = vmax.f32 %v8735, 0.0
        %v8799 = vmax.f32 %v8736, 0.0
        %v8800 = vmax.f32 %v8737, 0.0
        %v8801 = vmax.f32 %v8738, 0.0
        %v8802 = vmax.f32 %v8739, 0.0
        %v8803 = vmax.f32 %v8740, 0.0
        %v8804 = vmax.f32 %v8741, 0.0
        %v8805 = vmax.f32 %v8742, 0.0
        %v8806 = vpack.c.bf16 %v8744, %v8743
        %v8807 = vpack.c.bf16 %v8746, %v8745
        %v8808 = vpack.c.bf16 %v8748, %v8747
        %v8809 = vpack.c.bf16 %v8750, %v8749
        %v8810 = vpack.c.bf16 %v8752, %v8751
        %v8811 = vpack.c.bf16 %v8754, %v8753
        %v8812 = vpack.c.bf16 %v8756, %v8755
        %v8813 = vpack.c.bf16 %v8758, %v8757
        %v8814 = vpack.c.bf16 %v8760, %v8759
        %v8815 = vpack.c.bf16 %v8762, %v8761
        %v8816 = vpack.c.bf16 %v8764, %v8763
        %v8817 = vpack.c.bf16 %v8766, %v8765
        %v8818 = vpack.c.bf16 %v8768, %v8767
        %v8819 = vpack.c.bf16 %v8770, %v8769
        %v8820 = vpack.c.bf16 %v8772, %v8771
        %v8821 = vpack.c.bf16 %v8774, %v8773
        %v8822 = vpack.c.bf16 %v8776, %v8775
        %v8823 = vpack.c.bf16 %v8778, %v8777
        %v8824 = vpack.c.bf16 %v8780, %v8779
        %v8825 = vpack.c.bf16 %v8782, %v8781
        %v8826 = vpack.c.bf16 %v8784, %v8783
        %v8827 = vpack.c.bf16 %v8786, %v8785
        %v8828 = vpack.c.bf16 %v8788, %v8787
        %v8829 = vpack.c.bf16 %v8790, %v8789
        %v8830 = vpack.c.bf16 %v8792, %v8791
        %v8831 = vpack.c.bf16 %v8794, %v8793
        %v8832 = vpack.c.bf16 %v8796, %v8795
        %v8833 = vpack.c.bf16 %v8798, %v8797
        %v8834 = vpack.c.bf16 %v8800, %v8799
        %v8835 = vpack.c.bf16 %v8802, %v8801
        %v8836 = vpack.c.bf16 %v8804, %v8803
        %v8837 = vpack.c.bf16 %v8805, %v8805
        %v8838 = vld [vmem:[%s3 + $0x50] sm:$0xf]
        %v8839 = vld [vmem:[%s3 + $0x54] sm:$0xf]
        %v8840 = vld [vmem:[%s3 + $0x58] sm:$0xf]
        %v8841 = vld [vmem:[%s3 + $0x5c] sm:$0xf]
        %v8842 = vld [vmem:[%s3 + $0x60] sm:$0xf]
        %v8843 = vld [vmem:[%s3 + $0x64] sm:$0xf]
        %v8844 = vld [vmem:[%s3 + $0x68] sm:$0xf]
        %v8845 = vld [vmem:[%s3 + $0x6c] sm:$0xf]
        %v8854 = vunpack.c.l.b16 %v8838
        %v8855 = vunpack.c.l.b16 %v8839
        %v8856 = vunpack.c.l.b16 %v8840
        %v8857 = vunpack.c.l.b16 %v8841
        %v8858 = vunpack.c.l.b16 %v8842
        %v8859 = vunpack.c.l.b16 %v8843
        %v8860 = vunpack.c.l.b16 %v8844
        %v8861 = vunpack.c.l.b16 %v8845
        %v8862 = vpack.c.b16 %v8855, %v8854
        %v8863 = vpack.c.b16 %v8857, %v8856
        %v8864 = vpack.c.b16 %v8859, %v8858
        %v8865 = vpack.c.b16 %v8861, %v8860
        %v8871 = vsel %vm3284, %v8806, 0
        %v8874 = vsel %vm3284, %v8807, 0
        %v8877 = vsel %vm3284, %v8808, 0
        %v8880 = vsel %vm3284, %v8809, 0
        %v8883 = vsel %vm3284, %v8810, 0
        %v8886 = vsel %vm3284, %v8811, 0
        %v8889 = vsel %vm3284, %v8812, 0
        %v8892 = vsel %vm3284, %v8813, 0
        %v8895 = vsel %vm3284, %v8814, 0
        %v8898 = vsel %vm3284, %v8815, 0
        %v8901 = vsel %vm3284, %v8816, 0
        %v8904 = vsel %vm3284, %v8817, 0
        %v8907 = vsel %vm3284, %v8818, 0
        %v8910 = vsel %vm3284, %v8819, 0
        %v8913 = vsel %vm3284, %v8820, 0
        %v8916 = vsel %vm3284, %v8821, 0
        %v8919 = vsel %vm3284, %v8822, 0
        %v8922 = vsel %vm3284, %v8823, 0
        %v8925 = vsel %vm3284, %v8824, 0
        %v8928 = vsel %vm3284, %v8825, 0
        %v8931 = vsel %vm3284, %v8826, 0
        %v8934 = vsel %vm3284, %v8827, 0
        %v8937 = vsel %vm3284, %v8828, 0
        %v8940 = vsel %vm3284, %v8829, 0
        %v8943 = vsel %vm3284, %v8830, 0
        %v8946 = vsel %vm3284, %v8831, 0
        %v8949 = vsel %vm3284, %v8832, 0
        %v8952 = vsel %vm3284, %v8833, 0
        %v8955 = vsel %vm3284, %v8834, 0
        %v8958 = vsel %vm3284, %v8835, 0
        %v8961 = vsel %vm3284, %v8836, 0
        %v8964 = vsel %vm3284, %v8837, 0
        %8966 = vmatprep.subr.bf16.mxu0 0
        %8967 = vmatpush1.bf16.msra.mxu0 %v8862
        %8968 = vmatprep.subr.bf16.mxu0 0
        %8969 = vmatpush1.bf16.msra.mxu0 %v8863
        %8970 = vmatprep.subr.bf16.mxu0 0
        %8971 = vmatpush1.bf16.msra.mxu0 %v8864
        %8972 = vmatprep.subr.bf16.mxu0 0
        %8973 = vmatpush1.bf16.msra.mxu0 %v8865
        %8974 = vmatprep.subr.bf16.mxu0 0
        %8975 = vmatpush1.bf16.msra.mxu0 0
        %8976 = vmatprep.subr.bf16.mxu0 0
        %8977 = vmatpush1.bf16.msra.mxu0 0
        %8978 = vmatprep.subr.bf16.mxu0 0
        %8979 = vmatpush1.bf16.msra.mxu0 0
        %8980 = vmatprep.subr.bf16.mxu0 0
        %8981 = vmatpush1.bf16.msra.mxu0 0
        %8982 = vmatprep.subr.bf16.mxu0 0
        %8983 = vmatpush1.bf16.msra.mxu0 0
        %8984 = vmatprep.subr.bf16.mxu0 0
        %8985 = vmatpush1.bf16.msra.mxu0 0
        %8986 = vmatprep.subr.bf16.mxu0 0
        %8987 = vmatpush1.bf16.msra.mxu0 0
        %8988 = vmatprep.subr.bf16.mxu0 0
        %8989 = vmatpush1.bf16.msra.mxu0 0
        %8990 = vmatprep.subr.bf16.mxu0 0
        %8991 = vmatpush1.bf16.msra.mxu0 0
        %8992 = vmatprep.subr.bf16.mxu0 0
        %8993 = vmatpush1.bf16.msra.mxu0 0
        %8994 = vmatprep.subr.bf16.mxu0 0
        %8995 = vmatpush1.bf16.msra.mxu0 0
        %8996 = vmatprep.subr.bf16.mxu0 0
        %8997 = vmatpush1.bf16.msra.mxu0 0
        %8998 = vmatprep.mubr.bf16.mxu0 0
        %8999 = vmatmul.mubr.bf16.gmra.mrb[0].mxu0 %v8871
        %v9000 = vpop.f32.mrb[0].mxu0
        %v9001 = vadd.f32 0.0, %v9000
        %v9002 = vpop.f32.mrb[0].mxu0
        %v9003 = vpop.f32.mrb[0].mxu0
        %v9004 = vadd.f32 0.0, %v9003
        %v9005 = vpop.f32.mrb[0].mxu0
        %9006 = vmatprep.mubr.bf16.mxu0 0
        %9007 = vmatmul.mubr.bf16.gmra.mrb[0].mxu0 %v8874
        %v9008 = vpop.f32.mrb[0].mxu0
        %v9009 = vadd.f32 0.0, %v9008
        %v9010 = vpop.f32.mrb[0].mxu0
        %v9011 = vpop.f32.mrb[0].mxu0
        %v9012 = vadd.f32 0.0, %v9011
        %v9013 = vpop.f32.mrb[0].mxu0
        %9014 = vmatprep.mubr.bf16.mxu0 0
        %9015 = vmatmul.mubr.bf16.gmra.mrb[0].mxu0 %v8877
        %v9016 = vpop.f32.mrb[0].mxu0
        %v9017 = vadd.f32 0.0, %v9016
        %v9018 = vpop.f32.mrb[0].mxu0
        %v9019 = vpop.f32.mrb[0].mxu0
        %v9020 = vadd.f32 0.0, %v9019
        %v9021 = vpop.f32.mrb[0].mxu0
        %9022 = vmatprep.mubr.bf16.mxu0 0
        %9023 = vmatmul.mubr.bf16.gmra.mrb[0].mxu0 %v8880
        %v9024 = vpop.f32.mrb[0].mxu0
        %v9025 = vadd.f32 0.0, %v9024
        %v9026 = vpop.f32.mrb[0].mxu0
        %v9027 = vpop.f32.mrb[0].mxu0
        %v9028 = vadd.f32 0.0, %v9027
        %v9029 = vpop.f32.mrb[0].mxu0
        %9030 = vmatprep.mubr.bf16.mxu0 0
        %9031 = vmatmul.mubr.bf16.gmra.mrb[0].mxu0 %v8883
        %v9032 = vpop.f32.mrb[0].mxu0
        %v9033 = vadd.f32 0.0, %v9032
        %v9034 = vpop.f32.mrb[0].mxu0
        %v9035 = vpop.f32.mrb[0].mxu0
        %v9036 = vadd.f32 0.0, %v9035
        %v9037 = vpop.f32.mrb[0].mxu0
        %9038 = vmatprep.mubr.bf16.mxu0 0
        %9039 = vmatmul.mubr.bf16.gmra.mrb[0].mxu0 %v8886
        %v9040 = vpop.f32.mrb[0].mxu0
        %v9041 = vadd.f32 0.0, %v9040
        %v9042 = vpop.f32.mrb[0].mxu0
        %v9043 = vpop.f32.mrb[0].mxu0
        %v9044 = vadd.f32 0.0, %v9043
        %v9045 = vpop.f32.mrb[0].mxu0
        %9046 = vmatprep.mubr.bf16.mxu0 0
        %9047 = vmatmul.mubr.bf16.gmra.mrb[0].mxu0 %v8889
        %v9048 = vpop.f32.mrb[0].mxu0
        %v9049 = vadd.f32 0.0, %v9048
        %v9050 = vpop.f32.mrb[0].mxu0
        %v9051 = vpop.f32.mrb[0].mxu0
        %v9052 = vadd.f32 0.0, %v9051
        %v9053 = vpop.f32.mrb[0].mxu0
        %9054 = vmatprep.mubr.bf16.mxu0 0
        %9055 = vmatmul.mubr.bf16.gmra.mrb[0].mxu0 %v8892
        %v9056 = vpop.f32.mrb[0].mxu0
        %v9057 = vadd.f32 0.0, %v9056
        %v9058 = vpop.f32.mrb[0].mxu0
        %v9059 = vpop.f32.mrb[0].mxu0
        %v9060 = vadd.f32 0.0, %v9059
        %v9061 = vpop.f32.mrb[0].mxu0
        %9062 = vmatprep.mubr.bf16.mxu0 0
        %9063 = vmatmul.mubr.bf16.gmra.mrb[0].mxu0 %v8895
        %v9064 = vpop.f32.mrb[0].mxu0
        %v9065 = vadd.f32 0.0, %v9064
        %v9066 = vpop.f32.mrb[0].mxu0
        %v9067 = vpop.f32.mrb[0].mxu0
        %v9068 = vadd.f32 0.0, %v9067
        %v9069 = vpop.f32.mrb[0].mxu0
        %9070 = vmatprep.mubr.bf16.mxu0 0
        %9071 = vmatmul.mubr.bf16.gmra.mrb[0].mxu0 %v8898
        %v9072 = vpop.f32.mrb[0].mxu0
        %v9073 = vadd.f32 0.0, %v9072
        %v9074 = vpop.f32.mrb[0].mxu0
        %v9075 = vpop.f32.mrb[0].mxu0
        %v9076 = vadd.f32 0.0, %v9075
        %v9077 = vpop.f32.mrb[0].mxu0
        %9078 = vmatprep.mubr.bf16.mxu0 0
        %9079 = vmatmul.mubr.bf16.gmra.mrb[0].mxu0 %v8901
        %v9080 = vpop.f32.mrb[0].mxu0
        %v9081 = vadd.f32 0.0, %v9080
        %v9082 = vpop.f32.mrb[0].mxu0
        %v9083 = vpop.f32.mrb[0].mxu0
        %v9084 = vadd.f32 0.0, %v9083
        %v9085 = vpop.f32.mrb[0].mxu0
        %9086 = vmatprep.mubr.bf16.mxu0 0
        %9087 = vmatmul.mubr.bf16.gmra.mrb[0].mxu0 %v8904
        %v9088 = vpop.f32.mrb[0].mxu0
        %v9089 = vadd.f32 0.0, %v9088
        %v9090 = vpop.f32.mrb[0].mxu0
        %v9091 = vpop.f32.mrb[0].mxu0
        %v9092 = vadd.f32 0.0, %v9091
        %v9093 = vpop.f32.mrb[0].mxu0
        %9094 = vmatprep.mubr.bf16.mxu0 0
        %9095 = vmatmul.mubr.bf16.gmra.mrb[0].mxu0 %v8907
        %v9096 = vpop.f32.mrb[0].mxu0
        %v9097 = vadd.f32 0.0, %v9096
        %v9098 = vpop.f32.mrb[0].mxu0
        %v9099 = vpop.f32.mrb[0].mxu0
        %v9100 = vadd.f32 0.0, %v9099
        %v9101 = vpop.f32.mrb[0].mxu0
        %9102 = vmatprep.mubr.bf16.mxu0 0
        %9103 = vmatmul.mubr.bf16.gmra.mrb[0].mxu0 %v8910
        %v9104 = vpop.f32.mrb[0].mxu0
        %v9105 = vadd.f32 0.0, %v9104
        %v9106 = vpop.f32.mrb[0].mxu0
        %v9107 = vpop.f32.mrb[0].mxu0
        %v9108 = vadd.f32 0.0, %v9107
        %v9109 = vpop.f32.mrb[0].mxu0
        %9110 = vmatprep.mubr.bf16.mxu0 0
        %9111 = vmatmul.mubr.bf16.gmra.mrb[0].mxu0 %v8913
        %v9112 = vpop.f32.mrb[0].mxu0
        %v9113 = vadd.f32 0.0, %v9112
        %v9114 = vpop.f32.mrb[0].mxu0
        %v9115 = vpop.f32.mrb[0].mxu0
        %v9116 = vadd.f32 0.0, %v9115
        %v9117 = vpop.f32.mrb[0].mxu0
        %9118 = vmatprep.mubr.bf16.mxu0 0
        %9119 = vmatmul.mubr.bf16.gmra.mrb[0].mxu0 %v8916
        %v9120 = vpop.f32.mrb[0].mxu0
        %v9121 = vadd.f32 0.0, %v9120
        %v9122 = vpop.f32.mrb[0].mxu0
        %v9123 = vpop.f32.mrb[0].mxu0
        %v9124 = vadd.f32 0.0, %v9123
        %v9125 = vpop.f32.mrb[0].mxu0
        %9126 = vmatprep.mubr.bf16.mxu0 0
        %9127 = vmatmul.mubr.bf16.gmra.mrb[0].mxu0 %v8919
        %v9128 = vpop.f32.mrb[0].mxu0
        %v9129 = vadd.f32 0.0, %v9128
        %v9130 = vpop.f32.mrb[0].mxu0
        %v9131 = vpop.f32.mrb[0].mxu0
        %v9132 = vadd.f32 0.0, %v9131
        %v9133 = vpop.f32.mrb[0].mxu0
        %9134 = vmatprep.mubr.bf16.mxu0 0
        %9135 = vmatmul.mubr.bf16.gmra.mrb[0].mxu0 %v8922
        %v9136 = vpop.f32.mrb[0].mxu0
        %v9137 = vadd.f32 0.0, %v9136
        %v9138 = vpop.f32.mrb[0].mxu0
        %v9139 = vpop.f32.mrb[0].mxu0
        %v9140 = vadd.f32 0.0, %v9139
        %v9141 = vpop.f32.mrb[0].mxu0
        %9142 = vmatprep.mubr.bf16.mxu0 0
        %9143 = vmatmul.mubr.bf16.gmra.mrb[0].mxu0 %v8925
        %v9144 = vpop.f32.mrb[0].mxu0
        %v9145 = vadd.f32 0.0, %v9144
        %v9146 = vpop.f32.mrb[0].mxu0
        %v9147 = vpop.f32.mrb[0].mxu0
        %v9148 = vadd.f32 0.0, %v9147
        %v9149 = vpop.f32.mrb[0].mxu0
        %9150 = vmatprep.mubr.bf16.mxu0 0
        %9151 = vmatmul.mubr.bf16.gmra.mrb[0].mxu0 %v8928
        %v9152 = vpop.f32.mrb[0].mxu0
        %v9153 = vadd.f32 0.0, %v9152
        %v9154 = vpop.f32.mrb[0].mxu0
        %v9155 = vpop.f32.mrb[0].mxu0
        %v9156 = vadd.f32 0.0, %v9155
        %v9157 = vpop.f32.mrb[0].mxu0
        %9158 = vmatprep.mubr.bf16.mxu0 0
        %9159 = vmatmul.mubr.bf16.gmra.mrb[0].mxu0 %v8931
        %v9160 = vpop.f32.mrb[0].mxu0
        %v9161 = vadd.f32 0.0, %v9160
        %v9162 = vpop.f32.mrb[0].mxu0
        %v9163 = vpop.f32.mrb[0].mxu0
        %v9164 = vadd.f32 0.0, %v9163
        %v9165 = vpop.f32.mrb[0].mxu0
        %9166 = vmatprep.mubr.bf16.mxu0 0
        %9167 = vmatmul.mubr.bf16.gmra.mrb[0].mxu0 %v8934
        %v9168 = vpop.f32.mrb[0].mxu0
        %v9169 = vadd.f32 0.0, %v9168
        %v9170 = vpop.f32.mrb[0].mxu0
        %v9171 = vpop.f32.mrb[0].mxu0
        %v9172 = vadd.f32 0.0, %v9171
        %v9173 = vpop.f32.mrb[0].mxu0
        %9174 = vmatprep.mubr.bf16.mxu0 0
        %9175 = vmatmul.mubr.bf16.gmra.mrb[0].mxu0 %v8937
        %v9176 = vpop.f32.mrb[0].mxu0
        %v9177 = vadd.f32 0.0, %v9176
        %v9178 = vpop.f32.mrb[0].mxu0
        %v9179 = vpop.f32.mrb[0].mxu0
        %v9180 = vadd.f32 0.0, %v9179
        %v9181 = vpop.f32.mrb[0].mxu0
        %9182 = vmatprep.mubr.bf16.mxu0 0
        %9183 = vmatmul.mubr.bf16.gmra.mrb[0].mxu0 %v8940
        %v9184 = vpop.f32.mrb[0].mxu0
        %v9185 = vadd.f32 0.0, %v9184
        %v9186 = vpop.f32.mrb[0].mxu0
        %v9187 = vpop.f32.mrb[0].mxu0
        %v9188 = vadd.f32 0.0, %v9187
        %v9189 = vpop.f32.mrb[0].mxu0
        %9190 = vmatprep.mubr.bf16.mxu0 0
        %9191 = vmatmul.mubr.bf16.gmra.mrb[0].mxu0 %v8943
        %v9192 = vpop.f32.mrb[0].mxu0
        %v9193 = vadd.f32 0.0, %v9192
        %v9194 = vpop.f32.mrb[0].mxu0
        %v9195 = vpop.f32.mrb[0].mxu0
        %v9196 = vadd.f32 0.0, %v9195
        %v9197 = vpop.f32.mrb[0].mxu0
        %9198 = vmatprep.mubr.bf16.mxu0 0
        %9199 = vmatmul.mubr.bf16.gmra.mrb[0].mxu0 %v8946
        %v9200 = vpop.f32.mrb[0].mxu0
        %v9201 = vadd.f32 0.0, %v9200
        %v9202 = vpop.f32.mrb[0].mxu0
        %v9203 = vpop.f32.mrb[0].mxu0
        %v9204 = vadd.f32 0.0, %v9203
        %v9205 = vpop.f32.mrb[0].mxu0
        %9206 = vmatprep.mubr.bf16.mxu0 0
        %9207 = vmatmul.mubr.bf16.gmra.mrb[0].mxu0 %v8949
        %v9208 = vpop.f32.mrb[0].mxu0
        %v9209 = vadd.f32 0.0, %v9208
        %v9210 = vpop.f32.mrb[0].mxu0
        %v9211 = vpop.f32.mrb[0].mxu0
        %v9212 = vadd.f32 0.0, %v9211
        %v9213 = vpop.f32.mrb[0].mxu0
        %9214 = vmatprep.mubr.bf16.mxu0 0
        %9215 = vmatmul.mubr.bf16.gmra.mrb[0].mxu0 %v8952
        %v9216 = vpop.f32.mrb[0].mxu0
        %v9217 = vadd.f32 0.0, %v9216
        %v9218 = vpop.f32.mrb[0].mxu0
        %v9219 = vpop.f32.mrb[0].mxu0
        %v9220 = vadd.f32 0.0, %v9219
        %v9221 = vpop.f32.mrb[0].mxu0
        %9222 = vmatprep.mubr.bf16.mxu0 0
        %9223 = vmatmul.mubr.bf16.gmra.mrb[0].mxu0 %v8955
        %v9224 = vpop.f32.mrb[0].mxu0
        %v9225 = vadd.f32 0.0, %v9224
        %v9226 = vpop.f32.mrb[0].mxu0
        %v9227 = vpop.f32.mrb[0].mxu0
        %v9228 = vadd.f32 0.0, %v9227
        %v9229 = vpop.f32.mrb[0].mxu0
        %9230 = vmatprep.mubr.bf16.mxu0 0
        %9231 = vmatmul.mubr.bf16.gmra.mrb[0].mxu0 %v8958
        %v9232 = vpop.f32.mrb[0].mxu0
        %v9233 = vadd.f32 0.0, %v9232
        %v9234 = vpop.f32.mrb[0].mxu0
        %v9235 = vpop.f32.mrb[0].mxu0
        %v9236 = vadd.f32 0.0, %v9235
        %v9237 = vpop.f32.mrb[0].mxu0
        %9238 = vmatprep.mubr.bf16.mxu0 0
        %9239 = vmatmul.mubr.bf16.gmra.mrb[0].mxu0 %v8961
        %v9240 = vpop.f32.mrb[0].mxu0
        %v9241 = vadd.f32 0.0, %v9240
        %v9242 = vpop.f32.mrb[0].mxu0
        %v9243 = vpop.f32.mrb[0].mxu0
        %v9244 = vadd.f32 0.0, %v9243
        %v9245 = vpop.f32.mrb[0].mxu0
        %9246 = vmatprep.mubr.bf16.mxu0 0
        %9247 = vmatmul.mubr.bf16.gmra.mrb[0].mxu0 %v8964
        %v9248 = vpop.f32.mrb[0].mxu0
        %v9249 = vadd.f32 0.0, %v9248
        %v9250 = vpop.f32.mrb[0].mxu0
        %v9251 = vpop.f32.mrb[0].mxu0
        %v9252 = vpop.f32.mrb[0].mxu0
        %9253 = vdwg.mxu0
        %v9254 = vadd.f32 %v7093, %v9001
        %v9255 = vadd.f32 %v7094, %v9004
        %v9256 = vadd.f32 %v7095, %v9009
        %v9257 = vadd.f32 %v7096, %v9012
        %v9258 = vadd.f32 %v7097, %v9017
        %v9259 = vadd.f32 %v7098, %v9020
        %v9260 = vadd.f32 %v7099, %v9025
        %v9261 = vadd.f32 %v7100, %v9028
        %v9262 = vadd.f32 %v7101, %v9033
        %v9263 = vadd.f32 %v7102, %v9036
        %v9264 = vadd.f32 %v7103, %v9041
        %v9265 = vadd.f32 %v7104, %v9044
        %v9266 = vadd.f32 %v7105, %v9049
        %v9267 = vadd.f32 %v7106, %v9052
        %v9268 = vadd.f32 %v7107, %v9057
        %v9269 = vadd.f32 %v7108, %v9060
        %v9270 = vadd.f32 %v7109, %v9065
        %v9271 = vadd.f32 %v7110, %v9068
        %v9272 = vadd.f32 %v7111, %v9073
        %v9273 = vadd.f32 %v7112, %v9076
        %v9274 = vadd.f32 %v7113, %v9081
        %v9275 = vadd.f32 %v7114, %v9084
        %v9276 = vadd.f32 %v7115, %v9089
        %v9277 = vadd.f32 %v7116, %v9092
        %v9278 = vadd.f32 %v7117, %v9097
        %v9279 = vadd.f32 %v7118, %v9100
        %v9280 = vadd.f32 %v7119, %v9105
        %v9281 = vadd.f32 %v7120, %v9108
        %v9282 = vadd.f32 %v7121, %v9113
        %v9283 = vadd.f32 %v7122, %v9116
        %v9284 = vadd.f32 %v7123, %v9121
        %v9285 = vadd.f32 %v7124, %v9124
        %v9286 = vadd.f32 %v7125, %v9129
        %v9287 = vadd.f32 %v7126, %v9132
        %v9288 = vadd.f32 %v7127, %v9137
        %v9289 = vadd.f32 %v7128, %v9140
        %v9290 = vadd.f32 %v7129, %v9145
        %v9291 = vadd.f32 %v7130, %v9148
        %v9292 = vadd.f32 %v7131, %v9153
        %v9293 = vadd.f32 %v7132, %v9156
        %v9294 = vadd.f32 %v7133, %v9161
        %v9295 = vadd.f32 %v7134, %v9164
        %v9296 = vadd.f32 %v7135, %v9169
        %v9297 = vadd.f32 %v7136, %v9172
        %v9298 = vadd.f32 %v7137, %v9177
        %v9299 = vadd.f32 %v7138, %v9180
        %v9300 = vadd.f32 %v7139, %v9185
        %v9301 = vadd.f32 %v7140, %v9188
        %v9302 = vadd.f32 %v7141, %v9193
        %v9303 = vadd.f32 %v7142, %v9196
        %v9304 = vadd.f32 %v7143, %v9201
        %v9305 = vadd.f32 %v7144, %v9204
        %v9306 = vadd.f32 %v7145, %v9209
        %v9307 = vadd.f32 %v7146, %v9212
        %v9308 = vadd.f32 %v7147, %v9217
        %v9309 = vadd.f32 %v7148, %v9220
        %v9310 = vadd.f32 %v7149, %v9225
        %v9311 = vadd.f32 %v7150, %v9228
        %v9312 = vadd.f32 %v7151, %v9233
        %v9313 = vadd.f32 %v7152, %v9236
        %v9314 = vadd.f32 %v7153, %v9241
        %v9315 = vadd.f32 %v7154, %v9244
        %v9316 = vadd.f32 %v7155, %v9249
        %v9317 = vmax.f32 %v9254, 0.0
        %v9318 = vmax.f32 %v9255, 0.0
        %v9319 = vmax.f32 %v9256, 0.0
        %v9320 = vmax.f32 %v9257, 0.0
        %v9321 = vmax.f32 %v9258, 0.0
        %v9322 = vmax.f32 %v9259, 0.0
        %v9323 = vmax.f32 %v9260, 0.0
        %v9324 = vmax.f32 %v9261, 0.0
        %v9325 = vmax.f32 %v9262, 0.0
        %v9326 = vmax.f32 %v9263, 0.0
        %v9327 = vmax.f32 %v9264, 0.0
        %v9328 = vmax.f32 %v9265, 0.0
        %v9329 = vmax.f32 %v9266, 0.0
        %v9330 = vmax.f32 %v9267, 0.0
        %v9331 = vmax.f32 %v9268, 0.0
        %v9332 = vmax.f32 %v9269, 0.0
        %v9333 = vmax.f32 %v9270, 0.0
        %v9334 = vmax.f32 %v9271, 0.0
        %v9335 = vmax.f32 %v9272, 0.0
        %v9336 = vmax.f32 %v9273, 0.0
        %v9337 = vmax.f32 %v9274, 0.0
        %v9338 = vmax.f32 %v9275, 0.0
        %v9339 = vmax.f32 %v9276, 0.0
        %v9340 = vmax.f32 %v9277, 0.0
        %v9341 = vmax.f32 %v9278, 0.0
        %v9342 = vmax.f32 %v9279, 0.0
        %v9343 = vmax.f32 %v9280, 0.0
        %v9344 = vmax.f32 %v9281, 0.0
        %v9345 = vmax.f32 %v9282, 0.0
        %v9346 = vmax.f32 %v9283, 0.0
        %v9347 = vmax.f32 %v9284, 0.0
        %v9348 = vmax.f32 %v9285, 0.0
        %v9349 = vmax.f32 %v9286, 0.0
        %v9350 = vmax.f32 %v9287, 0.0
        %v9351 = vmax.f32 %v9288, 0.0
        %v9352 = vmax.f32 %v9289, 0.0
        %v9353 = vmax.f32 %v9290, 0.0
        %v9354 = vmax.f32 %v9291, 0.0
        %v9355 = vmax.f32 %v9292, 0.0
        %v9356 = vmax.f32 %v9293, 0.0
        %v9357 = vmax.f32 %v9294, 0.0
        %v9358 = vmax.f32 %v9295, 0.0
        %v9359 = vmax.f32 %v9296, 0.0
        %v9360 = vmax.f32 %v9297, 0.0
        %v9361 = vmax.f32 %v9298, 0.0
        %v9362 = vmax.f32 %v9299, 0.0
        %v9363 = vmax.f32 %v9300, 0.0
        %v9364 = vmax.f32 %v9301, 0.0
        %v9365 = vmax.f32 %v9302, 0.0
        %v9366 = vmax.f32 %v9303, 0.0
        %v9367 = vmax.f32 %v9304, 0.0
        %v9368 = vmax.f32 %v9305, 0.0
        %v9369 = vmax.f32 %v9306, 0.0
        %v9370 = vmax.f32 %v9307, 0.0
        %v9371 = vmax.f32 %v9308, 0.0
        %v9372 = vmax.f32 %v9309, 0.0
        %v9373 = vmax.f32 %v9310, 0.0
        %v9374 = vmax.f32 %v9311, 0.0
        %v9375 = vmax.f32 %v9312, 0.0
        %v9376 = vmax.f32 %v9313, 0.0
        %v9377 = vmax.f32 %v9314, 0.0
        %v9378 = vmax.f32 %v9315, 0.0
        %v9379 = vmax.f32 %v9316, 0.0
        %v9380 = vpack.c.bf16 %v9318, %v9317
        %v9381 = vpack.c.bf16 %v9320, %v9319
        %v9382 = vpack.c.bf16 %v9322, %v9321
        %v9383 = vpack.c.bf16 %v9324, %v9323
        %v9384 = vpack.c.bf16 %v9326, %v9325
        %v9385 = vpack.c.bf16 %v9328, %v9327
        %v9386 = vpack.c.bf16 %v9330, %v9329
        %v9387 = vpack.c.bf16 %v9332, %v9331
        %v9388 = vpack.c.bf16 %v9334, %v9333
        %v9389 = vpack.c.bf16 %v9336, %v9335
        %v9390 = vpack.c.bf16 %v9338, %v9337
        %v9391 = vpack.c.bf16 %v9340, %v9339
        %v9392 = vpack.c.bf16 %v9342, %v9341
        %v9393 = vpack.c.bf16 %v9344, %v9343
        %v9394 = vpack.c.bf16 %v9346, %v9345
        %v9395 = vpack.c.bf16 %v9348, %v9347
        %v9396 = vpack.c.bf16 %v9350, %v9349
        %v9397 = vpack.c.bf16 %v9352, %v9351
        %v9398 = vpack.c.bf16 %v9354, %v9353
        %v9399 = vpack.c.bf16 %v9356, %v9355
        %v9400 = vpack.c.bf16 %v9358, %v9357
        %v9401 = vpack.c.bf16 %v9360, %v9359
        %v9402 = vpack.c.bf16 %v9362, %v9361
        %v9403 = vpack.c.bf16 %v9364, %v9363
        %v9404 = vpack.c.bf16 %v9366, %v9365
        %v9405 = vpack.c.bf16 %v9368, %v9367
        %v9406 = vpack.c.bf16 %v9370, %v9369
        %v9407 = vpack.c.bf16 %v9372, %v9371
        %v9408 = vpack.c.bf16 %v9374, %v9373
        %v9409 = vpack.c.bf16 %v9376, %v9375
        %v9410 = vpack.c.bf16 %v9378, %v9377
        %v9411 = vpack.c.bf16 %v9379, %v9379
        %v9412 = vld [vmem:[%s3 + $0xb0] sm:$0xf]
        %v9413 = vld [vmem:[%s3 + $0xb4] sm:$0xf]
        %v9414 = vld [vmem:[%s3 + $0xb8] sm:$0xf]
        %v9415 = vld [vmem:[%s3 + $0xbc] sm:$0xf]
        %v9416 = vld [vmem:[%s3 + $0xc0] sm:$0xf]
        %v9417 = vld [vmem:[%s3 + $0xc4] sm:$0xf]
        %v9418 = vld [vmem:[%s3 + $0xc8] sm:$0xf]
        %v9419 = vld [vmem:[%s3 + $0xcc] sm:$0xf]
        %v9420 = vld [vmem:[%s3 + $0xd0] sm:$0xf]
        %v9421 = vld [vmem:[%s3 + $0xd4] sm:$0xf]
        %v9422 = vld [vmem:[%s3 + $0xd8] sm:$0xf]
        %v9423 = vld [vmem:[%s3 + $0xdc] sm:$0xf]
        %v9424 = vld [vmem:[%s3 + $0xe0] sm:$0xf]
        %v9425 = vld [vmem:[%s3 + $0xe4] sm:$0xf]
        %v9426 = vld [vmem:[%s3 + $0xe8] sm:$0xf]
        %v9427 = vld [vmem:[%s3 + $0xec] sm:$0xf]
        %v9428 = vld [vmem:[%s4 + $0x1] sm:$0x1]
        %v9429 = vlaneseq
        %v9430 = vshrl.u32 %v9429, 7
        %v9431 = vsub.s32 0, %v9430
        %v9432 = vrot.slane %v9428, %v9431
        %v9449 = vunpack.c.l.b16 %v9412
        %v9450 = vunpack.c.l.b16 %v9413
        %v9451 = vunpack.c.l.b16 %v9414
        %v9452 = vunpack.c.l.b16 %v9415
        %v9453 = vunpack.c.l.b16 %v9416
        %v9454 = vunpack.c.l.b16 %v9417
        %v9455 = vunpack.c.l.b16 %v9418
        %v9456 = vunpack.c.l.b16 %v9419
        %v9457 = vunpack.c.l.b16 %v9420
        %v9458 = vunpack.c.l.b16 %v9421
        %v9459 = vunpack.c.l.b16 %v9422
        %v9460 = vunpack.c.l.b16 %v9423
        %v9461 = vunpack.c.l.b16 %v9424
        %v9462 = vunpack.c.l.b16 %v9425
        %v9463 = vunpack.c.l.b16 %v9426
        %v9464 = vunpack.c.l.b16 %v9427
        %v9465 = vpack.c.b16 %v9450, %v9449
        %v9466 = vpack.c.b16 %v9452, %v9451
        %v9467 = vpack.c.b16 %v9454, %v9453
        %v9468 = vpack.c.b16 %v9456, %v9455
        %v9469 = vpack.c.b16 %v9458, %v9457
        %v9470 = vpack.c.b16 %v9460, %v9459
        %v9471 = vpack.c.b16 %v9462, %v9461
        %v9472 = vpack.c.b16 %v9464, %v9463
        %9481 = vmatprep.subr.bf16.mxu0 0
        %9482 = vmatpush1.bf16.msra.mxu0 %v9465
        %9483 = vmatprep.subr.bf16.mxu0 0
        %9484 = vmatpush1.bf16.msra.mxu0 %v9466
        %9485 = vmatprep.subr.bf16.mxu0 0
        %9486 = vmatpush1.bf16.msra.mxu0 %v9467
        %9487 = vmatprep.subr.bf16.mxu0 0
        %9488 = vmatpush1.bf16.msra.mxu0 %v9468
        %9489 = vmatprep.subr.bf16.mxu0 0
        %9490 = vmatpush1.bf16.msra.mxu0 %v9469
        %9491 = vmatprep.subr.bf16.mxu0 0
        %9492 = vmatpush1.bf16.msra.mxu0 %v9470
        %9493 = vmatprep.subr.bf16.mxu0 0
        %9494 = vmatpush1.bf16.msra.mxu0 %v9471
        %9495 = vmatprep.subr.bf16.mxu0 0
        %9496 = vmatpush1.bf16.msra.mxu0 %v9472
        %9497 = vmatprep.subr.bf16.mxu0 0
        %9498 = vmatpush1.bf16.msra.mxu0 0
        %9499 = vmatprep.subr.bf16.mxu0 0
        %9500 = vmatpush1.bf16.msra.mxu0 0
        %9501 = vmatprep.subr.bf16.mxu0 0
        %9502 = vmatpush1.bf16.msra.mxu0 0
        %9503 = vmatprep.subr.bf16.mxu0 0
        %9504 = vmatpush1.bf16.msra.mxu0 0
        %9505 = vmatprep.subr.bf16.mxu0 0
        %9506 = vmatpush1.bf16.msra.mxu0 0
        %9507 = vmatprep.subr.bf16.mxu0 0
        %9508 = vmatpush1.bf16.msra.mxu0 0
        %9509 = vmatprep.subr.bf16.mxu0 0
        %9510 = vmatpush1.bf16.msra.mxu0 0
        %9511 = vmatprep.subr.bf16.mxu0 0
        %9512 = vmatpush1.bf16.msra.mxu0 0
        %9513 = vmatprep.mubr.bf16.mxu0 0
        %9514 = vmatmul.mubr.bf16.gmra.mrb[0].mxu0 %v9380
        %v9515 = vpop.f32.mrb[0].mxu0
        %v9516 = vadd.f32 %v9432, %v9515
        %v9517 = vpop.f32.mrb[0].mxu0
        %v9518 = vpop.f32.mrb[0].mxu0
        %v9519 = vadd.f32 %v9432, %v9518
        %v9520 = vpop.f32.mrb[0].mxu0
        %9521 = vmatprep.mubr.bf16.mxu0 0
        %9522 = vmatmul.mubr.bf16.gmra.mrb[0].mxu0 %v9381
        %v9523 = vpop.f32.mrb[0].mxu0
        %v9524 = vadd.f32 %v9432, %v9523
        %v9525 = vpop.f32.mrb[0].mxu0
        %v9526 = vpop.f32.mrb[0].mxu0
        %v9527 = vadd.f32 %v9432, %v9526
        %v9528 = vpop.f32.mrb[0].mxu0
        %9529 = vmatprep.mubr.bf16.mxu0 0
        %9530 = vmatmul.mubr.bf16.gmra.mrb[0].mxu0 %v9382
        %v9531 = vpop.f32.mrb[0].mxu0
        %v9532 = vadd.f32 %v9432, %v9531
        %v9533 = vpop.f32.mrb[0].mxu0
        %v9534 = vpop.f32.mrb[0].mxu0
        %v9535 = vadd.f32 %v9432, %v9534
        %v9536 = vpop.f32.mrb[0].mxu0
        %9537 = vmatprep.mubr.bf16.mxu0 0
        %9538 = vmatmul.mubr.bf16.gmra.mrb[0].mxu0 %v9383
        %v9539 = vpop.f32.mrb[0].mxu0
        %v9540 = vadd.f32 %v9432, %v9539
        %v9541 = vpop.f32.mrb[0].mxu0
        %v9542 = vpop.f32.mrb[0].mxu0
        %v9543 = vadd.f32 %v9432, %v9542
        %v9544 = vpop.f32.mrb[0].mxu0
        %9545 = vmatprep.mubr.bf16.mxu0 0
        %9546 = vmatmul.mubr.bf16.gmra.mrb[0].mxu0 %v9384
        %v9547 = vpop.f32.mrb[0].mxu0
        %v9548 = vadd.f32 %v9432, %v9547
        %v9549 = vpop.f32.mrb[0].mxu0
        %v9550 = vpop.f32.mrb[0].mxu0
        %v9551 = vadd.f32 %v9432, %v9550
        %v9552 = vpop.f32.mrb[0].mxu0
        %9553 = vmatprep.mubr.bf16.mxu0 0
        %9554 = vmatmul.mubr.bf16.gmra.mrb[0].mxu0 %v9385
        %v9555 = vpop.f32.mrb[0].mxu0
        %v9556 = vadd.f32 %v9432, %v9555
        %v9557 = vpop.f32.mrb[0].mxu0
        %v9558 = vpop.f32.mrb[0].mxu0
        %v9559 = vadd.f32 %v9432, %v9558
        %v9560 = vpop.f32.mrb[0].mxu0
        %9561 = vmatprep.mubr.bf16.mxu0 0
        %9562 = vmatmul.mubr.bf16.gmra.mrb[0].mxu0 %v9386
        %v9563 = vpop.f32.mrb[0].mxu0
        %v9564 = vadd.f32 %v9432, %v9563
        %v9565 = vpop.f32.mrb[0].mxu0
        %v9566 = vpop.f32.mrb[0].mxu0
        %v9567 = vadd.f32 %v9432, %v9566
        %v9568 = vpop.f32.mrb[0].mxu0
        %9569 = vmatprep.mubr.bf16.mxu0 0
        %9570 = vmatmul.mubr.bf16.gmra.mrb[0].mxu0 %v9387
        %v9571 = vpop.f32.mrb[0].mxu0
        %v9572 = vadd.f32 %v9432, %v9571
        %v9573 = vpop.f32.mrb[0].mxu0
        %v9574 = vpop.f32.mrb[0].mxu0
        %v9575 = vadd.f32 %v9432, %v9574
        %v9576 = vpop.f32.mrb[0].mxu0
        %9577 = vmatprep.mubr.bf16.mxu0 0
        %9578 = vmatmul.mubr.bf16.gmra.mrb[0].mxu0 %v9388
        %v9579 = vpop.f32.mrb[0].mxu0
        %v9580 = vadd.f32 %v9432, %v9579
        %v9581 = vpop.f32.mrb[0].mxu0
        %v9582 = vpop.f32.mrb[0].mxu0
        %v9583 = vadd.f32 %v9432, %v9582
        %v9584 = vpop.f32.mrb[0].mxu0
        %9585 = vmatprep.mubr.bf16.mxu0 0
        %9586 = vmatmul.mubr.bf16.gmra.mrb[0].mxu0 %v9389
        %v9587 = vpop.f32.mrb[0].mxu0
        %v9588 = vadd.f32 %v9432, %v9587
        %v9589 = vpop.f32.mrb[0].mxu0
        %v9590 = vpop.f32.mrb[0].mxu0
        %v9591 = vadd.f32 %v9432, %v9590
        %v9592 = vpop.f32.mrb[0].mxu0
        %9593 = vmatprep.mubr.bf16.mxu0 0
        %9594 = vmatmul.mubr.bf16.gmra.mrb[0].mxu0 %v9390
        %v9595 = vpop.f32.mrb[0].mxu0
        %v9596 = vadd.f32 %v9432, %v9595
        %v9597 = vpop.f32.mrb[0].mxu0
        %v9598 = vpop.f32.mrb[0].mxu0
        %v9599 = vadd.f32 %v9432, %v9598
        %v9600 = vpop.f32.mrb[0].mxu0
        %9601 = vmatprep.mubr.bf16.mxu0 0
        %9602 = vmatmul.mubr.bf16.gmra.mrb[0].mxu0 %v9391
        %v9603 = vpop.f32.mrb[0].mxu0
        %v9604 = vadd.f32 %v9432, %v9603
        %v9605 = vpop.f32.mrb[0].mxu0
        %v9606 = vpop.f32.mrb[0].mxu0
        %v9607 = vadd.f32 %v9432, %v9606
        %v9608 = vpop.f32.mrb[0].mxu0
        %9609 = vmatprep.mubr.bf16.mxu0 0
        %9610 = vmatmul.mubr.bf16.gmra.mrb[0].mxu0 %v9392
        %v9611 = vpop.f32.mrb[0].mxu0
        %v9612 = vadd.f32 %v9432, %v9611
        %v9613 = vpop.f32.mrb[0].mxu0
        %v9614 = vpop.f32.mrb[0].mxu0
        %v9615 = vadd.f32 %v9432, %v9614
        %v9616 = vpop.f32.mrb[0].mxu0
        %9617 = vmatprep.mubr.bf16.mxu0 0
        %9618 = vmatmul.mubr.bf16.gmra.mrb[0].mxu0 %v9393
        %v9619 = vpop.f32.mrb[0].mxu0
        %v9620 = vadd.f32 %v9432, %v9619
        %v9621 = vpop.f32.mrb[0].mxu0
        %v9622 = vpop.f32.mrb[0].mxu0
        %v9623 = vadd.f32 %v9432, %v9622
        %v9624 = vpop.f32.mrb[0].mxu0
        %9625 = vmatprep.mubr.bf16.mxu0 0
        %9626 = vmatmul.mubr.bf16.gmra.mrb[0].mxu0 %v9394
        %v9627 = vpop.f32.mrb[0].mxu0
        %v9628 = vadd.f32 %v9432, %v9627
        %v9629 = vpop.f32.mrb[0].mxu0
        %v9630 = vpop.f32.mrb[0].mxu0
        %v9631 = vadd.f32 %v9432, %v9630
        %v9632 = vpop.f32.mrb[0].mxu0
        %9633 = vmatprep.mubr.bf16.mxu0 0
        %9634 = vmatmul.mubr.bf16.gmra.mrb[0].mxu0 %v9395
        %v9635 = vpop.f32.mrb[0].mxu0
        %v9636 = vadd.f32 %v9432, %v9635
        %v9637 = vpop.f32.mrb[0].mxu0
        %v9638 = vpop.f32.mrb[0].mxu0
        %v9639 = vadd.f32 %v9432, %v9638
        %v9640 = vpop.f32.mrb[0].mxu0
        %9641 = vmatprep.mubr.bf16.mxu0 0
        %9642 = vmatmul.mubr.bf16.gmra.mrb[0].mxu0 %v9396
        %v9643 = vpop.f32.mrb[0].mxu0
        %v9644 = vadd.f32 %v9432, %v9643
        %v9645 = vpop.f32.mrb[0].mxu0
        %v9646 = vpop.f32.mrb[0].mxu0
        %v9647 = vadd.f32 %v9432, %v9646
        %v9648 = vpop.f32.mrb[0].mxu0
        %9649 = vmatprep.mubr.bf16.mxu0 0
        %9650 = vmatmul.mubr.bf16.gmra.mrb[0].mxu0 %v9397
        %v9651 = vpop.f32.mrb[0].mxu0
        %v9652 = vadd.f32 %v9432, %v9651
        %v9653 = vpop.f32.mrb[0].mxu0
        %v9654 = vpop.f32.mrb[0].mxu0
        %v9655 = vadd.f32 %v9432, %v9654
        %v9656 = vpop.f32.mrb[0].mxu0
        %9657 = vmatprep.mubr.bf16.mxu0 0
        %9658 = vmatmul.mubr.bf16.gmra.mrb[0].mxu0 %v9398
        %v9659 = vpop.f32.mrb[0].mxu0
        %v9660 = vadd.f32 %v9432, %v9659
        %v9661 = vpop.f32.mrb[0].mxu0
        %v9662 = vpop.f32.mrb[0].mxu0
        %v9663 = vadd.f32 %v9432, %v9662
        %v9664 = vpop.f32.mrb[0].mxu0
        %9665 = vmatprep.mubr.bf16.mxu0 0
        %9666 = vmatmul.mubr.bf16.gmra.mrb[0].mxu0 %v9399
        %v9667 = vpop.f32.mrb[0].mxu0
        %v9668 = vadd.f32 %v9432, %v9667
        %v9669 = vpop.f32.mrb[0].mxu0
        %v9670 = vpop.f32.mrb[0].mxu0
        %v9671 = vadd.f32 %v9432, %v9670
        %v9672 = vpop.f32.mrb[0].mxu0
        %9673 = vmatprep.mubr.bf16.mxu0 0
        %9674 = vmatmul.mubr.bf16.gmra.mrb[0].mxu0 %v9400
        %v9675 = vpop.f32.mrb[0].mxu0
        %v9676 = vadd.f32 %v9432, %v9675
        %v9677 = vpop.f32.mrb[0].mxu0
        %v9678 = vpop.f32.mrb[0].mxu0
        %v9679 = vadd.f32 %v9432, %v9678
        %v9680 = vpop.f32.mrb[0].mxu0
        %9681 = vmatprep.mubr.bf16.mxu0 0
        %9682 = vmatmul.mubr.bf16.gmra.mrb[0].mxu0 %v9401
        %v9683 = vpop.f32.mrb[0].mxu0
        %v9684 = vadd.f32 %v9432, %v9683
        %v9685 = vpop.f32.mrb[0].mxu0
        %v9686 = vpop.f32.mrb[0].mxu0
        %v9687 = vadd.f32 %v9432, %v9686
        %v9688 = vpop.f32.mrb[0].mxu0
        %9689 = vmatprep.mubr.bf16.mxu0 0
        %9690 = vmatmul.mubr.bf16.gmra.mrb[0].mxu0 %v9402
        %v9691 = vpop.f32.mrb[0].mxu0
        %v9692 = vadd.f32 %v9432, %v9691
        %v9693 = vpop.f32.mrb[0].mxu0
        %v9694 = vpop.f32.mrb[0].mxu0
        %v9695 = vadd.f32 %v9432, %v9694
        %v9696 = vpop.f32.mrb[0].mxu0
        %9697 = vmatprep.mubr.bf16.mxu0 0
        %9698 = vmatmul.mubr.bf16.gmra.mrb[0].mxu0 %v9403
        %v9699 = vpop.f32.mrb[0].mxu0
        %v9700 = vadd.f32 %v9432, %v9699
        %v9701 = vpop.f32.mrb[0].mxu0
        %v9702 = vpop.f32.mrb[0].mxu0
        %v9703 = vadd.f32 %v9432, %v9702
        %v9704 = vpop.f32.mrb[0].mxu0
        %9705 = vmatprep.mubr.bf16.mxu0 0
        %9706 = vmatmul.mubr.bf16.gmra.mrb[0].mxu0 %v9404
        %v9707 = vpop.f32.mrb[0].mxu0
        %v9708 = vadd.f32 %v9432, %v9707
        %v9709 = vpop.f32.mrb[0].mxu0
        %v9710 = vpop.f32.mrb[0].mxu0
        %v9711 = vadd.f32 %v9432, %v9710
        %v9712 = vpop.f32.mrb[0].mxu0
        %9713 = vmatprep.mubr.bf16.mxu0 0
        %9714 = vmatmul.mubr.bf16.gmra.mrb[0].mxu0 %v9405
        %v9715 = vpop.f32.mrb[0].mxu0
        %v9716 = vadd.f32 %v9432, %v9715
        %v9717 = vpop.f32.mrb[0].mxu0
        %v9718 = vpop.f32.mrb[0].mxu0
        %v9719 = vadd.f32 %v9432, %v9718
        %v9720 = vpop.f32.mrb[0].mxu0
        %9721 = vmatprep.mubr.bf16.mxu0 0
        %9722 = vmatmul.mubr.bf16.gmra.mrb[0].mxu0 %v9406
        %v9723 = vpop.f32.mrb[0].mxu0
        %v9724 = vadd.f32 %v9432, %v9723
        %v9725 = vpop.f32.mrb[0].mxu0
        %v9726 = vpop.f32.mrb[0].mxu0
        %v9727 = vadd.f32 %v9432, %v9726
        %v9728 = vpop.f32.mrb[0].mxu0
        %9729 = vmatprep.mubr.bf16.mxu0 0
        %9730 = vmatmul.mubr.bf16.gmra.mrb[0].mxu0 %v9407
        %v9731 = vpop.f32.mrb[0].mxu0
        %v9732 = vadd.f32 %v9432, %v9731
        %v9733 = vpop.f32.mrb[0].mxu0
        %v9734 = vpop.f32.mrb[0].mxu0
        %v9735 = vadd.f32 %v9432, %v9734
        %v9736 = vpop.f32.mrb[0].mxu0
        %9737 = vmatprep.mubr.bf16.mxu0 0
        %9738 = vmatmul.mubr.bf16.gmra.mrb[0].mxu0 %v9408
        %v9739 = vpop.f32.mrb[0].mxu0
        %v9740 = vadd.f32 %v9432, %v9739
        %v9741 = vpop.f32.mrb[0].mxu0
        %v9742 = vpop.f32.mrb[0].mxu0
        %v9743 = vadd.f32 %v9432, %v9742
        %v9744 = vpop.f32.mrb[0].mxu0
        %9745 = vmatprep.mubr.bf16.mxu0 0
        %9746 = vmatmul.mubr.bf16.gmra.mrb[0].mxu0 %v9409
        %v9747 = vpop.f32.mrb[0].mxu0
        %v9748 = vadd.f32 %v9432, %v9747
        %v9749 = vpop.f32.mrb[0].mxu0
        %v9750 = vpop.f32.mrb[0].mxu0
        %v9751 = vadd.f32 %v9432, %v9750
        %v9752 = vpop.f32.mrb[0].mxu0
        %9753 = vmatprep.mubr.bf16.mxu0 0
        %9754 = vmatmul.mubr.bf16.gmra.mrb[0].mxu0 %v9410
        %v9755 = vpop.f32.mrb[0].mxu0
        %v9756 = vadd.f32 %v9432, %v9755
        %v9757 = vpop.f32.mrb[0].mxu0
        %v9758 = vpop.f32.mrb[0].mxu0
        %v9759 = vadd.f32 %v9432, %v9758
        %v9760 = vpop.f32.mrb[0].mxu0
        %9761 = vmatprep.mubr.bf16.mxu0 0
        %9762 = vmatmul.mubr.bf16.gmra.mrb[0].mxu0 %v9411
        %v9763 = vpop.f32.mrb[0].mxu0
        %v9764 = vadd.f32 %v9432, %v9763
        %v9765 = vpop.f32.mrb[0].mxu0
        %v9766 = vpop.f32.mrb[0].mxu0
        %v9767 = vpop.f32.mrb[0].mxu0
        %9768 = vdwg.mxu0
        %v9769 = vmax.f32 %v9516, 0.0
        %v9770 = vmax.f32 %v9519, 0.0
        %v9771 = vmax.f32 %v9524, 0.0
        %v9772 = vmax.f32 %v9527, 0.0
        %v9773 = vmax.f32 %v9532, 0.0
        %v9774 = vmax.f32 %v9535, 0.0
        %v9775 = vmax.f32 %v9540, 0.0
        %v9776 = vmax.f32 %v9543, 0.0
        %v9777 = vmax.f32 %v9548, 0.0
        %v9778 = vmax.f32 %v9551, 0.0
        %v9779 = vmax.f32 %v9556, 0.0
        %v9780 = vmax.f32 %v9559, 0.0
        %v9781 = vmax.f32 %v9564, 0.0
        %v9782 = vmax.f32 %v9567, 0.0
        %v9783 = vmax.f32 %v9572, 0.0
        %v9784 = vmax.f32 %v9575, 0.0
        %v9785 = vmax.f32 %v9580, 0.0
        %v9786 = vmax.f32 %v9583, 0.0
        %v9787 = vmax.f32 %v9588, 0.0
        %v9788 = vmax.f32 %v9591, 0.0
        %v9789 = vmax.f32 %v9596, 0.0
        %v9790 = vmax.f32 %v9599, 0.0
        %v9791 = vmax.f32 %v9604, 0.0
        %v9792 = vmax.f32 %v9607, 0.0
        %v9793 = vmax.f32 %v9612, 0.0
        %v9794 = vmax.f32 %v9615, 0.0
        %v9795 = vmax.f32 %v9620, 0.0
        %v9796 = vmax.f32 %v9623, 0.0
        %v9797 = vmax.f32 %v9628, 0.0
        %v9798 = vmax.f32 %v9631, 0.0
        %v9799 = vmax.f32 %v9636, 0.0
        %v9800 = vmax.f32 %v9639, 0.0
        %v9801 = vmax.f32 %v9644, 0.0
        %v9802 = vmax.f32 %v9647, 0.0
        %v9803 = vmax.f32 %v9652, 0.0
        %v9804 = vmax.f32 %v9655, 0.0
        %v9805 = vmax.f32 %v9660, 0.0
        %v9806 = vmax.f32 %v9663, 0.0
        %v9807 = vmax.f32 %v9668, 0.0
        %v9808 = vmax.f32 %v9671, 0.0
        %v9809 = vmax.f32 %v9676, 0.0
        %v9810 = vmax.f32 %v9679, 0.0
        %v9811 = vmax.f32 %v9684, 0.0
        %v9812 = vmax.f32 %v9687, 0.0
        %v9813 = vmax.f32 %v9692, 0.0
        %v9814 = vmax.f32 %v9695, 0.0
        %v9815 = vmax.f32 %v9700, 0.0
        %v9816 = vmax.f32 %v9703, 0.0
        %v9817 = vmax.f32 %v9708, 0.0
        %v9818 = vmax.f32 %v9711, 0.0
        %v9819 = vmax.f32 %v9716, 0.0
        %v9820 = vmax.f32 %v9719, 0.0
        %v9821 = vmax.f32 %v9724, 0.0
        %v9822 = vmax.f32 %v9727, 0.0
        %v9823 = vmax.f32 %v9732, 0.0
        %v9824 = vmax.f32 %v9735, 0.0
        %v9825 = vmax.f32 %v9740, 0.0
        %v9826 = vmax.f32 %v9743, 0.0
        %v9827 = vmax.f32 %v9748, 0.0
        %v9828 = vmax.f32 %v9751, 0.0
        %v9829 = vmax.f32 %v9756, 0.0
        %v9830 = vmax.f32 %v9759, 0.0
        %v9831 = vmax.f32 %v9764, 0.0
        %v9832 = vpack.c.bf16 %v9770, %v9769
        %v9833 = vpack.c.bf16 %v9772, %v9771
        %v9834 = vpack.c.bf16 %v9774, %v9773
        %v9835 = vpack.c.bf16 %v9776, %v9775
        %v9836 = vpack.c.bf16 %v9778, %v9777
        %v9837 = vpack.c.bf16 %v9780, %v9779
        %v9838 = vpack.c.bf16 %v9782, %v9781
        %v9839 = vpack.c.bf16 %v9784, %v9783
        %v9840 = vpack.c.bf16 %v9786, %v9785
        %v9841 = vpack.c.bf16 %v9788, %v9787
        %v9842 = vpack.c.bf16 %v9790, %v9789
        %v9843 = vpack.c.bf16 %v9792, %v9791
        %v9844 = vpack.c.bf16 %v9794, %v9793
        %v9845 = vpack.c.bf16 %v9796, %v9795
        %v9846 = vpack.c.bf16 %v9798, %v9797
        %v9847 = vpack.c.bf16 %v9800, %v9799
        %v9848 = vpack.c.bf16 %v9802, %v9801
        %v9849 = vpack.c.bf16 %v9804, %v9803
        %v9850 = vpack.c.bf16 %v9806, %v9805
        %v9851 = vpack.c.bf16 %v9808, %v9807
        %v9852 = vpack.c.bf16 %v9810, %v9809
        %v9853 = vpack.c.bf16 %v9812, %v9811
        %v9854 = vpack.c.bf16 %v9814, %v9813
        %v9855 = vpack.c.bf16 %v9816, %v9815
        %v9856 = vpack.c.bf16 %v9818, %v9817
        %v9857 = vpack.c.bf16 %v9820, %v9819
        %v9858 = vpack.c.bf16 %v9822, %v9821
        %v9859 = vpack.c.bf16 %v9824, %v9823
        %v9860 = vpack.c.bf16 %v9826, %v9825
        %v9861 = vpack.c.bf16 %v9828, %v9827
        %v9862 = vpack.c.bf16 %v9830, %v9829
        %v9863 = vpack.c.bf16 %v9831, %v9831
        %v9864 = vld [vmem:[%s3 + $0xf0] sm:$0xf]
        %v9865 = vld [vmem:[%s3 + $0xf4] sm:$0xf]
        %v9866 = vld [vmem:[%s3 + $0xf8] sm:$0xf]
        %v9867 = vld [vmem:[%s3 + $0xfc] sm:$0xf]
        %v9868 = vld [vmem:[%s3 + $0x100] sm:$0xf]
        %v9869 = vld [vmem:[%s3 + $0x104] sm:$0xf]
        %v9870 = vld [vmem:[%s3 + $0x108] sm:$0xf]
        %v9871 = vld [vmem:[%s3 + $0x10c] sm:$0xf]
        %v9872 = vld [vmem:[%s3 + $0x110] sm:$0xf]
        %v9873 = vld [vmem:[%s3 + $0x114] sm:$0xf]
        %v9874 = vld [vmem:[%s3 + $0x118] sm:$0xf]
        %v9875 = vld [vmem:[%s3 + $0x11c] sm:$0xf]
        %v9876 = vld [vmem:[%s3 + $0x120] sm:$0xf]
        %v9877 = vld [vmem:[%s3 + $0x124] sm:$0xf]
        %v9878 = vld [vmem:[%s3 + $0x128] sm:$0xf]
        %v9879 = vld [vmem:[%s3 + $0x12c] sm:$0xf]
        %v9880 = vld [vmem:[%s4 + $0x2] sm:$0x1]
        %v9881 = vlaneseq
        %v9882 = vshrl.u32 %v9881, 7
        %v9883 = vsub.s32 0, %v9882
        %v9884 = vrot.slane %v9880, %v9883
        %v9901 = vunpack.c.l.b16 %v9864
        %v9902 = vunpack.c.l.b16 %v9865
        %v9903 = vunpack.c.l.b16 %v9866
        %v9904 = vunpack.c.l.b16 %v9867
        %v9905 = vunpack.c.l.b16 %v9868
        %v9906 = vunpack.c.l.b16 %v9869
        %v9907 = vunpack.c.l.b16 %v9870
        %v9908 = vunpack.c.l.b16 %v9871
        %v9909 = vunpack.c.l.b16 %v9872
        %v9910 = vunpack.c.l.b16 %v9873
        %v9911 = vunpack.c.l.b16 %v9874
        %v9912 = vunpack.c.l.b16 %v9875
        %v9913 = vunpack.c.l.b16 %v9876
        %v9914 = vunpack.c.l.b16 %v9877
        %v9915 = vunpack.c.l.b16 %v9878
        %v9916 = vunpack.c.l.b16 %v9879
        %v9917 = vpack.c.b16 %v9902, %v9901
        %v9918 = vpack.c.b16 %v9904, %v9903
        %v9919 = vpack.c.b16 %v9906, %v9905
        %v9920 = vpack.c.b16 %v9908, %v9907
        %v9921 = vpack.c.b16 %v9910, %v9909
        %v9922 = vpack.c.b16 %v9912, %v9911
        %v9923 = vpack.c.b16 %v9914, %v9913
        %v9924 = vpack.c.b16 %v9916, %v9915
        %9933 = vmatprep.subr.bf16.mxu0 0
        %9934 = vmatpush1.bf16.msra.mxu0 %v9917
        %9935 = vmatprep.subr.bf16.mxu0 0
        %9936 = vmatpush1.bf16.msra.mxu0 %v9918
        %9937 = vmatprep.subr.bf16.mxu0 0
        %9938 = vmatpush1.bf16.msra.mxu0 %v9919
        %9939 = vmatprep.subr.bf16.mxu0 0
        %9940 = vmatpush1.bf16.msra.mxu0 %v9920
        %9941 = vmatprep.subr.bf16.mxu0 0
        %9942 = vmatpush1.bf16.msra.mxu0 %v9921
        %9943 = vmatprep.subr.bf16.mxu0 0
        %9944 = vmatpush1.bf16.msra.mxu0 %v9922
        %9945 = vmatprep.subr.bf16.mxu0 0
        %9946 = vmatpush1.bf16.msra.mxu0 %v9923
        %9947 = vmatprep.subr.bf16.mxu0 0
        %9948 = vmatpush1.bf16.msra.mxu0 %v9924
        %9949 = vmatprep.subr.bf16.mxu0 0
        %9950 = vmatpush1.bf16.msra.mxu0 0
        %9951 = vmatprep.subr.bf16.mxu0 0
        %9952 = vmatpush1.bf16.msra.mxu0 0
        %9953 = vmatprep.subr.bf16.mxu0 0
        %9954 = vmatpush1.bf16.msra.mxu0 0
        %9955 = vmatprep.subr.bf16.mxu0 0
        %9956 = vmatpush1.bf16.msra.mxu0 0
        %9957 = vmatprep.subr.bf16.mxu0 0
        %9958 = vmatpush1.bf16.msra.mxu0 0
        %9959 = vmatprep.subr.bf16.mxu0 0
        %9960 = vmatpush1.bf16.msra.mxu0 0
        %9961 = vmatprep.subr.bf16.mxu0 0
        %9962 = vmatpush1.bf16.msra.mxu0 0
        %9963 = vmatprep.subr.bf16.mxu0 0
        %9964 = vmatpush1.bf16.msra.mxu0 0
        %9965 = vmatprep.mubr.bf16.mxu0 0
        %9966 = vmatmul.mubr.bf16.gmra.mrb[0].mxu0 %v9832
        %v9967 = vpop.f32.mrb[0].mxu0
        %v9968 = vadd.f32 %v9884, %v9967
        %v9969 = vpop.f32.mrb[0].mxu0
        %v9970 = vpop.f32.mrb[0].mxu0
        %v9971 = vadd.f32 %v9884, %v9970
        %v9972 = vpop.f32.mrb[0].mxu0
        %9973 = vmatprep.mubr.bf16.mxu0 0
        %9974 = vmatmul.mubr.bf16.gmra.mrb[0].mxu0 %v9833
        %v9975 = vpop.f32.mrb[0].mxu0
        %v9976 = vadd.f32 %v9884, %v9975
        %v9977 = vpop.f32.mrb[0].mxu0
        %v9978 = vpop.f32.mrb[0].mxu0
        %v9979 = vadd.f32 %v9884, %v9978
        %v9980 = vpop.f32.mrb[0].mxu0
        %9981 = vmatprep.mubr.bf16.mxu0 0
        %9982 = vmatmul.mubr.bf16.gmra.mrb[0].mxu0 %v9834
        %v9983 = vpop.f32.mrb[0].mxu0
        %v9984 = vadd.f32 %v9884, %v9983
        %v9985 = vpop.f32.mrb[0].mxu0
        %v9986 = vpop.f32.mrb[0].mxu0
        %v9987 = vadd.f32 %v9884, %v9986
        %v9988 = vpop.f32.mrb[0].mxu0
        %9989 = vmatprep.mubr.bf16.mxu0 0
        %9990 = vmatmul.mubr.bf16.gmra.mrb[0].mxu0 %v9835
        %v9991 = vpop.f32.mrb[0].mxu0
        %v9992 = vadd.f32 %v9884, %v9991
        %v9993 = vpop.f32.mrb[0].mxu0
        %v9994 = vpop.f32.mrb[0].mxu0
        %v9995 = vadd.f32 %v9884, %v9994
        %v9996 = vpop.f32.mrb[0].mxu0
        %9997 = vmatprep.mubr.bf16.mxu0 0
        %9998 = vmatmul.mubr.bf16.gmra.mrb[0].mxu0 %v9836
        %v9999 = vpop.f32.mrb[0].mxu0
        %v10000 = vadd.f32 %v9884, %v9999
        %v10001 = vpop.f32.mrb[0].mxu0
        %v10002 = vpop.f32.mrb[0].mxu0
        %v10003 = vadd.f32 %v9884, %v10002
        %v10004 = vpop.f32.mrb[0].mxu0
        %10005 = vmatprep.mubr.bf16.mxu0 0
        %10006 = vmatmul.mubr.bf16.gmra.mrb[0].mxu0 %v9837
        %v10007 = vpop.f32.mrb[0].mxu0
        %v10008 = vadd.f32 %v9884, %v10007
        %v10009 = vpop.f32.mrb[0].mxu0
        %v10010 = vpop.f32.mrb[0].mxu0
        %v10011 = vadd.f32 %v9884, %v10010
        %v10012 = vpop.f32.mrb[0].mxu0
        %10013 = vmatprep.mubr.bf16.mxu0 0
        %10014 = vmatmul.mubr.bf16.gmra.mrb[0].mxu0 %v9838
        %v10015 = vpop.f32.mrb[0].mxu0
        %v10016 = vadd.f32 %v9884, %v10015
        %v10017 = vpop.f32.mrb[0].mxu0
        %v10018 = vpop.f32.mrb[0].mxu0
        %v10019 = vadd.f32 %v9884, %v10018
        %v10020 = vpop.f32.mrb[0].mxu0
        %10021 = vmatprep.mubr.bf16.mxu0 0
        %10022 = vmatmul.mubr.bf16.gmra.mrb[0].mxu0 %v9839
        %v10023 = vpop.f32.mrb[0].mxu0
        %v10024 = vadd.f32 %v9884, %v10023
        %v10025 = vpop.f32.mrb[0].mxu0
        %v10026 = vpop.f32.mrb[0].mxu0
        %v10027 = vadd.f32 %v9884, %v10026
        %v10028 = vpop.f32.mrb[0].mxu0
        %10029 = vmatprep.mubr.bf16.mxu0 0
        %10030 = vmatmul.mubr.bf16.gmra.mrb[0].mxu0 %v9840
        %v10031 = vpop.f32.mrb[0].mxu0
        %v10032 = vadd.f32 %v9884, %v10031
        %v10033 = vpop.f32.mrb[0].mxu0
        %v10034 = vpop.f32.mrb[0].mxu0
        %v10035 = vadd.f32 %v9884, %v10034
        %v10036 = vpop.f32.mrb[0].mxu0
        %10037 = vmatprep.mubr.bf16.mxu0 0
        %10038 = vmatmul.mubr.bf16.gmra.mrb[0].mxu0 %v9841
        %v10039 = vpop.f32.mrb[0].mxu0
        %v10040 = vadd.f32 %v9884, %v10039
        %v10041 = vpop.f32.mrb[0].mxu0
        %v10042 = vpop.f32.mrb[0].mxu0
        %v10043 = vadd.f32 %v9884, %v10042
        %v10044 = vpop.f32.mrb[0].mxu0
        %10045 = vmatprep.mubr.bf16.mxu0 0
        %10046 = vmatmul.mubr.bf16.gmra.mrb[0].mxu0 %v9842
        %v10047 = vpop.f32.mrb[0].mxu0
        %v10048 = vadd.f32 %v9884, %v10047
        %v10049 = vpop.f32.mrb[0].mxu0
        %v10050 = vpop.f32.mrb[0].mxu0
        %v10051 = vadd.f32 %v9884, %v10050
        %v10052 = vpop.f32.mrb[0].mxu0
        %10053 = vmatprep.mubr.bf16.mxu0 0
        %10054 = vmatmul.mubr.bf16.gmra.mrb[0].mxu0 %v9843
        %v10055 = vpop.f32.mrb[0].mxu0
        %v10056 = vadd.f32 %v9884, %v10055
        %v10057 = vpop.f32.mrb[0].mxu0
        %v10058 = vpop.f32.mrb[0].mxu0
        %v10059 = vadd.f32 %v9884, %v10058
        %v10060 = vpop.f32.mrb[0].mxu0
        %10061 = vmatprep.mubr.bf16.mxu0 0
        %10062 = vmatmul.mubr.bf16.gmra.mrb[0].mxu0 %v9844
        %v10063 = vpop.f32.mrb[0].mxu0
        %v10064 = vadd.f32 %v9884, %v10063
        %v10065 = vpop.f32.mrb[0].mxu0
        %v10066 = vpop.f32.mrb[0].mxu0
        %v10067 = vadd.f32 %v9884, %v10066
        %v10068 = vpop.f32.mrb[0].mxu0
        %10069 = vmatprep.mubr.bf16.mxu0 0
        %10070 = vmatmul.mubr.bf16.gmra.mrb[0].mxu0 %v9845
        %v10071 = vpop.f32.mrb[0].mxu0
        %v10072 = vadd.f32 %v9884, %v10071
        %v10073 = vpop.f32.mrb[0].mxu0
        %v10074 = vpop.f32.mrb[0].mxu0
        %v10075 = vadd.f32 %v9884, %v10074
        %v10076 = vpop.f32.mrb[0].mxu0
        %10077 = vmatprep.mubr.bf16.mxu0 0
        %10078 = vmatmul.mubr.bf16.gmra.mrb[0].mxu0 %v9846
        %v10079 = vpop.f32.mrb[0].mxu0
        %v10080 = vadd.f32 %v9884, %v10079
        %v10081 = vpop.f32.mrb[0].mxu0
        %v10082 = vpop.f32.mrb[0].mxu0
        %v10083 = vadd.f32 %v9884, %v10082
        %v10084 = vpop.f32.mrb[0].mxu0
        %10085 = vmatprep.mubr.bf16.mxu0 0
        %10086 = vmatmul.mubr.bf16.gmra.mrb[0].mxu0 %v9847
        %v10087 = vpop.f32.mrb[0].mxu0
        %v10088 = vadd.f32 %v9884, %v10087
        %v10089 = vpop.f32.mrb[0].mxu0
        %v10090 = vpop.f32.mrb[0].mxu0
        %v10091 = vadd.f32 %v9884, %v10090
        %v10092 = vpop.f32.mrb[0].mxu0
        %10093 = vmatprep.mubr.bf16.mxu0 0
        %10094 = vmatmul.mubr.bf16.gmra.mrb[0].mxu0 %v9848
        %v10095 = vpop.f32.mrb[0].mxu0
        %v10096 = vadd.f32 %v9884, %v10095
        %v10097 = vpop.f32.mrb[0].mxu0
        %v10098 = vpop.f32.mrb[0].mxu0
        %v10099 = vadd.f32 %v9884, %v10098
        %v10100 = vpop.f32.mrb[0].mxu0
        %10101 = vmatprep.mubr.bf16.mxu0 0
        %10102 = vmatmul.mubr.bf16.gmra.mrb[0].mxu0 %v9849
        %v10103 = vpop.f32.mrb[0].mxu0
        %v10104 = vadd.f32 %v9884, %v10103
        %v10105 = vpop.f32.mrb[0].mxu0
        %v10106 = vpop.f32.mrb[0].mxu0
        %v10107 = vadd.f32 %v9884, %v10106
        %v10108 = vpop.f32.mrb[0].mxu0
        %10109 = vmatprep.mubr.bf16.mxu0 0
        %10110 = vmatmul.mubr.bf16.gmra.mrb[0].mxu0 %v9850
        %v10111 = vpop.f32.mrb[0].mxu0
        %v10112 = vadd.f32 %v9884, %v10111
        %v10113 = vpop.f32.mrb[0].mxu0
        %v10114 = vpop.f32.mrb[0].mxu0
        %v10115 = vadd.f32 %v9884, %v10114
        %v10116 = vpop.f32.mrb[0].mxu0
        %10117 = vmatprep.mubr.bf16.mxu0 0
        %10118 = vmatmul.mubr.bf16.gmra.mrb[0].mxu0 %v9851
        %v10119 = vpop.f32.mrb[0].mxu0
        %v10120 = vadd.f32 %v9884, %v10119
        %v10121 = vpop.f32.mrb[0].mxu0
        %v10122 = vpop.f32.mrb[0].mxu0
        %v10123 = vadd.f32 %v9884, %v10122
        %v10124 = vpop.f32.mrb[0].mxu0
        %10125 = vmatprep.mubr.bf16.mxu0 0
        %10126 = vmatmul.mubr.bf16.gmra.mrb[0].mxu0 %v9852
        %v10127 = vpop.f32.mrb[0].mxu0
        %v10128 = vadd.f32 %v9884, %v10127
        %v10129 = vpop.f32.mrb[0].mxu0
        %v10130 = vpop.f32.mrb[0].mxu0
        %v10131 = vadd.f32 %v9884, %v10130
        %v10132 = vpop.f32.mrb[0].mxu0
        %10133 = vmatprep.mubr.bf16.mxu0 0
        %10134 = vmatmul.mubr.bf16.gmra.mrb[0].mxu0 %v9853
        %v10135 = vpop.f32.mrb[0].mxu0
        %v10136 = vadd.f32 %v9884, %v10135
        %v10137 = vpop.f32.mrb[0].mxu0
        %v10138 = vpop.f32.mrb[0].mxu0
        %v10139 = vadd.f32 %v9884, %v10138
        %v10140 = vpop.f32.mrb[0].mxu0
        %10141 = vmatprep.mubr.bf16.mxu0 0
        %10142 = vmatmul.mubr.bf16.gmra.mrb[0].mxu0 %v9854
        %v10143 = vpop.f32.mrb[0].mxu0
        %v10144 = vadd.f32 %v9884, %v10143
        %v10145 = vpop.f32.mrb[0].mxu0
        %v10146 = vpop.f32.mrb[0].mxu0
        %v10147 = vadd.f32 %v9884, %v10146
        %v10148 = vpop.f32.mrb[0].mxu0
        %10149 = vmatprep.mubr.bf16.mxu0 0
        %10150 = vmatmul.mubr.bf16.gmra.mrb[0].mxu0 %v9855
        %v10151 = vpop.f32.mrb[0].mxu0
        %v10152 = vadd.f32 %v9884, %v10151
        %v10153 = vpop.f32.mrb[0].mxu0
        %v10154 = vpop.f32.mrb[0].mxu0
        %v10155 = vadd.f32 %v9884, %v10154
        %v10156 = vpop.f32.mrb[0].mxu0
        %10157 = vmatprep.mubr.bf16.mxu0 0
        %10158 = vmatmul.mubr.bf16.gmra.mrb[0].mxu0 %v9856
        %v10159 = vpop.f32.mrb[0].mxu0
        %v10160 = vadd.f32 %v9884, %v10159
        %v10161 = vpop.f32.mrb[0].mxu0
        %v10162 = vpop.f32.mrb[0].mxu0
        %v10163 = vadd.f32 %v9884, %v10162
        %v10164 = vpop.f32.mrb[0].mxu0
        %10165 = vmatprep.mubr.bf16.mxu0 0
        %10166 = vmatmul.mubr.bf16.gmra.mrb[0].mxu0 %v9857
        %v10167 = vpop.f32.mrb[0].mxu0
        %v10168 = vadd.f32 %v9884, %v10167
        %v10169 = vpop.f32.mrb[0].mxu0
        %v10170 = vpop.f32.mrb[0].mxu0
        %v10171 = vadd.f32 %v9884, %v10170
        %v10172 = vpop.f32.mrb[0].mxu0
        %10173 = vmatprep.mubr.bf16.mxu0 0
        %10174 = vmatmul.mubr.bf16.gmra.mrb[0].mxu0 %v9858
        %v10175 = vpop.f32.mrb[0].mxu0
        %v10176 = vadd.f32 %v9884, %v10175
        %v10177 = vpop.f32.mrb[0].mxu0
        %v10178 = vpop.f32.mrb[0].mxu0
        %v10179 = vadd.f32 %v9884, %v10178
        %v10180 = vpop.f32.mrb[0].mxu0
        %10181 = vmatprep.mubr.bf16.mxu0 0
        %10182 = vmatmul.mubr.bf16.gmra.mrb[0].mxu0 %v9859
        %v10183 = vpop.f32.mrb[0].mxu0
        %v10184 = vadd.f32 %v9884, %v10183
        %v10185 = vpop.f32.mrb[0].mxu0
        %v10186 = vpop.f32.mrb[0].mxu0
        %v10187 = vadd.f32 %v9884, %v10186
        %v10188 = vpop.f32.mrb[0].mxu0
        %10189 = vmatprep.mubr.bf16.mxu0 0
        %10190 = vmatmul.mubr.bf16.gmra.mrb[0].mxu0 %v9860
        %v10191 = vpop.f32.mrb[0].mxu0
        %v10192 = vadd.f32 %v9884, %v10191
        %v10193 = vpop.f32.mrb[0].mxu0
        %v10194 = vpop.f32.mrb[0].mxu0
        %v10195 = vadd.f32 %v9884, %v10194
        %v10196 = vpop.f32.mrb[0].mxu0
        %10197 = vmatprep.mubr.bf16.mxu0 0
        %10198 = vmatmul.mubr.bf16.gmra.mrb[0].mxu0 %v9861
        %v10199 = vpop.f32.mrb[0].mxu0
        %v10200 = vadd.f32 %v9884, %v10199
        %v10201 = vpop.f32.mrb[0].mxu0
        %v10202 = vpop.f32.mrb[0].mxu0
        %v10203 = vadd.f32 %v9884, %v10202
        %v10204 = vpop.f32.mrb[0].mxu0
        %10205 = vmatprep.mubr.bf16.mxu0 0
        %10206 = vmatmul.mubr.bf16.gmra.mrb[0].mxu0 %v9862
        %v10207 = vpop.f32.mrb[0].mxu0
        %v10208 = vadd.f32 %v9884, %v10207
        %v10209 = vpop.f32.mrb[0].mxu0
        %v10210 = vpop.f32.mrb[0].mxu0
        %v10211 = vadd.f32 %v9884, %v10210
        %v10212 = vpop.f32.mrb[0].mxu0
        %10213 = vmatprep.mubr.bf16.mxu0 0
        %10214 = vmatmul.mubr.bf16.gmra.mrb[0].mxu0 %v9863
        %v10215 = vpop.f32.mrb[0].mxu0
        %v10216 = vadd.f32 %v9884, %v10215
        %v10217 = vpop.f32.mrb[0].mxu0
        %v10218 = vpop.f32.mrb[0].mxu0
        %v10219 = vpop.f32.mrb[0].mxu0
        %10220 = vdwg.mxu0
        %v10221 = vpack.c.bf16 %v9971, %v9968
        %v10222 = vpack.c.bf16 %v9979, %v9976
        %v10223 = vpack.c.bf16 %v9987, %v9984
        %v10224 = vpack.c.bf16 %v9995, %v9992
        %v10225 = vpack.c.bf16 %v10003, %v10000
        %v10226 = vpack.c.bf16 %v10011, %v10008
        %v10227 = vpack.c.bf16 %v10019, %v10016
        %v10228 = vpack.c.bf16 %v10027, %v10024
        %v10229 = vpack.c.bf16 %v10035, %v10032
        %v10230 = vpack.c.bf16 %v10043, %v10040
        %v10231 = vpack.c.bf16 %v10051, %v10048
        %v10232 = vpack.c.bf16 %v10059, %v10056
        %v10233 = vpack.c.bf16 %v10067, %v10064
        %v10234 = vpack.c.bf16 %v10075, %v10072
        %v10235 = vpack.c.bf16 %v10083, %v10080
        %v10236 = vpack.c.bf16 %v10091, %v10088
        %v10237 = vpack.c.bf16 %v10099, %v10096
        %v10238 = vpack.c.bf16 %v10107, %v10104
        %v10239 = vpack.c.bf16 %v10115, %v10112
        %v10240 = vpack.c.bf16 %v10123, %v10120
        %v10241 = vpack.c.bf16 %v10131, %v10128
        %v10242 = vpack.c.bf16 %v10139, %v10136
        %v10243 = vpack.c.bf16 %v10147, %v10144
        %v10244 = vpack.c.bf16 %v10155, %v10152
        %v10245 = vpack.c.bf16 %v10163, %v10160
        %v10246 = vpack.c.bf16 %v10171, %v10168
        %v10247 = vpack.c.bf16 %v10179, %v10176
        %v10248 = vpack.c.bf16 %v10187, %v10184
        %v10249 = vpack.c.bf16 %v10195, %v10192
        %v10250 = vpack.c.bf16 %v10203, %v10200
        %v10251 = vpack.c.bf16 %v10211, %v10208
        %v10252 = vpack.c.bf16 %v10216, %v10216
        %v10285 = vunpack.c.l.b16 %v10221
        %v10286 = vunpack.c.h.b16 %v10221
        %v10287 = vunpack.c.l.b16 %v10222
        %v10288 = vunpack.c.h.b16 %v10222
        %v10289 = vunpack.c.l.b16 %v10223
        %v10290 = vunpack.c.h.b16 %v10223
        %v10291 = vunpack.c.l.b16 %v10224
        %v10292 = vunpack.c.h.b16 %v10224
        %v10293 = vunpack.c.l.b16 %v10225
        %v10294 = vunpack.c.h.b16 %v10225
        %v10295 = vunpack.c.l.b16 %v10226
        %v10296 = vunpack.c.h.b16 %v10226
        %v10297 = vunpack.c.l.b16 %v10227
        %v10298 = vunpack.c.h.b16 %v10227
        %v10299 = vunpack.c.l.b16 %v10228
        %v10300 = vunpack.c.h.b16 %v10228
        %v10301 = vunpack.c.l.b16 %v10229
        %v10302 = vunpack.c.h.b16 %v10229
        %v10303 = vunpack.c.l.b16 %v10230
        %v10304 = vunpack.c.h.b16 %v10230
        %v10305 = vunpack.c.l.b16 %v10231
        %v10306 = vunpack.c.h.b16 %v10231
        %v10307 = vunpack.c.l.b16 %v10232
        %v10308 = vunpack.c.h.b16 %v10232
        %v10309 = vunpack.c.l.b16 %v10233
        %v10310 = vunpack.c.h.b16 %v10233
        %v10311 = vunpack.c.l.b16 %v10234
        %v10312 = vunpack.c.h.b16 %v10234
        %v10313 = vunpack.c.l.b16 %v10235
        %v10314 = vunpack.c.h.b16 %v10235
        %v10315 = vunpack.c.l.b16 %v10236
        %v10316 = vunpack.c.h.b16 %v10236
        %v10317 = vunpack.c.l.b16 %v10237
        %v10318 = vunpack.c.h.b16 %v10237
        %v10319 = vunpack.c.l.b16 %v10238
        %v10320 = vunpack.c.h.b16 %v10238
        %v10321 = vunpack.c.l.b16 %v10239
        %v10322 = vunpack.c.h.b16 %v10239
        %v10323 = vunpack.c.l.b16 %v10240
        %v10324 = vunpack.c.h.b16 %v10240
        %v10325 = vunpack.c.l.b16 %v10241
        %v10326 = vunpack.c.h.b16 %v10241
        %v10327 = vunpack.c.l.b16 %v10242
        %v10328 = vunpack.c.h.b16 %v10242
        %v10329 = vunpack.c.l.b16 %v10243
        %v10330 = vunpack.c.h.b16 %v10243
        %v10331 = vunpack.c.l.b16 %v10244
        %v10332 = vunpack.c.h.b16 %v10244
        %v10333 = vunpack.c.l.b16 %v10245
        %v10334 = vunpack.c.h.b16 %v10245
        %v10335 = vunpack.c.l.b16 %v10246
        %v10336 = vunpack.c.h.b16 %v10246
        %v10337 = vunpack.c.l.b16 %v10247
        %v10338 = vunpack.c.h.b16 %v10247
        %v10339 = vunpack.c.l.b16 %v10248
        %v10340 = vunpack.c.h.b16 %v10248
        %v10341 = vunpack.c.l.b16 %v10249
        %v10342 = vunpack.c.h.b16 %v10249
        %v10343 = vunpack.c.l.b16 %v10250
        %v10344 = vunpack.c.h.b16 %v10250
        %v10345 = vunpack.c.l.b16 %v10251
        %v10346 = vunpack.c.h.b16 %v10251
        %v10347 = vunpack.c.l.b16 %v10252
        %v10348 = vpack.c.b16 %v10285, %v10285
        %v10349 = vpack.c.b16 %v10286, %v10286
        %v10350 = vpack.c.b16 %v10287, %v10287
        %v10351 = vpack.c.b16 %v10288, %v10288
        %v10352 = vpack.c.b16 %v10289, %v10289
        %v10353 = vpack.c.b16 %v10290, %v10290
        %v10354 = vpack.c.b16 %v10291, %v10291
        %v10355 = vpack.c.b16 %v10292, %v10292
        %v10356 = vpack.c.b16 %v10293, %v10293
        %v10357 = vpack.c.b16 %v10294, %v10294
        %v10358 = vpack.c.b16 %v10295, %v10295
        %v10359 = vpack.c.b16 %v10296, %v10296
        %v10360 = vpack.c.b16 %v10297, %v10297
        %v10361 = vpack.c.b16 %v10298, %v10298
        %v10362 = vpack.c.b16 %v10299, %v10299
        %v10363 = vpack.c.b16 %v10300, %v10300
        %v10364 = vpack.c.b16 %v10301, %v10301
        %v10365 = vpack.c.b16 %v10302, %v10302
        %v10366 = vpack.c.b16 %v10303, %v10303
        %v10367 = vpack.c.b16 %v10304, %v10304
        %v10368 = vpack.c.b16 %v10305, %v10305
        %v10369 = vpack.c.b16 %v10306, %v10306
        %v10370 = vpack.c.b16 %v10307, %v10307
        %v10371 = vpack.c.b16 %v10308, %v10308
        %v10372 = vpack.c.b16 %v10309, %v10309
        %v10373 = vpack.c.b16 %v10310, %v10310
        %v10374 = vpack.c.b16 %v10311, %v10311
        %v10375 = vpack.c.b16 %v10312, %v10312
        %v10376 = vpack.c.b16 %v10313, %v10313
        %v10377 = vpack.c.b16 %v10314, %v10314
        %v10378 = vpack.c.b16 %v10315, %v10315
        %v10379 = vpack.c.b16 %v10316, %v10316
        %v10380 = vpack.c.b16 %v10317, %v10317
        %v10381 = vpack.c.b16 %v10318, %v10318
        %v10382 = vpack.c.b16 %v10319, %v10319
        %v10383 = vpack.c.b16 %v10320, %v10320
        %v10384 = vpack.c.b16 %v10321, %v10321
        %v10385 = vpack.c.b16 %v10322, %v10322
        %v10386 = vpack.c.b16 %v10323, %v10323
        %v10387 = vpack.c.b16 %v10324, %v10324
        %v10388 = vpack.c.b16 %v10325, %v10325
        %v10389 = vpack.c.b16 %v10326, %v10326
        %v10390 = vpack.c.b16 %v10327, %v10327
        %v10391 = vpack.c.b16 %v10328, %v10328
        %v10392 = vpack.c.b16 %v10329, %v10329
        %v10393 = vpack.c.b16 %v10330, %v10330
        %v10394 = vpack.c.b16 %v10331, %v10331
        %v10395 = vpack.c.b16 %v10332, %v10332
        %v10396 = vpack.c.b16 %v10333, %v10333
        %v10397 = vpack.c.b16 %v10334, %v10334
        %v10398 = vpack.c.b16 %v10335, %v10335
        %v10399 = vpack.c.b16 %v10336, %v10336
        %v10400 = vpack.c.b16 %v10337, %v10337
        %v10401 = vpack.c.b16 %v10338, %v10338
        %v10402 = vpack.c.b16 %v10339, %v10339
        %v10403 = vpack.c.b16 %v10340, %v10340
        %v10404 = vpack.c.b16 %v10341, %v10341
        %v10405 = vpack.c.b16 %v10342, %v10342
        %v10406 = vpack.c.b16 %v10343, %v10343
        %v10407 = vpack.c.b16 %v10344, %v10344
        %v10408 = vpack.c.b16 %v10345, %v10345
        %v10409 = vpack.c.b16 %v10346, %v10346
        %v10410 = vpack.c.b16 %v10347, %v10347
        %10474 = vst [vmem:[%s1307] sm:$0xf] %v10348
        %10475 = vst [vmem:[%s1307 + $0x4] sm:$0xf] %v10349
        %10476 = vst [vmem:[%s1307 + $0x8] sm:$0xf] %v10350
        %10477 = vst [vmem:[%s1307 + $0xc] sm:$0xf] %v10351
        %10478 = vst [vmem:[%s1307 + $0x10] sm:$0xf] %v10352
        %10479 = vst [vmem:[%s1307 + $0x14] sm:$0xf] %v10353
        %10480 = vst [vmem:[%s1307 + $0x18] sm:$0xf] %v10354
        %10481 = vst [vmem:[%s1307 + $0x1c] sm:$0xf] %v10355
        %10482 = vst [vmem:[%s1307 + $0x20] sm:$0xf] %v10356
        %10483 = vst [vmem:[%s1307 + $0x24] sm:$0xf] %v10357
        %10484 = vst [vmem:[%s1307 + $0x28] sm:$0xf] %v10358
        %10485 = vst [vmem:[%s1307 + $0x2c] sm:$0xf] %v10359
        %10486 = vst [vmem:[%s1307 + $0x30] sm:$0xf] %v10360
        %10487 = vst [vmem:[%s1307 + $0x34] sm:$0xf] %v10361
        %10488 = vst [vmem:[%s1307 + $0x38] sm:$0xf] %v10362
        %10489 = vst [vmem:[%s1307 + $0x3c] sm:$0xf] %v10363
        %10490 = vst [vmem:[%s1307 + $0x40] sm:$0xf] %v10364
        %10491 = vst [vmem:[%s1307 + $0x44] sm:$0xf] %v10365
        %10492 = vst [vmem:[%s1307 + $0x48] sm:$0xf] %v10366
        %10493 = vst [vmem:[%s1307 + $0x4c] sm:$0xf] %v10367
        %10494 = vst [vmem:[%s1307 + $0x50] sm:$0xf] %v10368
        %10495 = vst [vmem:[%s1307 + $0x54] sm:$0xf] %v10369
        %10496 = vst [vmem:[%s1307 + $0x58] sm:$0xf] %v10370
        %10497 = vst [vmem:[%s1307 + $0x5c] sm:$0xf] %v10371
        %10498 = vst [vmem:[%s1307 + $0x60] sm:$0xf] %v10372
        %10499 = vst [vmem:[%s1307 + $0x64] sm:$0xf] %v10373
        %10500 = vst [vmem:[%s1307 + $0x68] sm:$0xf] %v10374
        %10501 = vst [vmem:[%s1307 + $0x6c] sm:$0xf] %v10375
        %10502 = vst [vmem:[%s1307 + $0x70] sm:$0xf] %v10376
        %10503 = vst [vmem:[%s1307 + $0x74] sm:$0xf] %v10377
        %10504 = vst [vmem:[%s1307 + $0x78] sm:$0xf] %v10378
        %10505 = vst [vmem:[%s1307 + $0x7c] sm:$0xf] %v10379
        %10506 = vst [vmem:[%s1307 + $0x80] sm:$0xf] %v10380
        %10507 = vst [vmem:[%s1307 + $0x84] sm:$0xf] %v10381
        %10508 = vst [vmem:[%s1307 + $0x88] sm:$0xf] %v10382
        %10509 = vst [vmem:[%s1307 + $0x8c] sm:$0xf] %v10383
        %10510 = vst [vmem:[%s1307 + $0x90] sm:$0xf] %v10384
        %10511 = vst [vmem:[%s1307 + $0x94] sm:$0xf] %v10385
        %10512 = vst [vmem:[%s1307 + $0x98] sm:$0xf] %v10386
        %10513 = vst [vmem:[%s1307 + $0x9c] sm:$0xf] %v10387
        %10514 = vst [vmem:[%s1307 + $0xa0] sm:$0xf] %v10388
        %10515 = vst [vmem:[%s1307 + $0xa4] sm:$0xf] %v10389
        %10516 = vst [vmem:[%s1307 + $0xa8] sm:$0xf] %v10390
        %10517 = vst [vmem:[%s1307 + $0xac] sm:$0xf] %v10391
        %10518 = vst [vmem:[%s1307 + $0xb0] sm:$0xf] %v10392
        %10519 = vst [vmem:[%s1307 + $0xb4] sm:$0xf] %v10393
        %10520 = vst [vmem:[%s1307 + $0xb8] sm:$0xf] %v10394
        %10521 = vst [vmem:[%s1307 + $0xbc] sm:$0xf] %v10395
        %10522 = vst [vmem:[%s1307 + $0xc0] sm:$0xf] %v10396
        %10523 = vst [vmem:[%s1307 + $0xc4] sm:$0xf] %v10397
        %10524 = vst [vmem:[%s1307 + $0xc8] sm:$0xf] %v10398
        %10525 = vst [vmem:[%s1307 + $0xcc] sm:$0xf] %v10399
        %10526 = vst [vmem:[%s1307 + $0xd0] sm:$0xf] %v10400
        %10527 = vst [vmem:[%s1307 + $0xd4] sm:$0xf] %v10401
        %10528 = vst [vmem:[%s1307 + $0xd8] sm:$0xf] %v10402
        %10529 = vst [vmem:[%s1307 + $0xdc] sm:$0xf] %v10403
        %10530 = vst [vmem:[%s1307 + $0xe0] sm:$0xf] %v10404
        %10531 = vst [vmem:[%s1307 + $0xe4] sm:$0xf] %v10405
        %10532 = vst [vmem:[%s1307 + $0xe8] sm:$0xf] %v10406
        %10533 = vst [vmem:[%s1307 + $0xec] sm:$0xf] %v10407
        %10534 = vst [vmem:[%s1307 + $0xf0] sm:$0xf] %v10408
        %10535 = vst [vmem:[%s1307 + $0xf4] sm:$0xf] %v10409
        %10536 = vst [vmem:[%s1307 + $0xf8] sm:$0xf] %v10410
        %s10537 = smul.u32 63, %s17
        %p10538 = scmp.lt.s32.totalorder %s10537, 125
        %s10539 = scalar_select %p10538, %s10537, 125
        %s10540 = smul.addr %s10539, 4
        %s10541 = scalar_lea.vmem %s5, %s10540
        // Predicated region
        $region86: #{basicnet_forward.1} parent=76 // pred_check
          %p10542 = pneg %p150
        $region87: #{basicnet_forward.1} parent=76 // pred_check_branch
          %10544 = sbr.rel (%p10542) target = $region89
        $region88: #{basicnet_forward.1} parent=76 // pred_region
          %s10545 = smul.u32 63, %s17
        $region89: #{basicnet_forward.1} parent=76 // pred_fallthru
          _
      $region77: #{basicnet_forward.1} parent=5 // pred_fallthru
        _
      %p10546 = scmp.le.s32.totalorder 2, %s12
      // Predicated region
      $region90: #{basicnet_forward.1} parent=5 // pred_check
        %p10547 = pneg %p10546
      $region91: #{basicnet_forward.1} parent=5 // pred_check_branch
        %10549 = sbr.rel (%p10547) target = $region93
      $region92: #{basicnet_forward.1} parent=5 // pred_region
        %s10550 = ssub.s32 %s12, 2
        // Predicated region
        $region94: #{basicnet_forward.1} parent=92 // pred_check
          %p10551 = pneg %p156
        $region95: #{basicnet_forward.1} parent=92 // pred_check_branch
          %10553 = sbr.rel (%p10551) target = $region97
        $region96: #{basicnet_forward.1} parent=92 // pred_region
          %s10554 = smul.u32 63, %s18
          %p10555 = scmp.lt.s32.totalorder %s10554, 125
          %s10556 = scalar_select %p10555, %s10554, 125
          %s10557 = smul.addr %s10556, 4
          %s10558 = scalar_lea.vmem %s5, %s10557
        $region97: #{basicnet_forward.1} parent=92 // pred_fallthru
          _
      $region93: #{basicnet_forward.1} parent=5 // pred_fallthru
        _
    $region6: #{basicnet_forward.1} parent=1 // loop_footer
      %s16 = sadd.s32 1, %s12
    $region7: #{basicnet_forward.1} parent=1 // loop_footer_branch
      %11 = sbr.rel target = $region3
    $region8: #{basicnet_forward.1} parent=1 // loop_exit
      _
    %10559 = vsyncpa [#allocation3], 1
    %s10560 = scalar_lea.sflag [#allocation3], 1
    %10561 = vsyncpa %s10560, 1

</llo_original>
